<compile_context>
chip_gen: v6e
topology: v6e:2x2x1
jax: 0.10.0
libtpu: 0.0.40
codegen_flags: <defaults>
</compile_context>

<pallas_src>
import jax
import jax.numpy as jnp
import numpy as np
from jax.experimental import pallas as pl
from jax.experimental.pallas import tpu as pltpu

EPS = 1e-5
HIGHEST = jax.lax.Precision.HIGHEST


# ---------------------------------------------------------------------------
# Fused conv kernel factory
# ---------------------------------------------------------------------------
def _make_conv_kernel(td, H, W, *, apply_relu, has_bias, emit_stats):
    """Fused [BN-affine -> (ReLU) -> halo-zero -> 3x3x3 conv -> (bias) -> (stats)]."""
    M = td * H * W

    def kernel(*refs):
        x_ref, scale_ref, shift_ref, mask_ref, w_ref = refs[:5]
        i = 5
        b_ref = None
        if has_bias:
            b_ref = refs[i]
            i += 1
        y_ref = refs[i]
        i += 1
        stats_ref = None
        if emit_stats:
            stats_ref = refs[i]
            i += 1
        patch_ref = refs[i]                       # VMEM scratch (M, 9*Cin) bf16

        Cin = x_ref.shape[-1]
        Cout = y_ref.shape[-1]

        # ---- fused prologue: previous BN affine + ReLU + halo re-zeroing ----
        x = x_ref[...].astype(jnp.float32)        # (td+2, H+2, W+2, Cin)
        xn = x * scale_ref[...] + shift_ref[...]
        if apply_relu:
            xn = jnp.maximum(xn, 0.0)
        xn = (xn * mask_ref[...]).astype(jnp.bfloat16)

        # ---- conv: fold (kh, kw) taps into the contraction dim --------------
        # patch: (M, 9*Cin) im2col slab, one MXU matmul per kd => K = 9*Cin.
        acc = jnp.zeros((M, Cout), jnp.float32)
        for kd in range(3):
            for kh in range(3):
                for kw in range(3):
                    j = kh * 3 + kw
                    win = xn[kd:kd + td, kh:kh + H, kw:kw + W, :]
                    patch_ref[:, j * Cin:(j + 1) * Cin] = win.reshape(M, Cin)
            acc = acc + jnp.dot(patch_ref[...], w_ref[kd],
                                preferred_element_type=jnp.float32)

        if has_bias:
            acc = acc + b_ref[...]
        y_ref[...] = acc.astype(y_ref.dtype)

        # ---- fused epilogue: partial BatchNorm statistics --------------------
        if emit_stats:
            s = jnp.sum(acc, axis=0, keepdims=True)
            sq = jnp.sum(acc * acc, axis=0, keepdims=True)
            stats_ref[...] = jnp.concatenate([s, sq], axis=0)

    return kernel


# ---------------------------------------------------------------------------
# Host-side helpers (tiny XLA ops only)
# ---------------------------------------------------------------------------
def _make_slabs(x, td):
    """(N, D, H, W, C) -> zero-padded, depth-slabbed (N, S, td+2, H+2, W+2, C)."""
    N, D, H, W, C = x.shape
    S = D // td
    xp = jnp.pad(x, ((0, 0), (1, 1), (1, 1), (1, 1), (0, 0)))
    return jnp.stack([xp[:, s * td: s * td + td + 2] for s in range(S)], axis=1)


def _make_halo_mask(D, H, W, td):
    """1.0 on real voxels, 0.0 on the conv zero-padding planes.  (S, td+2, H+2, W+2, 1)."""
    S = D // td
    d = np.arange(td + 2)[None, :] + td * np.arange(S)[:, None]   # global padded depth idx
    vd = (d >= 1) & (d <= D)
    vh = (np.arange(H + 2) >= 1) & (np.arange(H + 2) <= H)
    vw = (np.arange(W + 2) >= 1) & (np.arange(W + 2) <= W)
    m = vd[:, :, None, None] & vh[None, None, :, None] & vw[None, None, None, :]
    return jnp.asarray(m[..., None].astype(np.float32))


def conv3x3x3_pallas(x, scale, shift, w, bias=None, *, td,
                     apply_relu, emit_stats, out_dtype):
    """Fused (BN-affine -> ReLU -> conv3x3x3 [-> bias] [-> BN partial stats]).

    x     : (N, D, H, W, Cin) raw (pre-BN) activation, bf16
    scale : (Cin,) f32, shift : (Cin,) f32  (identity for the first conv)
    w     : (3, 9*Cin, Cout) bf16,  bias : (Cout,) f32 or None
    Returns y (N, D, H, W, Cout) in out_dtype and, if emit_stats, per-slab
    partial BN statistics (N, S, 2, Cout) f32 (sum / sum-of-squares).
    """
    N, D, H, W, Cin = x.shape
    Cout = w.shape[-1]
    assert D % td == 0, f"depth {D} must be divisible by depth tile {td}"
    S = D // td
    TDp, Hp, Wp = td + 2, H + 2, W + 2
    M = td * H * W

    slabs = _make_slabs(x, td)                 # (N, S, TDp, Hp, Wp, Cin) bf16
    mask = _make_halo_mask(D, H, W, td)        # (S, TDp, Hp, Wp, 1) f32

    kernel = _make_conv_kernel(td, H, W, apply_relu=apply_relu,
                               has_bias=bias is not None, emit_stats=emit_stats)

    in_specs = [
        pl.BlockSpec((None, None, TDp, Hp, Wp, Cin),
                     lambda n, s: (n, s, 0, 0, 0, 0)),
        pl.BlockSpec((1, Cin), lambda n, s: (0, 0)),
        pl.BlockSpec((1, Cin), lambda n, s: (0, 0)),
        pl.BlockSpec((None, TDp, Hp, Wp, 1), lambda n, s: (s, 0, 0, 0, 0)),
        pl.BlockSpec((3, 9 * Cin, Cout), lambda n, s: (0, 0, 0)),
    ]
    args = [slabs,
            scale.reshape(1, Cin).astype(jnp.float32),
            shift.reshape(1, Cin).astype(jnp.float32),
            mask, w]
    if bias is not None:
        in_specs.append(pl.BlockSpec((1, Cout), lambda n, s: (0, 0)))
        args.append(bias.reshape(1, Cout).astype(jnp.float32))

    y_shape = jax.ShapeDtypeStruct((N, S, M, Cout), out_dtype)
    y_spec = pl.BlockSpec((None, None, M, Cout), lambda n, s: (n, s, 0, 0))
    if emit_stats:
        out_shape = (y_shape, jax.ShapeDtypeStruct((N, S, 2, Cout), jnp.float32))
        out_specs = (y_spec,
                     pl.BlockSpec((None, None, 2, Cout), lambda n, s: (n, s, 0, 0)))
    else:
        out_shape = y_shape
        out_specs = y_spec

    out = pl.pallas_call(
        kernel,
        grid=(N, S),
        in_specs=in_specs,
        out_specs=out_specs,
        out_shape=out_shape,
        scratch_shapes=[pltpu.VMEM((M, 9 * Cin), jnp.bfloat16)],
        compiler_params=pltpu.CompilerParams(
            dimension_semantics=("parallel", "parallel")),
    )(*args)

    if emit_stats:
        y, stats = out
    else:
        y, stats = out, None
    return y.reshape(N, D, H, W, Cout), stats


def _bn_scale_shift(stats, count, gamma, beta, eps=EPS):
    """Fold batch statistics into a per-channel affine: y = x*scale + shift."""
    tot = jnp.sum(stats, axis=(0, 1))          # (2, C)
    mean = tot[0] / count
    # Biased variance (PyTorch training-mode normalization).  E[x^2]-E[x]^2 in
    # f32 is fine at these magnitudes; clamp guards tiny negative rounding.
    var = jnp.maximum(tot[1] / count - mean * mean, 0.0)
    scale = gamma * jax.lax.rsqrt(var + eps)
    shift = beta - mean * scale
    return scale, shift


# ---------------------------------------------------------------------------
# Parameters (deterministic, synthetic; PyTorch-layout copies kept for the ref)
# ---------------------------------------------------------------------------
def _prep_weight(w_oidhw, cin_pad, cout_pad):
    """PyTorch (Cout, Cin, 3,3,3) -> (3, 9*cin_pad, cout_pad) bf16.

    Row order within each kd is (kh, kw, cin), matching the kernel's im2col
    packing.  Padded channels are zero.
    """
    co, ci, k = w_oidhw.shape[0], w_oidhw.shape[1], w_oidhw.shape[2]
    wt = jnp.transpose(w_oidhw, (2, 3, 4, 1, 0))          # (kd, kh, kw, ci, co)
    wt = jnp.pad(wt, ((0, 0), (0, 0), (0, 0),
                      (0, cin_pad - ci), (0, cout_pad - co)))
    return wt.reshape(k, k * k * cin_pad, cout_pad).astype(jnp.bfloat16)


def init_params(key, n_in=1, n_out=1, filters=(32, 64), k=3):
    ks = jax.random.split(key, 6)
    raw = {
        "w1": 0.05 * jax.random.normal(ks[0], (filters[0], n_in, k, k, k), jnp.float32),
        "b1": 0.01 * jax.random.normal(ks[1], (filters[0],), jnp.float32),
        "g1": jnp.ones((filters[0],), jnp.float32),
        "be1": jnp.zeros((filters[0],), jnp.float32),
        "w2": 0.05 * jax.random.normal(ks[2], (filters[1], filters[0], k, k, k), jnp.float32),
        "b2": 0.01 * jax.random.normal(ks[3], (filters[1],), jnp.float32),
        "g2": jnp.ones((filters[1],), jnp.float32),
        "be2": jnp.zeros((filters[1],), jnp.float32),
        "w3": 0.05 * jax.random.normal(ks[4], (n_out, filters[1], k, k, k), jnp.float32),
        "b3": 0.01 * jax.random.normal(ks[5], (n_out,), jnp.float32),
    }
    cin_pad = 8    # pad Cin=1 -> 8 (zero lanes; zero weight rows => exact)
    cout_pad = 8   # pad final Cout=1 -> 8; sliced back after the last conv
    kparams = {
        "cin_pad": cin_pad,
        "n_out": n_out,
        "w1": _prep_weight(raw["w1"], cin_pad, filters[0]),
        "g1": raw["g1"], "be1": raw["be1"],
        "w2": _prep_weight(raw["w2"], filters[0], filters[1]),
        "g2": raw["g2"], "be2": raw["be2"],
        "w3": _prep_weight(raw["w3"], filters[1], cout_pad),
        "b3": jnp.pad(raw["b3"], (0, cout_pad - n_out)),
        # conv1/conv2 biases are intentionally dropped on the kernel path:
        # a conv bias immediately followed by training-mode BatchNorm cancels.
    }
    return raw, kparams


# ---------------------------------------------------------------------------
# Forward pass (Pallas) and pure-JAX f32 reference
# ---------------------------------------------------------------------------
def cnn_head_forward(x_ncdhw, kp, *, td=4):
    N, C0, D, H, W = x_ncdhw.shape
    cin_pad = kp["cin_pad"]
    x = jnp.transpose(x_ncdhw, (0, 2, 3, 4, 1)).astype(jnp.bfloat16)  # -> NDHWC
    x = jnp.pad(x, ((0, 0),) * 4 + ((0, cin_pad - C0),))
    count = float(N * D * H * W)

    ident_s = jnp.ones((cin_pad,), jnp.float32)
    ident_b = jnp.zeros((cin_pad,), jnp.float32)

    # conv1 (bias folded into BN) + fused BN1 partial statistics
    y1, st1 = conv3x3x3_pallas(x, ident_s, ident_b, kp["w1"], td=td,
                               apply_relu=False, emit_stats=True,
                               out_dtype=jnp.bfloat16)
    sc1, sh1 = _bn_scale_shift(st1, count, kp["g1"], kp["be1"])

    # BN1-affine + ReLU fused into conv2 prologue; BN2 stats in its epilogue
    y2, st2 = conv3x3x3_pallas(y1, sc1, sh1, kp["w2"], td=td,
                               apply_relu=True, emit_stats=True,
                               out_dtype=jnp.bfloat16)
    sc2, sh2 = _bn_scale_shift(st2, count, kp["g2"], kp["be2"])

    # BN2-affine + ReLU fused into conv3 prologue; conv3 keeps its bias
    y3, _ = conv3x3x3_pallas(y2, sc2, sh2, kp["w3"], bias=kp["b3"], td=td,
                             apply_relu=True, emit_stats=False,
                             out_dtype=jnp.float32)
    y3 = y3[..., : kp["n_out"]]
    return jnp.transpose(y3, (0, 4, 1, 2, 3))  # back to NCDHW


def cnn_head_reference(x_ncdhw, raw):
    x = jnp.transpose(x_ncdhw, (0, 2, 3, 4, 1)).astype(jnp.float32)

    def conv(x, w_oidhw, b):
        w = jnp.transpose(w_oidhw, (2, 3, 4, 1, 0))  # DHWIO
        y = jax.lax.conv_general_dilated(
            x, w, (1, 1, 1), [(1, 1)] * 3,
            dimension_numbers=("NDHWC", "DHWIO", "NDHWC"), precision=HIGHEST)
        return y + b

    def bn_relu(x, g, b):
        mean = jnp.mean(x, axis=(0, 1, 2, 3))
        var = jnp.mean((x - mean) ** 2, axis=(0, 1, 2, 3))
        return jnp.maximum((x - mean) / jnp.sqrt(var + EPS) * g + b, 0.0)

    x = bn_relu(conv(x, raw["w1"], raw["b1"]), raw["g1"], raw["be1"])
    x = bn_relu(conv(x, raw["w2"], raw["b2"]), raw["g2"], raw["be2"])
    x = conv(x, raw["w3"], raw["b3"])
    return jnp.transpose(x, (0, 4, 1, 2, 3))


# ---------------------------------------------------------------------------
if __name__ == "__main__":
    key = jax.random.PRNGKey(0)
    k_x, k_p = jax.random.split(key)

    N, C, D, H, W = 2, 1, 8, 8, 8  # PyTorch NCDHW, module defaults
    x = jax.random.normal(k_x, (N, C, D, H, W), jnp.float32)

    raw, kparams = init_params(k_p)

    out = jax.block_until_ready(cnn_head_forward(x, kparams, td=4))
    assert out.shape == (N, 1, D, H, W), out.shape

    ref = jax.block_until_ready(cnn_head_reference(x, raw))
    out_np = np.asarray(out, np.float32)
    ref_np = np.asarray(ref, np.float32)

    # Kernel path uses bf16 activations/weights vs an f32/HIGHEST reference:
    # loose elementwise bound plus a tight aggregate relative-RMS check.
    np.testing.assert_allclose(out_np, ref_np, atol=1e-1, rtol=1e-1)
    rel_rms = np.sqrt(np.mean((out_np - ref_np) ** 2)) / (
        np.sqrt(np.mean(ref_np ** 2)) + 1e-12)
    assert rel_rms < 3e-2, f"relative RMS error too large: {rel_rms}"

    print("KERNEL_OK")
</pallas_src>

<mosaic_0001>
module attributes {stable_mosaic.version = 11 : i64} {
  func.func @kernel(%arg0: i32, %arg1: i32, %arg2: memref<1x1x6x10x10x8xbf16, #tpu.memory_space<vmem>>, %arg3: memref<1x8xf32, #tpu.memory_space<vmem>>, %arg4: memref<1x8xf32, #tpu.memory_space<vmem>>, %arg5: memref<1x6x10x10x1xf32, #tpu.memory_space<vmem>>, %arg6: memref<3x72x32xbf16, #tpu.memory_space<vmem>>, %arg7: memref<1x1x256x32xbf16, #tpu.memory_space<vmem>>, %arg8: memref<1x1x2x32xf32, #tpu.memory_space<vmem>>, %arg9: memref<256x72xbf16, #tpu.memory_space<vmem>>) attributes {dimension_semantics = [#tpu.dimension_semantics<parallel>, #tpu.dimension_semantics<parallel>], iteration_bounds = array<i64: 2, 2>, scalar_prefetch = 0 : i64, scratch_operands = 1 : i64, tpu.core_type = #tpu.core_type<tc>, window_params = [{transform_indices = @transform_0, window_bounds = array<i64: 1, 1, 6, 10, 10, 8>}, {pipeline_mode = #tpu.pipeline_mode<synchronous>, transform_indices = @transform_1, window_bounds = array<i64: 1, 8>}, {pipeline_mode = #tpu.pipeline_mode<synchronous>, transform_indices = @transform_2, window_bounds = array<i64: 1, 8>}, {transform_indices = @transform_3, window_bounds = array<i64: 1, 6, 10, 10, 1>}, {pipeline_mode = #tpu.pipeline_mode<synchronous>, transform_indices = @transform_4, window_bounds = array<i64: 3, 72, 32>}, {transform_indices = @transform_5, window_bounds = array<i64: 1, 1, 256, 32>}, {transform_indices = @transform_6, window_bounds = array<i64: 1, 1, 2, 32>}]} {
    %c0 = arith.constant 0 : index
    %c0_0 = arith.constant 0 : index
    %c0_1 = arith.constant 0 : index
    %c0_2 = arith.constant 0 : index
    %c0_3 = arith.constant 0 : index
    %c0_4 = arith.constant 0 : index
    %0 = vector.load %arg2[%c0, %c0_0, %c0_1, %c0_2, %c0_3, %c0_4] : memref<1x1x6x10x10x8xbf16, #tpu.memory_space<vmem>>, vector<1x1x6x10x10x8xbf16>
    %1 = vector.shape_cast %0 : vector<1x1x6x10x10x8xbf16> to vector<6x10x10x8xbf16>
    %2 = arith.extf %1 : vector<6x10x10x8xbf16> to vector<6x10x10x8xf32>
    %c0_5 = arith.constant 0 : index
    %c0_6 = arith.constant 0 : index
    %3 = vector.load %arg3[%c0_5, %c0_6] : memref<1x8xf32, #tpu.memory_space<vmem>>, vector<1x8xf32>
    %4 = vector.shape_cast %3 : vector<1x8xf32> to vector<1x1x1x8xf32>
    %5 = vector.broadcast %4 : vector<1x1x1x8xf32> to vector<6x10x10x8xf32>
    %6 = arith.mulf %2, %5 : vector<6x10x10x8xf32>
    %c0_7 = arith.constant 0 : index
    %c0_8 = arith.constant 0 : index
    %7 = vector.load %arg4[%c0_7, %c0_8] : memref<1x8xf32, #tpu.memory_space<vmem>>, vector<1x8xf32>
    %8 = vector.shape_cast %7 : vector<1x8xf32> to vector<1x1x1x8xf32>
    %9 = vector.broadcast %8 : vector<1x1x1x8xf32> to vector<6x10x10x8xf32>
    %10 = arith.addf %6, %9 : vector<6x10x10x8xf32>
    %c0_9 = arith.constant 0 : index
    %c0_10 = arith.constant 0 : index
    %c0_11 = arith.constant 0 : index
    %c0_12 = arith.constant 0 : index
    %c0_13 = arith.constant 0 : index
    %11 = vector.load %arg5[%c0_9, %c0_10, %c0_11, %c0_12, %c0_13] : memref<1x6x10x10x1xf32, #tpu.memory_space<vmem>>, vector<1x6x10x10x1xf32>
    %12 = vector.shape_cast %11 : vector<1x6x10x10x1xf32> to vector<6x10x10x1xf32>
    %13 = vector.broadcast %12 : vector<6x10x10x1xf32> to vector<6x10x10x8xf32>
    %14 = arith.mulf %10, %13 : vector<6x10x10x8xf32>
    %15 = arith.truncf %14 : vector<6x10x10x8xf32> to vector<6x10x10x8xbf16>
    %cst = arith.constant 0.000000e+00 : f32
    %16 = vector.broadcast %cst : f32 to vector<256x32xf32>
    %17 = vector.extract_strided_slice %15 {offsets = [0, 0, 0, 0], sizes = [4, 8, 8, 8], strides = [1, 1, 1, 1]} : vector<6x10x10x8xbf16> to vector<4x8x8x8xbf16>
    %18 = vector.shape_cast %17 : vector<4x8x8x8xbf16> to vector<256x8xbf16>
    %c0_14 = arith.constant 0 : index
    %c0_15 = arith.constant 0 : index
    %19 = vector.load %arg9[%c0_14, %c0_15] : memref<256x72xbf16, #tpu.memory_space<vmem>>, vector<256x8xbf16>
    tpu.vector_store %arg9[%c0_14, %c0_15], %18 {strides = array<i32>} : memref<256x72xbf16, #tpu.memory_space<vmem>>, vector<256x8xbf16>,
    %20 = vector.extract_strided_slice %15 {offsets = [0, 0, 1, 0], sizes = [4, 8, 8, 8], strides = [1, 1, 1, 1]} : vector<6x10x10x8xbf16> to vector<4x8x8x8xbf16>
    %21 = vector.shape_cast %20 : vector<4x8x8x8xbf16> to vector<256x8xbf16>
    %c0_16 = arith.constant 0 : index
    %c8 = arith.constant 8 : index
    %22 = vector.load %arg9[%c0_16, %c8] : memref<256x72xbf16, #tpu.memory_space<vmem>>, vector<256x8xbf16>
    tpu.vector_store %arg9[%c0_16, %c8], %21 {strides = array<i32>} : memref<256x72xbf16, #tpu.memory_space<vmem>>, vector<256x8xbf16>,
    %23 = vector.extract_strided_slice %15 {offsets = [0, 0, 2, 0], sizes = [4, 8, 8, 8], strides = [1, 1, 1, 1]} : vector<6x10x10x8xbf16> to vector<4x8x8x8xbf16>
    %24 = vector.shape_cast %23 : vector<4x8x8x8xbf16> to vector<256x8xbf16>
    %c0_17 = arith.constant 0 : index
    %c16 = arith.constant 16 : index
    %25 = vector.load %arg9[%c0_17, %c16] : memref<256x72xbf16, #tpu.memory_space<vmem>>, vector<256x8xbf16>
    tpu.vector_store %arg9[%c0_17, %c16], %24 {strides = array<i32>} : memref<256x72xbf16, #tpu.memory_space<vmem>>, vector<256x8xbf16>,
    %26 = vector.extract_strided_slice %15 {offsets = [0, 1, 0, 0], sizes = [4, 8, 8, 8], strides = [1, 1, 1, 1]} : vector<6x10x10x8xbf16> to vector<4x8x8x8xbf16>
    %27 = vector.shape_cast %26 : vector<4x8x8x8xbf16> to vector<256x8xbf16>
    %c0_18 = arith.constant 0 : index
    %c24 = arith.constant 24 : index
    %28 = vector.load %arg9[%c0_18, %c24] : memref<256x72xbf16, #tpu.memory_space<vmem>>, vector<256x8xbf16>
    tpu.vector_store %arg9[%c0_18, %c24], %27 {strides = array<i32>} : memref<256x72xbf16, #tpu.memory_space<vmem>>, vector<256x8xbf16>,
    %29 = vector.extract_strided_slice %15 {offsets = [0, 1, 1, 0], sizes = [4, 8, 8, 8], strides = [1, 1, 1, 1]} : vector<6x10x10x8xbf16> to vector<4x8x8x8xbf16>
    %30 = vector.shape_cast %29 : vector<4x8x8x8xbf16> to vector<256x8xbf16>
    %c0_19 = arith.constant 0 : index
    %c32 = arith.constant 32 : index
    %31 = vector.load %arg9[%c0_19, %c32] : memref<256x72xbf16, #tpu.memory_space<vmem>>, vector<256x8xbf16>
    tpu.vector_store %arg9[%c0_19, %c32], %30 {strides = array<i32>} : memref<256x72xbf16, #tpu.memory_space<vmem>>, vector<256x8xbf16>,
    %32 = vector.extract_strided_slice %15 {offsets = [0, 1, 2, 0], sizes = [4, 8, 8, 8], strides = [1, 1, 1, 1]} : vector<6x10x10x8xbf16> to vector<4x8x8x8xbf16>
    %33 = vector.shape_cast %32 : vector<4x8x8x8xbf16> to vector<256x8xbf16>
    %c0_20 = arith.constant 0 : index
    %c40 = arith.constant 40 : index
    %34 = vector.load %arg9[%c0_20, %c40] : memref<256x72xbf16, #tpu.memory_space<vmem>>, vector<256x8xbf16>
    tpu.vector_store %arg9[%c0_20, %c40], %33 {strides = array<i32>} : memref<256x72xbf16, #tpu.memory_space<vmem>>, vector<256x8xbf16>,
    %35 = vector.extract_strided_slice %15 {offsets = [0, 2, 0, 0], sizes = [4, 8, 8, 8], strides = [1, 1, 1, 1]} : vector<6x10x10x8xbf16> to vector<4x8x8x8xbf16>
    %36 = vector.shape_cast %35 : vector<4x8x8x8xbf16> to vector<256x8xbf16>
    %c0_21 = arith.constant 0 : index
    %c48 = arith.constant 48 : index
    %37 = vector.load %arg9[%c0_21, %c48] : memref<256x72xbf16, #tpu.memory_space<vmem>>, vector<256x8xbf16>
    tpu.vector_store %arg9[%c0_21, %c48], %36 {strides = array<i32>} : memref<256x72xbf16, #tpu.memory_space<vmem>>, vector<256x8xbf16>,
    %38 = vector.extract_strided_slice %15 {offsets = [0, 2, 1, 0], sizes = [4, 8, 8, 8], strides = [1, 1, 1, 1]} : vector<6x10x10x8xbf16> to vector<4x8x8x8xbf16>
    %39 = vector.shape_cast %38 : vector<4x8x8x8xbf16> to vector<256x8xbf16>
    %c0_22 = arith.constant 0 : index
    %c56 = arith.constant 56 : index
    %40 = vector.load %arg9[%c0_22, %c56] : memref<256x72xbf16, #tpu.memory_space<vmem>>, vector<256x8xbf16>
    tpu.vector_store %arg9[%c0_22, %c56], %39 {strides = array<i32>} : memref<256x72xbf16, #tpu.memory_space<vmem>>, vector<256x8xbf16>,
    %41 = vector.extract_strided_slice %15 {offsets = [0, 2, 2, 0], sizes = [4, 8, 8, 8], strides = [1, 1, 1, 1]} : vector<6x10x10x8xbf16> to vector<4x8x8x8xbf16>
    %42 = vector.shape_cast %41 : vector<4x8x8x8xbf16> to vector<256x8xbf16>
    %c0_23 = arith.constant 0 : index
    %c64 = arith.constant 64 : index
    %43 = vector.load %arg9[%c0_23, %c64] : memref<256x72xbf16, #tpu.memory_space<vmem>>, vector<256x8xbf16>
    tpu.vector_store %arg9[%c0_23, %c64], %42 {strides = array<i32>} : memref<256x72xbf16, #tpu.memory_space<vmem>>, vector<256x8xbf16>,
    %c0_24 = arith.constant 0 : index
    %c0_25 = arith.constant 0 : index
    %44 = vector.load %arg9[%c0_24, %c0_25] : memref<256x72xbf16, #tpu.memory_space<vmem>>, vector<256x72xbf16>
    %c0_26 = arith.constant 0 : index
    %c0_27 = arith.constant 0 : index
    %c0_28 = arith.constant 0 : index
    %45 = vector.load %arg6[%c0_26, %c0_27, %c0_28] : memref<3x72x32xbf16, #tpu.memory_space<vmem>>, vector<1x72x32xbf16>
    %46 = vector.shape_cast %45 : vector<1x72x32xbf16> to vector<72x32xbf16>
    %cst_29 = arith.constant dense<0.000000e+00> : vector<256x32xf32>
    %47 = tpu.matmul %44, %46, %cst_29 {dimension_numbers = #tpu.dot_dimension_numbers<[1], [0], [0], [1], [0, 0, 1, 1], [], []>} : vector<256x72xbf16>, vector<72x32xbf16>, vector<256x32xf32> -> vector<256x32xf32>
    %48 = arith.addf %16, %47 : vector<256x32xf32>
    %49 = vector.extract_strided_slice %15 {offsets = [1, 0, 0, 0], sizes = [4, 8, 8, 8], strides = [1, 1, 1, 1]} : vector<6x10x10x8xbf16> to vector<4x8x8x8xbf16>
    %50 = vector.shape_cast %49 : vector<4x8x8x8xbf16> to vector<256x8xbf16>
    %c0_30 = arith.constant 0 : index
    %c0_31 = arith.constant 0 : index
    %51 = vector.load %arg9[%c0_30, %c0_31] : memref<256x72xbf16, #tpu.memory_space<vmem>>, vector<256x8xbf16>
    tpu.vector_store %arg9[%c0_30, %c0_31], %50 {strides = array<i32>} : memref<256x72xbf16, #tpu.memory_space<vmem>>, vector<256x8xbf16>,
    %52 = vector.extract_strided_slice %15 {offsets = [1, 0, 1, 0], sizes = [4, 8, 8, 8], strides = [1, 1, 1, 1]} : vector<6x10x10x8xbf16> to vector<4x8x8x8xbf16>
    %53 = vector.shape_cast %52 : vector<4x8x8x8xbf16> to vector<256x8xbf16>
    %c0_32 = arith.constant 0 : index
    %c8_33 = arith.constant 8 : index
    %54 = vector.load %arg9[%c0_32, %c8_33] : memref<256x72xbf16, #tpu.memory_space<vmem>>, vector<256x8xbf16>
    tpu.vector_store %arg9[%c0_32, %c8_33], %53 {strides = array<i32>} : memref<256x72xbf16, #tpu.memory_space<vmem>>, vector<256x8xbf16>,
    %55 = vector.extract_strided_slice %15 {offsets = [1, 0, 2, 0], sizes = [4, 8, 8, 8], strides = [1, 1, 1, 1]} : vector<6x10x10x8xbf16> to vector<4x8x8x8xbf16>
    %56 = vector.shape_cast %55 : vector<4x8x8x8xbf16> to vector<256x8xbf16>
    %c0_34 = arith.constant 0 : index
    %c16_35 = arith.constant 16 : index
    %57 = vector.load %arg9[%c0_34, %c16_35] : memref<256x72xbf16, #tpu.memory_space<vmem>>, vector<256x8xbf16>
    tpu.vector_store %arg9[%c0_34, %c16_35], %56 {strides = array<i32>} : memref<256x72xbf16, #tpu.memory_space<vmem>>, vector<256x8xbf16>,
    %58 = vector.extract_strided_slice %15 {offsets = [1, 1, 0, 0], sizes = [4, 8, 8, 8], strides = [1, 1, 1, 1]} : vector<6x10x10x8xbf16> to vector<4x8x8x8xbf16>
    %59 = vector.shape_cast %58 : vector<4x8x8x8xbf16> to vector<256x8xbf16>
    %c0_36 = arith.constant 0 : index
    %c24_37 = arith.constant 24 : index
    %60 = vector.load %arg9[%c0_36, %c24_37] : memref<256x72xbf16, #tpu.memory_space<vmem>>, vector<256x8xbf16>
    tpu.vector_store %arg9[%c0_36, %c24_37], %59 {strides = array<i32>} : memref<256x72xbf16, #tpu.memory_space<vmem>>, vector<256x8xbf16>,
    %61 = vector.extract_strided_slice %15 {offsets = [1, 1, 1, 0], sizes = [4, 8, 8, 8], strides = [1, 1, 1, 1]} : vector<6x10x10x8xbf16> to vector<4x8x8x8xbf16>
    %62 = vector.shape_cast %61 : vector<4x8x8x8xbf16> to vector<256x8xbf16>
    %c0_38 = arith.constant 0 : index
    %c32_39 = arith.constant 32 : index
    %63 = vector.load %arg9[%c0_38, %c32_39] : memref<256x72xbf16, #tpu.memory_space<vmem>>, vector<256x8xbf16>
    tpu.vector_store %arg9[%c0_38, %c32_39], %62 {strides = array<i32>} : memref<256x72xbf16, #tpu.memory_space<vmem>>, vector<256x8xbf16>,
    %64 = vector.extract_strided_slice %15 {offsets = [1, 1, 2, 0], sizes = [4, 8, 8, 8], strides = [1, 1, 1, 1]} : vector<6x10x10x8xbf16> to vector<4x8x8x8xbf16>
    %65 = vector.shape_cast %64 : vector<4x8x8x8xbf16> to vector<256x8xbf16>
    %c0_40 = arith.constant 0 : index
    %c40_41 = arith.constant 40 : index
    %66 = vector.load %arg9[%c0_40, %c40_41] : memref<256x72xbf16, #tpu.memory_space<vmem>>, vector<256x8xbf16>
    tpu.vector_store %arg9[%c0_40, %c40_41], %65 {strides = array<i32>} : memref<256x72xbf16, #tpu.memory_space<vmem>>, vector<256x8xbf16>,
    %67 = vector.extract_strided_slice %15 {offsets = [1, 2, 0, 0], sizes = [4, 8, 8, 8], strides = [1, 1, 1, 1]} : vector<6x10x10x8xbf16> to vector<4x8x8x8xbf16>
    %68 = vector.shape_cast %67 : vector<4x8x8x8xbf16> to vector<256x8xbf16>
    %c0_42 = arith.constant 0 : index
    %c48_43 = arith.constant 48 : index
    %69 = vector.load %arg9[%c0_42, %c48_43] : memref<256x72xbf16, #tpu.memory_space<vmem>>, vector<256x8xbf16>
    tpu.vector_store %arg9[%c0_42, %c48_43], %68 {strides = array<i32>} : memref<256x72xbf16, #tpu.memory_space<vmem>>, vector<256x8xbf16>,
    %70 = vector.extract_strided_slice %15 {offsets = [1, 2, 1, 0], sizes = [4, 8, 8, 8], strides = [1, 1, 1, 1]} : vector<6x10x10x8xbf16> to vector<4x8x8x8xbf16>
    %71 = vector.shape_cast %70 : vector<4x8x8x8xbf16> to vector<256x8xbf16>
    %c0_44 = arith.constant 0 : index
    %c56_45 = arith.constant 56 : index
    %72 = vector.load %arg9[%c0_44, %c56_45] : memref<256x72xbf16, #tpu.memory_space<vmem>>, vector<256x8xbf16>
    tpu.vector_store %arg9[%c0_44, %c56_45], %71 {strides = array<i32>} : memref<256x72xbf16, #tpu.memory_space<vmem>>, vector<256x8xbf16>,
    %73 = vector.extract_strided_slice %15 {offsets = [1, 2, 2, 0], sizes = [4, 8, 8, 8], strides = [1, 1, 1, 1]} : vector<6x10x10x8xbf16> to vector<4x8x8x8xbf16>
    %74 = vector.shape_cast %73 : vector<4x8x8x8xbf16> to vector<256x8xbf16>
    %c0_46 = arith.constant 0 : index
    %c64_47 = arith.constant 64 : index
    %75 = vector.load %arg9[%c0_46, %c64_47] : memref<256x72xbf16, #tpu.memory_space<vmem>>, vector<256x8xbf16>
    tpu.vector_store %arg9[%c0_46, %c64_47], %74 {strides = array<i32>} : memref<256x72xbf16, #tpu.memory_space<vmem>>, vector<256x8xbf16>,
    %c0_48 = arith.constant 0 : index
    %c0_49 = arith.constant 0 : index
    %76 = vector.load %arg9[%c0_48, %c0_49] : memref<256x72xbf16, #tpu.memory_space<vmem>>, vector<256x72xbf16>
    %c1 = arith.constant 1 : index
    %c0_50 = arith.constant 0 : index
    %c0_51 = arith.constant 0 : index
    %77 = vector.load %arg6[%c1, %c0_50, %c0_51] : memref<3x72x32xbf16, #tpu.memory_space<vmem>>, vector<1x72x32xbf16>
    %78 = vector.shape_cast %77 : vector<1x72x32xbf16> to vector<72x32xbf16>
    %cst_52 = arith.constant dense<0.000000e+00> : vector<256x32xf32>
    %79 = tpu.matmul %76, %78, %cst_52 {dimension_numbers = #tpu.dot_dimension_numbers<[1], [0], [0], [1], [0, 0, 1, 1], [], []>} : vector<256x72xbf16>, vector<72x32xbf16>, vector<256x32xf32> -> vector<256x32xf32>
    %80 = arith.addf %48, %79 : vector<256x32xf32>
    %81 = vector.extract_strided_slice %15 {offsets = [2, 0, 0, 0], sizes = [4, 8, 8, 8], strides = [1, 1, 1, 1]} : vector<6x10x10x8xbf16> to vector<4x8x8x8xbf16>
    %82 = vector.shape_cast %81 : vector<4x8x8x8xbf16> to vector<256x8xbf16>
    %c0_53 = arith.constant 0 : index
    %c0_54 = arith.constant 0 : index
    %83 = vector.load %arg9[%c0_53, %c0_54] : memref<256x72xbf16, #tpu.memory_space<vmem>>, vector<256x8xbf16>
    tpu.vector_store %arg9[%c0_53, %c0_54], %82 {strides = array<i32>} : memref<256x72xbf16, #tpu.memory_space<vmem>>, vector<256x8xbf16>,
    %84 = vector.extract_strided_slice %15 {offsets = [2, 0, 1, 0], sizes = [4, 8, 8, 8], strides = [1, 1, 1, 1]} : vector<6x10x10x8xbf16> to vector<4x8x8x8xbf16>
    %85 = vector.shape_cast %84 : vector<4x8x8x8xbf16> to vector<256x8xbf16>
    %c0_55 = arith.constant 0 : index
    %c8_56 = arith.constant 8 : index
    %86 = vector.load %arg9[%c0_55, %c8_56] : memref<256x72xbf16, #tpu.memory_space<vmem>>, vector<256x8xbf16>
    tpu.vector_store %arg9[%c0_55, %c8_56], %85 {strides = array<i32>} : memref<256x72xbf16, #tpu.memory_space<vmem>>, vector<256x8xbf16>,
    %87 = vector.extract_strided_slice %15 {offsets = [2, 0, 2, 0], sizes = [4, 8, 8, 8], strides = [1, 1, 1, 1]} : vector<6x10x10x8xbf16> to vector<4x8x8x8xbf16>
    %88 = vector.shape_cast %87 : vector<4x8x8x8xbf16> to vector<256x8xbf16>
    %c0_57 = arith.constant 0 : index
    %c16_58 = arith.constant 16 : index
    %89 = vector.load %arg9[%c0_57, %c16_58] : memref<256x72xbf16, #tpu.memory_space<vmem>>, vector<256x8xbf16>
    tpu.vector_store %arg9[%c0_57, %c16_58], %88 {strides = array<i32>} : memref<256x72xbf16, #tpu.memory_space<vmem>>, vector<256x8xbf16>,
    %90 = vector.extract_strided_slice %15 {offsets = [2, 1, 0, 0], sizes = [4, 8, 8, 8], strides = [1, 1, 1, 1]} : vector<6x10x10x8xbf16> to vector<4x8x8x8xbf16>
    %91 = vector.shape_cast %90 : vector<4x8x8x8xbf16> to vector<256x8xbf16>
    %c0_59 = arith.constant 0 : index
    %c24_60 = arith.constant 24 : index
    %92 = vector.load %arg9[%c0_59, %c24_60] : memref<256x72xbf16, #tpu.memory_space<vmem>>, vector<256x8xbf16>
    tpu.vector_store %arg9[%c0_59, %c24_60], %91 {strides = array<i32>} : memref<256x72xbf16, #tpu.memory_space<vmem>>, vector<256x8xbf16>,
    %93 = vector.extract_strided_slice %15 {offsets = [2, 1, 1, 0], sizes = [4, 8, 8, 8], strides = [1, 1, 1, 1]} : vector<6x10x10x8xbf16> to vector<4x8x8x8xbf16>
    %94 = vector.shape_cast %93 : vector<4x8x8x8xbf16> to vector<256x8xbf16>
    %c0_61 = arith.constant 0 : index
    %c32_62 = arith.constant 32 : index
    %95 = vector.load %arg9[%c0_61, %c32_62] : memref<256x72xbf16, #tpu.memory_space<vmem>>, vector<256x8xbf16>
    tpu.vector_store %arg9[%c0_61, %c32_62], %94 {strides = array<i32>} : memref<256x72xbf16, #tpu.memory_space<vmem>>, vector<256x8xbf16>,
    %96 = vector.extract_strided_slice %15 {offsets = [2, 1, 2, 0], sizes = [4, 8, 8, 8], strides = [1, 1, 1, 1]} : vector<6x10x10x8xbf16> to vector<4x8x8x8xbf16>
    %97 = vector.shape_cast %96 : vector<4x8x8x8xbf16> to vector<256x8xbf16>
    %c0_63 = arith.constant 0 : index
    %c40_64 = arith.constant 40 : index
    %98 = vector.load %arg9[%c0_63, %c40_64] : memref<256x72xbf16, #tpu.memory_space<vmem>>, vector<256x8xbf16>
    tpu.vector_store %arg9[%c0_63, %c40_64], %97 {strides = array<i32>} : memref<256x72xbf16, #tpu.memory_space<vmem>>, vector<256x8xbf16>,
    %99 = vector.extract_strided_slice %15 {offsets = [2, 2, 0, 0], sizes = [4, 8, 8, 8], strides = [1, 1, 1, 1]} : vector<6x10x10x8xbf16> to vector<4x8x8x8xbf16>
    %100 = vector.shape_cast %99 : vector<4x8x8x8xbf16> to vector<256x8xbf16>
    %c0_65 = arith.constant 0 : index
    %c48_66 = arith.constant 48 : index
    %101 = vector.load %arg9[%c0_65, %c48_66] : memref<256x72xbf16, #tpu.memory_space<vmem>>, vector<256x8xbf16>
    tpu.vector_store %arg9[%c0_65, %c48_66], %100 {strides = array<i32>} : memref<256x72xbf16, #tpu.memory_space<vmem>>, vector<256x8xbf16>,
    %102 = vector.extract_strided_slice %15 {offsets = [2, 2, 1, 0], sizes = [4, 8, 8, 8], strides = [1, 1, 1, 1]} : vector<6x10x10x8xbf16> to vector<4x8x8x8xbf16>
    %103 = vector.shape_cast %102 : vector<4x8x8x8xbf16> to vector<256x8xbf16>
    %c0_67 = arith.constant 0 : index
    %c56_68 = arith.constant 56 : index
    %104 = vector.load %arg9[%c0_67, %c56_68] : memref<256x72xbf16, #tpu.memory_space<vmem>>, vector<256x8xbf16>
    tpu.vector_store %arg9[%c0_67, %c56_68], %103 {strides = array<i32>} : memref<256x72xbf16, #tpu.memory_space<vmem>>, vector<256x8xbf16>,
    %105 = vector.extract_strided_slice %15 {offsets = [2, 2, 2, 0], sizes = [4, 8, 8, 8], strides = [1, 1, 1, 1]} : vector<6x10x10x8xbf16> to vector<4x8x8x8xbf16>
    %106 = vector.shape_cast %105 : vector<4x8x8x8xbf16> to vector<256x8xbf16>
    %c0_69 = arith.constant 0 : index
    %c64_70 = arith.constant 64 : index
    %107 = vector.load %arg9[%c0_69, %c64_70] : memref<256x72xbf16, #tpu.memory_space<vmem>>, vector<256x8xbf16>
    tpu.vector_store %arg9[%c0_69, %c64_70], %106 {strides = array<i32>} : memref<256x72xbf16, #tpu.memory_space<vmem>>, vector<256x8xbf16>,
    %c0_71 = arith.constant 0 : index
    %c0_72 = arith.constant 0 : index
    %108 = vector.load %arg9[%c0_71, %c0_72] : memref<256x72xbf16, #tpu.memory_space<vmem>>, vector<256x72xbf16>
    %c2 = arith.constant 2 : index
    %c0_73 = arith.constant 0 : index
    %c0_74 = arith.constant 0 : index
    %109 = vector.load %arg6[%c2, %c0_73, %c0_74] : memref<3x72x32xbf16, #tpu.memory_space<vmem>>, vector<1x72x32xbf16>
    %110 = vector.shape_cast %109 : vector<1x72x32xbf16> to vector<72x32xbf16>
    %cst_75 = arith.constant dense<0.000000e+00> : vector<256x32xf32>
    %111 = tpu.matmul %108, %110, %cst_75 {dimension_numbers = #tpu.dot_dimension_numbers<[1], [0], [0], [1], [0, 0, 1, 1], [], []>} : vector<256x72xbf16>, vector<72x32xbf16>, vector<256x32xf32> -> vector<256x32xf32>
    %112 = arith.addf %80, %111 : vector<256x32xf32>
    %113 = arith.truncf %112 : vector<256x32xf32> to vector<256x32xbf16>
    %c0_76 = arith.constant 0 : index
    %c0_77 = arith.constant 0 : index
    %c0_78 = arith.constant 0 : index
    %c0_79 = arith.constant 0 : index
    %114 = vector.load %arg7[%c0_76, %c0_77, %c0_78, %c0_79] : memref<1x1x256x32xbf16, #tpu.memory_space<vmem>>, vector<1x1x256x32xbf16>
    %115 = vector.shape_cast %114 : vector<1x1x256x32xbf16> to vector<256x32xbf16>
    %116 = vector.shape_cast %113 : vector<256x32xbf16> to vector<1x1x256x32xbf16>
    tpu.vector_store %arg7[%c0_76, %c0_77, %c0_78, %c0_79], %116 {strides = array<i32>} : memref<1x1x256x32xbf16, #tpu.memory_space<vmem>>, vector<1x1x256x32xbf16>,
    %cst_80 = arith.constant dense<0.000000e+00> : vector<32xf32>
    %117 = vector.multi_reduction <add>, %112, %cst_80 [0] : vector<256x32xf32> to vector<32xf32>
    %118 = vector.shape_cast %117 : vector<32xf32> to vector<1x32xf32>
    %119 = arith.mulf %112, %112 : vector<256x32xf32>
    %cst_81 = arith.constant dense<0.000000e+00> : vector<32xf32>
    %120 = vector.multi_reduction <add>, %119, %cst_81 [0] : vector<256x32xf32> to vector<32xf32>
    %121 = vector.shape_cast %120 : vector<32xf32> to vector<1x32xf32>
    %122 = tpu.concatenate %118, %121 in 0 : vector<1x32xf32>, vector<1x32xf32> -> vector<2x32xf32>
    %c0_82 = arith.constant 0 : index
    %c0_83 = arith.constant 0 : index
    %c0_84 = arith.constant 0 : index
    %c0_85 = arith.constant 0 : index
    %123 = vector.load %arg8[%c0_82, %c0_83, %c0_84, %c0_85] : memref<1x1x2x32xf32, #tpu.memory_space<vmem>>, vector<1x1x2x32xf32>
    %124 = vector.shape_cast %123 : vector<1x1x2x32xf32> to vector<2x32xf32>
    %125 = vector.shape_cast %122 : vector<2x32xf32> to vector<1x1x2x32xf32>
    tpu.vector_store %arg8[%c0_82, %c0_83, %c0_84, %c0_85], %125 {strides = array<i32>} : memref<1x1x2x32xf32, #tpu.memory_space<vmem>>, vector<1x1x2x32xf32>,
    return
  }
  func.func @transform_0(%arg0: i32, %arg1: i32) -> (i32, i32, i32, i32, i32, i32) {
    %c0_i32 = arith.constant 0 : i32
    %c0_i32_0 = arith.constant 0 : i32
    %c0_i32_1 = arith.constant 0 : i32
    %c0_i32_2 = arith.constant 0 : i32
    %c0_i32_3 = arith.constant 0 : i32
    return %arg0, %arg1, %c0_i32, %c0_i32_0, %c0_i32_1, %c0_i32_2 : i32, i32, i32, i32, i32, i32
  }
  func.func @transform_1(%arg0: i32, %arg1: i32) -> (i32, i32) {
    %c0_i32 = arith.constant 0 : i32
    %c0_i32_0 = arith.constant 0 : i32
    %c0_i32_1 = arith.constant 0 : i32
    return %c0_i32, %c0_i32_0 : i32, i32
  }
  func.func @transform_2(%arg0: i32, %arg1: i32) -> (i32, i32) {
    %c0_i32 = arith.constant 0 : i32
    %c0_i32_0 = arith.constant 0 : i32
    %c0_i32_1 = arith.constant 0 : i32
    return %c0_i32, %c0_i32_0 : i32, i32
  }
  func.func @transform_3(%arg0: i32, %arg1: i32) -> (i32, i32, i32, i32, i32) {
    %c0_i32 = arith.constant 0 : i32
    %c0_i32_0 = arith.constant 0 : i32
    %c0_i32_1 = arith.constant 0 : i32
    %c0_i32_2 = arith.constant 0 : i32
    %c0_i32_3 = arith.constant 0 : i32
    return %arg1, %c0_i32, %c0_i32_0, %c0_i32_1, %c0_i32_2 : i32, i32, i32, i32, i32
  }
  func.func @transform_4(%arg0: i32, %arg1: i32) -> (i32, i32, i32) {
    %c0_i32 = arith.constant 0 : i32
    %c0_i32_0 = arith.constant 0 : i32
    %c0_i32_1 = arith.constant 0 : i32
    %c0_i32_2 = arith.constant 0 : i32
    return %c0_i32, %c0_i32_0, %c0_i32_1 : i32, i32, i32
  }
  func.func @transform_5(%arg0: i32, %arg1: i32) -> (i32, i32, i32, i32) {
    %c0_i32 = arith.constant 0 : i32
    %c0_i32_0 = arith.constant 0 : i32
    %c0_i32_1 = arith.constant 0 : i32
    return %arg0, %arg1, %c0_i32, %c0_i32_0 : i32, i32, i32, i32
  }
  func.func @transform_6(%arg0: i32, %arg1: i32) -> (i32, i32, i32, i32) {
    %c0_i32 = arith.constant 0 : i32
    %c0_i32_0 = arith.constant 0 : i32
    %c0_i32_1 = arith.constant 0 : i32
    return %arg0, %arg1, %c0_i32, %c0_i32_0 : i32, i32, i32, i32
  }
}

</mosaic_0001>

<llo_original>
// kernel: tpu_custom_call.1
$region0: #{tpu_custom_call.1}
  #allocation0 [shape = 'u32[]', space=smem, size = 0x4, offset = 0x4, fixed_abs, tag = 'smem constant byte address 0x4 - core index']
  #allocation1 [shape = 'u32[144,128]{1,0:T(1,128)}', space=vmem, size = 0x12000, scoped, tag = 'internal scratch']
  #allocation2 [shape = 'bf16[256,72]{1,0:T(8,128)(2,1)}', space=vmem, size = 0x10000, scoped, tag = 'scratch operand']
  %s0 = inlined_call_operand.vmem [shape: bf16[2,2,6,10,10,8], index: 0, kind: input, shape index: {}]
  %s1 = inlined_call_operand.vmem [shape: f32[1,8], index: 1, kind: input, shape index: {}]
  %s2 = inlined_call_operand.vmem [shape: f32[1,8], index: 2, kind: input, shape index: {}]
  %s3 = inlined_call_operand.vmem [shape: f32[2,6,10,10,1], index: 3, kind: input, shape index: {}]
  %s4 = inlined_call_operand.vmem [shape: bf16[3,72,32], index: 4, kind: input, shape index: {}]
  %s5 = inlined_call_operand.vmem [shape: bf16[2,2,256,32], index: 5, kind: output, shape index: {0}]
  %s6 = inlined_call_operand.hbm [shape: f32[2,2,2,32], index: 6, kind: output, shape index: {1}]
  %7 = xla_tuple %s5, %s6
  %s8 = sld [smem:[#allocation0]]
  $region61: #{tpu_custom_call.1} parent=0
    _
  %s10 = ssub.s32 1, %s8
  %s11 = scalar_select 0, %s10, %s8
  $region1: #{tpu_custom_call.1} parent=0
    #allocation3 [shape = 'u8[2048]{0}', space=vmem, size = 0x800, scoped, tag = 'output window, operand 1']
    #allocation4 [shape = 's32[2]{0}', space=sflag, size = 0x8, scoped, tag = 'scoped memory for tpu_custom_call.1']
    %12 = vsyncpa [#allocation4], 0
    %s13 = scalar_lea.sflag [#allocation4], 1
    %14 = vsyncpa %s13, 0
    loop: start=0, step=1, limit=6
    $region2: #{tpu_custom_call.1} parent=1 // loop_pre_header
      _
    $region3: #{tpu_custom_call.1} parent=1 // loop_header
      %s16 = sphi 0, %s20
      %p17 = scmp.ge.s32.totalorder %s16, 6
      %s23 = sphi 0, %s35
      %s24 = sphi 0, %s31
      %s25 = sphi 0, %s23
      %s26 = sphi 0, %s24
      %s27 = sphi 0, %s25
      %s28 = sphi 0, %s26
      %s40 = sphi 0, %s42
      %s43 = sphi 0, %s40
      %s44 = sphi 0, %s43
      %s60 = sphi 0, %s44
      %s64 = sphi 0, %s64
      %s66 = sphi 0, %s64
      %s67 = sphi 0, %s66
      %s81 = sphi 0, %s67
      %s85 = sphi 0, %s85
      %s87 = sphi 0, %s85
      %s88 = sphi 0, %s87
      %s102 = sphi 0, %s88
      %s108 = sphi 0, %s110
      %s111 = sphi 0, %s108
      %s112 = sphi 0, %s111
      %s128 = sphi 0, %s112
      %s132 = sphi 0, %s132
      %s134 = sphi 0, %s132
      %s135 = sphi 0, %s134
      %s149 = sphi 0, %s135
      %s157 = sphi 0, %s159
      %s160 = sphi 0, %s157
      %s161 = sphi 0, %s160
      %s177 = sphi 0, %s161
      %s185 = sphi 0, %s187
      %s188 = sphi 0, %s185
      %s189 = sphi 0, %s188
      %s205 = sphi 0, %s189
    $region4: #{tpu_custom_call.1} parent=1 // loop_header_branch
      %19 = sbr.rel (%p17) target = $region8
    $region5: #{tpu_custom_call.1} parent=1 // loop_body
      %s21 = ssub.s32 %s16, 1
      %s22 = ssub.s32 %s16, 2
      %s29 = sadd.s32 1, %s24
      %p30 = scmp.ge.s32.totalorder %s29, 2
      %s31 = scalar_select %p30, 0, %s29
      %s32 = sadd.s32 1, %s23
      %s33 = scalar_select %p30, %s32, %s23
      %p34 = scmp.ge.s32.totalorder %s33, 2
      %s35 = scalar_select %p34, 0, %s33
      %s36 = ssub.s32 %s23, %s35
      %s37 = ssub.s32 %s24, %s31
      %s38 = sor.u32 %s36, %s37
      %p39 = scmp.eq.s32.totalorder %s38, 0
      %s41 = sadd.s32 %s40, 1
      %s42 = scalar_select %p39, %s40, %s41
      %p45 = pneg %p39
      %p46 = scmp.eq.s32.totalorder %s16, 3
      %p47 = por %p45, %p46
      %p48 = scmp.ne.s32.totalorder %s40, %s43
      %p49 = scmp.eq.s32.totalorder %s16, 0
      %p50 = por %p48, %p49
      %p51 = scmp.ne.s32.totalorder %s40, %s43
      %p52 = scmp.eq.s32.totalorder %s21, 3
      %p53 = por %p51, %p52
      %p54 = scmp.ne.s32.totalorder %s43, %s44
      %p55 = scmp.eq.s32.totalorder %s21, 0
      %p56 = por %p54, %p55
      %p57 = scmp.ne.s32.totalorder %s43, %s44
      %p58 = scmp.eq.s32.totalorder %s22, 3
      %p59 = por %p57, %p58
      %p61 = scmp.ne.s32.totalorder %s44, %s60
      %p62 = scmp.eq.s32.totalorder %s22, 0
      %p63 = por %p61, %p62
      %s65 = sadd.s32 %s64, 1
      %p68 = scmp.eq.s32.totalorder %s16, 3
      %p69 = scmp.ne.s32.totalorder %s64, %s66
      %p70 = scmp.eq.s32.totalorder %s16, 0
      %p71 = por %p69, %p70
      %p72 = scmp.ne.s32.totalorder %s64, %s66
      %p73 = scmp.eq.s32.totalorder %s21, 3
      %p74 = por %p72, %p73
      %p75 = scmp.ne.s32.totalorder %s66, %s67
      %p76 = scmp.eq.s32.totalorder %s21, 0
      %p77 = por %p75, %p76
      %p78 = scmp.ne.s32.totalorder %s66, %s67
      %p79 = scmp.eq.s32.totalorder %s22, 3
      %p80 = por %p78, %p79
      %p82 = scmp.ne.s32.totalorder %s67, %s81
      %p83 = scmp.eq.s32.totalorder %s22, 0
      %p84 = por %p82, %p83
      %s86 = sadd.s32 %s85, 1
      %p89 = scmp.eq.s32.totalorder %s16, 3
      %p90 = scmp.ne.s32.totalorder %s85, %s87
      %p91 = scmp.eq.s32.totalorder %s16, 0
      %p92 = por %p90, %p91
      %p93 = scmp.ne.s32.totalorder %s85, %s87
      %p94 = scmp.eq.s32.totalorder %s21, 3
      %p95 = por %p93, %p94
      %p96 = scmp.ne.s32.totalorder %s87, %s88
      %p97 = scmp.eq.s32.totalorder %s21, 0
      %p98 = por %p96, %p97
      %p99 = scmp.ne.s32.totalorder %s87, %s88
      %p100 = scmp.eq.s32.totalorder %s22, 3
      %p101 = por %p99, %p100
      %p103 = scmp.ne.s32.totalorder %s88, %s102
      %p104 = scmp.eq.s32.totalorder %s22, 0
      %p105 = por %p103, %p104
      %s106 = ssub.s32 %s24, %s31
      %p107 = scmp.eq.s32.totalorder %s106, 0
      %s109 = sadd.s32 %s108, 1
      %s110 = scalar_select %p107, %s108, %s109
      %p113 = pneg %p107
      %p114 = scmp.eq.s32.totalorder %s16, 3
      %p115 = por %p113, %p114
      %p116 = scmp.ne.s32.totalorder %s108, %s111
      %p117 = scmp.eq.s32.totalorder %s16, 0
      %p118 = por %p116, %p117
      %p119 = scmp.ne.s32.totalorder %s108, %s111
      %p120 = scmp.eq.s32.totalorder %s21, 3
      %p121 = por %p119, %p120
      %p122 = scmp.ne.s32.totalorder %s111, %s112
      %p123 = scmp.eq.s32.totalorder %s21, 0
      %p124 = por %p122, %p123
      %p125 = scmp.ne.s32.totalorder %s111, %s112
      %p126 = scmp.eq.s32.totalorder %s22, 3
      %p127 = por %p125, %p126
      %p129 = scmp.ne.s32.totalorder %s112, %s128
      %p130 = scmp.eq.s32.totalorder %s22, 0
      %p131 = por %p129, %p130
      %s133 = sadd.s32 %s132, 1
      %p136 = scmp.eq.s32.totalorder %s16, 3
      %p137 = scmp.ne.s32.totalorder %s132, %s134
      %p138 = scmp.eq.s32.totalorder %s16, 0
      %p139 = por %p137, %p138
      %p140 = scmp.ne.s32.totalorder %s132, %s134
      %p141 = scmp.eq.s32.totalorder %s21, 3
      %p142 = por %p140, %p141
      %p143 = scmp.ne.s32.totalorder %s134, %s135
      %p144 = scmp.eq.s32.totalorder %s21, 0
      %p145 = por %p143, %p144
      %p146 = scmp.ne.s32.totalorder %s134, %s135
      %p147 = scmp.eq.s32.totalorder %s22, 3
      %p148 = por %p146, %p147
      %p150 = scmp.ne.s32.totalorder %s135, %s149
      %p151 = scmp.eq.s32.totalorder %s22, 0
      %p152 = por %p150, %p151
      %s153 = ssub.s32 %s23, %s35
      %s154 = ssub.s32 %s24, %s31
      %s155 = sor.u32 %s153, %s154
      %p156 = scmp.eq.s32.totalorder %s155, 0
      %s158 = sadd.s32 %s157, 1
      %s159 = scalar_select %p156, %s157, %s158
      %p162 = pneg %p156
      %p163 = scmp.eq.s32.totalorder %s16, 3
      %p164 = por %p162, %p163
      %p165 = scmp.ne.s32.totalorder %s157, %s160
      %p166 = scmp.eq.s32.totalorder %s16, 0
      %p167 = por %p165, %p166
      %p168 = scmp.ne.s32.totalorder %s157, %s160
      %p169 = scmp.eq.s32.totalorder %s21, 3
      %p170 = por %p168, %p169
      %p171 = scmp.ne.s32.totalorder %s160, %s161
      %p172 = scmp.eq.s32.totalorder %s21, 0
      %p173 = por %p171, %p172
      %p174 = scmp.ne.s32.totalorder %s160, %s161
      %p175 = scmp.eq.s32.totalorder %s22, 3
      %p176 = por %p174, %p175
      %p178 = scmp.ne.s32.totalorder %s161, %s177
      %p179 = scmp.eq.s32.totalorder %s22, 0
      %p180 = por %p178, %p179
      %s181 = ssub.s32 %s23, %s35
      %s182 = ssub.s32 %s24, %s31
      %s183 = sor.u32 %s181, %s182
      %p184 = scmp.eq.s32.totalorder %s183, 0
      %s186 = sadd.s32 %s185, 1
      %s187 = scalar_select %p184, %s185, %s186
      %p190 = pneg %p184
      %p191 = scmp.eq.s32.totalorder %s16, 3
      %p192 = por %p190, %p191
      %p193 = scmp.ne.s32.totalorder %s185, %s188
      %p194 = scmp.eq.s32.totalorder %s16, 0
      %p195 = por %p193, %p194
      %p196 = scmp.ne.s32.totalorder %s185, %s188
      %p197 = scmp.eq.s32.totalorder %s21, 3
      %p198 = por %p196, %p197
      %p199 = scmp.ne.s32.totalorder %s188, %s189
      %p200 = scmp.eq.s32.totalorder %s21, 0
      %p201 = por %p199, %p200
      %p202 = scmp.ne.s32.totalorder %s188, %s189
      %p203 = scmp.eq.s32.totalorder %s22, 3
      %p204 = por %p202, %p203
      %p206 = scmp.ne.s32.totalorder %s189, %s205
      %p207 = scmp.eq.s32.totalorder %s22, 0
      %p208 = por %p206, %p207
      %p209 = scmp.le.s32.totalorder 1, %s16
      %p210 = scmp.lt.s32.totalorder %s16, 5
      %p211 = pnand %p209, %p210
      %p212 = pneg %p211
      // Predicated region
      $region9: #{tpu_custom_call.1} parent=5 // pred_check
        _
      $region10: #{tpu_custom_call.1} parent=5 // pred_check_branch
        %214 = sbr.rel (%p211) target = $region12
      $region11: #{tpu_custom_call.1} parent=5 // pred_region
        %s215 = ssub.s32 %s16, 1
        // Predicated region
        $region13: #{tpu_custom_call.1} parent=11 // pred_check
          %p216 = pneg %p77
        $region14: #{tpu_custom_call.1} parent=11 // pred_check_branch
          %218 = sbr.rel (%p216) target = $region16
        $region15: #{tpu_custom_call.1} parent=11 // pred_region
          _
        $region16: #{tpu_custom_call.1} parent=11 // pred_fallthru
          _
        // Predicated region
        $region17: #{tpu_custom_call.1} parent=11 // pred_check
          %p219 = pneg %p98
        $region18: #{tpu_custom_call.1} parent=11 // pred_check_branch
          %221 = sbr.rel (%p219) target = $region20
        $region19: #{tpu_custom_call.1} parent=11 // pred_region
          _
        $region20: #{tpu_custom_call.1} parent=11 // pred_fallthru
          _
        // Predicated region
        $region21: #{tpu_custom_call.1} parent=11 // pred_check
          %p222 = pneg %p145
        $region22: #{tpu_custom_call.1} parent=11 // pred_check_branch
          %224 = sbr.rel (%p222) target = $region24
        $region23: #{tpu_custom_call.1} parent=11 // pred_region
          _
        $region24: #{tpu_custom_call.1} parent=11 // pred_fallthru
          _
      $region12: #{tpu_custom_call.1} parent=5 // pred_fallthru
        _
      %p225 = scmp.lt.s32.totalorder %s16, 4
      // Predicated region
      $region25: #{tpu_custom_call.1} parent=5 // pred_check
        %p226 = pneg %p225
      $region26: #{tpu_custom_call.1} parent=5 // pred_check_branch
        %228 = sbr.rel (%p226) target = $region28
      $region27: #{tpu_custom_call.1} parent=5 // pred_region
        // Predicated region
        $region29: #{tpu_custom_call.1} parent=27 // pred_check
          %p229 = pneg %p50
        $region30: #{tpu_custom_call.1} parent=27 // pred_check_branch
          %231 = sbr.rel (%p229) target = $region32
        $region31: #{tpu_custom_call.1} parent=27 // pred_region
          %p232 = scmp.lt.s32.totalorder %s23, 1
          %s233 = scalar_select %p232, %s23, 1
          %p234 = scmp.lt.s32.totalorder %s24, 1
          %s235 = scalar_select %p234, %s24, 1
          %s236 = smul.addr %s235, 120
          %s237 = smul.addr %s233, 240
          %s238 = sadd.s32 %s236, %s237
          %s239 = smul.addr %s238, 4
          %s240 = scalar_lea.vmem %s0, %s239
        $region32: #{tpu_custom_call.1} parent=27 // pred_fallthru
          _
        // Predicated region
        $region33: #{tpu_custom_call.1} parent=27 // pred_check
          %p241 = pneg %p118
        $region34: #{tpu_custom_call.1} parent=27 // pred_check_branch
          %243 = sbr.rel (%p241) target = $region36
        $region35: #{tpu_custom_call.1} parent=27 // pred_region
          %p244 = scmp.lt.s32.totalorder %s24, 1
          %s245 = scalar_select %p244, %s24, 1
          %s246 = smul.addr %s245, 120
          %s247 = smul.addr %s246, 8
          %s248 = scalar_lea.vmem %s3, %s247
        $region36: #{tpu_custom_call.1} parent=27 // pred_fallthru
          _
      $region28: #{tpu_custom_call.1} parent=5 // pred_fallthru
        _
      %p249 = scmp.le.s32.totalorder 1, %s16
      %p250 = scmp.lt.s32.totalorder %s16, 5
      %p251 = pnand %p249, %p250
      %p252 = pneg %p251
      // Predicated region
      $region37: #{tpu_custom_call.1} parent=5 // pred_check
        _
      $region38: #{tpu_custom_call.1} parent=5 // pred_check_branch
        %254 = sbr.rel (%p251) target = $region40
      $region39: #{tpu_custom_call.1} parent=5 // pred_region
        %s255 = ssub.s32 %s16, 1
        %p256 = scmp.lt.s32.totalorder %s25, 1
        %s257 = scalar_select %p256, %s25, 1
        %p258 = scmp.lt.s32.totalorder %s26, 1
        %s259 = scalar_select %p258, %s26, 1
        %s260 = smul.addr %s259, 120
        %s261 = smul.addr %s257, 240
        %s262 = sadd.s32 %s260, %s261
        %s263 = smul.addr %s262, 4
        %s264 = scalar_lea.vmem %s0, %s263
        %p265 = pneg %p56
        %p266 = pneg %p53
        %p267 = pneg %p77
        %p268 = pneg %p74
        %p269 = pneg %p98
        %p270 = pneg %p95
        %p271 = scmp.lt.s32.totalorder %s26, 1
        %s272 = scalar_select %p271, %s26, 1
        %s273 = smul.addr %s272, 120
        %s274 = smul.addr %s273, 8
        %s275 = scalar_lea.vmem %s3, %s274
        %p276 = pneg %p124
        %p277 = pneg %p121
        %p278 = pneg %p145
        %p279 = pneg %p142
        %p280 = pneg %p173
        %p281 = pneg %p170
        %p282 = scmp.lt.s32.totalorder %s25, 1
        %s283 = scalar_select %p282, %s25, 1
        %p284 = scmp.lt.s32.totalorder %s26, 1
        %s285 = scalar_select %p284, %s26, 1
        %s286 = smul.addr %s285, 32
        %s287 = smul.addr %s283, 64
        %s288 = sadd.s32 %s286, %s287
        %s289 = smul.addr %s288, 4
        %s290 = scalar_lea.vmem %s5, %s289
        %p291 = pneg %p201
        %p292 = pneg %p198
        %s293 = sand.u32 %s188, 1
        %s294 = scalar_lea.sflag [#allocation4], %s293
        %s295 = sand.u32 %s188, 1
        %s296 = smul.addr %s295, 2
        %s297 = scalar_lea.vmem [#allocation3], %s296
        %p298 = scmp.lt.s32.totalorder %s25, 1
        %s299 = scalar_select %p298, %s25, 1
        %p300 = scmp.lt.s32.totalorder %s26, 1
        %s301 = scalar_select %p300, %s26, 1
        %s302 = smul.addr %s301, 120
        %s303 = smul.addr %s299, 240
        %s304 = sadd.s32 %s302, %s303
        %s305 = smul.addr %s304, 4
        %s306 = scalar_lea.vmem %s0, %s305
        %p307 = scmp.lt.s32.totalorder %s26, 1
        %s308 = scalar_select %p307, %s26, 1
        %s309 = smul.addr %s308, 120
        %s310 = smul.addr %s309, 8
        %s311 = scalar_lea.vmem %s3, %s310
        %p312 = scmp.lt.s32.totalorder %s25, 1
        %s313 = scalar_select %p312, %s25, 1
        %p314 = scmp.lt.s32.totalorder %s26, 1
        %s315 = scalar_select %p314, %s26, 1
        %s316 = smul.addr %s315, 32
        %s317 = smul.addr %s313, 64
        %s318 = sadd.s32 %s316, %s317
        %s319 = smul.addr %s318, 4
        %s320 = scalar_lea.vmem %s5, %s319
        %v322 = vld [vmem:[%s306] sm:$0xf]
        %v323 = vld [vmem:[%s306 + $0x4] sm:$0x1]
        %v324 = vld [vmem:[%s306 + $0x8] sm:$0xf]
        %v325 = vld [vmem:[%s306 + $0xc] sm:$0x1]
        %v326 = vld [vmem:[%s306 + $0x10] sm:$0xf]
        %v327 = vld [vmem:[%s306 + $0x14] sm:$0x1]
        %v328 = vld [vmem:[%s306 + $0x18] sm:$0xf]
        %v329 = vld [vmem:[%s306 + $0x1c] sm:$0x1]
        %v330 = vld [vmem:[%s306 + $0x20] sm:$0xf]
        %v331 = vld [vmem:[%s306 + $0x24] sm:$0x1]
        %v332 = vld [vmem:[%s306 + $0x28] sm:$0xf]
        %v333 = vld [vmem:[%s306 + $0x2c] sm:$0x1]
        %v334 = vld [vmem:[%s306 + $0x30] sm:$0xf]
        %v335 = vld [vmem:[%s306 + $0x34] sm:$0x1]
        %v336 = vld [vmem:[%s306 + $0x38] sm:$0xf]
        %v337 = vld [vmem:[%s306 + $0x3c] sm:$0x1]
        %v338 = vld [vmem:[%s306 + $0x40] sm:$0xf]
        %v339 = vld [vmem:[%s306 + $0x44] sm:$0x1]
        %v340 = vld [vmem:[%s306 + $0x48] sm:$0xf]
        %v341 = vld [vmem:[%s306 + $0x4c] sm:$0x1]
        %v342 = vld [vmem:[%s306 + $0x50] sm:$0xf]
        %v343 = vld [vmem:[%s306 + $0x54] sm:$0x1]
        %v344 = vld [vmem:[%s306 + $0x58] sm:$0xf]
        %v345 = vld [vmem:[%s306 + $0x5c] sm:$0x1]
        %v346 = vld [vmem:[%s306 + $0x60] sm:$0xf]
        %v347 = vld [vmem:[%s306 + $0x64] sm:$0x1]
        %v348 = vld [vmem:[%s306 + $0x68] sm:$0xf]
        %v349 = vld [vmem:[%s306 + $0x6c] sm:$0x1]
        %v350 = vld [vmem:[%s306 + $0x70] sm:$0xf]
        %v351 = vld [vmem:[%s306 + $0x74] sm:$0x1]
        %v352 = vld [vmem:[%s306 + $0x78] sm:$0xf]
        %v353 = vld [vmem:[%s306 + $0x7c] sm:$0x1]
        %v354 = vld [vmem:[%s306 + $0x80] sm:$0xf]
        %v355 = vld [vmem:[%s306 + $0x84] sm:$0x1]
        %v356 = vld [vmem:[%s306 + $0x88] sm:$0xf]
        %v357 = vld [vmem:[%s306 + $0x8c] sm:$0x1]
        %v358 = vld [vmem:[%s306 + $0x90] sm:$0xf]
        %v359 = vld [vmem:[%s306 + $0x94] sm:$0x1]
        %v360 = vld [vmem:[%s306 + $0x98] sm:$0xf]
        %v361 = vld [vmem:[%s306 + $0x9c] sm:$0x1]
        %v362 = vld [vmem:[%s306 + $0xa0] sm:$0xf]
        %v363 = vld [vmem:[%s306 + $0xa4] sm:$0x1]
        %v364 = vld [vmem:[%s306 + $0xa8] sm:$0xf]
        %v365 = vld [vmem:[%s306 + $0xac] sm:$0x1]
        %v366 = vld [vmem:[%s306 + $0xb0] sm:$0xf]
        %v367 = vld [vmem:[%s306 + $0xb4] sm:$0x1]
        %v368 = vld [vmem:[%s306 + $0xb8] sm:$0xf]
        %v369 = vld [vmem:[%s306 + $0xbc] sm:$0x1]
        %v370 = vld [vmem:[%s306 + $0xc0] sm:$0xf]
        %v371 = vld [vmem:[%s306 + $0xc4] sm:$0x1]
        %v372 = vld [vmem:[%s306 + $0xc8] sm:$0xf]
        %v373 = vld [vmem:[%s306 + $0xcc] sm:$0x1]
        %v374 = vld [vmem:[%s306 + $0xd0] sm:$0xf]
        %v375 = vld [vmem:[%s306 + $0xd4] sm:$0x1]
        %v376 = vld [vmem:[%s306 + $0xd8] sm:$0xf]
        %v377 = vld [vmem:[%s306 + $0xdc] sm:$0x1]
        %v378 = vld [vmem:[%s306 + $0xe0] sm:$0xf]
        %v379 = vld [vmem:[%s306 + $0xe4] sm:$0x1]
        %v380 = vld [vmem:[%s306 + $0xe8] sm:$0xf]
        %v381 = vld [vmem:[%s306 + $0xec] sm:$0x1]
        %v382 = vld [vmem:[%s306 + $0xf0] sm:$0xf]
        %v383 = vld [vmem:[%s306 + $0xf4] sm:$0x1]
        %v384 = vld [vmem:[%s306 + $0xf8] sm:$0xf]
        %v385 = vld [vmem:[%s306 + $0xfc] sm:$0x1]
        %v386 = vld [vmem:[%s306 + $0x100] sm:$0xf]
        %v387 = vld [vmem:[%s306 + $0x104] sm:$0x1]
        %v388 = vld [vmem:[%s306 + $0x108] sm:$0xf]
        %v389 = vld [vmem:[%s306 + $0x10c] sm:$0x1]
        %v390 = vld [vmem:[%s306 + $0x110] sm:$0xf]
        %v391 = vld [vmem:[%s306 + $0x114] sm:$0x1]
        %v392 = vld [vmem:[%s306 + $0x118] sm:$0xf]
        %v393 = vld [vmem:[%s306 + $0x11c] sm:$0x1]
        %v394 = vld [vmem:[%s306 + $0x120] sm:$0xf]
        %v395 = vld [vmem:[%s306 + $0x124] sm:$0x1]
        %v396 = vld [vmem:[%s306 + $0x128] sm:$0xf]
        %v397 = vld [vmem:[%s306 + $0x12c] sm:$0x1]
        %v398 = vld [vmem:[%s306 + $0x130] sm:$0xf]
        %v399 = vld [vmem:[%s306 + $0x134] sm:$0x1]
        %v400 = vld [vmem:[%s306 + $0x138] sm:$0xf]
        %v401 = vld [vmem:[%s306 + $0x13c] sm:$0x1]
        %v402 = vld [vmem:[%s306 + $0x140] sm:$0xf]
        %v403 = vld [vmem:[%s306 + $0x144] sm:$0x1]
        %v404 = vld [vmem:[%s306 + $0x148] sm:$0xf]
        %v405 = vld [vmem:[%s306 + $0x14c] sm:$0x1]
        %v406 = vld [vmem:[%s306 + $0x150] sm:$0xf]
        %v407 = vld [vmem:[%s306 + $0x154] sm:$0x1]
        %v408 = vld [vmem:[%s306 + $0x158] sm:$0xf]
        %v409 = vld [vmem:[%s306 + $0x15c] sm:$0x1]
        %v410 = vld [vmem:[%s306 + $0x160] sm:$0xf]
        %v411 = vld [vmem:[%s306 + $0x164] sm:$0x1]
        %v412 = vld [vmem:[%s306 + $0x168] sm:$0xf]
        %v413 = vld [vmem:[%s306 + $0x16c] sm:$0x1]
        %v414 = vld [vmem:[%s306 + $0x170] sm:$0xf]
        %v415 = vld [vmem:[%s306 + $0x174] sm:$0x1]
        %v416 = vld [vmem:[%s306 + $0x178] sm:$0xf]
        %v417 = vld [vmem:[%s306 + $0x17c] sm:$0x1]
        %v418 = vld [vmem:[%s306 + $0x180] sm:$0xf]
        %v419 = vld [vmem:[%s306 + $0x184] sm:$0x1]
        %v420 = vld [vmem:[%s306 + $0x188] sm:$0xf]
        %v421 = vld [vmem:[%s306 + $0x18c] sm:$0x1]
        %v422 = vld [vmem:[%s306 + $0x190] sm:$0xf]
        %v423 = vld [vmem:[%s306 + $0x194] sm:$0x1]
        %v424 = vld [vmem:[%s306 + $0x198] sm:$0xf]
        %v425 = vld [vmem:[%s306 + $0x19c] sm:$0x1]
        %v426 = vld [vmem:[%s306 + $0x1a0] sm:$0xf]
        %v427 = vld [vmem:[%s306 + $0x1a4] sm:$0x1]
        %v428 = vld [vmem:[%s306 + $0x1a8] sm:$0xf]
        %v429 = vld [vmem:[%s306 + $0x1ac] sm:$0x1]
        %v430 = vld [vmem:[%s306 + $0x1b0] sm:$0xf]
        %v431 = vld [vmem:[%s306 + $0x1b4] sm:$0x1]
        %v432 = vld [vmem:[%s306 + $0x1b8] sm:$0xf]
        %v433 = vld [vmem:[%s306 + $0x1bc] sm:$0x1]
        %v434 = vld [vmem:[%s306 + $0x1c0] sm:$0xf]
        %v435 = vld [vmem:[%s306 + $0x1c4] sm:$0x1]
        %v436 = vld [vmem:[%s306 + $0x1c8] sm:$0xf]
        %v437 = vld [vmem:[%s306 + $0x1cc] sm:$0x1]
        %v438 = vld [vmem:[%s306 + $0x1d0] sm:$0xf]
        %v439 = vld [vmem:[%s306 + $0x1d4] sm:$0x1]
        %v440 = vld [vmem:[%s306 + $0x1d8] sm:$0xf]
        %v441 = vld [vmem:[%s306 + $0x1dc] sm:$0x1]
        %v442 = vunpack.c.l.bf16 %v322
        %v443 = vunpack.c.l.bf16 %v323
        %v444 = vunpack.c.l.bf16 %v324
        %v445 = vunpack.c.l.bf16 %v325
        %v446 = vunpack.c.l.bf16 %v326
        %v447 = vunpack.c.l.bf16 %v327
        %v448 = vunpack.c.l.bf16 %v328
        %v449 = vunpack.c.l.bf16 %v329
        %v450 = vunpack.c.l.bf16 %v330
        %v451 = vunpack.c.l.bf16 %v331
        %v452 = vunpack.c.l.bf16 %v332
        %v453 = vunpack.c.l.bf16 %v333
        %v454 = vunpack.c.l.bf16 %v334
        %v455 = vunpack.c.l.bf16 %v335
        %v456 = vunpack.c.l.bf16 %v336
        %v457 = vunpack.c.l.bf16 %v337
        %v458 = vunpack.c.l.bf16 %v338
        %v459 = vunpack.c.l.bf16 %v339
        %v460 = vunpack.c.l.bf16 %v340
        %v461 = vunpack.c.l.bf16 %v341
        %v462 = vunpack.c.l.bf16 %v342
        %v463 = vunpack.c.l.bf16 %v343
        %v464 = vunpack.c.l.bf16 %v344
        %v465 = vunpack.c.l.bf16 %v345
        %v466 = vunpack.c.l.bf16 %v346
        %v467 = vunpack.c.l.bf16 %v347
        %v468 = vunpack.c.l.bf16 %v348
        %v469 = vunpack.c.l.bf16 %v349
        %v470 = vunpack.c.l.bf16 %v350
        %v471 = vunpack.c.l.bf16 %v351
        %v472 = vunpack.c.l.bf16 %v352
        %v473 = vunpack.c.l.bf16 %v353
        %v474 = vunpack.c.l.bf16 %v354
        %v475 = vunpack.c.l.bf16 %v355
        %v476 = vunpack.c.l.bf16 %v356
        %v477 = vunpack.c.l.bf16 %v357
        %v478 = vunpack.c.l.bf16 %v358
        %v479 = vunpack.c.l.bf16 %v359
        %v480 = vunpack.c.l.bf16 %v360
        %v481 = vunpack.c.l.bf16 %v361
        %v482 = vunpack.c.l.bf16 %v362
        %v483 = vunpack.c.l.bf16 %v363
        %v484 = vunpack.c.l.bf16 %v364
        %v485 = vunpack.c.l.bf16 %v365
        %v486 = vunpack.c.l.bf16 %v366
        %v487 = vunpack.c.l.bf16 %v367
        %v488 = vunpack.c.l.bf16 %v368
        %v489 = vunpack.c.l.bf16 %v369
        %v490 = vunpack.c.l.bf16 %v370
        %v491 = vunpack.c.l.bf16 %v371
        %v492 = vunpack.c.l.bf16 %v372
        %v493 = vunpack.c.l.bf16 %v373
        %v494 = vunpack.c.l.bf16 %v374
        %v495 = vunpack.c.l.bf16 %v375
        %v496 = vunpack.c.l.bf16 %v376
        %v497 = vunpack.c.l.bf16 %v377
        %v498 = vunpack.c.l.bf16 %v378
        %v499 = vunpack.c.l.bf16 %v379
        %v500 = vunpack.c.l.bf16 %v380
        %v501 = vunpack.c.l.bf16 %v381
        %v502 = vunpack.c.l.bf16 %v382
        %v503 = vunpack.c.l.bf16 %v383
        %v504 = vunpack.c.l.bf16 %v384
        %v505 = vunpack.c.l.bf16 %v385
        %v506 = vunpack.c.l.bf16 %v386
        %v507 = vunpack.c.l.bf16 %v387
        %v508 = vunpack.c.l.bf16 %v388
        %v509 = vunpack.c.l.bf16 %v389
        %v510 = vunpack.c.l.bf16 %v390
        %v511 = vunpack.c.l.bf16 %v391
        %v512 = vunpack.c.l.bf16 %v392
        %v513 = vunpack.c.l.bf16 %v393
        %v514 = vunpack.c.l.bf16 %v394
        %v515 = vunpack.c.l.bf16 %v395
        %v516 = vunpack.c.l.bf16 %v396
        %v517 = vunpack.c.l.bf16 %v397
        %v518 = vunpack.c.l.bf16 %v398
        %v519 = vunpack.c.l.bf16 %v399
        %v520 = vunpack.c.l.bf16 %v400
        %v521 = vunpack.c.l.bf16 %v401
        %v522 = vunpack.c.l.bf16 %v402
        %v523 = vunpack.c.l.bf16 %v403
        %v524 = vunpack.c.l.bf16 %v404
        %v525 = vunpack.c.l.bf16 %v405
        %v526 = vunpack.c.l.bf16 %v406
        %v527 = vunpack.c.l.bf16 %v407
        %v528 = vunpack.c.l.bf16 %v408
        %v529 = vunpack.c.l.bf16 %v409
        %v530 = vunpack.c.l.bf16 %v410
        %v531 = vunpack.c.l.bf16 %v411
        %v532 = vunpack.c.l.bf16 %v412
        %v533 = vunpack.c.l.bf16 %v413
        %v534 = vunpack.c.l.bf16 %v414
        %v535 = vunpack.c.l.bf16 %v415
        %v536 = vunpack.c.l.bf16 %v416
        %v537 = vunpack.c.l.bf16 %v417
        %v538 = vunpack.c.l.bf16 %v418
        %v539 = vunpack.c.l.bf16 %v419
        %v540 = vunpack.c.l.bf16 %v420
        %v541 = vunpack.c.l.bf16 %v421
        %v542 = vunpack.c.l.bf16 %v422
        %v543 = vunpack.c.l.bf16 %v423
        %v544 = vunpack.c.l.bf16 %v424
        %v545 = vunpack.c.l.bf16 %v425
        %v546 = vunpack.c.l.bf16 %v426
        %v547 = vunpack.c.l.bf16 %v427
        %v548 = vunpack.c.l.bf16 %v428
        %v549 = vunpack.c.l.bf16 %v429
        %v550 = vunpack.c.l.bf16 %v430
        %v551 = vunpack.c.l.bf16 %v431
        %v552 = vunpack.c.l.bf16 %v432
        %v553 = vunpack.c.l.bf16 %v433
        %v554 = vunpack.c.l.bf16 %v434
        %v555 = vunpack.c.l.bf16 %v435
        %v556 = vunpack.c.l.bf16 %v436
        %v557 = vunpack.c.l.bf16 %v437
        %v558 = vunpack.c.l.bf16 %v438
        %v559 = vunpack.c.l.bf16 %v439
        %v560 = vunpack.c.l.bf16 %v440
        %v561 = vunpack.c.l.bf16 %v441
        %v562 = vld [vmem:[%s1] sm:$0x1]
        %v564 = vlaneseq
        %v565 = vshrl.u32 %v564, 7
        %v566 = vsub.s32 0, %v565
        %v567 = vrot.slane %v562, %v566
        %v569 = vmul.f32 %v442, %v567
        %v570 = vmul.f32 %v443, %v567
        %v571 = vmul.f32 %v444, %v567
        %v572 = vmul.f32 %v445, %v567
        %v573 = vmul.f32 %v446, %v567
        %v574 = vmul.f32 %v447, %v567
        %v575 = vmul.f32 %v448, %v567
        %v576 = vmul.f32 %v449, %v567
        %v577 = vmul.f32 %v450, %v567
        %v578 = vmul.f32 %v451, %v567
        %v579 = vmul.f32 %v452, %v567
        %v580 = vmul.f32 %v453, %v567
        %v581 = vmul.f32 %v454, %v567
        %v582 = vmul.f32 %v455, %v567
        %v583 = vmul.f32 %v456, %v567
        %v584 = vmul.f32 %v457, %v567
        %v585 = vmul.f32 %v458, %v567
        %v586 = vmul.f32 %v459, %v567
        %v587 = vmul.f32 %v460, %v567
        %v588 = vmul.f32 %v461, %v567
        %v589 = vmul.f32 %v462, %v567
        %v590 = vmul.f32 %v463, %v567
        %v591 = vmul.f32 %v464, %v567
        %v592 = vmul.f32 %v465, %v567
        %v593 = vmul.f32 %v466, %v567
        %v594 = vmul.f32 %v467, %v567
        %v595 = vmul.f32 %v468, %v567
        %v596 = vmul.f32 %v469, %v567
        %v597 = vmul.f32 %v470, %v567
        %v598 = vmul.f32 %v471, %v567
        %v599 = vmul.f32 %v472, %v567
        %v600 = vmul.f32 %v473, %v567
        %v601 = vmul.f32 %v474, %v567
        %v602 = vmul.f32 %v475, %v567
        %v603 = vmul.f32 %v476, %v567
        %v604 = vmul.f32 %v477, %v567
        %v605 = vmul.f32 %v478, %v567
        %v606 = vmul.f32 %v479, %v567
        %v607 = vmul.f32 %v480, %v567
        %v608 = vmul.f32 %v481, %v567
        %v609 = vmul.f32 %v482, %v567
        %v610 = vmul.f32 %v483, %v567
        %v611 = vmul.f32 %v484, %v567
        %v612 = vmul.f32 %v485, %v567
        %v613 = vmul.f32 %v486, %v567
        %v614 = vmul.f32 %v487, %v567
        %v615 = vmul.f32 %v488, %v567
        %v616 = vmul.f32 %v489, %v567
        %v617 = vmul.f32 %v490, %v567
        %v618 = vmul.f32 %v491, %v567
        %v619 = vmul.f32 %v492, %v567
        %v620 = vmul.f32 %v493, %v567
        %v621 = vmul.f32 %v494, %v567
        %v622 = vmul.f32 %v495, %v567
        %v623 = vmul.f32 %v496, %v567
        %v624 = vmul.f32 %v497, %v567
        %v625 = vmul.f32 %v498, %v567
        %v626 = vmul.f32 %v499, %v567
        %v627 = vmul.f32 %v500, %v567
        %v628 = vmul.f32 %v501, %v567
        %v629 = vmul.f32 %v502, %v567
        %v630 = vmul.f32 %v503, %v567
        %v631 = vmul.f32 %v504, %v567
        %v632 = vmul.f32 %v505, %v567
        %v633 = vmul.f32 %v506, %v567
        %v634 = vmul.f32 %v507, %v567
        %v635 = vmul.f32 %v508, %v567
        %v636 = vmul.f32 %v509, %v567
        %v637 = vmul.f32 %v510, %v567
        %v638 = vmul.f32 %v511, %v567
        %v639 = vmul.f32 %v512, %v567
        %v640 = vmul.f32 %v513, %v567
        %v641 = vmul.f32 %v514, %v567
        %v642 = vmul.f32 %v515, %v567
        %v643 = vmul.f32 %v516, %v567
        %v644 = vmul.f32 %v517, %v567
        %v645 = vmul.f32 %v518, %v567
        %v646 = vmul.f32 %v519, %v567
        %v647 = vmul.f32 %v520, %v567
        %v648 = vmul.f32 %v521, %v567
        %v649 = vmul.f32 %v522, %v567
        %v650 = vmul.f32 %v523, %v567
        %v651 = vmul.f32 %v524, %v567
        %v652 = vmul.f32 %v525, %v567
        %v653 = vmul.f32 %v526, %v567
        %v654 = vmul.f32 %v527, %v567
        %v655 = vmul.f32 %v528, %v567
        %v656 = vmul.f32 %v529, %v567
        %v657 = vmul.f32 %v530, %v567
        %v658 = vmul.f32 %v531, %v567
        %v659 = vmul.f32 %v532, %v567
        %v660 = vmul.f32 %v533, %v567
        %v661 = vmul.f32 %v534, %v567
        %v662 = vmul.f32 %v535, %v567
        %v663 = vmul.f32 %v536, %v567
        %v664 = vmul.f32 %v537, %v567
        %v665 = vmul.f32 %v538, %v567
        %v666 = vmul.f32 %v539, %v567
        %v667 = vmul.f32 %v540, %v567
        %v668 = vmul.f32 %v541, %v567
        %v669 = vmul.f32 %v542, %v567
        %v670 = vmul.f32 %v543, %v567
        %v671 = vmul.f32 %v544, %v567
        %v672 = vmul.f32 %v545, %v567
        %v673 = vmul.f32 %v546, %v567
        %v674 = vmul.f32 %v547, %v567
        %v675 = vmul.f32 %v548, %v567
        %v676 = vmul.f32 %v549, %v567
        %v677 = vmul.f32 %v550, %v567
        %v678 = vmul.f32 %v551, %v567
        %v679 = vmul.f32 %v552, %v567
        %v680 = vmul.f32 %v553, %v567
        %v681 = vmul.f32 %v554, %v567
        %v682 = vmul.f32 %v555, %v567
        %v683 = vmul.f32 %v556, %v567
        %v684 = vmul.f32 %v557, %v567
        %v685 = vmul.f32 %v558, %v567
        %v686 = vmul.f32 %v559, %v567
        %v687 = vmul.f32 %v560, %v567
        %v688 = vmul.f32 %v561, %v567
        %v689 = vld [vmem:[%s2] sm:$0x1]
        %v691 = vlaneseq
        %v692 = vshrl.u32 %v691, 7
        %v693 = vsub.s32 0, %v692
        %v694 = vrot.slane %v689, %v693
        %v696 = vadd.f32 %v569, %v694
        %v697 = vadd.f32 %v570, %v694
        %v698 = vadd.f32 %v571, %v694
        %v699 = vadd.f32 %v572, %v694
        %v700 = vadd.f32 %v573, %v694
        %v701 = vadd.f32 %v574, %v694
        %v702 = vadd.f32 %v575, %v694
        %v703 = vadd.f32 %v576, %v694
        %v704 = vadd.f32 %v577, %v694
        %v705 = vadd.f32 %v578, %v694
        %v706 = vadd.f32 %v579, %v694
        %v707 = vadd.f32 %v580, %v694
        %v708 = vadd.f32 %v581, %v694
        %v709 = vadd.f32 %v582, %v694
        %v710 = vadd.f32 %v583, %v694
        %v711 = vadd.f32 %v584, %v694
        %v712 = vadd.f32 %v585, %v694
        %v713 = vadd.f32 %v586, %v694
        %v714 = vadd.f32 %v587, %v694
        %v715 = vadd.f32 %v588, %v694
        %v716 = vadd.f32 %v589, %v694
        %v717 = vadd.f32 %v590, %v694
        %v718 = vadd.f32 %v591, %v694
        %v719 = vadd.f32 %v592, %v694
        %v720 = vadd.f32 %v593, %v694
        %v721 = vadd.f32 %v594, %v694
        %v722 = vadd.f32 %v595, %v694
        %v723 = vadd.f32 %v596, %v694
        %v724 = vadd.f32 %v597, %v694
        %v725 = vadd.f32 %v598, %v694
        %v726 = vadd.f32 %v599, %v694
        %v727 = vadd.f32 %v600, %v694
        %v728 = vadd.f32 %v601, %v694
        %v729 = vadd.f32 %v602, %v694
        %v730 = vadd.f32 %v603, %v694
        %v731 = vadd.f32 %v604, %v694
        %v732 = vadd.f32 %v605, %v694
        %v733 = vadd.f32 %v606, %v694
        %v734 = vadd.f32 %v607, %v694
        %v735 = vadd.f32 %v608, %v694
        %v736 = vadd.f32 %v609, %v694
        %v737 = vadd.f32 %v610, %v694
        %v738 = vadd.f32 %v611, %v694
        %v739 = vadd.f32 %v612, %v694
        %v740 = vadd.f32 %v613, %v694
        %v741 = vadd.f32 %v614, %v694
        %v742 = vadd.f32 %v615, %v694
        %v743 = vadd.f32 %v616, %v694
        %v744 = vadd.f32 %v617, %v694
        %v745 = vadd.f32 %v618, %v694
        %v746 = vadd.f32 %v619, %v694
        %v747 = vadd.f32 %v620, %v694
        %v748 = vadd.f32 %v621, %v694
        %v749 = vadd.f32 %v622, %v694
        %v750 = vadd.f32 %v623, %v694
        %v751 = vadd.f32 %v624, %v694
        %v752 = vadd.f32 %v625, %v694
        %v753 = vadd.f32 %v626, %v694
        %v754 = vadd.f32 %v627, %v694
        %v755 = vadd.f32 %v628, %v694
        %v756 = vadd.f32 %v629, %v694
        %v757 = vadd.f32 %v630, %v694
        %v758 = vadd.f32 %v631, %v694
        %v759 = vadd.f32 %v632, %v694
        %v760 = vadd.f32 %v633, %v694
        %v761 = vadd.f32 %v634, %v694
        %v762 = vadd.f32 %v635, %v694
        %v763 = vadd.f32 %v636, %v694
        %v764 = vadd.f32 %v637, %v694
        %v765 = vadd.f32 %v638, %v694
        %v766 = vadd.f32 %v639, %v694
        %v767 = vadd.f32 %v640, %v694
        %v768 = vadd.f32 %v641, %v694
        %v769 = vadd.f32 %v642, %v694
        %v770 = vadd.f32 %v643, %v694
        %v771 = vadd.f32 %v644, %v694
        %v772 = vadd.f32 %v645, %v694
        %v773 = vadd.f32 %v646, %v694
        %v774 = vadd.f32 %v647, %v694
        %v775 = vadd.f32 %v648, %v694
        %v776 = vadd.f32 %v649, %v694
        %v777 = vadd.f32 %v650, %v694
        %v778 = vadd.f32 %v651, %v694
        %v779 = vadd.f32 %v652, %v694
        %v780 = vadd.f32 %v653, %v694
        %v781 = vadd.f32 %v654, %v694
        %v782 = vadd.f32 %v655, %v694
        %v783 = vadd.f32 %v656, %v694
        %v784 = vadd.f32 %v657, %v694
        %v785 = vadd.f32 %v658, %v694
        %v786 = vadd.f32 %v659, %v694
        %v787 = vadd.f32 %v660, %v694
        %v788 = vadd.f32 %v661, %v694
        %v789 = vadd.f32 %v662, %v694
        %v790 = vadd.f32 %v663, %v694
        %v791 = vadd.f32 %v664, %v694
        %v792 = vadd.f32 %v665, %v694
        %v793 = vadd.f32 %v666, %v694
        %v794 = vadd.f32 %v667, %v694
        %v795 = vadd.f32 %v668, %v694
        %v796 = vadd.f32 %v669, %v694
        %v797 = vadd.f32 %v670, %v694
        %v798 = vadd.f32 %v671, %v694
        %v799 = vadd.f32 %v672, %v694
        %v800 = vadd.f32 %v673, %v694
        %v801 = vadd.f32 %v674, %v694
        %v802 = vadd.f32 %v675, %v694
        %v803 = vadd.f32 %v676, %v694
        %v804 = vadd.f32 %v677, %v694
        %v805 = vadd.f32 %v678, %v694
        %v806 = vadd.f32 %v679, %v694
        %v807 = vadd.f32 %v680, %v694
        %v808 = vadd.f32 %v681, %v694
        %v809 = vadd.f32 %v682, %v694
        %v810 = vadd.f32 %v683, %v694
        %v811 = vadd.f32 %v684, %v694
        %v812 = vadd.f32 %v685, %v694
        %v813 = vadd.f32 %v686, %v694
        %v814 = vadd.f32 %v687, %v694
        %v815 = vadd.f32 %v688, %v694
        %v816 = vld [vmem:[%s311] sm:$0xff]
        %v817 = vld [vmem:[%s311 + $0x8] sm:$0x3]
        %v818 = vld [vmem:[%s311 + $0x10] sm:$0xff]
        %v819 = vld [vmem:[%s311 + $0x18] sm:$0x3]
        %v820 = vld [vmem:[%s311 + $0x20] sm:$0xff]
        %v821 = vld [vmem:[%s311 + $0x28] sm:$0x3]
        %v822 = vld [vmem:[%s311 + $0x30] sm:$0xff]
        %v823 = vld [vmem:[%s311 + $0x38] sm:$0x3]
        %v824 = vld [vmem:[%s311 + $0x40] sm:$0xff]
        %v825 = vld [vmem:[%s311 + $0x48] sm:$0x3]
        %v826 = vld [vmem:[%s311 + $0x50] sm:$0xff]
        %v827 = vld [vmem:[%s311 + $0x58] sm:$0x3]
        %v828 = vld [vmem:[%s311 + $0x60] sm:$0xff]
        %v829 = vld [vmem:[%s311 + $0x68] sm:$0x3]
        %v830 = vld [vmem:[%s311 + $0x70] sm:$0xff]
        %v831 = vld [vmem:[%s311 + $0x78] sm:$0x3]
        %v832 = vld [vmem:[%s311 + $0x80] sm:$0xff]
        %v833 = vld [vmem:[%s311 + $0x88] sm:$0x3]
        %v834 = vld [vmem:[%s311 + $0x90] sm:$0xff]
        %v835 = vld [vmem:[%s311 + $0x98] sm:$0x3]
        %v836 = vld [vmem:[%s311 + $0xa0] sm:$0xff]
        %v837 = vld [vmem:[%s311 + $0xa8] sm:$0x3]
        %v838 = vld [vmem:[%s311 + $0xb0] sm:$0xff]
        %v839 = vld [vmem:[%s311 + $0xb8] sm:$0x3]
        %v840 = vld [vmem:[%s311 + $0xc0] sm:$0xff]
        %v841 = vld [vmem:[%s311 + $0xc8] sm:$0x3]
        %v842 = vld [vmem:[%s311 + $0xd0] sm:$0xff]
        %v843 = vld [vmem:[%s311 + $0xd8] sm:$0x3]
        %v844 = vld [vmem:[%s311 + $0xe0] sm:$0xff]
        %v845 = vld [vmem:[%s311 + $0xe8] sm:$0x3]
        %v846 = vld [vmem:[%s311 + $0xf0] sm:$0xff]
        %v847 = vld [vmem:[%s311 + $0xf8] sm:$0x3]
        %v848 = vld [vmem:[%s311 + $0x100] sm:$0xff]
        %v849 = vld [vmem:[%s311 + $0x108] sm:$0x3]
        %v850 = vld [vmem:[%s311 + $0x110] sm:$0xff]
        %v851 = vld [vmem:[%s311 + $0x118] sm:$0x3]
        %v852 = vld [vmem:[%s311 + $0x120] sm:$0xff]
        %v853 = vld [vmem:[%s311 + $0x128] sm:$0x3]
        %v854 = vld [vmem:[%s311 + $0x130] sm:$0xff]
        %v855 = vld [vmem:[%s311 + $0x138] sm:$0x3]
        %v856 = vld [vmem:[%s311 + $0x140] sm:$0xff]
        %v857 = vld [vmem:[%s311 + $0x148] sm:$0x3]
        %v858 = vld [vmem:[%s311 + $0x150] sm:$0xff]
        %v859 = vld [vmem:[%s311 + $0x158] sm:$0x3]
        %v860 = vld [vmem:[%s311 + $0x160] sm:$0xff]
        %v861 = vld [vmem:[%s311 + $0x168] sm:$0x3]
        %v862 = vld [vmem:[%s311 + $0x170] sm:$0xff]
        %v863 = vld [vmem:[%s311 + $0x178] sm:$0x3]
        %v864 = vld [vmem:[%s311 + $0x180] sm:$0xff]
        %v865 = vld [vmem:[%s311 + $0x188] sm:$0x3]
        %v866 = vld [vmem:[%s311 + $0x190] sm:$0xff]
        %v867 = vld [vmem:[%s311 + $0x198] sm:$0x3]
        %v868 = vld [vmem:[%s311 + $0x1a0] sm:$0xff]
        %v869 = vld [vmem:[%s311 + $0x1a8] sm:$0x3]
        %v870 = vld [vmem:[%s311 + $0x1b0] sm:$0xff]
        %v871 = vld [vmem:[%s311 + $0x1b8] sm:$0x3]
        %v872 = vld [vmem:[%s311 + $0x1c0] sm:$0xff]
        %v873 = vld [vmem:[%s311 + $0x1c8] sm:$0x3]
        %v874 = vld [vmem:[%s311 + $0x1d0] sm:$0xff]
        %v875 = vld [vmem:[%s311 + $0x1d8] sm:$0x3]
        %v876 = vld [vmem:[%s311 + $0x1e0] sm:$0xff]
        %v877 = vld [vmem:[%s311 + $0x1e8] sm:$0x3]
        %v878 = vld [vmem:[%s311 + $0x1f0] sm:$0xff]
        %v879 = vld [vmem:[%s311 + $0x1f8] sm:$0x3]
        %v880 = vld [vmem:[%s311 + $0x200] sm:$0xff]
        %v881 = vld [vmem:[%s311 + $0x208] sm:$0x3]
        %v882 = vld [vmem:[%s311 + $0x210] sm:$0xff]
        %v883 = vld [vmem:[%s311 + $0x218] sm:$0x3]
        %v884 = vld [vmem:[%s311 + $0x220] sm:$0xff]
        %v885 = vld [vmem:[%s311 + $0x228] sm:$0x3]
        %v886 = vld [vmem:[%s311 + $0x230] sm:$0xff]
        %v887 = vld [vmem:[%s311 + $0x238] sm:$0x3]
        %v888 = vld [vmem:[%s311 + $0x240] sm:$0xff]
        %v889 = vld [vmem:[%s311 + $0x248] sm:$0x3]
        %v890 = vld [vmem:[%s311 + $0x250] sm:$0xff]
        %v891 = vld [vmem:[%s311 + $0x258] sm:$0x3]
        %v892 = vld [vmem:[%s311 + $0x260] sm:$0xff]
        %v893 = vld [vmem:[%s311 + $0x268] sm:$0x3]
        %v894 = vld [vmem:[%s311 + $0x270] sm:$0xff]
        %v895 = vld [vmem:[%s311 + $0x278] sm:$0x3]
        %v896 = vld [vmem:[%s311 + $0x280] sm:$0xff]
        %v897 = vld [vmem:[%s311 + $0x288] sm:$0x3]
        %v898 = vld [vmem:[%s311 + $0x290] sm:$0xff]
        %v899 = vld [vmem:[%s311 + $0x298] sm:$0x3]
        %v900 = vld [vmem:[%s311 + $0x2a0] sm:$0xff]
        %v901 = vld [vmem:[%s311 + $0x2a8] sm:$0x3]
        %v902 = vld [vmem:[%s311 + $0x2b0] sm:$0xff]
        %v903 = vld [vmem:[%s311 + $0x2b8] sm:$0x3]
        %v904 = vld [vmem:[%s311 + $0x2c0] sm:$0xff]
        %v905 = vld [vmem:[%s311 + $0x2c8] sm:$0x3]
        %v906 = vld [vmem:[%s311 + $0x2d0] sm:$0xff]
        %v907 = vld [vmem:[%s311 + $0x2d8] sm:$0x3]
        %v908 = vld [vmem:[%s311 + $0x2e0] sm:$0xff]
        %v909 = vld [vmem:[%s311 + $0x2e8] sm:$0x3]
        %v910 = vld [vmem:[%s311 + $0x2f0] sm:$0xff]
        %v911 = vld [vmem:[%s311 + $0x2f8] sm:$0x3]
        %v912 = vld [vmem:[%s311 + $0x300] sm:$0xff]
        %v913 = vld [vmem:[%s311 + $0x308] sm:$0x3]
        %v914 = vld [vmem:[%s311 + $0x310] sm:$0xff]
        %v915 = vld [vmem:[%s311 + $0x318] sm:$0x3]
        %v916 = vld [vmem:[%s311 + $0x320] sm:$0xff]
        %v917 = vld [vmem:[%s311 + $0x328] sm:$0x3]
        %v918 = vld [vmem:[%s311 + $0x330] sm:$0xff]
        %v919 = vld [vmem:[%s311 + $0x338] sm:$0x3]
        %v920 = vld [vmem:[%s311 + $0x340] sm:$0xff]
        %v921 = vld [vmem:[%s311 + $0x348] sm:$0x3]
        %v922 = vld [vmem:[%s311 + $0x350] sm:$0xff]
        %v923 = vld [vmem:[%s311 + $0x358] sm:$0x3]
        %v924 = vld [vmem:[%s311 + $0x360] sm:$0xff]
        %v925 = vld [vmem:[%s311 + $0x368] sm:$0x3]
        %v926 = vld [vmem:[%s311 + $0x370] sm:$0xff]
        %v927 = vld [vmem:[%s311 + $0x378] sm:$0x3]
        %v928 = vld [vmem:[%s311 + $0x380] sm:$0xff]
        %v929 = vld [vmem:[%s311 + $0x388] sm:$0x3]
        %v930 = vld [vmem:[%s311 + $0x390] sm:$0xff]
        %v931 = vld [vmem:[%s311 + $0x398] sm:$0x3]
        %v932 = vld [vmem:[%s311 + $0x3a0] sm:$0xff]
        %v933 = vld [vmem:[%s311 + $0x3a8] sm:$0x3]
        %v934 = vld [vmem:[%s311 + $0x3b0] sm:$0xff]
        %v935 = vld [vmem:[%s311 + $0x3b8] sm:$0x3]
        %937 = vset.pattern.permute.xlu0 0
        %938 = vperm.xlu0 %937, %v816
        %v939 = vpop.permute.xlu0 %938
        %942 = vset.pattern.permute.xlu0 0
        %943 = vperm.xlu0 %942, %v817
        %v944 = vpop.permute.xlu0 %943
        %947 = vset.pattern.permute.xlu0 0
        %948 = vperm.xlu0 %947, %v818
        %v949 = vpop.permute.xlu0 %948
        %952 = vset.pattern.permute.xlu0 0
        %953 = vperm.xlu0 %952, %v819
        %v954 = vpop.permute.xlu0 %953
        %957 = vset.pattern.permute.xlu0 0
        %958 = vperm.xlu0 %957, %v820
        %v959 = vpop.permute.xlu0 %958
        %962 = vset.pattern.permute.xlu0 0
        %963 = vperm.xlu0 %962, %v821
        %v964 = vpop.permute.xlu0 %963
        %967 = vset.pattern.permute.xlu0 0
        %968 = vperm.xlu0 %967, %v822
        %v969 = vpop.permute.xlu0 %968
        %972 = vset.pattern.permute.xlu0 0
        %973 = vperm.xlu0 %972, %v823
        %v974 = vpop.permute.xlu0 %973
        %977 = vset.pattern.permute.xlu0 0
        %978 = vperm.xlu0 %977, %v824
        %v979 = vpop.permute.xlu0 %978
        %982 = vset.pattern.permute.xlu0 0
        %983 = vperm.xlu0 %982, %v825
        %v984 = vpop.permute.xlu0 %983
        %987 = vset.pattern.permute.xlu0 0
        %988 = vperm.xlu0 %987, %v826
        %v989 = vpop.permute.xlu0 %988
        %992 = vset.pattern.permute.xlu0 0
        %993 = vperm.xlu0 %992, %v827
        %v994 = vpop.permute.xlu0 %993
        %997 = vset.pattern.permute.xlu0 0
        %998 = vperm.xlu0 %997, %v828
        %v999 = vpop.permute.xlu0 %998
        %1002 = vset.pattern.permute.xlu0 0
        %1003 = vperm.xlu0 %1002, %v829
        %v1004 = vpop.permute.xlu0 %1003
        %1007 = vset.pattern.permute.xlu0 0
        %1008 = vperm.xlu0 %1007, %v830
        %v1009 = vpop.permute.xlu0 %1008
        %1012 = vset.pattern.permute.xlu0 0
        %1013 = vperm.xlu0 %1012, %v831
        %v1014 = vpop.permute.xlu0 %1013
        %1017 = vset.pattern.permute.xlu0 0
        %1018 = vperm.xlu0 %1017, %v832
        %v1019 = vpop.permute.xlu0 %1018
        %1022 = vset.pattern.permute.xlu0 0
        %1023 = vperm.xlu0 %1022, %v833
        %v1024 = vpop.permute.xlu0 %1023
        %1027 = vset.pattern.permute.xlu0 0
        %1028 = vperm.xlu0 %1027, %v834
        %v1029 = vpop.permute.xlu0 %1028
        %1032 = vset.pattern.permute.xlu0 0
        %1033 = vperm.xlu0 %1032, %v835
        %v1034 = vpop.permute.xlu0 %1033
        %1037 = vset.pattern.permute.xlu0 0
        %1038 = vperm.xlu0 %1037, %v836
        %v1039 = vpop.permute.xlu0 %1038
        %1042 = vset.pattern.permute.xlu0 0
        %1043 = vperm.xlu0 %1042, %v837
        %v1044 = vpop.permute.xlu0 %1043
        %1047 = vset.pattern.permute.xlu0 0
        %1048 = vperm.xlu0 %1047, %v838
        %v1049 = vpop.permute.xlu0 %1048
        %1052 = vset.pattern.permute.xlu0 0
        %1053 = vperm.xlu0 %1052, %v839
        %v1054 = vpop.permute.xlu0 %1053
        %1057 = vset.pattern.permute.xlu0 0
        %1058 = vperm.xlu0 %1057, %v840
        %v1059 = vpop.permute.xlu0 %1058
        %1062 = vset.pattern.permute.xlu0 0
        %1063 = vperm.xlu0 %1062, %v841
        %v1064 = vpop.permute.xlu0 %1063
        %1067 = vset.pattern.permute.xlu0 0
        %1068 = vperm.xlu0 %1067, %v842
        %v1069 = vpop.permute.xlu0 %1068
        %1072 = vset.pattern.permute.xlu0 0
        %1073 = vperm.xlu0 %1072, %v843
        %v1074 = vpop.permute.xlu0 %1073
        %1077 = vset.pattern.permute.xlu0 0
        %1078 = vperm.xlu0 %1077, %v844
        %v1079 = vpop.permute.xlu0 %1078
        %1082 = vset.pattern.permute.xlu0 0
        %1083 = vperm.xlu0 %1082, %v845
        %v1084 = vpop.permute.xlu0 %1083
        %1087 = vset.pattern.permute.xlu0 0
        %1088 = vperm.xlu0 %1087, %v846
        %v1089 = vpop.permute.xlu0 %1088
        %1092 = vset.pattern.permute.xlu0 0
        %1093 = vperm.xlu0 %1092, %v847
        %v1094 = vpop.permute.xlu0 %1093
        %1097 = vset.pattern.permute.xlu0 0
        %1098 = vperm.xlu0 %1097, %v848
        %v1099 = vpop.permute.xlu0 %1098
        %1102 = vset.pattern.permute.xlu0 0
        %1103 = vperm.xlu0 %1102, %v849
        %v1104 = vpop.permute.xlu0 %1103
        %1107 = vset.pattern.permute.xlu0 0
        %1108 = vperm.xlu0 %1107, %v850
        %v1109 = vpop.permute.xlu0 %1108
        %1112 = vset.pattern.permute.xlu0 0
        %1113 = vperm.xlu0 %1112, %v851
        %v1114 = vpop.permute.xlu0 %1113
        %1117 = vset.pattern.permute.xlu0 0
        %1118 = vperm.xlu0 %1117, %v852
        %v1119 = vpop.permute.xlu0 %1118
        %1122 = vset.pattern.permute.xlu0 0
        %1123 = vperm.xlu0 %1122, %v853
        %v1124 = vpop.permute.xlu0 %1123
        %1127 = vset.pattern.permute.xlu0 0
        %1128 = vperm.xlu0 %1127, %v854
        %v1129 = vpop.permute.xlu0 %1128
        %1132 = vset.pattern.permute.xlu0 0
        %1133 = vperm.xlu0 %1132, %v855
        %v1134 = vpop.permute.xlu0 %1133
        %1137 = vset.pattern.permute.xlu0 0
        %1138 = vperm.xlu0 %1137, %v856
        %v1139 = vpop.permute.xlu0 %1138
        %1142 = vset.pattern.permute.xlu0 0
        %1143 = vperm.xlu0 %1142, %v857
        %v1144 = vpop.permute.xlu0 %1143
        %1147 = vset.pattern.permute.xlu0 0
        %1148 = vperm.xlu0 %1147, %v858
        %v1149 = vpop.permute.xlu0 %1148
        %1152 = vset.pattern.permute.xlu0 0
        %1153 = vperm.xlu0 %1152, %v859
        %v1154 = vpop.permute.xlu0 %1153
        %1157 = vset.pattern.permute.xlu0 0
        %1158 = vperm.xlu0 %1157, %v860
        %v1159 = vpop.permute.xlu0 %1158
        %1162 = vset.pattern.permute.xlu0 0
        %1163 = vperm.xlu0 %1162, %v861
        %v1164 = vpop.permute.xlu0 %1163
        %1167 = vset.pattern.permute.xlu0 0
        %1168 = vperm.xlu0 %1167, %v862
        %v1169 = vpop.permute.xlu0 %1168
        %1172 = vset.pattern.permute.xlu0 0
        %1173 = vperm.xlu0 %1172, %v863
        %v1174 = vpop.permute.xlu0 %1173
        %1177 = vset.pattern.permute.xlu0 0
        %1178 = vperm.xlu0 %1177, %v864
        %v1179 = vpop.permute.xlu0 %1178
        %1182 = vset.pattern.permute.xlu0 0
        %1183 = vperm.xlu0 %1182, %v865
        %v1184 = vpop.permute.xlu0 %1183
        %1187 = vset.pattern.permute.xlu0 0
        %1188 = vperm.xlu0 %1187, %v866
        %v1189 = vpop.permute.xlu0 %1188
        %1192 = vset.pattern.permute.xlu0 0
        %1193 = vperm.xlu0 %1192, %v867
        %v1194 = vpop.permute.xlu0 %1193
        %1197 = vset.pattern.permute.xlu0 0
        %1198 = vperm.xlu0 %1197, %v868
        %v1199 = vpop.permute.xlu0 %1198
        %1202 = vset.pattern.permute.xlu0 0
        %1203 = vperm.xlu0 %1202, %v869
        %v1204 = vpop.permute.xlu0 %1203
        %1207 = vset.pattern.permute.xlu0 0
        %1208 = vperm.xlu0 %1207, %v870
        %v1209 = vpop.permute.xlu0 %1208
        %1212 = vset.pattern.permute.xlu0 0
        %1213 = vperm.xlu0 %1212, %v871
        %v1214 = vpop.permute.xlu0 %1213
        %1217 = vset.pattern.permute.xlu0 0
        %1218 = vperm.xlu0 %1217, %v872
        %v1219 = vpop.permute.xlu0 %1218
        %1222 = vset.pattern.permute.xlu0 0
        %1223 = vperm.xlu0 %1222, %v873
        %v1224 = vpop.permute.xlu0 %1223
        %1227 = vset.pattern.permute.xlu0 0
        %1228 = vperm.xlu0 %1227, %v874
        %v1229 = vpop.permute.xlu0 %1228
        %1232 = vset.pattern.permute.xlu0 0
        %1233 = vperm.xlu0 %1232, %v875
        %v1234 = vpop.permute.xlu0 %1233
        %1237 = vset.pattern.permute.xlu0 0
        %1238 = vperm.xlu0 %1237, %v876
        %v1239 = vpop.permute.xlu0 %1238
        %1242 = vset.pattern.permute.xlu0 0
        %1243 = vperm.xlu0 %1242, %v877
        %v1244 = vpop.permute.xlu0 %1243
        %1247 = vset.pattern.permute.xlu0 0
        %1248 = vperm.xlu0 %1247, %v878
        %v1249 = vpop.permute.xlu0 %1248
        %1252 = vset.pattern.permute.xlu0 0
        %1253 = vperm.xlu0 %1252, %v879
        %v1254 = vpop.permute.xlu0 %1253
        %1257 = vset.pattern.permute.xlu0 0
        %1258 = vperm.xlu0 %1257, %v880
        %v1259 = vpop.permute.xlu0 %1258
        %1262 = vset.pattern.permute.xlu0 0
        %1263 = vperm.xlu0 %1262, %v881
        %v1264 = vpop.permute.xlu0 %1263
        %1267 = vset.pattern.permute.xlu0 0
        %1268 = vperm.xlu0 %1267, %v882
        %v1269 = vpop.permute.xlu0 %1268
        %1272 = vset.pattern.permute.xlu0 0
        %1273 = vperm.xlu0 %1272, %v883
        %v1274 = vpop.permute.xlu0 %1273
        %1277 = vset.pattern.permute.xlu0 0
        %1278 = vperm.xlu0 %1277, %v884
        %v1279 = vpop.permute.xlu0 %1278
        %1282 = vset.pattern.permute.xlu0 0
        %1283 = vperm.xlu0 %1282, %v885
        %v1284 = vpop.permute.xlu0 %1283
        %1287 = vset.pattern.permute.xlu0 0
        %1288 = vperm.xlu0 %1287, %v886
        %v1289 = vpop.permute.xlu0 %1288
        %1292 = vset.pattern.permute.xlu0 0
        %1293 = vperm.xlu0 %1292, %v887
        %v1294 = vpop.permute.xlu0 %1293
        %1297 = vset.pattern.permute.xlu0 0
        %1298 = vperm.xlu0 %1297, %v888
        %v1299 = vpop.permute.xlu0 %1298
        %1302 = vset.pattern.permute.xlu0 0
        %1303 = vperm.xlu0 %1302, %v889
        %v1304 = vpop.permute.xlu0 %1303
        %1307 = vset.pattern.permute.xlu0 0
        %1308 = vperm.xlu0 %1307, %v890
        %v1309 = vpop.permute.xlu0 %1308
        %1312 = vset.pattern.permute.xlu0 0
        %1313 = vperm.xlu0 %1312, %v891
        %v1314 = vpop.permute.xlu0 %1313
        %1317 = vset.pattern.permute.xlu0 0
        %1318 = vperm.xlu0 %1317, %v892
        %v1319 = vpop.permute.xlu0 %1318
        %1322 = vset.pattern.permute.xlu0 0
        %1323 = vperm.xlu0 %1322, %v893
        %v1324 = vpop.permute.xlu0 %1323
        %1327 = vset.pattern.permute.xlu0 0
        %1328 = vperm.xlu0 %1327, %v894
        %v1329 = vpop.permute.xlu0 %1328
        %1332 = vset.pattern.permute.xlu0 0
        %1333 = vperm.xlu0 %1332, %v895
        %v1334 = vpop.permute.xlu0 %1333
        %1337 = vset.pattern.permute.xlu0 0
        %1338 = vperm.xlu0 %1337, %v896
        %v1339 = vpop.permute.xlu0 %1338
        %1342 = vset.pattern.permute.xlu0 0
        %1343 = vperm.xlu0 %1342, %v897
        %v1344 = vpop.permute.xlu0 %1343
        %1347 = vset.pattern.permute.xlu0 0
        %1348 = vperm.xlu0 %1347, %v898
        %v1349 = vpop.permute.xlu0 %1348
        %1352 = vset.pattern.permute.xlu0 0
        %1353 = vperm.xlu0 %1352, %v899
        %v1354 = vpop.permute.xlu0 %1353
        %1357 = vset.pattern.permute.xlu0 0
        %1358 = vperm.xlu0 %1357, %v900
        %v1359 = vpop.permute.xlu0 %1358
        %1362 = vset.pattern.permute.xlu0 0
        %1363 = vperm.xlu0 %1362, %v901
        %v1364 = vpop.permute.xlu0 %1363
        %1367 = vset.pattern.permute.xlu0 0
        %1368 = vperm.xlu0 %1367, %v902
        %v1369 = vpop.permute.xlu0 %1368
        %1372 = vset.pattern.permute.xlu0 0
        %1373 = vperm.xlu0 %1372, %v903
        %v1374 = vpop.permute.xlu0 %1373
        %1377 = vset.pattern.permute.xlu0 0
        %1378 = vperm.xlu0 %1377, %v904
        %v1379 = vpop.permute.xlu0 %1378
        %1382 = vset.pattern.permute.xlu0 0
        %1383 = vperm.xlu0 %1382, %v905
        %v1384 = vpop.permute.xlu0 %1383
        %1387 = vset.pattern.permute.xlu0 0
        %1388 = vperm.xlu0 %1387, %v906
        %v1389 = vpop.permute.xlu0 %1388
        %1392 = vset.pattern.permute.xlu0 0
        %1393 = vperm.xlu0 %1392, %v907
        %v1394 = vpop.permute.xlu0 %1393
        %1397 = vset.pattern.permute.xlu0 0
        %1398 = vperm.xlu0 %1397, %v908
        %v1399 = vpop.permute.xlu0 %1398
        %1402 = vset.pattern.permute.xlu0 0
        %1403 = vperm.xlu0 %1402, %v909
        %v1404 = vpop.permute.xlu0 %1403
        %1407 = vset.pattern.permute.xlu0 0
        %1408 = vperm.xlu0 %1407, %v910
        %v1409 = vpop.permute.xlu0 %1408
        %1412 = vset.pattern.permute.xlu0 0
        %1413 = vperm.xlu0 %1412, %v911
        %v1414 = vpop.permute.xlu0 %1413
        %1417 = vset.pattern.permute.xlu0 0
        %1418 = vperm.xlu0 %1417, %v912
        %v1419 = vpop.permute.xlu0 %1418
        %1422 = vset.pattern.permute.xlu0 0
        %1423 = vperm.xlu0 %1422, %v913
        %v1424 = vpop.permute.xlu0 %1423
        %1427 = vset.pattern.permute.xlu0 0
        %1428 = vperm.xlu0 %1427, %v914
        %v1429 = vpop.permute.xlu0 %1428
        %1432 = vset.pattern.permute.xlu0 0
        %1433 = vperm.xlu0 %1432, %v915
        %v1434 = vpop.permute.xlu0 %1433
        %1437 = vset.pattern.permute.xlu0 0
        %1438 = vperm.xlu0 %1437, %v916
        %v1439 = vpop.permute.xlu0 %1438
        %1442 = vset.pattern.permute.xlu0 0
        %1443 = vperm.xlu0 %1442, %v917
        %v1444 = vpop.permute.xlu0 %1443
        %1447 = vset.pattern.permute.xlu0 0
        %1448 = vperm.xlu0 %1447, %v918
        %v1449 = vpop.permute.xlu0 %1448
        %1452 = vset.pattern.permute.xlu0 0
        %1453 = vperm.xlu0 %1452, %v919
        %v1454 = vpop.permute.xlu0 %1453
        %1457 = vset.pattern.permute.xlu0 0
        %1458 = vperm.xlu0 %1457, %v920
        %v1459 = vpop.permute.xlu0 %1458
        %1462 = vset.pattern.permute.xlu0 0
        %1463 = vperm.xlu0 %1462, %v921
        %v1464 = vpop.permute.xlu0 %1463
        %1467 = vset.pattern.permute.xlu0 0
        %1468 = vperm.xlu0 %1467, %v922
        %v1469 = vpop.permute.xlu0 %1468
        %1472 = vset.pattern.permute.xlu0 0
        %1473 = vperm.xlu0 %1472, %v923
        %v1474 = vpop.permute.xlu0 %1473
        %1477 = vset.pattern.permute.xlu0 0
        %1478 = vperm.xlu0 %1477, %v924
        %v1479 = vpop.permute.xlu0 %1478
        %1482 = vset.pattern.permute.xlu0 0
        %1483 = vperm.xlu0 %1482, %v925
        %v1484 = vpop.permute.xlu0 %1483
        %1487 = vset.pattern.permute.xlu0 0
        %1488 = vperm.xlu0 %1487, %v926
        %v1489 = vpop.permute.xlu0 %1488
        %1492 = vset.pattern.permute.xlu0 0
        %1493 = vperm.xlu0 %1492, %v927
        %v1494 = vpop.permute.xlu0 %1493
        %1497 = vset.pattern.permute.xlu0 0
        %1498 = vperm.xlu0 %1497, %v928
        %v1499 = vpop.permute.xlu0 %1498
        %1502 = vset.pattern.permute.xlu0 0
        %1503 = vperm.xlu0 %1502, %v929
        %v1504 = vpop.permute.xlu0 %1503
        %1507 = vset.pattern.permute.xlu0 0
        %1508 = vperm.xlu0 %1507, %v930
        %v1509 = vpop.permute.xlu0 %1508
        %1512 = vset.pattern.permute.xlu0 0
        %1513 = vperm.xlu0 %1512, %v931
        %v1514 = vpop.permute.xlu0 %1513
        %1517 = vset.pattern.permute.xlu0 0
        %1518 = vperm.xlu0 %1517, %v932
        %v1519 = vpop.permute.xlu0 %1518
        %1522 = vset.pattern.permute.xlu0 0
        %1523 = vperm.xlu0 %1522, %v933
        %v1524 = vpop.permute.xlu0 %1523
        %1527 = vset.pattern.permute.xlu0 0
        %1528 = vperm.xlu0 %1527, %v934
        %v1529 = vpop.permute.xlu0 %1528
        %1532 = vset.pattern.permute.xlu0 0
        %1533 = vperm.xlu0 %1532, %v935
        %v1534 = vpop.permute.xlu0 %1533
        %v1536 = vmul.f32 %v696, %v939
        %v1537 = vmul.f32 %v697, %v944
        %v1538 = vmul.f32 %v698, %v949
        %v1539 = vmul.f32 %v699, %v954
        %v1540 = vmul.f32 %v700, %v959
        %v1541 = vmul.f32 %v701, %v964
        %v1542 = vmul.f32 %v702, %v969
        %v1543 = vmul.f32 %v703, %v974
        %v1544 = vmul.f32 %v704, %v979
        %v1545 = vmul.f32 %v705, %v984
        %v1546 = vmul.f32 %v706, %v989
        %v1547 = vmul.f32 %v707, %v994
        %v1548 = vmul.f32 %v708, %v999
        %v1549 = vmul.f32 %v709, %v1004
        %v1550 = vmul.f32 %v710, %v1009
        %v1551 = vmul.f32 %v711, %v1014
        %v1552 = vmul.f32 %v712, %v1019
        %v1553 = vmul.f32 %v713, %v1024
        %v1554 = vmul.f32 %v714, %v1029
        %v1555 = vmul.f32 %v715, %v1034
        %v1556 = vmul.f32 %v716, %v1039
        %v1557 = vmul.f32 %v717, %v1044
        %v1558 = vmul.f32 %v718, %v1049
        %v1559 = vmul.f32 %v719, %v1054
        %v1560 = vmul.f32 %v720, %v1059
        %v1561 = vmul.f32 %v721, %v1064
        %v1562 = vmul.f32 %v722, %v1069
        %v1563 = vmul.f32 %v723, %v1074
        %v1564 = vmul.f32 %v724, %v1079
        %v1565 = vmul.f32 %v725, %v1084
        %v1566 = vmul.f32 %v726, %v1089
        %v1567 = vmul.f32 %v727, %v1094
        %v1568 = vmul.f32 %v728, %v1099
        %v1569 = vmul.f32 %v729, %v1104
        %v1570 = vmul.f32 %v730, %v1109
        %v1571 = vmul.f32 %v731, %v1114
        %v1572 = vmul.f32 %v732, %v1119
        %v1573 = vmul.f32 %v733, %v1124
        %v1574 = vmul.f32 %v734, %v1129
        %v1575 = vmul.f32 %v735, %v1134
        %v1576 = vmul.f32 %v736, %v1139
        %v1577 = vmul.f32 %v737, %v1144
        %v1578 = vmul.f32 %v738, %v1149
        %v1579 = vmul.f32 %v739, %v1154
        %v1580 = vmul.f32 %v740, %v1159
        %v1581 = vmul.f32 %v741, %v1164
        %v1582 = vmul.f32 %v742, %v1169
        %v1583 = vmul.f32 %v743, %v1174
        %v1584 = vmul.f32 %v744, %v1179
        %v1585 = vmul.f32 %v745, %v1184
        %v1586 = vmul.f32 %v746, %v1189
        %v1587 = vmul.f32 %v747, %v1194
        %v1588 = vmul.f32 %v748, %v1199
        %v1589 = vmul.f32 %v749, %v1204
        %v1590 = vmul.f32 %v750, %v1209
        %v1591 = vmul.f32 %v751, %v1214
        %v1592 = vmul.f32 %v752, %v1219
        %v1593 = vmul.f32 %v753, %v1224
        %v1594 = vmul.f32 %v754, %v1229
        %v1595 = vmul.f32 %v755, %v1234
        %v1596 = vmul.f32 %v756, %v1239
        %v1597 = vmul.f32 %v757, %v1244
        %v1598 = vmul.f32 %v758, %v1249
        %v1599 = vmul.f32 %v759, %v1254
        %v1600 = vmul.f32 %v760, %v1259
        %v1601 = vmul.f32 %v761, %v1264
        %v1602 = vmul.f32 %v762, %v1269
        %v1603 = vmul.f32 %v763, %v1274
        %v1604 = vmul.f32 %v764, %v1279
        %v1605 = vmul.f32 %v765, %v1284
        %v1606 = vmul.f32 %v766, %v1289
        %v1607 = vmul.f32 %v767, %v1294
        %v1608 = vmul.f32 %v768, %v1299
        %v1609 = vmul.f32 %v769, %v1304
        %v1610 = vmul.f32 %v770, %v1309
        %v1611 = vmul.f32 %v771, %v1314
        %v1612 = vmul.f32 %v772, %v1319
        %v1613 = vmul.f32 %v773, %v1324
        %v1614 = vmul.f32 %v774, %v1329
        %v1615 = vmul.f32 %v775, %v1334
        %v1616 = vmul.f32 %v776, %v1339
        %v1617 = vmul.f32 %v777, %v1344
        %v1618 = vmul.f32 %v778, %v1349
        %v1619 = vmul.f32 %v779, %v1354
        %v1620 = vmul.f32 %v780, %v1359
        %v1621 = vmul.f32 %v781, %v1364
        %v1622 = vmul.f32 %v782, %v1369
        %v1623 = vmul.f32 %v783, %v1374
        %v1624 = vmul.f32 %v784, %v1379
        %v1625 = vmul.f32 %v785, %v1384
        %v1626 = vmul.f32 %v786, %v1389
        %v1627 = vmul.f32 %v787, %v1394
        %v1628 = vmul.f32 %v788, %v1399
        %v1629 = vmul.f32 %v789, %v1404
        %v1630 = vmul.f32 %v790, %v1409
        %v1631 = vmul.f32 %v791, %v1414
        %v1632 = vmul.f32 %v792, %v1419
        %v1633 = vmul.f32 %v793, %v1424
        %v1634 = vmul.f32 %v794, %v1429
        %v1635 = vmul.f32 %v795, %v1434
        %v1636 = vmul.f32 %v796, %v1439
        %v1637 = vmul.f32 %v797, %v1444
        %v1638 = vmul.f32 %v798, %v1449
        %v1639 = vmul.f32 %v799, %v1454
        %v1640 = vmul.f32 %v800, %v1459
        %v1641 = vmul.f32 %v801, %v1464
        %v1642 = vmul.f32 %v802, %v1469
        %v1643 = vmul.f32 %v803, %v1474
        %v1644 = vmul.f32 %v804, %v1479
        %v1645 = vmul.f32 %v805, %v1484
        %v1646 = vmul.f32 %v806, %v1489
        %v1647 = vmul.f32 %v807, %v1494
        %v1648 = vmul.f32 %v808, %v1499
        %v1649 = vmul.f32 %v809, %v1504
        %v1650 = vmul.f32 %v810, %v1509
        %v1651 = vmul.f32 %v811, %v1514
        %v1652 = vmul.f32 %v812, %v1519
        %v1653 = vmul.f32 %v813, %v1524
        %v1654 = vmul.f32 %v814, %v1529
        %v1655 = vmul.f32 %v815, %v1534
        %v1656 = vpack.c.bf16 %v1537, %v1536
        %v1657 = vpack.c.bf16 %v1539, %v1538
        %v1658 = vpack.c.bf16 %v1541, %v1540
        %v1659 = vpack.c.bf16 %v1543, %v1542
        %v1660 = vpack.c.bf16 %v1545, %v1544
        %v1661 = vpack.c.bf16 %v1547, %v1546
        %v1662 = vpack.c.bf16 %v1549, %v1548
        %v1663 = vpack.c.bf16 %v1551, %v1550
        %v1664 = vpack.c.bf16 %v1553, %v1552
        %v1665 = vpack.c.bf16 %v1555, %v1554
        %v1666 = vpack.c.bf16 %v1557, %v1556
        %v1667 = vpack.c.bf16 %v1559, %v1558
        %v1668 = vpack.c.bf16 %v1561, %v1560
        %v1669 = vpack.c.bf16 %v1563, %v1562
        %v1670 = vpack.c.bf16 %v1565, %v1564
        %v1671 = vpack.c.bf16 %v1567, %v1566
        %v1672 = vpack.c.bf16 %v1569, %v1568
        %v1673 = vpack.c.bf16 %v1571, %v1570
        %v1674 = vpack.c.bf16 %v1573, %v1572
        %v1675 = vpack.c.bf16 %v1575, %v1574
        %v1676 = vpack.c.bf16 %v1577, %v1576
        %v1677 = vpack.c.bf16 %v1579, %v1578
        %v1678 = vpack.c.bf16 %v1581, %v1580
        %v1679 = vpack.c.bf16 %v1583, %v1582
        %v1680 = vpack.c.bf16 %v1585, %v1584
        %v1681 = vpack.c.bf16 %v1587, %v1586
        %v1682 = vpack.c.bf16 %v1589, %v1588
        %v1683 = vpack.c.bf16 %v1591, %v1590
        %v1684 = vpack.c.bf16 %v1593, %v1592
        %v1685 = vpack.c.bf16 %v1595, %v1594
        %v1686 = vpack.c.bf16 %v1597, %v1596
        %v1687 = vpack.c.bf16 %v1599, %v1598
        %v1688 = vpack.c.bf16 %v1601, %v1600
        %v1689 = vpack.c.bf16 %v1603, %v1602
        %v1690 = vpack.c.bf16 %v1605, %v1604
        %v1691 = vpack.c.bf16 %v1607, %v1606
        %v1692 = vpack.c.bf16 %v1609, %v1608
        %v1693 = vpack.c.bf16 %v1611, %v1610
        %v1694 = vpack.c.bf16 %v1613, %v1612
        %v1695 = vpack.c.bf16 %v1615, %v1614
        %v1696 = vpack.c.bf16 %v1617, %v1616
        %v1697 = vpack.c.bf16 %v1619, %v1618
        %v1698 = vpack.c.bf16 %v1621, %v1620
        %v1699 = vpack.c.bf16 %v1623, %v1622
        %v1700 = vpack.c.bf16 %v1625, %v1624
        %v1701 = vpack.c.bf16 %v1627, %v1626
        %v1702 = vpack.c.bf16 %v1629, %v1628
        %v1703 = vpack.c.bf16 %v1631, %v1630
        %v1704 = vpack.c.bf16 %v1633, %v1632
        %v1705 = vpack.c.bf16 %v1635, %v1634
        %v1706 = vpack.c.bf16 %v1637, %v1636
        %v1707 = vpack.c.bf16 %v1639, %v1638
        %v1708 = vpack.c.bf16 %v1641, %v1640
        %v1709 = vpack.c.bf16 %v1643, %v1642
        %v1710 = vpack.c.bf16 %v1645, %v1644
        %v1711 = vpack.c.bf16 %v1647, %v1646
        %v1712 = vpack.c.bf16 %v1649, %v1648
        %v1713 = vpack.c.bf16 %v1651, %v1650
        %v1714 = vpack.c.bf16 %v1653, %v1652
        %v1715 = vpack.c.bf16 %v1655, %v1654
        %vm1716 = vcmask 60416
        %1717 = vst.msk [vmem:[#allocation2] sm:$0xf] %vm1716, %v1656
        %1718 = vst.msk [vmem:[#allocation2 + $0x4] sm:$0xf] %vm1716, %v1657
        %1719 = vst.msk [vmem:[#allocation2 + $0x8] sm:$0xf] %vm1716, %v1658
        %1720 = vst.msk [vmem:[#allocation2 + $0xc] sm:$0xf] %vm1716, %v1659
        %1721 = vst.msk [vmem:[#allocation2 + $0x10] sm:$0xf] %vm1716, %v1660
        %1722 = vst.msk [vmem:[#allocation2 + $0x14] sm:$0xf] %vm1716, %v1661
        %1723 = vst.msk [vmem:[#allocation2 + $0x18] sm:$0xf] %vm1716, %v1662
        %1724 = vst.msk [vmem:[#allocation2 + $0x1c] sm:$0xf] %vm1716, %v1663
        %1725 = vst.msk [vmem:[#allocation2 + $0x20] sm:$0xf] %vm1716, %v1666
        %1726 = vst.msk [vmem:[#allocation2 + $0x24] sm:$0xf] %vm1716, %v1667
        %1727 = vst.msk [vmem:[#allocation2 + $0x28] sm:$0xf] %vm1716, %v1668
        %1728 = vst.msk [vmem:[#allocation2 + $0x2c] sm:$0xf] %vm1716, %v1669
        %1729 = vst.msk [vmem:[#allocation2 + $0x30] sm:$0xf] %vm1716, %v1670
        %1730 = vst.msk [vmem:[#allocation2 + $0x34] sm:$0xf] %vm1716, %v1671
        %1731 = vst.msk [vmem:[#allocation2 + $0x38] sm:$0xf] %vm1716, %v1672
        %1732 = vst.msk [vmem:[#allocation2 + $0x3c] sm:$0xf] %vm1716, %v1673
        %1733 = vst.msk [vmem:[#allocation2 + $0x40] sm:$0xf] %vm1716, %v1676
        %1734 = vst.msk [vmem:[#allocation2 + $0x44] sm:$0xf] %vm1716, %v1677
        %1735 = vst.msk [vmem:[#allocation2 + $0x48] sm:$0xf] %vm1716, %v1678
        %1736 = vst.msk [vmem:[#allocation2 + $0x4c] sm:$0xf] %vm1716, %v1679
        %1737 = vst.msk [vmem:[#allocation2 + $0x50] sm:$0xf] %vm1716, %v1680
        %1738 = vst.msk [vmem:[#allocation2 + $0x54] sm:$0xf] %vm1716, %v1681
        %1739 = vst.msk [vmem:[#allocation2 + $0x58] sm:$0xf] %vm1716, %v1682
        %1740 = vst.msk [vmem:[#allocation2 + $0x5c] sm:$0xf] %vm1716, %v1683
        %1741 = vst.msk [vmem:[#allocation2 + $0x60] sm:$0xf] %vm1716, %v1686
        %1742 = vst.msk [vmem:[#allocation2 + $0x64] sm:$0xf] %vm1716, %v1687
        %1743 = vst.msk [vmem:[#allocation2 + $0x68] sm:$0xf] %vm1716, %v1688
        %1744 = vst.msk [vmem:[#allocation2 + $0x6c] sm:$0xf] %vm1716, %v1689
        %1745 = vst.msk [vmem:[#allocation2 + $0x70] sm:$0xf] %vm1716, %v1690
        %1746 = vst.msk [vmem:[#allocation2 + $0x74] sm:$0xf] %vm1716, %v1691
        %1747 = vst.msk [vmem:[#allocation2 + $0x78] sm:$0xf] %vm1716, %v1692
        %1748 = vst.msk [vmem:[#allocation2 + $0x7c] sm:$0xf] %vm1716, %v1693
        %v1781 = vunpack.c.l.b16 %v1656
        %v1782 = vunpack.c.h.b16 %v1656
        %v1783 = vunpack.c.l.b16 %v1657
        %v1784 = vunpack.c.h.b16 %v1657
        %v1785 = vunpack.c.l.b16 %v1658
        %v1786 = vunpack.c.h.b16 %v1658
        %v1787 = vunpack.c.l.b16 %v1659
        %v1788 = vunpack.c.h.b16 %v1659
        %v1789 = vunpack.c.l.b16 %v1660
        %v1790 = vunpack.c.h.b16 %v1660
        %v1791 = vunpack.c.l.b16 %v1661
        %v1792 = vunpack.c.h.b16 %v1661
        %v1793 = vunpack.c.l.b16 %v1662
        %v1794 = vunpack.c.h.b16 %v1662
        %v1795 = vunpack.c.l.b16 %v1663
        %v1796 = vunpack.c.h.b16 %v1663
        %v1797 = vunpack.c.l.b16 %v1666
        %v1798 = vunpack.c.h.b16 %v1666
        %v1799 = vunpack.c.l.b16 %v1667
        %v1800 = vunpack.c.h.b16 %v1667
        %v1801 = vunpack.c.l.b16 %v1668
        %v1802 = vunpack.c.h.b16 %v1668
        %v1803 = vunpack.c.l.b16 %v1669
        %v1804 = vunpack.c.h.b16 %v1669
        %v1805 = vunpack.c.l.b16 %v1670
        %v1806 = vunpack.c.h.b16 %v1670
        %v1807 = vunpack.c.l.b16 %v1671
        %v1808 = vunpack.c.h.b16 %v1671
        %v1809 = vunpack.c.l.b16 %v1672
        %v1810 = vunpack.c.h.b16 %v1672
        %v1811 = vunpack.c.l.b16 %v1673
        %v1812 = vunpack.c.h.b16 %v1673
        %v1813 = vunpack.c.l.b16 %v1676
        %v1814 = vunpack.c.h.b16 %v1676
        %v1815 = vunpack.c.l.b16 %v1677
        %v1816 = vunpack.c.h.b16 %v1677
        %v1817 = vunpack.c.l.b16 %v1678
        %v1818 = vunpack.c.h.b16 %v1678
        %v1819 = vunpack.c.l.b16 %v1679
        %v1820 = vunpack.c.h.b16 %v1679
        %v1821 = vunpack.c.l.b16 %v1680
        %v1822 = vunpack.c.h.b16 %v1680
        %v1823 = vunpack.c.l.b16 %v1681
        %v1824 = vunpack.c.h.b16 %v1681
        %v1825 = vunpack.c.l.b16 %v1682
        %v1826 = vunpack.c.h.b16 %v1682
        %v1827 = vunpack.c.l.b16 %v1683
        %v1828 = vunpack.c.h.b16 %v1683
        %v1829 = vunpack.c.l.b16 %v1686
        %v1830 = vunpack.c.h.b16 %v1686
        %v1831 = vunpack.c.l.b16 %v1687
        %v1832 = vunpack.c.h.b16 %v1687
        %v1833 = vunpack.c.l.b16 %v1688
        %v1834 = vunpack.c.h.b16 %v1688
        %v1835 = vunpack.c.l.b16 %v1689
        %v1836 = vunpack.c.h.b16 %v1689
        %v1837 = vunpack.c.l.b16 %v1690
        %v1838 = vunpack.c.h.b16 %v1690
        %v1839 = vunpack.c.l.b16 %v1691
        %v1840 = vunpack.c.h.b16 %v1691
        %v1841 = vunpack.c.l.b16 %v1692
        %v1842 = vunpack.c.h.b16 %v1692
        %v1843 = vunpack.c.l.b16 %v1693
        %v1844 = vunpack.c.h.b16 %v1693
        %v1845 = vpack.c.b16 %v1781, %v1781
        %v1846 = vpack.c.b16 %v1782, %v1782
        %v1847 = vpack.c.b16 %v1783, %v1783
        %v1848 = vpack.c.b16 %v1784, %v1784
        %v1849 = vpack.c.b16 %v1785, %v1785
        %v1850 = vpack.c.b16 %v1786, %v1786
        %v1851 = vpack.c.b16 %v1787, %v1787
        %v1852 = vpack.c.b16 %v1788, %v1788
        %v1853 = vpack.c.b16 %v1789, %v1789
        %v1854 = vpack.c.b16 %v1790, %v1790
        %v1855 = vpack.c.b16 %v1791, %v1791
        %v1856 = vpack.c.b16 %v1792, %v1792
        %v1857 = vpack.c.b16 %v1793, %v1793
        %v1858 = vpack.c.b16 %v1794, %v1794
        %v1859 = vpack.c.b16 %v1795, %v1795
        %v1860 = vpack.c.b16 %v1796, %v1796
        %v1861 = vpack.c.b16 %v1797, %v1797
        %v1862 = vpack.c.b16 %v1798, %v1798
        %v1863 = vpack.c.b16 %v1799, %v1799
        %v1864 = vpack.c.b16 %v1800, %v1800
        %v1865 = vpack.c.b16 %v1801, %v1801
        %v1866 = vpack.c.b16 %v1802, %v1802
        %v1867 = vpack.c.b16 %v1803, %v1803
        %v1868 = vpack.c.b16 %v1804, %v1804
        %v1869 = vpack.c.b16 %v1805, %v1805
        %v1870 = vpack.c.b16 %v1806, %v1806
        %v1871 = vpack.c.b16 %v1807, %v1807
        %v1872 = vpack.c.b16 %v1808, %v1808
        %v1873 = vpack.c.b16 %v1809, %v1809
        %v1874 = vpack.c.b16 %v1810, %v1810
        %v1875 = vpack.c.b16 %v1811, %v1811
        %v1876 = vpack.c.b16 %v1812, %v1812
        %v1877 = vpack.c.b16 %v1813, %v1813
        %v1878 = vpack.c.b16 %v1814, %v1814
        %v1879 = vpack.c.b16 %v1815, %v1815
        %v1880 = vpack.c.b16 %v1816, %v1816
        %v1881 = vpack.c.b16 %v1817, %v1817
        %v1882 = vpack.c.b16 %v1818, %v1818
        %v1883 = vpack.c.b16 %v1819, %v1819
        %v1884 = vpack.c.b16 %v1820, %v1820
        %v1885 = vpack.c.b16 %v1821, %v1821
        %v1886 = vpack.c.b16 %v1822, %v1822
        %v1887 = vpack.c.b16 %v1823, %v1823
        %v1888 = vpack.c.b16 %v1824, %v1824
        %v1889 = vpack.c.b16 %v1825, %v1825
        %v1890 = vpack.c.b16 %v1826, %v1826
        %v1891 = vpack.c.b16 %v1827, %v1827
        %v1892 = vpack.c.b16 %v1828, %v1828
        %v1893 = vpack.c.b16 %v1829, %v1829
        %v1894 = vpack.c.b16 %v1830, %v1830
        %v1895 = vpack.c.b16 %v1831, %v1831
        %v1896 = vpack.c.b16 %v1832, %v1832
        %v1897 = vpack.c.b16 %v1833, %v1833
        %v1898 = vpack.c.b16 %v1834, %v1834
        %v1899 = vpack.c.b16 %v1835, %v1835
        %v1900 = vpack.c.b16 %v1836, %v1836
        %v1901 = vpack.c.b16 %v1837, %v1837
        %v1902 = vpack.c.b16 %v1838, %v1838
        %v1903 = vpack.c.b16 %v1839, %v1839
        %v1904 = vpack.c.b16 %v1840, %v1840
        %v1905 = vpack.c.b16 %v1841, %v1841
        %v1906 = vpack.c.b16 %v1842, %v1842
        %v1907 = vpack.c.b16 %v1843, %v1843
        %v1908 = vpack.c.b16 %v1844, %v1844
        %vm1909 = vsmask.f32 3328
        %vm1910 = vsmask.f32 7440
        %vm1911 = vmor %vm1909, %vm1910
        %v1913 = vshrl.u32 %v1845, 16
        %v1915 = vrot.slane %v1913, 4
        %v1916 = vshll.u32 %v1845, 16
        %v1918 = vrot.slane %v1916, 5
        %v1919 = vor.u32 %v1915, %v1918
        %v1920 = vrot.slane %v1919, 4
        %v1922 = vshll.u32 %v1846, 16
        %v1924 = vrot.slane %v1922, 5
        %v1925 = vsel %vm1911, %v1920, %v1924
        %v1927 = vshrl.u32 %v1847, 16
        %v1929 = vrot.slane %v1927, 4
        %v1930 = vshll.u32 %v1847, 16
        %v1932 = vrot.slane %v1930, 5
        %v1933 = vor.u32 %v1929, %v1932
        %v1934 = vrot.slane %v1933, 4
        %v1936 = vshll.u32 %v1848, 16
        %v1938 = vrot.slane %v1936, 5
        %v1939 = vsel %vm1911, %v1934, %v1938
        %v1941 = vshrl.u32 %v1849, 16
        %v1943 = vrot.slane %v1941, 4
        %v1944 = vshll.u32 %v1849, 16
        %v1946 = vrot.slane %v1944, 5
        %v1947 = vor.u32 %v1943, %v1946
        %v1948 = vrot.slane %v1947, 4
        %v1950 = vshll.u32 %v1850, 16
        %v1952 = vrot.slane %v1950, 5
        %v1953 = vsel %vm1911, %v1948, %v1952
        %v1955 = vshrl.u32 %v1851, 16
        %v1957 = vrot.slane %v1955, 4
        %v1958 = vshll.u32 %v1851, 16
        %v1960 = vrot.slane %v1958, 5
        %v1961 = vor.u32 %v1957, %v1960
        %v1962 = vrot.slane %v1961, 4
        %v1964 = vshll.u32 %v1852, 16
        %v1966 = vrot.slane %v1964, 5
        %v1967 = vsel %vm1911, %v1962, %v1966
        %v1969 = vshrl.u32 %v1853, 16
        %v1971 = vrot.slane %v1969, 4
        %v1972 = vshll.u32 %v1853, 16
        %v1974 = vrot.slane %v1972, 5
        %v1975 = vor.u32 %v1971, %v1974
        %v1976 = vrot.slane %v1975, 4
        %v1978 = vshll.u32 %v1854, 16
        %v1980 = vrot.slane %v1978, 5
        %v1981 = vsel %vm1911, %v1976, %v1980
        %v1983 = vshrl.u32 %v1855, 16
        %v1985 = vrot.slane %v1983, 4
        %v1986 = vshll.u32 %v1855, 16
        %v1988 = vrot.slane %v1986, 5
        %v1989 = vor.u32 %v1985, %v1988
        %v1990 = vrot.slane %v1989, 4
        %v1992 = vshll.u32 %v1856, 16
        %v1994 = vrot.slane %v1992, 5
        %v1995 = vsel %vm1911, %v1990, %v1994
        %v1997 = vshrl.u32 %v1857, 16
        %v1999 = vrot.slane %v1997, 4
        %v2000 = vshll.u32 %v1857, 16
        %v2002 = vrot.slane %v2000, 5
        %v2003 = vor.u32 %v1999, %v2002
        %v2004 = vrot.slane %v2003, 4
        %v2006 = vshll.u32 %v1858, 16
        %v2008 = vrot.slane %v2006, 5
        %v2009 = vsel %vm1911, %v2004, %v2008
        %v2011 = vshrl.u32 %v1859, 16
        %v2013 = vrot.slane %v2011, 4
        %v2014 = vshll.u32 %v1859, 16
        %v2016 = vrot.slane %v2014, 5
        %v2017 = vor.u32 %v2013, %v2016
        %v2018 = vrot.slane %v2017, 4
        %v2020 = vshll.u32 %v1860, 16
        %v2022 = vrot.slane %v2020, 5
        %v2023 = vsel %vm1911, %v2018, %v2022
        %v2025 = vshrl.u32 %v1861, 16
        %v2027 = vrot.slane %v2025, 4
        %v2028 = vshll.u32 %v1861, 16
        %v2030 = vrot.slane %v2028, 5
        %v2031 = vor.u32 %v2027, %v2030
        %v2032 = vrot.slane %v2031, 4
        %v2034 = vshll.u32 %v1862, 16
        %v2036 = vrot.slane %v2034, 5
        %v2037 = vsel %vm1911, %v2032, %v2036
        %v2039 = vshrl.u32 %v1863, 16
        %v2041 = vrot.slane %v2039, 4
        %v2042 = vshll.u32 %v1863, 16
        %v2044 = vrot.slane %v2042, 5
        %v2045 = vor.u32 %v2041, %v2044
        %v2046 = vrot.slane %v2045, 4
        %v2048 = vshll.u32 %v1864, 16
        %v2050 = vrot.slane %v2048, 5
        %v2051 = vsel %vm1911, %v2046, %v2050
        %v2053 = vshrl.u32 %v1865, 16
        %v2055 = vrot.slane %v2053, 4
        %v2056 = vshll.u32 %v1865, 16
        %v2058 = vrot.slane %v2056, 5
        %v2059 = vor.u32 %v2055, %v2058
        %v2060 = vrot.slane %v2059, 4
        %v2062 = vshll.u32 %v1866, 16
        %v2064 = vrot.slane %v2062, 5
        %v2065 = vsel %vm1911, %v2060, %v2064
        %v2067 = vshrl.u32 %v1867, 16
        %v2069 = vrot.slane %v2067, 4
        %v2070 = vshll.u32 %v1867, 16
        %v2072 = vrot.slane %v2070, 5
        %v2073 = vor.u32 %v2069, %v2072
        %v2074 = vrot.slane %v2073, 4
        %v2076 = vshll.u32 %v1868, 16
        %v2078 = vrot.slane %v2076, 5
        %v2079 = vsel %vm1911, %v2074, %v2078
        %v2081 = vshrl.u32 %v1869, 16
        %v2083 = vrot.slane %v2081, 4
        %v2084 = vshll.u32 %v1869, 16
        %v2086 = vrot.slane %v2084, 5
        %v2087 = vor.u32 %v2083, %v2086
        %v2088 = vrot.slane %v2087, 4
        %v2090 = vshll.u32 %v1870, 16
        %v2092 = vrot.slane %v2090, 5
        %v2093 = vsel %vm1911, %v2088, %v2092
        %v2095 = vshrl.u32 %v1871, 16
        %v2097 = vrot.slane %v2095, 4
        %v2098 = vshll.u32 %v1871, 16
        %v2100 = vrot.slane %v2098, 5
        %v2101 = vor.u32 %v2097, %v2100
        %v2102 = vrot.slane %v2101, 4
        %v2104 = vshll.u32 %v1872, 16
        %v2106 = vrot.slane %v2104, 5
        %v2107 = vsel %vm1911, %v2102, %v2106
        %v2109 = vshrl.u32 %v1873, 16
        %v2111 = vrot.slane %v2109, 4
        %v2112 = vshll.u32 %v1873, 16
        %v2114 = vrot.slane %v2112, 5
        %v2115 = vor.u32 %v2111, %v2114
        %v2116 = vrot.slane %v2115, 4
        %v2118 = vshll.u32 %v1874, 16
        %v2120 = vrot.slane %v2118, 5
        %v2121 = vsel %vm1911, %v2116, %v2120
        %v2123 = vshrl.u32 %v1875, 16
        %v2125 = vrot.slane %v2123, 4
        %v2126 = vshll.u32 %v1875, 16
        %v2128 = vrot.slane %v2126, 5
        %v2129 = vor.u32 %v2125, %v2128
        %v2130 = vrot.slane %v2129, 4
        %v2132 = vshll.u32 %v1876, 16
        %v2134 = vrot.slane %v2132, 5
        %v2135 = vsel %vm1911, %v2130, %v2134
        %v2137 = vshrl.u32 %v1877, 16
        %v2139 = vrot.slane %v2137, 4
        %v2140 = vshll.u32 %v1877, 16
        %v2142 = vrot.slane %v2140, 5
        %v2143 = vor.u32 %v2139, %v2142
        %v2144 = vrot.slane %v2143, 4
        %v2146 = vshll.u32 %v1878, 16
        %v2148 = vrot.slane %v2146, 5
        %v2149 = vsel %vm1911, %v2144, %v2148
        %v2151 = vshrl.u32 %v1879, 16
        %v2153 = vrot.slane %v2151, 4
        %v2154 = vshll.u32 %v1879, 16
        %v2156 = vrot.slane %v2154, 5
        %v2157 = vor.u32 %v2153, %v2156
        %v2158 = vrot.slane %v2157, 4
        %v2160 = vshll.u32 %v1880, 16
        %v2162 = vrot.slane %v2160, 5
        %v2163 = vsel %vm1911, %v2158, %v2162
        %v2165 = vshrl.u32 %v1881, 16
        %v2167 = vrot.slane %v2165, 4
        %v2168 = vshll.u32 %v1881, 16
        %v2170 = vrot.slane %v2168, 5
        %v2171 = vor.u32 %v2167, %v2170
        %v2172 = vrot.slane %v2171, 4
        %v2174 = vshll.u32 %v1882, 16
        %v2176 = vrot.slane %v2174, 5
        %v2177 = vsel %vm1911, %v2172, %v2176
        %v2179 = vshrl.u32 %v1883, 16
        %v2181 = vrot.slane %v2179, 4
        %v2182 = vshll.u32 %v1883, 16
        %v2184 = vrot.slane %v2182, 5
        %v2185 = vor.u32 %v2181, %v2184
        %v2186 = vrot.slane %v2185, 4
        %v2188 = vshll.u32 %v1884, 16
        %v2190 = vrot.slane %v2188, 5
        %v2191 = vsel %vm1911, %v2186, %v2190
        %v2193 = vshrl.u32 %v1885, 16
        %v2195 = vrot.slane %v2193, 4
        %v2196 = vshll.u32 %v1885, 16
        %v2198 = vrot.slane %v2196, 5
        %v2199 = vor.u32 %v2195, %v2198
        %v2200 = vrot.slane %v2199, 4
        %v2202 = vshll.u32 %v1886, 16
        %v2204 = vrot.slane %v2202, 5
        %v2205 = vsel %vm1911, %v2200, %v2204
        %v2207 = vshrl.u32 %v1887, 16
        %v2209 = vrot.slane %v2207, 4
        %v2210 = vshll.u32 %v1887, 16
        %v2212 = vrot.slane %v2210, 5
        %v2213 = vor.u32 %v2209, %v2212
        %v2214 = vrot.slane %v2213, 4
        %v2216 = vshll.u32 %v1888, 16
        %v2218 = vrot.slane %v2216, 5
        %v2219 = vsel %vm1911, %v2214, %v2218
        %v2221 = vshrl.u32 %v1889, 16
        %v2223 = vrot.slane %v2221, 4
        %v2224 = vshll.u32 %v1889, 16
        %v2226 = vrot.slane %v2224, 5
        %v2227 = vor.u32 %v2223, %v2226
        %v2228 = vrot.slane %v2227, 4
        %v2230 = vshll.u32 %v1890, 16
        %v2232 = vrot.slane %v2230, 5
        %v2233 = vsel %vm1911, %v2228, %v2232
        %v2235 = vshrl.u32 %v1891, 16
        %v2237 = vrot.slane %v2235, 4
        %v2238 = vshll.u32 %v1891, 16
        %v2240 = vrot.slane %v2238, 5
        %v2241 = vor.u32 %v2237, %v2240
        %v2242 = vrot.slane %v2241, 4
        %v2244 = vshll.u32 %v1892, 16
        %v2246 = vrot.slane %v2244, 5
        %v2247 = vsel %vm1911, %v2242, %v2246
        %v2249 = vshrl.u32 %v1893, 16
        %v2251 = vrot.slane %v2249, 4
        %v2252 = vshll.u32 %v1893, 16
        %v2254 = vrot.slane %v2252, 5
        %v2255 = vor.u32 %v2251, %v2254
        %v2256 = vrot.slane %v2255, 4
        %v2258 = vshll.u32 %v1894, 16
        %v2260 = vrot.slane %v2258, 5
        %v2261 = vsel %vm1911, %v2256, %v2260
        %v2263 = vshrl.u32 %v1895, 16
        %v2265 = vrot.slane %v2263, 4
        %v2266 = vshll.u32 %v1895, 16
        %v2268 = vrot.slane %v2266, 5
        %v2269 = vor.u32 %v2265, %v2268
        %v2270 = vrot.slane %v2269, 4
        %v2272 = vshll.u32 %v1896, 16
        %v2274 = vrot.slane %v2272, 5
        %v2275 = vsel %vm1911, %v2270, %v2274
        %v2277 = vshrl.u32 %v1897, 16
        %v2279 = vrot.slane %v2277, 4
        %v2280 = vshll.u32 %v1897, 16
        %v2282 = vrot.slane %v2280, 5
        %v2283 = vor.u32 %v2279, %v2282
        %v2284 = vrot.slane %v2283, 4
        %v2286 = vshll.u32 %v1898, 16
        %v2288 = vrot.slane %v2286, 5
        %v2289 = vsel %vm1911, %v2284, %v2288
        %v2291 = vshrl.u32 %v1899, 16
        %v2293 = vrot.slane %v2291, 4
        %v2294 = vshll.u32 %v1899, 16
        %v2296 = vrot.slane %v2294, 5
        %v2297 = vor.u32 %v2293, %v2296
        %v2298 = vrot.slane %v2297, 4
        %v2300 = vshll.u32 %v1900, 16
        %v2302 = vrot.slane %v2300, 5
        %v2303 = vsel %vm1911, %v2298, %v2302
        %v2305 = vshrl.u32 %v1901, 16
        %v2307 = vrot.slane %v2305, 4
        %v2308 = vshll.u32 %v1901, 16
        %v2310 = vrot.slane %v2308, 5
        %v2311 = vor.u32 %v2307, %v2310
        %v2312 = vrot.slane %v2311, 4
        %v2314 = vshll.u32 %v1902, 16
        %v2316 = vrot.slane %v2314, 5
        %v2317 = vsel %vm1911, %v2312, %v2316
        %v2319 = vshrl.u32 %v1903, 16
        %v2321 = vrot.slane %v2319, 4
        %v2322 = vshll.u32 %v1903, 16
        %v2324 = vrot.slane %v2322, 5
        %v2325 = vor.u32 %v2321, %v2324
        %v2326 = vrot.slane %v2325, 4
        %v2328 = vshll.u32 %v1904, 16
        %v2330 = vrot.slane %v2328, 5
        %v2331 = vsel %vm1911, %v2326, %v2330
        %v2333 = vshrl.u32 %v1905, 16
        %v2335 = vrot.slane %v2333, 4
        %v2336 = vshll.u32 %v1905, 16
        %v2338 = vrot.slane %v2336, 5
        %v2339 = vor.u32 %v2335, %v2338
        %v2340 = vrot.slane %v2339, 4
        %v2342 = vshll.u32 %v1906, 16
        %v2344 = vrot.slane %v2342, 5
        %v2345 = vsel %vm1911, %v2340, %v2344
        %v2347 = vshrl.u32 %v1907, 16
        %v2349 = vrot.slane %v2347, 4
        %v2350 = vshll.u32 %v1907, 16
        %v2352 = vrot.slane %v2350, 5
        %v2353 = vor.u32 %v2349, %v2352
        %v2354 = vrot.slane %v2353, 4
        %v2356 = vshll.u32 %v1908, 16
        %v2358 = vrot.slane %v2356, 5
        %v2359 = vsel %vm1911, %v2354, %v2358
        %2360 = vrot.lane.b32.xlu0 %v1925, 8
        %v2361 = vpop.permute.xlu0 %2360
        %2362 = vrot.lane.b32.xlu0 %v1939, 8
        %v2363 = vpop.permute.xlu0 %2362
        %2364 = vrot.lane.b32.xlu0 %v1953, 8
        %v2365 = vpop.permute.xlu0 %2364
        %2366 = vrot.lane.b32.xlu0 %v1967, 8
        %v2367 = vpop.permute.xlu0 %2366
        %2368 = vrot.lane.b32.xlu0 %v1981, 8
        %v2369 = vpop.permute.xlu0 %2368
        %2370 = vrot.lane.b32.xlu0 %v1995, 8
        %v2371 = vpop.permute.xlu0 %2370
        %2372 = vrot.lane.b32.xlu0 %v2009, 8
        %v2373 = vpop.permute.xlu0 %2372
        %2374 = vrot.lane.b32.xlu0 %v2023, 8
        %v2375 = vpop.permute.xlu0 %2374
        %2376 = vrot.lane.b32.xlu0 %v2037, 8
        %v2377 = vpop.permute.xlu0 %2376
        %2378 = vrot.lane.b32.xlu0 %v2051, 8
        %v2379 = vpop.permute.xlu0 %2378
        %2380 = vrot.lane.b32.xlu0 %v2065, 8
        %v2381 = vpop.permute.xlu0 %2380
        %2382 = vrot.lane.b32.xlu0 %v2079, 8
        %v2383 = vpop.permute.xlu0 %2382
        %2384 = vrot.lane.b32.xlu0 %v2093, 8
        %v2385 = vpop.permute.xlu0 %2384
        %2386 = vrot.lane.b32.xlu0 %v2107, 8
        %v2387 = vpop.permute.xlu0 %2386
        %2388 = vrot.lane.b32.xlu0 %v2121, 8
        %v2389 = vpop.permute.xlu0 %2388
        %2390 = vrot.lane.b32.xlu0 %v2135, 8
        %v2391 = vpop.permute.xlu0 %2390
        %2392 = vrot.lane.b32.xlu0 %v2149, 8
        %v2393 = vpop.permute.xlu0 %2392
        %2394 = vrot.lane.b32.xlu0 %v2163, 8
        %v2395 = vpop.permute.xlu0 %2394
        %2396 = vrot.lane.b32.xlu0 %v2177, 8
        %v2397 = vpop.permute.xlu0 %2396
        %2398 = vrot.lane.b32.xlu0 %v2191, 8
        %v2399 = vpop.permute.xlu0 %2398
        %2400 = vrot.lane.b32.xlu0 %v2205, 8
        %v2401 = vpop.permute.xlu0 %2400
        %2402 = vrot.lane.b32.xlu0 %v2219, 8
        %v2403 = vpop.permute.xlu0 %2402
        %2404 = vrot.lane.b32.xlu0 %v2233, 8
        %v2405 = vpop.permute.xlu0 %2404
        %2406 = vrot.lane.b32.xlu0 %v2247, 8
        %v2407 = vpop.permute.xlu0 %2406
        %2408 = vrot.lane.b32.xlu0 %v2261, 8
        %v2409 = vpop.permute.xlu0 %2408
        %2410 = vrot.lane.b32.xlu0 %v2275, 8
        %v2411 = vpop.permute.xlu0 %2410
        %2412 = vrot.lane.b32.xlu0 %v2289, 8
        %v2413 = vpop.permute.xlu0 %2412
        %2414 = vrot.lane.b32.xlu0 %v2303, 8
        %v2415 = vpop.permute.xlu0 %2414
        %2416 = vrot.lane.b32.xlu0 %v2317, 8
        %v2417 = vpop.permute.xlu0 %2416
        %2418 = vrot.lane.b32.xlu0 %v2331, 8
        %v2419 = vpop.permute.xlu0 %2418
        %2420 = vrot.lane.b32.xlu0 %v2345, 8
        %v2421 = vpop.permute.xlu0 %2420
        %2422 = vrot.lane.b32.xlu0 %v2359, 8
        %v2423 = vpop.permute.xlu0 %2422
        %vm2456 = vcmask 126016
        %2457 = vst.msk [vmem:[#allocation2] sm:$0xf] %vm2456, %v2361
        %2458 = vst.msk [vmem:[#allocation2 + $0x4] sm:$0xf] %vm2456, %v2363
        %2459 = vst.msk [vmem:[#allocation2 + $0x8] sm:$0xf] %vm2456, %v2365
        %2460 = vst.msk [vmem:[#allocation2 + $0xc] sm:$0xf] %vm2456, %v2367
        %2461 = vst.msk [vmem:[#allocation2 + $0x10] sm:$0xf] %vm2456, %v2369
        %2462 = vst.msk [vmem:[#allocation2 + $0x14] sm:$0xf] %vm2456, %v2371
        %2463 = vst.msk [vmem:[#allocation2 + $0x18] sm:$0xf] %vm2456, %v2373
        %2464 = vst.msk [vmem:[#allocation2 + $0x1c] sm:$0xf] %vm2456, %v2375
        %2465 = vst.msk [vmem:[#allocation2 + $0x20] sm:$0xf] %vm2456, %v2377
        %2466 = vst.msk [vmem:[#allocation2 + $0x24] sm:$0xf] %vm2456, %v2379
        %2467 = vst.msk [vmem:[#allocation2 + $0x28] sm:$0xf] %vm2456, %v2381
        %2468 = vst.msk [vmem:[#allocation2 + $0x2c] sm:$0xf] %vm2456, %v2383
        %2469 = vst.msk [vmem:[#allocation2 + $0x30] sm:$0xf] %vm2456, %v2385
        %2470 = vst.msk [vmem:[#allocation2 + $0x34] sm:$0xf] %vm2456, %v2387
        %2471 = vst.msk [vmem:[#allocation2 + $0x38] sm:$0xf] %vm2456, %v2389
        %2472 = vst.msk [vmem:[#allocation2 + $0x3c] sm:$0xf] %vm2456, %v2391
        %2473 = vst.msk [vmem:[#allocation2 + $0x40] sm:$0xf] %vm2456, %v2393
        %2474 = vst.msk [vmem:[#allocation2 + $0x44] sm:$0xf] %vm2456, %v2395
        %2475 = vst.msk [vmem:[#allocation2 + $0x48] sm:$0xf] %vm2456, %v2397
        %2476 = vst.msk [vmem:[#allocation2 + $0x4c] sm:$0xf] %vm2456, %v2399
        %2477 = vst.msk [vmem:[#allocation2 + $0x50] sm:$0xf] %vm2456, %v2401
        %2478 = vst.msk [vmem:[#allocation2 + $0x54] sm:$0xf] %vm2456, %v2403
        %2479 = vst.msk [vmem:[#allocation2 + $0x58] sm:$0xf] %vm2456, %v2405
        %2480 = vst.msk [vmem:[#allocation2 + $0x5c] sm:$0xf] %vm2456, %v2407
        %2481 = vst.msk [vmem:[#allocation2 + $0x60] sm:$0xf] %vm2456, %v2409
        %2482 = vst.msk [vmem:[#allocation2 + $0x64] sm:$0xf] %vm2456, %v2411
        %2483 = vst.msk [vmem:[#allocation2 + $0x68] sm:$0xf] %vm2456, %v2413
        %2484 = vst.msk [vmem:[#allocation2 + $0x6c] sm:$0xf] %vm2456, %v2415
        %2485 = vst.msk [vmem:[#allocation2 + $0x70] sm:$0xf] %vm2456, %v2417
        %2486 = vst.msk [vmem:[#allocation2 + $0x74] sm:$0xf] %vm2456, %v2419
        %2487 = vst.msk [vmem:[#allocation2 + $0x78] sm:$0xf] %vm2456, %v2421
        %2488 = vst.msk [vmem:[#allocation2 + $0x7c] sm:$0xf] %vm2456, %v2423
        %vm2489 = vcmask 1042432
        %vm2490 = vcmask 1046532
        %vm2491 = vmor %vm2489, %vm2490
        %v2492 = vrot.slane %v1845, 5
        %v2493 = vrot.slane %v2492, 4
        %v2494 = vrot.slane %v1846, 5
        %v2495 = vsel %vm2491, %v2493, %v2494
        %v2496 = vrot.slane %v1847, 5
        %v2497 = vrot.slane %v2496, 4
        %v2498 = vrot.slane %v1848, 5
        %v2499 = vsel %vm2491, %v2497, %v2498
        %v2500 = vrot.slane %v1849, 5
        %v2501 = vrot.slane %v2500, 4
        %v2502 = vrot.slane %v1850, 5
        %v2503 = vsel %vm2491, %v2501, %v2502
        %v2504 = vrot.slane %v1851, 5
        %v2505 = vrot.slane %v2504, 4
        %v2506 = vrot.slane %v1852, 5
        %v2507 = vsel %vm2491, %v2505, %v2506
        %v2508 = vrot.slane %v1853, 5
        %v2509 = vrot.slane %v2508, 4
        %v2510 = vrot.slane %v1854, 5
        %v2511 = vsel %vm2491, %v2509, %v2510
        %v2512 = vrot.slane %v1855, 5
        %v2513 = vrot.slane %v2512, 4
        %v2514 = vrot.slane %v1856, 5
        %v2515 = vsel %vm2491, %v2513, %v2514
        %v2516 = vrot.slane %v1857, 5
        %v2517 = vrot.slane %v2516, 4
        %v2518 = vrot.slane %v1858, 5
        %v2519 = vsel %vm2491, %v2517, %v2518
        %v2520 = vrot.slane %v1859, 5
        %v2521 = vrot.slane %v2520, 4
        %v2522 = vrot.slane %v1860, 5
        %v2523 = vsel %vm2491, %v2521, %v2522
        %v2524 = vrot.slane %v1861, 5
        %v2525 = vrot.slane %v2524, 4
        %v2526 = vrot.slane %v1862, 5
        %v2527 = vsel %vm2491, %v2525, %v2526
        %v2528 = vrot.slane %v1863, 5
        %v2529 = vrot.slane %v2528, 4
        %v2530 = vrot.slane %v1864, 5
        %v2531 = vsel %vm2491, %v2529, %v2530
        %v2532 = vrot.slane %v1865, 5
        %v2533 = vrot.slane %v2532, 4
        %v2534 = vrot.slane %v1866, 5
        %v2535 = vsel %vm2491, %v2533, %v2534
        %v2536 = vrot.slane %v1867, 5
        %v2537 = vrot.slane %v2536, 4
        %v2538 = vrot.slane %v1868, 5
        %v2539 = vsel %vm2491, %v2537, %v2538
        %v2540 = vrot.slane %v1869, 5
        %v2541 = vrot.slane %v2540, 4
        %v2542 = vrot.slane %v1870, 5
        %v2543 = vsel %vm2491, %v2541, %v2542
        %v2544 = vrot.slane %v1871, 5
        %v2545 = vrot.slane %v2544, 4
        %v2546 = vrot.slane %v1872, 5
        %v2547 = vsel %vm2491, %v2545, %v2546
        %v2548 = vrot.slane %v1873, 5
        %v2549 = vrot.slane %v2548, 4
        %v2550 = vrot.slane %v1874, 5
        %v2551 = vsel %vm2491, %v2549, %v2550
        %v2552 = vrot.slane %v1875, 5
        %v2553 = vrot.slane %v2552, 4
        %v2554 = vrot.slane %v1876, 5
        %v2555 = vsel %vm2491, %v2553, %v2554
        %v2556 = vrot.slane %v1877, 5
        %v2557 = vrot.slane %v2556, 4
        %v2558 = vrot.slane %v1878, 5
        %v2559 = vsel %vm2491, %v2557, %v2558
        %v2560 = vrot.slane %v1879, 5
        %v2561 = vrot.slane %v2560, 4
        %v2562 = vrot.slane %v1880, 5
        %v2563 = vsel %vm2491, %v2561, %v2562
        %v2564 = vrot.slane %v1881, 5
        %v2565 = vrot.slane %v2564, 4
        %v2566 = vrot.slane %v1882, 5
        %v2567 = vsel %vm2491, %v2565, %v2566
        %v2568 = vrot.slane %v1883, 5
        %v2569 = vrot.slane %v2568, 4
        %v2570 = vrot.slane %v1884, 5
        %v2571 = vsel %vm2491, %v2569, %v2570
        %v2572 = vrot.slane %v1885, 5
        %v2573 = vrot.slane %v2572, 4
        %v2574 = vrot.slane %v1886, 5
        %v2575 = vsel %vm2491, %v2573, %v2574
        %v2576 = vrot.slane %v1887, 5
        %v2577 = vrot.slane %v2576, 4
        %v2578 = vrot.slane %v1888, 5
        %v2579 = vsel %vm2491, %v2577, %v2578
        %v2580 = vrot.slane %v1889, 5
        %v2581 = vrot.slane %v2580, 4
        %v2582 = vrot.slane %v1890, 5
        %v2583 = vsel %vm2491, %v2581, %v2582
        %v2584 = vrot.slane %v1891, 5
        %v2585 = vrot.slane %v2584, 4
        %v2586 = vrot.slane %v1892, 5
        %v2587 = vsel %vm2491, %v2585, %v2586
        %v2588 = vrot.slane %v1893, 5
        %v2589 = vrot.slane %v2588, 4
        %v2590 = vrot.slane %v1894, 5
        %v2591 = vsel %vm2491, %v2589, %v2590
        %v2592 = vrot.slane %v1895, 5
        %v2593 = vrot.slane %v2592, 4
        %v2594 = vrot.slane %v1896, 5
        %v2595 = vsel %vm2491, %v2593, %v2594
        %v2596 = vrot.slane %v1897, 5
        %v2597 = vrot.slane %v2596, 4
        %v2598 = vrot.slane %v1898, 5
        %v2599 = vsel %vm2491, %v2597, %v2598
        %v2600 = vrot.slane %v1899, 5
        %v2601 = vrot.slane %v2600, 4
        %v2602 = vrot.slane %v1900, 5
        %v2603 = vsel %vm2491, %v2601, %v2602
        %v2604 = vrot.slane %v1901, 5
        %v2605 = vrot.slane %v2604, 4
        %v2606 = vrot.slane %v1902, 5
        %v2607 = vsel %vm2491, %v2605, %v2606
        %v2608 = vrot.slane %v1903, 5
        %v2609 = vrot.slane %v2608, 4
        %v2610 = vrot.slane %v1904, 5
        %v2611 = vsel %vm2491, %v2609, %v2610
        %v2612 = vrot.slane %v1905, 5
        %v2613 = vrot.slane %v2612, 4
        %v2614 = vrot.slane %v1906, 5
        %v2615 = vsel %vm2491, %v2613, %v2614
        %v2616 = vrot.slane %v1907, 5
        %v2617 = vrot.slane %v2616, 4
        %v2618 = vrot.slane %v1908, 5
        %v2619 = vsel %vm2491, %v2617, %v2618
        %2620 = vrot.lane.b32.xlu0 %v2495, 16
        %v2621 = vpop.permute.xlu0 %2620
        %2622 = vrot.lane.b32.xlu0 %v2499, 16
        %v2623 = vpop.permute.xlu0 %2622
        %2624 = vrot.lane.b32.xlu0 %v2503, 16
        %v2625 = vpop.permute.xlu0 %2624
        %2626 = vrot.lane.b32.xlu0 %v2507, 16
        %v2627 = vpop.permute.xlu0 %2626
        %2628 = vrot.lane.b32.xlu0 %v2511, 16
        %v2629 = vpop.permute.xlu0 %2628
        %2630 = vrot.lane.b32.xlu0 %v2515, 16
        %v2631 = vpop.permute.xlu0 %2630
        %2632 = vrot.lane.b32.xlu0 %v2519, 16
        %v2633 = vpop.permute.xlu0 %2632
        %2634 = vrot.lane.b32.xlu0 %v2523, 16
        %v2635 = vpop.permute.xlu0 %2634
        %2636 = vrot.lane.b32.xlu0 %v2527, 16
        %v2637 = vpop.permute.xlu0 %2636
        %2638 = vrot.lane.b32.xlu0 %v2531, 16
        %v2639 = vpop.permute.xlu0 %2638
        %2640 = vrot.lane.b32.xlu0 %v2535, 16
        %v2641 = vpop.permute.xlu0 %2640
        %2642 = vrot.lane.b32.xlu0 %v2539, 16
        %v2643 = vpop.permute.xlu0 %2642
        %2644 = vrot.lane.b32.xlu0 %v2543, 16
        %v2645 = vpop.permute.xlu0 %2644
        %2646 = vrot.lane.b32.xlu0 %v2547, 16
        %v2647 = vpop.permute.xlu0 %2646
        %2648 = vrot.lane.b32.xlu0 %v2551, 16
        %v2649 = vpop.permute.xlu0 %2648
        %2650 = vrot.lane.b32.xlu0 %v2555, 16
        %v2651 = vpop.permute.xlu0 %2650
        %2652 = vrot.lane.b32.xlu0 %v2559, 16
        %v2653 = vpop.permute.xlu0 %2652
        %2654 = vrot.lane.b32.xlu0 %v2563, 16
        %v2655 = vpop.permute.xlu0 %2654
        %2656 = vrot.lane.b32.xlu0 %v2567, 16
        %v2657 = vpop.permute.xlu0 %2656
        %2658 = vrot.lane.b32.xlu0 %v2571, 16
        %v2659 = vpop.permute.xlu0 %2658
        %2660 = vrot.lane.b32.xlu0 %v2575, 16
        %v2661 = vpop.permute.xlu0 %2660
        %2662 = vrot.lane.b32.xlu0 %v2579, 16
        %v2663 = vpop.permute.xlu0 %2662
        %2664 = vrot.lane.b32.xlu0 %v2583, 16
        %v2665 = vpop.permute.xlu0 %2664
        %2666 = vrot.lane.b32.xlu0 %v2587, 16
        %v2667 = vpop.permute.xlu0 %2666
        %2668 = vrot.lane.b32.xlu0 %v2591, 16
        %v2669 = vpop.permute.xlu0 %2668
        %2670 = vrot.lane.b32.xlu0 %v2595, 16
        %v2671 = vpop.permute.xlu0 %2670
        %2672 = vrot.lane.b32.xlu0 %v2599, 16
        %v2673 = vpop.permute.xlu0 %2672
        %2674 = vrot.lane.b32.xlu0 %v2603, 16
        %v2675 = vpop.permute.xlu0 %2674
        %2676 = vrot.lane.b32.xlu0 %v2607, 16
        %v2677 = vpop.permute.xlu0 %2676
        %2678 = vrot.lane.b32.xlu0 %v2611, 16
        %v2679 = vpop.permute.xlu0 %2678
        %2680 = vrot.lane.b32.xlu0 %v2615, 16
        %v2681 = vpop.permute.xlu0 %2680
        %2682 = vrot.lane.b32.xlu0 %v2619, 16
        %v2683 = vpop.permute.xlu0 %2682
        %vm2716 = vcmask 191616
        %2717 = vst.msk [vmem:[#allocation2] sm:$0xf] %vm2716, %v2621
        %2718 = vst.msk [vmem:[#allocation2 + $0x4] sm:$0xf] %vm2716, %v2623
        %2719 = vst.msk [vmem:[#allocation2 + $0x8] sm:$0xf] %vm2716, %v2625
        %2720 = vst.msk [vmem:[#allocation2 + $0xc] sm:$0xf] %vm2716, %v2627
        %2721 = vst.msk [vmem:[#allocation2 + $0x10] sm:$0xf] %vm2716, %v2629
        %2722 = vst.msk [vmem:[#allocation2 + $0x14] sm:$0xf] %vm2716, %v2631
        %2723 = vst.msk [vmem:[#allocation2 + $0x18] sm:$0xf] %vm2716, %v2633
        %2724 = vst.msk [vmem:[#allocation2 + $0x1c] sm:$0xf] %vm2716, %v2635
        %2725 = vst.msk [vmem:[#allocation2 + $0x20] sm:$0xf] %vm2716, %v2637
        %2726 = vst.msk [vmem:[#allocation2 + $0x24] sm:$0xf] %vm2716, %v2639
        %2727 = vst.msk [vmem:[#allocation2 + $0x28] sm:$0xf] %vm2716, %v2641
        %2728 = vst.msk [vmem:[#allocation2 + $0x2c] sm:$0xf] %vm2716, %v2643
        %2729 = vst.msk [vmem:[#allocation2 + $0x30] sm:$0xf] %vm2716, %v2645
        %2730 = vst.msk [vmem:[#allocation2 + $0x34] sm:$0xf] %vm2716, %v2647
        %2731 = vst.msk [vmem:[#allocation2 + $0x38] sm:$0xf] %vm2716, %v2649
        %2732 = vst.msk [vmem:[#allocation2 + $0x3c] sm:$0xf] %vm2716, %v2651
        %2733 = vst.msk [vmem:[#allocation2 + $0x40] sm:$0xf] %vm2716, %v2653
        %2734 = vst.msk [vmem:[#allocation2 + $0x44] sm:$0xf] %vm2716, %v2655
        %2735 = vst.msk [vmem:[#allocation2 + $0x48] sm:$0xf] %vm2716, %v2657
        %2736 = vst.msk [vmem:[#allocation2 + $0x4c] sm:$0xf] %vm2716, %v2659
        %2737 = vst.msk [vmem:[#allocation2 + $0x50] sm:$0xf] %vm2716, %v2661
        %2738 = vst.msk [vmem:[#allocation2 + $0x54] sm:$0xf] %vm2716, %v2663
        %2739 = vst.msk [vmem:[#allocation2 + $0x58] sm:$0xf] %vm2716, %v2665
        %2740 = vst.msk [vmem:[#allocation2 + $0x5c] sm:$0xf] %vm2716, %v2667
        %2741 = vst.msk [vmem:[#allocation2 + $0x60] sm:$0xf] %vm2716, %v2669
        %2742 = vst.msk [vmem:[#allocation2 + $0x64] sm:$0xf] %vm2716, %v2671
        %2743 = vst.msk [vmem:[#allocation2 + $0x68] sm:$0xf] %vm2716, %v2673
        %2744 = vst.msk [vmem:[#allocation2 + $0x6c] sm:$0xf] %vm2716, %v2675
        %2745 = vst.msk [vmem:[#allocation2 + $0x70] sm:$0xf] %vm2716, %v2677
        %2746 = vst.msk [vmem:[#allocation2 + $0x74] sm:$0xf] %vm2716, %v2679
        %2747 = vst.msk [vmem:[#allocation2 + $0x78] sm:$0xf] %vm2716, %v2681
        %2748 = vst.msk [vmem:[#allocation2 + $0x7c] sm:$0xf] %vm2716, %v2683
        %2753 = vrot.lane.b32.xlu0 %v1657, 24
        %v2754 = vpop.permute.xlu0 %2753
        %2755 = vrot.lane.b32.xlu0 %v1658, 24
        %v2756 = vpop.permute.xlu0 %2755
        %2757 = vrot.lane.b32.xlu0 %v1659, 24
        %v2758 = vpop.permute.xlu0 %2757
        %2759 = vrot.lane.b32.xlu0 %v1660, 24
        %v2760 = vpop.permute.xlu0 %2759
        %2761 = vrot.lane.b32.xlu0 %v1661, 24
        %v2762 = vpop.permute.xlu0 %2761
        %2763 = vrot.lane.b32.xlu0 %v1662, 24
        %v2764 = vpop.permute.xlu0 %2763
        %2765 = vrot.lane.b32.xlu0 %v1663, 24
        %v2766 = vpop.permute.xlu0 %2765
        %2767 = vrot.lane.b32.xlu0 %v1664, 24
        %v2768 = vpop.permute.xlu0 %2767
        %2769 = vrot.lane.b32.xlu0 %v1667, 24
        %v2770 = vpop.permute.xlu0 %2769
        %2771 = vrot.lane.b32.xlu0 %v1668, 24
        %v2772 = vpop.permute.xlu0 %2771
        %2773 = vrot.lane.b32.xlu0 %v1669, 24
        %v2774 = vpop.permute.xlu0 %2773
        %2775 = vrot.lane.b32.xlu0 %v1670, 24
        %v2776 = vpop.permute.xlu0 %2775
        %2777 = vrot.lane.b32.xlu0 %v1671, 24
        %v2778 = vpop.permute.xlu0 %2777
        %2779 = vrot.lane.b32.xlu0 %v1672, 24
        %v2780 = vpop.permute.xlu0 %2779
        %2781 = vrot.lane.b32.xlu0 %v1673, 24
        %v2782 = vpop.permute.xlu0 %2781
        %2783 = vrot.lane.b32.xlu0 %v1674, 24
        %v2784 = vpop.permute.xlu0 %2783
        %2785 = vrot.lane.b32.xlu0 %v1677, 24
        %v2786 = vpop.permute.xlu0 %2785
        %2787 = vrot.lane.b32.xlu0 %v1678, 24
        %v2788 = vpop.permute.xlu0 %2787
        %2789 = vrot.lane.b32.xlu0 %v1679, 24
        %v2790 = vpop.permute.xlu0 %2789
        %2791 = vrot.lane.b32.xlu0 %v1680, 24
        %v2792 = vpop.permute.xlu0 %2791
        %2793 = vrot.lane.b32.xlu0 %v1681, 24
        %v2794 = vpop.permute.xlu0 %2793
        %2795 = vrot.lane.b32.xlu0 %v1682, 24
        %v2796 = vpop.permute.xlu0 %2795
        %2797 = vrot.lane.b32.xlu0 %v1683, 24
        %v2798 = vpop.permute.xlu0 %2797
        %2799 = vrot.lane.b32.xlu0 %v1684, 24
        %v2800 = vpop.permute.xlu0 %2799
        %2801 = vrot.lane.b32.xlu0 %v1687, 24
        %v2802 = vpop.permute.xlu0 %2801
        %2803 = vrot.lane.b32.xlu0 %v1688, 24
        %v2804 = vpop.permute.xlu0 %2803
        %2805 = vrot.lane.b32.xlu0 %v1689, 24
        %v2806 = vpop.permute.xlu0 %2805
        %2807 = vrot.lane.b32.xlu0 %v1690, 24
        %v2808 = vpop.permute.xlu0 %2807
        %2809 = vrot.lane.b32.xlu0 %v1691, 24
        %v2810 = vpop.permute.xlu0 %2809
        %2811 = vrot.lane.b32.xlu0 %v1692, 24
        %v2812 = vpop.permute.xlu0 %2811
        %2813 = vrot.lane.b32.xlu0 %v1693, 24
        %v2814 = vpop.permute.xlu0 %2813
        %2815 = vrot.lane.b32.xlu0 %v1694, 24
        %v2816 = vpop.permute.xlu0 %2815
        %vm2849 = vcmask 257216
        %2850 = vst.msk [vmem:[#allocation2] sm:$0xf] %vm2849, %v2754
        %2851 = vst.msk [vmem:[#allocation2 + $0x4] sm:$0xf] %vm2849, %v2756
        %2852 = vst.msk [vmem:[#allocation2 + $0x8] sm:$0xf] %vm2849, %v2758
        %2853 = vst.msk [vmem:[#allocation2 + $0xc] sm:$0xf] %vm2849, %v2760
        %2854 = vst.msk [vmem:[#allocation2 + $0x10] sm:$0xf] %vm2849, %v2762
        %2855 = vst.msk [vmem:[#allocation2 + $0x14] sm:$0xf] %vm2849, %v2764
        %2856 = vst.msk [vmem:[#allocation2 + $0x18] sm:$0xf] %vm2849, %v2766
        %2857 = vst.msk [vmem:[#allocation2 + $0x1c] sm:$0xf] %vm2849, %v2768
        %2858 = vst.msk [vmem:[#allocation2 + $0x20] sm:$0xf] %vm2849, %v2770
        %2859 = vst.msk [vmem:[#allocation2 + $0x24] sm:$0xf] %vm2849, %v2772
        %2860 = vst.msk [vmem:[#allocation2 + $0x28] sm:$0xf] %vm2849, %v2774
        %2861 = vst.msk [vmem:[#allocation2 + $0x2c] sm:$0xf] %vm2849, %v2776
        %2862 = vst.msk [vmem:[#allocation2 + $0x30] sm:$0xf] %vm2849, %v2778
        %2863 = vst.msk [vmem:[#allocation2 + $0x34] sm:$0xf] %vm2849, %v2780
        %2864 = vst.msk [vmem:[#allocation2 + $0x38] sm:$0xf] %vm2849, %v2782
        %2865 = vst.msk [vmem:[#allocation2 + $0x3c] sm:$0xf] %vm2849, %v2784
        %2866 = vst.msk [vmem:[#allocation2 + $0x40] sm:$0xf] %vm2849, %v2786
        %2867 = vst.msk [vmem:[#allocation2 + $0x44] sm:$0xf] %vm2849, %v2788
        %2868 = vst.msk [vmem:[#allocation2 + $0x48] sm:$0xf] %vm2849, %v2790
        %2869 = vst.msk [vmem:[#allocation2 + $0x4c] sm:$0xf] %vm2849, %v2792
        %2870 = vst.msk [vmem:[#allocation2 + $0x50] sm:$0xf] %vm2849, %v2794
        %2871 = vst.msk [vmem:[#allocation2 + $0x54] sm:$0xf] %vm2849, %v2796
        %2872 = vst.msk [vmem:[#allocation2 + $0x58] sm:$0xf] %vm2849, %v2798
        %2873 = vst.msk [vmem:[#allocation2 + $0x5c] sm:$0xf] %vm2849, %v2800
        %2874 = vst.msk [vmem:[#allocation2 + $0x60] sm:$0xf] %vm2849, %v2802
        %2875 = vst.msk [vmem:[#allocation2 + $0x64] sm:$0xf] %vm2849, %v2804
        %2876 = vst.msk [vmem:[#allocation2 + $0x68] sm:$0xf] %vm2849, %v2806
        %2877 = vst.msk [vmem:[#allocation2 + $0x6c] sm:$0xf] %vm2849, %v2808
        %2878 = vst.msk [vmem:[#allocation2 + $0x70] sm:$0xf] %vm2849, %v2810
        %2879 = vst.msk [vmem:[#allocation2 + $0x74] sm:$0xf] %vm2849, %v2812
        %2880 = vst.msk [vmem:[#allocation2 + $0x78] sm:$0xf] %vm2849, %v2814
        %2881 = vst.msk [vmem:[#allocation2 + $0x7c] sm:$0xf] %vm2849, %v2816
        %v2882 = vunpack.c.l.b16 %v1664
        %v2883 = vunpack.c.h.b16 %v1664
        %v2884 = vunpack.c.l.b16 %v1674
        %v2885 = vunpack.c.h.b16 %v1674
        %v2886 = vunpack.c.l.b16 %v1684
        %v2887 = vunpack.c.h.b16 %v1684
        %v2888 = vunpack.c.l.b16 %v1694
        %v2889 = vunpack.c.h.b16 %v1694
        %v2890 = vpack.c.b16 %v2882, %v2882
        %v2891 = vpack.c.b16 %v2883, %v2883
        %v2892 = vpack.c.b16 %v2884, %v2884
        %v2893 = vpack.c.b16 %v2885, %v2885
        %v2894 = vpack.c.b16 %v2886, %v2886
        %v2895 = vpack.c.b16 %v2887, %v2887
        %v2896 = vpack.c.b16 %v2888, %v2888
        %v2897 = vpack.c.b16 %v2889, %v2889
        %v2899 = vshrl.u32 %v2890, 16
        %v2901 = vrot.slane %v2899, 4
        %v2902 = vshll.u32 %v2890, 16
        %v2904 = vrot.slane %v2902, 5
        %v2905 = vor.u32 %v2901, %v2904
        %v2906 = vrot.slane %v2905, 4
        %v2908 = vshll.u32 %v2891, 16
        %v2910 = vrot.slane %v2908, 5
        %v2911 = vsel %vm1911, %v2906, %v2910
        %v2913 = vshrl.u32 %v2892, 16
        %v2915 = vrot.slane %v2913, 4
        %v2916 = vshll.u32 %v2892, 16
        %v2918 = vrot.slane %v2916, 5
        %v2919 = vor.u32 %v2915, %v2918
        %v2920 = vrot.slane %v2919, 4
        %v2922 = vshll.u32 %v2893, 16
        %v2924 = vrot.slane %v2922, 5
        %v2925 = vsel %vm1911, %v2920, %v2924
        %v2927 = vshrl.u32 %v2894, 16
        %v2929 = vrot.slane %v2927, 4
        %v2930 = vshll.u32 %v2894, 16
        %v2932 = vrot.slane %v2930, 5
        %v2933 = vor.u32 %v2929, %v2932
        %v2934 = vrot.slane %v2933, 4
        %v2936 = vshll.u32 %v2895, 16
        %v2938 = vrot.slane %v2936, 5
        %v2939 = vsel %vm1911, %v2934, %v2938
        %v2941 = vshrl.u32 %v2896, 16
        %v2943 = vrot.slane %v2941, 4
        %v2944 = vshll.u32 %v2896, 16
        %v2946 = vrot.slane %v2944, 5
        %v2947 = vor.u32 %v2943, %v2946
        %v2948 = vrot.slane %v2947, 4
        %v2950 = vshll.u32 %v2897, 16
        %v2952 = vrot.slane %v2950, 5
        %v2953 = vsel %vm1911, %v2948, %v2952
        %2954 = vrot.lane.b32.xlu0 %v1939, 32
        %v2955 = vpop.permute.xlu0 %2954
        %2956 = vrot.lane.b32.xlu0 %v1953, 32
        %v2957 = vpop.permute.xlu0 %2956
        %2958 = vrot.lane.b32.xlu0 %v1967, 32
        %v2959 = vpop.permute.xlu0 %2958
        %2960 = vrot.lane.b32.xlu0 %v1981, 32
        %v2961 = vpop.permute.xlu0 %2960
        %2962 = vrot.lane.b32.xlu0 %v1995, 32
        %v2963 = vpop.permute.xlu0 %2962
        %2964 = vrot.lane.b32.xlu0 %v2009, 32
        %v2965 = vpop.permute.xlu0 %2964
        %2966 = vrot.lane.b32.xlu0 %v2023, 32
        %v2967 = vpop.permute.xlu0 %2966
        %2968 = vrot.lane.b32.xlu0 %v2911, 32
        %v2969 = vpop.permute.xlu0 %2968
        %2970 = vrot.lane.b32.xlu0 %v2051, 32
        %v2971 = vpop.permute.xlu0 %2970
        %2972 = vrot.lane.b32.xlu0 %v2065, 32
        %v2973 = vpop.permute.xlu0 %2972
        %2974 = vrot.lane.b32.xlu0 %v2079, 32
        %v2975 = vpop.permute.xlu0 %2974
        %2976 = vrot.lane.b32.xlu0 %v2093, 32
        %v2977 = vpop.permute.xlu0 %2976
        %2978 = vrot.lane.b32.xlu0 %v2107, 32
        %v2979 = vpop.permute.xlu0 %2978
        %2980 = vrot.lane.b32.xlu0 %v2121, 32
        %v2981 = vpop.permute.xlu0 %2980
        %2982 = vrot.lane.b32.xlu0 %v2135, 32
        %v2983 = vpop.permute.xlu0 %2982
        %2984 = vrot.lane.b32.xlu0 %v2925, 32
        %v2985 = vpop.permute.xlu0 %2984
        %2986 = vrot.lane.b32.xlu0 %v2163, 32
        %v2987 = vpop.permute.xlu0 %2986
        %2988 = vrot.lane.b32.xlu0 %v2177, 32
        %v2989 = vpop.permute.xlu0 %2988
        %2990 = vrot.lane.b32.xlu0 %v2191, 32
        %v2991 = vpop.permute.xlu0 %2990
        %2992 = vrot.lane.b32.xlu0 %v2205, 32
        %v2993 = vpop.permute.xlu0 %2992
        %2994 = vrot.lane.b32.xlu0 %v2219, 32
        %v2995 = vpop.permute.xlu0 %2994
        %2996 = vrot.lane.b32.xlu0 %v2233, 32
        %v2997 = vpop.permute.xlu0 %2996
        %2998 = vrot.lane.b32.xlu0 %v2247, 32
        %v2999 = vpop.permute.xlu0 %2998
        %3000 = vrot.lane.b32.xlu0 %v2939, 32
        %v3001 = vpop.permute.xlu0 %3000
        %3002 = vrot.lane.b32.xlu0 %v2275, 32
        %v3003 = vpop.permute.xlu0 %3002
        %3004 = vrot.lane.b32.xlu0 %v2289, 32
        %v3005 = vpop.permute.xlu0 %3004
        %3006 = vrot.lane.b32.xlu0 %v2303, 32
        %v3007 = vpop.permute.xlu0 %3006
        %3008 = vrot.lane.b32.xlu0 %v2317, 32
        %v3009 = vpop.permute.xlu0 %3008
        %3010 = vrot.lane.b32.xlu0 %v2331, 32
        %v3011 = vpop.permute.xlu0 %3010
        %3012 = vrot.lane.b32.xlu0 %v2345, 32
        %v3013 = vpop.permute.xlu0 %3012
        %3014 = vrot.lane.b32.xlu0 %v2359, 32
        %v3015 = vpop.permute.xlu0 %3014
        %3016 = vrot.lane.b32.xlu0 %v2953, 32
        %v3017 = vpop.permute.xlu0 %3016
        %vm3050 = vcmask 322816
        %3051 = vst.msk [vmem:[#allocation2] sm:$0xf] %vm3050, %v2955
        %3052 = vst.msk [vmem:[#allocation2 + $0x4] sm:$0xf] %vm3050, %v2957
        %3053 = vst.msk [vmem:[#allocation2 + $0x8] sm:$0xf] %vm3050, %v2959
        %3054 = vst.msk [vmem:[#allocation2 + $0xc] sm:$0xf] %vm3050, %v2961
        %3055 = vst.msk [vmem:[#allocation2 + $0x10] sm:$0xf] %vm3050, %v2963
        %3056 = vst.msk [vmem:[#allocation2 + $0x14] sm:$0xf] %vm3050, %v2965
        %3057 = vst.msk [vmem:[#allocation2 + $0x18] sm:$0xf] %vm3050, %v2967
        %3058 = vst.msk [vmem:[#allocation2 + $0x1c] sm:$0xf] %vm3050, %v2969
        %3059 = vst.msk [vmem:[#allocation2 + $0x20] sm:$0xf] %vm3050, %v2971
        %3060 = vst.msk [vmem:[#allocation2 + $0x24] sm:$0xf] %vm3050, %v2973
        %3061 = vst.msk [vmem:[#allocation2 + $0x28] sm:$0xf] %vm3050, %v2975
        %3062 = vst.msk [vmem:[#allocation2 + $0x2c] sm:$0xf] %vm3050, %v2977
        %3063 = vst.msk [vmem:[#allocation2 + $0x30] sm:$0xf] %vm3050, %v2979
        %3064 = vst.msk [vmem:[#allocation2 + $0x34] sm:$0xf] %vm3050, %v2981
        %3065 = vst.msk [vmem:[#allocation2 + $0x38] sm:$0xf] %vm3050, %v2983
        %3066 = vst.msk [vmem:[#allocation2 + $0x3c] sm:$0xf] %vm3050, %v2985
        %3067 = vst.msk [vmem:[#allocation2 + $0x40] sm:$0xf] %vm3050, %v2987
        %3068 = vst.msk [vmem:[#allocation2 + $0x44] sm:$0xf] %vm3050, %v2989
        %3069 = vst.msk [vmem:[#allocation2 + $0x48] sm:$0xf] %vm3050, %v2991
        %3070 = vst.msk [vmem:[#allocation2 + $0x4c] sm:$0xf] %vm3050, %v2993
        %3071 = vst.msk [vmem:[#allocation2 + $0x50] sm:$0xf] %vm3050, %v2995
        %3072 = vst.msk [vmem:[#allocation2 + $0x54] sm:$0xf] %vm3050, %v2997
        %3073 = vst.msk [vmem:[#allocation2 + $0x58] sm:$0xf] %vm3050, %v2999
        %3074 = vst.msk [vmem:[#allocation2 + $0x5c] sm:$0xf] %vm3050, %v3001
        %3075 = vst.msk [vmem:[#allocation2 + $0x60] sm:$0xf] %vm3050, %v3003
        %3076 = vst.msk [vmem:[#allocation2 + $0x64] sm:$0xf] %vm3050, %v3005
        %3077 = vst.msk [vmem:[#allocation2 + $0x68] sm:$0xf] %vm3050, %v3007
        %3078 = vst.msk [vmem:[#allocation2 + $0x6c] sm:$0xf] %vm3050, %v3009
        %3079 = vst.msk [vmem:[#allocation2 + $0x70] sm:$0xf] %vm3050, %v3011
        %3080 = vst.msk [vmem:[#allocation2 + $0x74] sm:$0xf] %vm3050, %v3013
        %3081 = vst.msk [vmem:[#allocation2 + $0x78] sm:$0xf] %vm3050, %v3015
        %3082 = vst.msk [vmem:[#allocation2 + $0x7c] sm:$0xf] %vm3050, %v3017
        %v3083 = vrot.slane %v2890, 5
        %v3084 = vrot.slane %v3083, 4
        %v3085 = vrot.slane %v2891, 5
        %v3086 = vsel %vm2491, %v3084, %v3085
        %v3087 = vrot.slane %v2892, 5
        %v3088 = vrot.slane %v3087, 4
        %v3089 = vrot.slane %v2893, 5
        %v3090 = vsel %vm2491, %v3088, %v3089
        %v3091 = vrot.slane %v2894, 5
        %v3092 = vrot.slane %v3091, 4
        %v3093 = vrot.slane %v2895, 5
        %v3094 = vsel %vm2491, %v3092, %v3093
        %v3095 = vrot.slane %v2896, 5
        %v3096 = vrot.slane %v3095, 4
        %v3097 = vrot.slane %v2897, 5
        %v3098 = vsel %vm2491, %v3096, %v3097
        %3099 = vrot.lane.b32.xlu0 %v2499, 40
        %v3100 = vpop.permute.xlu0 %3099
        %3101 = vrot.lane.b32.xlu0 %v2503, 40
        %v3102 = vpop.permute.xlu0 %3101
        %3103 = vrot.lane.b32.xlu0 %v2507, 40
        %v3104 = vpop.permute.xlu0 %3103
        %3105 = vrot.lane.b32.xlu0 %v2511, 40
        %v3106 = vpop.permute.xlu0 %3105
        %3107 = vrot.lane.b32.xlu0 %v2515, 40
        %v3108 = vpop.permute.xlu0 %3107
        %3109 = vrot.lane.b32.xlu0 %v2519, 40
        %v3110 = vpop.permute.xlu0 %3109
        %3111 = vrot.lane.b32.xlu0 %v2523, 40
        %v3112 = vpop.permute.xlu0 %3111
        %3113 = vrot.lane.b32.xlu0 %v3086, 40
        %v3114 = vpop.permute.xlu0 %3113
        %3115 = vrot.lane.b32.xlu0 %v2531, 40
        %v3116 = vpop.permute.xlu0 %3115
        %3117 = vrot.lane.b32.xlu0 %v2535, 40
        %v3118 = vpop.permute.xlu0 %3117
        %3119 = vrot.lane.b32.xlu0 %v2539, 40
        %v3120 = vpop.permute.xlu0 %3119
        %3121 = vrot.lane.b32.xlu0 %v2543, 40
        %v3122 = vpop.permute.xlu0 %3121
        %3123 = vrot.lane.b32.xlu0 %v2547, 40
        %v3124 = vpop.permute.xlu0 %3123
        %3125 = vrot.lane.b32.xlu0 %v2551, 40
        %v3126 = vpop.permute.xlu0 %3125
        %3127 = vrot.lane.b32.xlu0 %v2555, 40
        %v3128 = vpop.permute.xlu0 %3127
        %3129 = vrot.lane.b32.xlu0 %v3090, 40
        %v3130 = vpop.permute.xlu0 %3129
        %3131 = vrot.lane.b32.xlu0 %v2563, 40
        %v3132 = vpop.permute.xlu0 %3131
        %3133 = vrot.lane.b32.xlu0 %v2567, 40
        %v3134 = vpop.permute.xlu0 %3133
        %3135 = vrot.lane.b32.xlu0 %v2571, 40
        %v3136 = vpop.permute.xlu0 %3135
        %3137 = vrot.lane.b32.xlu0 %v2575, 40
        %v3138 = vpop.permute.xlu0 %3137
        %3139 = vrot.lane.b32.xlu0 %v2579, 40
        %v3140 = vpop.permute.xlu0 %3139
        %3141 = vrot.lane.b32.xlu0 %v2583, 40
        %v3142 = vpop.permute.xlu0 %3141
        %3143 = vrot.lane.b32.xlu0 %v2587, 40
        %v3144 = vpop.permute.xlu0 %3143
        %3145 = vrot.lane.b32.xlu0 %v3094, 40
        %v3146 = vpop.permute.xlu0 %3145
        %3147 = vrot.lane.b32.xlu0 %v2595, 40
        %v3148 = vpop.permute.xlu0 %3147
        %3149 = vrot.lane.b32.xlu0 %v2599, 40
        %v3150 = vpop.permute.xlu0 %3149
        %3151 = vrot.lane.b32.xlu0 %v2603, 40
        %v3152 = vpop.permute.xlu0 %3151
        %3153 = vrot.lane.b32.xlu0 %v2607, 40
        %v3154 = vpop.permute.xlu0 %3153
        %3155 = vrot.lane.b32.xlu0 %v2611, 40
        %v3156 = vpop.permute.xlu0 %3155
        %3157 = vrot.lane.b32.xlu0 %v2615, 40
        %v3158 = vpop.permute.xlu0 %3157
        %3159 = vrot.lane.b32.xlu0 %v2619, 40
        %v3160 = vpop.permute.xlu0 %3159
        %3161 = vrot.lane.b32.xlu0 %v3098, 40
        %v3162 = vpop.permute.xlu0 %3161
        %vm3195 = vcmask 388416
        %3196 = vst.msk [vmem:[#allocation2] sm:$0xf] %vm3195, %v3100
        %3197 = vst.msk [vmem:[#allocation2 + $0x4] sm:$0xf] %vm3195, %v3102
        %3198 = vst.msk [vmem:[#allocation2 + $0x8] sm:$0xf] %vm3195, %v3104
        %3199 = vst.msk [vmem:[#allocation2 + $0xc] sm:$0xf] %vm3195, %v3106
        %3200 = vst.msk [vmem:[#allocation2 + $0x10] sm:$0xf] %vm3195, %v3108
        %3201 = vst.msk [vmem:[#allocation2 + $0x14] sm:$0xf] %vm3195, %v3110
        %3202 = vst.msk [vmem:[#allocation2 + $0x18] sm:$0xf] %vm3195, %v3112
        %3203 = vst.msk [vmem:[#allocation2 + $0x1c] sm:$0xf] %vm3195, %v3114
        %3204 = vst.msk [vmem:[#allocation2 + $0x20] sm:$0xf] %vm3195, %v3116
        %3205 = vst.msk [vmem:[#allocation2 + $0x24] sm:$0xf] %vm3195, %v3118
        %3206 = vst.msk [vmem:[#allocation2 + $0x28] sm:$0xf] %vm3195, %v3120
        %3207 = vst.msk [vmem:[#allocation2 + $0x2c] sm:$0xf] %vm3195, %v3122
        %3208 = vst.msk [vmem:[#allocation2 + $0x30] sm:$0xf] %vm3195, %v3124
        %3209 = vst.msk [vmem:[#allocation2 + $0x34] sm:$0xf] %vm3195, %v3126
        %3210 = vst.msk [vmem:[#allocation2 + $0x38] sm:$0xf] %vm3195, %v3128
        %3211 = vst.msk [vmem:[#allocation2 + $0x3c] sm:$0xf] %vm3195, %v3130
        %3212 = vst.msk [vmem:[#allocation2 + $0x40] sm:$0xf] %vm3195, %v3132
        %3213 = vst.msk [vmem:[#allocation2 + $0x44] sm:$0xf] %vm3195, %v3134
        %3214 = vst.msk [vmem:[#allocation2 + $0x48] sm:$0xf] %vm3195, %v3136
        %3215 = vst.msk [vmem:[#allocation2 + $0x4c] sm:$0xf] %vm3195, %v3138
        %3216 = vst.msk [vmem:[#allocation2 + $0x50] sm:$0xf] %vm3195, %v3140
        %3217 = vst.msk [vmem:[#allocation2 + $0x54] sm:$0xf] %vm3195, %v3142
        %3218 = vst.msk [vmem:[#allocation2 + $0x58] sm:$0xf] %vm3195, %v3144
        %3219 = vst.msk [vmem:[#allocation2 + $0x5c] sm:$0xf] %vm3195, %v3146
        %3220 = vst.msk [vmem:[#allocation2 + $0x60] sm:$0xf] %vm3195, %v3148
        %3221 = vst.msk [vmem:[#allocation2 + $0x64] sm:$0xf] %vm3195, %v3150
        %3222 = vst.msk [vmem:[#allocation2 + $0x68] sm:$0xf] %vm3195, %v3152
        %3223 = vst.msk [vmem:[#allocation2 + $0x6c] sm:$0xf] %vm3195, %v3154
        %3224 = vst.msk [vmem:[#allocation2 + $0x70] sm:$0xf] %vm3195, %v3156
        %3225 = vst.msk [vmem:[#allocation2 + $0x74] sm:$0xf] %vm3195, %v3158
        %3226 = vst.msk [vmem:[#allocation2 + $0x78] sm:$0xf] %vm3195, %v3160
        %3227 = vst.msk [vmem:[#allocation2 + $0x7c] sm:$0xf] %vm3195, %v3162
        %3232 = vrot.lane.b32.xlu0 %v1658, 48
        %v3233 = vpop.permute.xlu0 %3232
        %3234 = vrot.lane.b32.xlu0 %v1659, 48
        %v3235 = vpop.permute.xlu0 %3234
        %3236 = vrot.lane.b32.xlu0 %v1660, 48
        %v3237 = vpop.permute.xlu0 %3236
        %3238 = vrot.lane.b32.xlu0 %v1661, 48
        %v3239 = vpop.permute.xlu0 %3238
        %3240 = vrot.lane.b32.xlu0 %v1662, 48
        %v3241 = vpop.permute.xlu0 %3240
        %3242 = vrot.lane.b32.xlu0 %v1663, 48
        %v3243 = vpop.permute.xlu0 %3242
        %3244 = vrot.lane.b32.xlu0 %v1664, 48
        %v3245 = vpop.permute.xlu0 %3244
        %3246 = vrot.lane.b32.xlu0 %v1665, 48
        %v3247 = vpop.permute.xlu0 %3246
        %3248 = vrot.lane.b32.xlu0 %v1668, 48
        %v3249 = vpop.permute.xlu0 %3248
        %3250 = vrot.lane.b32.xlu0 %v1669, 48
        %v3251 = vpop.permute.xlu0 %3250
        %3252 = vrot.lane.b32.xlu0 %v1670, 48
        %v3253 = vpop.permute.xlu0 %3252
        %3254 = vrot.lane.b32.xlu0 %v1671, 48
        %v3255 = vpop.permute.xlu0 %3254
        %3256 = vrot.lane.b32.xlu0 %v1672, 48
        %v3257 = vpop.permute.xlu0 %3256
        %3258 = vrot.lane.b32.xlu0 %v1673, 48
        %v3259 = vpop.permute.xlu0 %3258
        %3260 = vrot.lane.b32.xlu0 %v1674, 48
        %v3261 = vpop.permute.xlu0 %3260
        %3262 = vrot.lane.b32.xlu0 %v1675, 48
        %v3263 = vpop.permute.xlu0 %3262
        %3264 = vrot.lane.b32.xlu0 %v1678, 48
        %v3265 = vpop.permute.xlu0 %3264
        %3266 = vrot.lane.b32.xlu0 %v1679, 48
        %v3267 = vpop.permute.xlu0 %3266
        %3268 = vrot.lane.b32.xlu0 %v1680, 48
        %v3269 = vpop.permute.xlu0 %3268
        %3270 = vrot.lane.b32.xlu0 %v1681, 48
        %v3271 = vpop.permute.xlu0 %3270
        %3272 = vrot.lane.b32.xlu0 %v1682, 48
        %v3273 = vpop.permute.xlu0 %3272
        %3274 = vrot.lane.b32.xlu0 %v1683, 48
        %v3275 = vpop.permute.xlu0 %3274
        %3276 = vrot.lane.b32.xlu0 %v1684, 48
        %v3277 = vpop.permute.xlu0 %3276
        %3278 = vrot.lane.b32.xlu0 %v1685, 48
        %v3279 = vpop.permute.xlu0 %3278
        %3280 = vrot.lane.b32.xlu0 %v1688, 48
        %v3281 = vpop.permute.xlu0 %3280
        %3282 = vrot.lane.b32.xlu0 %v1689, 48
        %v3283 = vpop.permute.xlu0 %3282
        %3284 = vrot.lane.b32.xlu0 %v1690, 48
        %v3285 = vpop.permute.xlu0 %3284
        %3286 = vrot.lane.b32.xlu0 %v1691, 48
        %v3287 = vpop.permute.xlu0 %3286
        %3288 = vrot.lane.b32.xlu0 %v1692, 48
        %v3289 = vpop.permute.xlu0 %3288
        %3290 = vrot.lane.b32.xlu0 %v1693, 48
        %v3291 = vpop.permute.xlu0 %3290
        %3292 = vrot.lane.b32.xlu0 %v1694, 48
        %v3293 = vpop.permute.xlu0 %3292
        %3294 = vrot.lane.b32.xlu0 %v1695, 48
        %v3295 = vpop.permute.xlu0 %3294
        %vm3328 = vcmask 454016
        %3329 = vst.msk [vmem:[#allocation2] sm:$0xf] %vm3328, %v3233
        %3330 = vst.msk [vmem:[#allocation2 + $0x4] sm:$0xf] %vm3328, %v3235
        %3331 = vst.msk [vmem:[#allocation2 + $0x8] sm:$0xf] %vm3328, %v3237
        %3332 = vst.msk [vmem:[#allocation2 + $0xc] sm:$0xf] %vm3328, %v3239
        %3333 = vst.msk [vmem:[#allocation2 + $0x10] sm:$0xf] %vm3328, %v3241
        %3334 = vst.msk [vmem:[#allocation2 + $0x14] sm:$0xf] %vm3328, %v3243
        %3335 = vst.msk [vmem:[#allocation2 + $0x18] sm:$0xf] %vm3328, %v3245
        %3336 = vst.msk [vmem:[#allocation2 + $0x1c] sm:$0xf] %vm3328, %v3247
        %3337 = vst.msk [vmem:[#allocation2 + $0x20] sm:$0xf] %vm3328, %v3249
        %3338 = vst.msk [vmem:[#allocation2 + $0x24] sm:$0xf] %vm3328, %v3251
        %3339 = vst.msk [vmem:[#allocation2 + $0x28] sm:$0xf] %vm3328, %v3253
        %3340 = vst.msk [vmem:[#allocation2 + $0x2c] sm:$0xf] %vm3328, %v3255
        %3341 = vst.msk [vmem:[#allocation2 + $0x30] sm:$0xf] %vm3328, %v3257
        %3342 = vst.msk [vmem:[#allocation2 + $0x34] sm:$0xf] %vm3328, %v3259
        %3343 = vst.msk [vmem:[#allocation2 + $0x38] sm:$0xf] %vm3328, %v3261
        %3344 = vst.msk [vmem:[#allocation2 + $0x3c] sm:$0xf] %vm3328, %v3263
        %3345 = vst.msk [vmem:[#allocation2 + $0x40] sm:$0xf] %vm3328, %v3265
        %3346 = vst.msk [vmem:[#allocation2 + $0x44] sm:$0xf] %vm3328, %v3267
        %3347 = vst.msk [vmem:[#allocation2 + $0x48] sm:$0xf] %vm3328, %v3269
        %3348 = vst.msk [vmem:[#allocation2 + $0x4c] sm:$0xf] %vm3328, %v3271
        %3349 = vst.msk [vmem:[#allocation2 + $0x50] sm:$0xf] %vm3328, %v3273
        %3350 = vst.msk [vmem:[#allocation2 + $0x54] sm:$0xf] %vm3328, %v3275
        %3351 = vst.msk [vmem:[#allocation2 + $0x58] sm:$0xf] %vm3328, %v3277
        %3352 = vst.msk [vmem:[#allocation2 + $0x5c] sm:$0xf] %vm3328, %v3279
        %3353 = vst.msk [vmem:[#allocation2 + $0x60] sm:$0xf] %vm3328, %v3281
        %3354 = vst.msk [vmem:[#allocation2 + $0x64] sm:$0xf] %vm3328, %v3283
        %3355 = vst.msk [vmem:[#allocation2 + $0x68] sm:$0xf] %vm3328, %v3285
        %3356 = vst.msk [vmem:[#allocation2 + $0x6c] sm:$0xf] %vm3328, %v3287
        %3357 = vst.msk [vmem:[#allocation2 + $0x70] sm:$0xf] %vm3328, %v3289
        %3358 = vst.msk [vmem:[#allocation2 + $0x74] sm:$0xf] %vm3328, %v3291
        %3359 = vst.msk [vmem:[#allocation2 + $0x78] sm:$0xf] %vm3328, %v3293
        %3360 = vst.msk [vmem:[#allocation2 + $0x7c] sm:$0xf] %vm3328, %v3295
        %v3361 = vunpack.c.l.b16 %v1665
        %v3362 = vunpack.c.h.b16 %v1665
        %v3363 = vunpack.c.l.b16 %v1675
        %v3364 = vunpack.c.h.b16 %v1675
        %v3365 = vunpack.c.l.b16 %v1685
        %v3366 = vunpack.c.h.b16 %v1685
        %v3367 = vunpack.c.l.b16 %v1695
        %v3368 = vunpack.c.h.b16 %v1695
        %v3369 = vpack.c.b16 %v3361, %v3361
        %v3370 = vpack.c.b16 %v3362, %v3362
        %v3371 = vpack.c.b16 %v3363, %v3363
        %v3372 = vpack.c.b16 %v3364, %v3364
        %v3373 = vpack.c.b16 %v3365, %v3365
        %v3374 = vpack.c.b16 %v3366, %v3366
        %v3375 = vpack.c.b16 %v3367, %v3367
        %v3376 = vpack.c.b16 %v3368, %v3368
        %v3378 = vshrl.u32 %v3369, 16
        %v3380 = vrot.slane %v3378, 4
        %v3381 = vshll.u32 %v3369, 16
        %v3383 = vrot.slane %v3381, 5
        %v3384 = vor.u32 %v3380, %v3383
        %v3385 = vrot.slane %v3384, 4
        %v3387 = vshll.u32 %v3370, 16
        %v3389 = vrot.slane %v3387, 5
        %v3390 = vsel %vm1911, %v3385, %v3389
        %v3392 = vshrl.u32 %v3371, 16
        %v3394 = vrot.slane %v3392, 4
        %v3395 = vshll.u32 %v3371, 16
        %v3397 = vrot.slane %v3395, 5
        %v3398 = vor.u32 %v3394, %v3397
        %v3399 = vrot.slane %v3398, 4
        %v3401 = vshll.u32 %v3372, 16
        %v3403 = vrot.slane %v3401, 5
        %v3404 = vsel %vm1911, %v3399, %v3403
        %v3406 = vshrl.u32 %v3373, 16
        %v3408 = vrot.slane %v3406, 4
        %v3409 = vshll.u32 %v3373, 16
        %v3411 = vrot.slane %v3409, 5
        %v3412 = vor.u32 %v3408, %v3411
        %v3413 = vrot.slane %v3412, 4
        %v3415 = vshll.u32 %v3374, 16
        %v3417 = vrot.slane %v3415, 5
        %v3418 = vsel %vm1911, %v3413, %v3417
        %v3420 = vshrl.u32 %v3375, 16
        %v3422 = vrot.slane %v3420, 4
        %v3423 = vshll.u32 %v3375, 16
        %v3425 = vrot.slane %v3423, 5
        %v3426 = vor.u32 %v3422, %v3425
        %v3427 = vrot.slane %v3426, 4
        %v3429 = vshll.u32 %v3376, 16
        %v3431 = vrot.slane %v3429, 5
        %v3432 = vsel %vm1911, %v3427, %v3431
        %3433 = vrot.lane.b32.xlu0 %v1953, 56
        %v3434 = vpop.permute.xlu0 %3433
        %3435 = vrot.lane.b32.xlu0 %v1967, 56
        %v3436 = vpop.permute.xlu0 %3435
        %3437 = vrot.lane.b32.xlu0 %v1981, 56
        %v3438 = vpop.permute.xlu0 %3437
        %3439 = vrot.lane.b32.xlu0 %v1995, 56
        %v3440 = vpop.permute.xlu0 %3439
        %3441 = vrot.lane.b32.xlu0 %v2009, 56
        %v3442 = vpop.permute.xlu0 %3441
        %3443 = vrot.lane.b32.xlu0 %v2023, 56
        %v3444 = vpop.permute.xlu0 %3443
        %3445 = vrot.lane.b32.xlu0 %v2911, 56
        %v3446 = vpop.permute.xlu0 %3445
        %3447 = vrot.lane.b32.xlu0 %v3390, 56
        %v3448 = vpop.permute.xlu0 %3447
        %3449 = vrot.lane.b32.xlu0 %v2065, 56
        %v3450 = vpop.permute.xlu0 %3449
        %3451 = vrot.lane.b32.xlu0 %v2079, 56
        %v3452 = vpop.permute.xlu0 %3451
        %3453 = vrot.lane.b32.xlu0 %v2093, 56
        %v3454 = vpop.permute.xlu0 %3453
        %3455 = vrot.lane.b32.xlu0 %v2107, 56
        %v3456 = vpop.permute.xlu0 %3455
        %3457 = vrot.lane.b32.xlu0 %v2121, 56
        %v3458 = vpop.permute.xlu0 %3457
        %3459 = vrot.lane.b32.xlu0 %v2135, 56
        %v3460 = vpop.permute.xlu0 %3459
        %3461 = vrot.lane.b32.xlu0 %v2925, 56
        %v3462 = vpop.permute.xlu0 %3461
        %3463 = vrot.lane.b32.xlu0 %v3404, 56
        %v3464 = vpop.permute.xlu0 %3463
        %3465 = vrot.lane.b32.xlu0 %v2177, 56
        %v3466 = vpop.permute.xlu0 %3465
        %3467 = vrot.lane.b32.xlu0 %v2191, 56
        %v3468 = vpop.permute.xlu0 %3467
        %3469 = vrot.lane.b32.xlu0 %v2205, 56
        %v3470 = vpop.permute.xlu0 %3469
        %3471 = vrot.lane.b32.xlu0 %v2219, 56
        %v3472 = vpop.permute.xlu0 %3471
        %3473 = vrot.lane.b32.xlu0 %v2233, 56
        %v3474 = vpop.permute.xlu0 %3473
        %3475 = vrot.lane.b32.xlu0 %v2247, 56
        %v3476 = vpop.permute.xlu0 %3475
        %3477 = vrot.lane.b32.xlu0 %v2939, 56
        %v3478 = vpop.permute.xlu0 %3477
        %3479 = vrot.lane.b32.xlu0 %v3418, 56
        %v3480 = vpop.permute.xlu0 %3479
        %3481 = vrot.lane.b32.xlu0 %v2289, 56
        %v3482 = vpop.permute.xlu0 %3481
        %3483 = vrot.lane.b32.xlu0 %v2303, 56
        %v3484 = vpop.permute.xlu0 %3483
        %3485 = vrot.lane.b32.xlu0 %v2317, 56
        %v3486 = vpop.permute.xlu0 %3485
        %3487 = vrot.lane.b32.xlu0 %v2331, 56
        %v3488 = vpop.permute.xlu0 %3487
        %3489 = vrot.lane.b32.xlu0 %v2345, 56
        %v3490 = vpop.permute.xlu0 %3489
        %3491 = vrot.lane.b32.xlu0 %v2359, 56
        %v3492 = vpop.permute.xlu0 %3491
        %3493 = vrot.lane.b32.xlu0 %v2953, 56
        %v3494 = vpop.permute.xlu0 %3493
        %3495 = vrot.lane.b32.xlu0 %v3432, 56
        %v3496 = vpop.permute.xlu0 %3495
        %vm3529 = vcmask 519616
        %3530 = vst.msk [vmem:[#allocation2] sm:$0xf] %vm3529, %v3434
        %3531 = vst.msk [vmem:[#allocation2 + $0x4] sm:$0xf] %vm3529, %v3436
        %3532 = vst.msk [vmem:[#allocation2 + $0x8] sm:$0xf] %vm3529, %v3438
        %3533 = vst.msk [vmem:[#allocation2 + $0xc] sm:$0xf] %vm3529, %v3440
        %3534 = vst.msk [vmem:[#allocation2 + $0x10] sm:$0xf] %vm3529, %v3442
        %3535 = vst.msk [vmem:[#allocation2 + $0x14] sm:$0xf] %vm3529, %v3444
        %3536 = vst.msk [vmem:[#allocation2 + $0x18] sm:$0xf] %vm3529, %v3446
        %3537 = vst.msk [vmem:[#allocation2 + $0x1c] sm:$0xf] %vm3529, %v3448
        %3538 = vst.msk [vmem:[#allocation2 + $0x20] sm:$0xf] %vm3529, %v3450
        %3539 = vst.msk [vmem:[#allocation2 + $0x24] sm:$0xf] %vm3529, %v3452
        %3540 = vst.msk [vmem:[#allocation2 + $0x28] sm:$0xf] %vm3529, %v3454
        %3541 = vst.msk [vmem:[#allocation2 + $0x2c] sm:$0xf] %vm3529, %v3456
        %3542 = vst.msk [vmem:[#allocation2 + $0x30] sm:$0xf] %vm3529, %v3458
        %3543 = vst.msk [vmem:[#allocation2 + $0x34] sm:$0xf] %vm3529, %v3460
        %3544 = vst.msk [vmem:[#allocation2 + $0x38] sm:$0xf] %vm3529, %v3462
        %3545 = vst.msk [vmem:[#allocation2 + $0x3c] sm:$0xf] %vm3529, %v3464
        %3546 = vst.msk [vmem:[#allocation2 + $0x40] sm:$0xf] %vm3529, %v3466
        %3547 = vst.msk [vmem:[#allocation2 + $0x44] sm:$0xf] %vm3529, %v3468
        %3548 = vst.msk [vmem:[#allocation2 + $0x48] sm:$0xf] %vm3529, %v3470
        %3549 = vst.msk [vmem:[#allocation2 + $0x4c] sm:$0xf] %vm3529, %v3472
        %3550 = vst.msk [vmem:[#allocation2 + $0x50] sm:$0xf] %vm3529, %v3474
        %3551 = vst.msk [vmem:[#allocation2 + $0x54] sm:$0xf] %vm3529, %v3476
        %3552 = vst.msk [vmem:[#allocation2 + $0x58] sm:$0xf] %vm3529, %v3478
        %3553 = vst.msk [vmem:[#allocation2 + $0x5c] sm:$0xf] %vm3529, %v3480
        %3554 = vst.msk [vmem:[#allocation2 + $0x60] sm:$0xf] %vm3529, %v3482
        %3555 = vst.msk [vmem:[#allocation2 + $0x64] sm:$0xf] %vm3529, %v3484
        %3556 = vst.msk [vmem:[#allocation2 + $0x68] sm:$0xf] %vm3529, %v3486
        %3557 = vst.msk [vmem:[#allocation2 + $0x6c] sm:$0xf] %vm3529, %v3488
        %3558 = vst.msk [vmem:[#allocation2 + $0x70] sm:$0xf] %vm3529, %v3490
        %3559 = vst.msk [vmem:[#allocation2 + $0x74] sm:$0xf] %vm3529, %v3492
        %3560 = vst.msk [vmem:[#allocation2 + $0x78] sm:$0xf] %vm3529, %v3494
        %3561 = vst.msk [vmem:[#allocation2 + $0x7c] sm:$0xf] %vm3529, %v3496
        %v3562 = vrot.slane %v3369, 5
        %v3563 = vrot.slane %v3562, 4
        %v3564 = vrot.slane %v3370, 5
        %v3565 = vsel %vm2491, %v3563, %v3564
        %v3566 = vrot.slane %v3371, 5
        %v3567 = vrot.slane %v3566, 4
        %v3568 = vrot.slane %v3372, 5
        %v3569 = vsel %vm2491, %v3567, %v3568
        %v3570 = vrot.slane %v3373, 5
        %v3571 = vrot.slane %v3570, 4
        %v3572 = vrot.slane %v3374, 5
        %v3573 = vsel %vm2491, %v3571, %v3572
        %v3574 = vrot.slane %v3375, 5
        %v3575 = vrot.slane %v3574, 4
        %v3576 = vrot.slane %v3376, 5
        %v3577 = vsel %vm2491, %v3575, %v3576
        %3578 = vrot.lane.b32.xlu0 %v2503, 64
        %v3579 = vpop.permute.xlu0 %3578
        %3580 = vrot.lane.b32.xlu0 %v2507, 64
        %v3581 = vpop.permute.xlu0 %3580
        %3582 = vrot.lane.b32.xlu0 %v2511, 64
        %v3583 = vpop.permute.xlu0 %3582
        %3584 = vrot.lane.b32.xlu0 %v2515, 64
        %v3585 = vpop.permute.xlu0 %3584
        %3586 = vrot.lane.b32.xlu0 %v2519, 64
        %v3587 = vpop.permute.xlu0 %3586
        %3588 = vrot.lane.b32.xlu0 %v2523, 64
        %v3589 = vpop.permute.xlu0 %3588
        %3590 = vrot.lane.b32.xlu0 %v3086, 64
        %v3591 = vpop.permute.xlu0 %3590
        %3592 = vrot.lane.b32.xlu0 %v3565, 64
        %v3593 = vpop.permute.xlu0 %3592
        %3594 = vrot.lane.b32.xlu0 %v2535, 64
        %v3595 = vpop.permute.xlu0 %3594
        %3596 = vrot.lane.b32.xlu0 %v2539, 64
        %v3597 = vpop.permute.xlu0 %3596
        %3598 = vrot.lane.b32.xlu0 %v2543, 64
        %v3599 = vpop.permute.xlu0 %3598
        %3600 = vrot.lane.b32.xlu0 %v2547, 64
        %v3601 = vpop.permute.xlu0 %3600
        %3602 = vrot.lane.b32.xlu0 %v2551, 64
        %v3603 = vpop.permute.xlu0 %3602
        %3604 = vrot.lane.b32.xlu0 %v2555, 64
        %v3605 = vpop.permute.xlu0 %3604
        %3606 = vrot.lane.b32.xlu0 %v3090, 64
        %v3607 = vpop.permute.xlu0 %3606
        %3608 = vrot.lane.b32.xlu0 %v3569, 64
        %v3609 = vpop.permute.xlu0 %3608
        %3610 = vrot.lane.b32.xlu0 %v2567, 64
        %v3611 = vpop.permute.xlu0 %3610
        %3612 = vrot.lane.b32.xlu0 %v2571, 64
        %v3613 = vpop.permute.xlu0 %3612
        %3614 = vrot.lane.b32.xlu0 %v2575, 64
        %v3615 = vpop.permute.xlu0 %3614
        %3616 = vrot.lane.b32.xlu0 %v2579, 64
        %v3617 = vpop.permute.xlu0 %3616
        %3618 = vrot.lane.b32.xlu0 %v2583, 64
        %v3619 = vpop.permute.xlu0 %3618
        %3620 = vrot.lane.b32.xlu0 %v2587, 64
        %v3621 = vpop.permute.xlu0 %3620
        %3622 = vrot.lane.b32.xlu0 %v3094, 64
        %v3623 = vpop.permute.xlu0 %3622
        %3624 = vrot.lane.b32.xlu0 %v3573, 64
        %v3625 = vpop.permute.xlu0 %3624
        %3626 = vrot.lane.b32.xlu0 %v2599, 64
        %v3627 = vpop.permute.xlu0 %3626
        %3628 = vrot.lane.b32.xlu0 %v2603, 64
        %v3629 = vpop.permute.xlu0 %3628
        %3630 = vrot.lane.b32.xlu0 %v2607, 64
        %v3631 = vpop.permute.xlu0 %3630
        %3632 = vrot.lane.b32.xlu0 %v2611, 64
        %v3633 = vpop.permute.xlu0 %3632
        %3634 = vrot.lane.b32.xlu0 %v2615, 64
        %v3635 = vpop.permute.xlu0 %3634
        %3636 = vrot.lane.b32.xlu0 %v2619, 64
        %v3637 = vpop.permute.xlu0 %3636
        %3638 = vrot.lane.b32.xlu0 %v3098, 64
        %v3639 = vpop.permute.xlu0 %3638
        %3640 = vrot.lane.b32.xlu0 %v3577, 64
        %v3641 = vpop.permute.xlu0 %3640
        %vm3674 = vcmask 585216
        %3675 = vst.msk [vmem:[#allocation2] sm:$0xf] %vm3674, %v3579
        %3676 = vst.msk [vmem:[#allocation2 + $0x4] sm:$0xf] %vm3674, %v3581
        %3677 = vst.msk [vmem:[#allocation2 + $0x8] sm:$0xf] %vm3674, %v3583
        %3678 = vst.msk [vmem:[#allocation2 + $0xc] sm:$0xf] %vm3674, %v3585
        %3679 = vst.msk [vmem:[#allocation2 + $0x10] sm:$0xf] %vm3674, %v3587
        %3680 = vst.msk [vmem:[#allocation2 + $0x14] sm:$0xf] %vm3674, %v3589
        %3681 = vst.msk [vmem:[#allocation2 + $0x18] sm:$0xf] %vm3674, %v3591
        %3682 = vst.msk [vmem:[#allocation2 + $0x1c] sm:$0xf] %vm3674, %v3593
        %3683 = vst.msk [vmem:[#allocation2 + $0x20] sm:$0xf] %vm3674, %v3595
        %3684 = vst.msk [vmem:[#allocation2 + $0x24] sm:$0xf] %vm3674, %v3597
        %3685 = vst.msk [vmem:[#allocation2 + $0x28] sm:$0xf] %vm3674, %v3599
        %3686 = vst.msk [vmem:[#allocation2 + $0x2c] sm:$0xf] %vm3674, %v3601
        %3687 = vst.msk [vmem:[#allocation2 + $0x30] sm:$0xf] %vm3674, %v3603
        %3688 = vst.msk [vmem:[#allocation2 + $0x34] sm:$0xf] %vm3674, %v3605
        %3689 = vst.msk [vmem:[#allocation2 + $0x38] sm:$0xf] %vm3674, %v3607
        %3690 = vst.msk [vmem:[#allocation2 + $0x3c] sm:$0xf] %vm3674, %v3609
        %3691 = vst.msk [vmem:[#allocation2 + $0x40] sm:$0xf] %vm3674, %v3611
        %3692 = vst.msk [vmem:[#allocation2 + $0x44] sm:$0xf] %vm3674, %v3613
        %3693 = vst.msk [vmem:[#allocation2 + $0x48] sm:$0xf] %vm3674, %v3615
        %3694 = vst.msk [vmem:[#allocation2 + $0x4c] sm:$0xf] %vm3674, %v3617
        %3695 = vst.msk [vmem:[#allocation2 + $0x50] sm:$0xf] %vm3674, %v3619
        %3696 = vst.msk [vmem:[#allocation2 + $0x54] sm:$0xf] %vm3674, %v3621
        %3697 = vst.msk [vmem:[#allocation2 + $0x58] sm:$0xf] %vm3674, %v3623
        %3698 = vst.msk [vmem:[#allocation2 + $0x5c] sm:$0xf] %vm3674, %v3625
        %3699 = vst.msk [vmem:[#allocation2 + $0x60] sm:$0xf] %vm3674, %v3627
        %3700 = vst.msk [vmem:[#allocation2 + $0x64] sm:$0xf] %vm3674, %v3629
        %3701 = vst.msk [vmem:[#allocation2 + $0x68] sm:$0xf] %vm3674, %v3631
        %3702 = vst.msk [vmem:[#allocation2 + $0x6c] sm:$0xf] %vm3674, %v3633
        %3703 = vst.msk [vmem:[#allocation2 + $0x70] sm:$0xf] %vm3674, %v3635
        %3704 = vst.msk [vmem:[#allocation2 + $0x74] sm:$0xf] %vm3674, %v3637
        %3705 = vst.msk [vmem:[#allocation2 + $0x78] sm:$0xf] %vm3674, %v3639
        %3706 = vst.msk [vmem:[#allocation2 + $0x7c] sm:$0xf] %vm3674, %v3641
        %v3707 = vld [vmem:[#allocation2] sm:$0xf]
        %v3708 = vld [vmem:[#allocation2 + $0x4] sm:$0xf]
        %v3709 = vld [vmem:[#allocation2 + $0x8] sm:$0xf]
        %v3710 = vld [vmem:[#allocation2 + $0xc] sm:$0xf]
        %v3711 = vld [vmem:[#allocation2 + $0x10] sm:$0xf]
        %v3712 = vld [vmem:[#allocation2 + $0x14] sm:$0xf]
        %v3713 = vld [vmem:[#allocation2 + $0x18] sm:$0xf]
        %v3714 = vld [vmem:[#allocation2 + $0x1c] sm:$0xf]
        %v3715 = vld [vmem:[#allocation2 + $0x20] sm:$0xf]
        %v3716 = vld [vmem:[#allocation2 + $0x24] sm:$0xf]
        %v3717 = vld [vmem:[#allocation2 + $0x28] sm:$0xf]
        %v3718 = vld [vmem:[#allocation2 + $0x2c] sm:$0xf]
        %v3719 = vld [vmem:[#allocation2 + $0x30] sm:$0xf]
        %v3720 = vld [vmem:[#allocation2 + $0x34] sm:$0xf]
        %v3721 = vld [vmem:[#allocation2 + $0x38] sm:$0xf]
        %v3722 = vld [vmem:[#allocation2 + $0x3c] sm:$0xf]
        %v3723 = vld [vmem:[#allocation2 + $0x40] sm:$0xf]
        %v3724 = vld [vmem:[#allocation2 + $0x44] sm:$0xf]
        %v3725 = vld [vmem:[#allocation2 + $0x48] sm:$0xf]
        %v3726 = vld [vmem:[#allocation2 + $0x4c] sm:$0xf]
        %v3727 = vld [vmem:[#allocation2 + $0x50] sm:$0xf]
        %v3728 = vld [vmem:[#allocation2 + $0x54] sm:$0xf]
        %v3729 = vld [vmem:[#allocation2 + $0x58] sm:$0xf]
        %v3730 = vld [vmem:[#allocation2 + $0x5c] sm:$0xf]
        %v3731 = vld [vmem:[#allocation2 + $0x60] sm:$0xf]
        %v3732 = vld [vmem:[#allocation2 + $0x64] sm:$0xf]
        %v3733 = vld [vmem:[#allocation2 + $0x68] sm:$0xf]
        %v3734 = vld [vmem:[#allocation2 + $0x6c] sm:$0xf]
        %v3735 = vld [vmem:[#allocation2 + $0x70] sm:$0xf]
        %v3736 = vld [vmem:[#allocation2 + $0x74] sm:$0xf]
        %v3737 = vld [vmem:[#allocation2 + $0x78] sm:$0xf]
        %v3738 = vld [vmem:[#allocation2 + $0x7c] sm:$0xf]
        %v3739 = vld [vmem:[%s4] sm:$0xf]
        %v3740 = vld [vmem:[%s4 + $0x4] sm:$0xf]
        %v3741 = vld [vmem:[%s4 + $0x8] sm:$0xf]
        %v3742 = vld [vmem:[%s4 + $0xc] sm:$0xf]
        %v3743 = vld [vmem:[%s4 + $0x10] sm:$0xf]
        %v3744 = vld [vmem:[%s4 + $0x14] sm:$0xf]
        %v3745 = vld [vmem:[%s4 + $0x18] sm:$0xf]
        %v3746 = vld [vmem:[%s4 + $0x1c] sm:$0xf]
        %v3747 = vld [vmem:[%s4 + $0x20] sm:$0xf]
        %3748 = vst.msk [vmem:[#allocation2] sm:$0xf] %vm1716, %v1666
        %3749 = vst.msk [vmem:[#allocation2 + $0x4] sm:$0xf] %vm1716, %v1667
        %3750 = vst.msk [vmem:[#allocation2 + $0x8] sm:$0xf] %vm1716, %v1668
        %3751 = vst.msk [vmem:[#allocation2 + $0xc] sm:$0xf] %vm1716, %v1669
        %3752 = vst.msk [vmem:[#allocation2 + $0x10] sm:$0xf] %vm1716, %v1670
        %3753 = vst.msk [vmem:[#allocation2 + $0x14] sm:$0xf] %vm1716, %v1671
        %3754 = vst.msk [vmem:[#allocation2 + $0x18] sm:$0xf] %vm1716, %v1672
        %3755 = vst.msk [vmem:[#allocation2 + $0x1c] sm:$0xf] %vm1716, %v1673
        %3756 = vst.msk [vmem:[#allocation2 + $0x20] sm:$0xf] %vm1716, %v1676
        %3757 = vst.msk [vmem:[#allocation2 + $0x24] sm:$0xf] %vm1716, %v1677
        %3758 = vst.msk [vmem:[#allocation2 + $0x28] sm:$0xf] %vm1716, %v1678
        %3759 = vst.msk [vmem:[#allocation2 + $0x2c] sm:$0xf] %vm1716, %v1679
        %3760 = vst.msk [vmem:[#allocation2 + $0x30] sm:$0xf] %vm1716, %v1680
        %3761 = vst.msk [vmem:[#allocation2 + $0x34] sm:$0xf] %vm1716, %v1681
        %3762 = vst.msk [vmem:[#allocation2 + $0x38] sm:$0xf] %vm1716, %v1682
        %3763 = vst.msk [vmem:[#allocation2 + $0x3c] sm:$0xf] %vm1716, %v1683
        %3764 = vst.msk [vmem:[#allocation2 + $0x40] sm:$0xf] %vm1716, %v1686
        %3765 = vst.msk [vmem:[#allocation2 + $0x44] sm:$0xf] %vm1716, %v1687
        %3766 = vst.msk [vmem:[#allocation2 + $0x48] sm:$0xf] %vm1716, %v1688
        %3767 = vst.msk [vmem:[#allocation2 + $0x4c] sm:$0xf] %vm1716, %v1689
        %3768 = vst.msk [vmem:[#allocation2 + $0x50] sm:$0xf] %vm1716, %v1690
        %3769 = vst.msk [vmem:[#allocation2 + $0x54] sm:$0xf] %vm1716, %v1691
        %3770 = vst.msk [vmem:[#allocation2 + $0x58] sm:$0xf] %vm1716, %v1692
        %3771 = vst.msk [vmem:[#allocation2 + $0x5c] sm:$0xf] %vm1716, %v1693
        %3772 = vst.msk [vmem:[#allocation2 + $0x60] sm:$0xf] %vm1716, %v1696
        %3773 = vst.msk [vmem:[#allocation2 + $0x64] sm:$0xf] %vm1716, %v1697
        %3774 = vst.msk [vmem:[#allocation2 + $0x68] sm:$0xf] %vm1716, %v1698
        %3775 = vst.msk [vmem:[#allocation2 + $0x6c] sm:$0xf] %vm1716, %v1699
        %3776 = vst.msk [vmem:[#allocation2 + $0x70] sm:$0xf] %vm1716, %v1700
        %3777 = vst.msk [vmem:[#allocation2 + $0x74] sm:$0xf] %vm1716, %v1701
        %3778 = vst.msk [vmem:[#allocation2 + $0x78] sm:$0xf] %vm1716, %v1702
        %3779 = vst.msk [vmem:[#allocation2 + $0x7c] sm:$0xf] %vm1716, %v1703
        %v3788 = vunpack.c.l.b16 %v1696
        %v3789 = vunpack.c.h.b16 %v1696
        %v3790 = vunpack.c.l.b16 %v1697
        %v3791 = vunpack.c.h.b16 %v1697
        %v3792 = vunpack.c.l.b16 %v1698
        %v3793 = vunpack.c.h.b16 %v1698
        %v3794 = vunpack.c.l.b16 %v1699
        %v3795 = vunpack.c.h.b16 %v1699
        %v3796 = vunpack.c.l.b16 %v1700
        %v3797 = vunpack.c.h.b16 %v1700
        %v3798 = vunpack.c.l.b16 %v1701
        %v3799 = vunpack.c.h.b16 %v1701
        %v3800 = vunpack.c.l.b16 %v1702
        %v3801 = vunpack.c.h.b16 %v1702
        %v3802 = vunpack.c.l.b16 %v1703
        %v3803 = vunpack.c.h.b16 %v1703
        %v3804 = vpack.c.b16 %v3788, %v3788
        %v3805 = vpack.c.b16 %v3789, %v3789
        %v3806 = vpack.c.b16 %v3790, %v3790
        %v3807 = vpack.c.b16 %v3791, %v3791
        %v3808 = vpack.c.b16 %v3792, %v3792
        %v3809 = vpack.c.b16 %v3793, %v3793
        %v3810 = vpack.c.b16 %v3794, %v3794
        %v3811 = vpack.c.b16 %v3795, %v3795
        %v3812 = vpack.c.b16 %v3796, %v3796
        %v3813 = vpack.c.b16 %v3797, %v3797
        %v3814 = vpack.c.b16 %v3798, %v3798
        %v3815 = vpack.c.b16 %v3799, %v3799
        %v3816 = vpack.c.b16 %v3800, %v3800
        %v3817 = vpack.c.b16 %v3801, %v3801
        %v3818 = vpack.c.b16 %v3802, %v3802
        %v3819 = vpack.c.b16 %v3803, %v3803
        %v3821 = vshrl.u32 %v3804, 16
        %v3823 = vrot.slane %v3821, 4
        %v3824 = vshll.u32 %v3804, 16
        %v3826 = vrot.slane %v3824, 5
        %v3827 = vor.u32 %v3823, %v3826
        %v3828 = vrot.slane %v3827, 4
        %v3830 = vshll.u32 %v3805, 16
        %v3832 = vrot.slane %v3830, 5
        %v3833 = vsel %vm1911, %v3828, %v3832
        %v3835 = vshrl.u32 %v3806, 16
        %v3837 = vrot.slane %v3835, 4
        %v3838 = vshll.u32 %v3806, 16
        %v3840 = vrot.slane %v3838, 5
        %v3841 = vor.u32 %v3837, %v3840
        %v3842 = vrot.slane %v3841, 4
        %v3844 = vshll.u32 %v3807, 16
        %v3846 = vrot.slane %v3844, 5
        %v3847 = vsel %vm1911, %v3842, %v3846
        %v3849 = vshrl.u32 %v3808, 16
        %v3851 = vrot.slane %v3849, 4
        %v3852 = vshll.u32 %v3808, 16
        %v3854 = vrot.slane %v3852, 5
        %v3855 = vor.u32 %v3851, %v3854
        %v3856 = vrot.slane %v3855, 4
        %v3858 = vshll.u32 %v3809, 16
        %v3860 = vrot.slane %v3858, 5
        %v3861 = vsel %vm1911, %v3856, %v3860
        %v3863 = vshrl.u32 %v3810, 16
        %v3865 = vrot.slane %v3863, 4
        %v3866 = vshll.u32 %v3810, 16
        %v3868 = vrot.slane %v3866, 5
        %v3869 = vor.u32 %v3865, %v3868
        %v3870 = vrot.slane %v3869, 4
        %v3872 = vshll.u32 %v3811, 16
        %v3874 = vrot.slane %v3872, 5
        %v3875 = vsel %vm1911, %v3870, %v3874
        %v3877 = vshrl.u32 %v3812, 16
        %v3879 = vrot.slane %v3877, 4
        %v3880 = vshll.u32 %v3812, 16
        %v3882 = vrot.slane %v3880, 5
        %v3883 = vor.u32 %v3879, %v3882
        %v3884 = vrot.slane %v3883, 4
        %v3886 = vshll.u32 %v3813, 16
        %v3888 = vrot.slane %v3886, 5
        %v3889 = vsel %vm1911, %v3884, %v3888
        %v3891 = vshrl.u32 %v3814, 16
        %v3893 = vrot.slane %v3891, 4
        %v3894 = vshll.u32 %v3814, 16
        %v3896 = vrot.slane %v3894, 5
        %v3897 = vor.u32 %v3893, %v3896
        %v3898 = vrot.slane %v3897, 4
        %v3900 = vshll.u32 %v3815, 16
        %v3902 = vrot.slane %v3900, 5
        %v3903 = vsel %vm1911, %v3898, %v3902
        %v3905 = vshrl.u32 %v3816, 16
        %v3907 = vrot.slane %v3905, 4
        %v3908 = vshll.u32 %v3816, 16
        %v3910 = vrot.slane %v3908, 5
        %v3911 = vor.u32 %v3907, %v3910
        %v3912 = vrot.slane %v3911, 4
        %v3914 = vshll.u32 %v3817, 16
        %v3916 = vrot.slane %v3914, 5
        %v3917 = vsel %vm1911, %v3912, %v3916
        %v3919 = vshrl.u32 %v3818, 16
        %v3921 = vrot.slane %v3919, 4
        %v3922 = vshll.u32 %v3818, 16
        %v3924 = vrot.slane %v3922, 5
        %v3925 = vor.u32 %v3921, %v3924
        %v3926 = vrot.slane %v3925, 4
        %v3928 = vshll.u32 %v3819, 16
        %v3930 = vrot.slane %v3928, 5
        %v3931 = vsel %vm1911, %v3926, %v3930
        %3932 = vrot.lane.b32.xlu0 %v3833, 8
        %v3933 = vpop.permute.xlu0 %3932
        %3934 = vrot.lane.b32.xlu0 %v3847, 8
        %v3935 = vpop.permute.xlu0 %3934
        %3936 = vrot.lane.b32.xlu0 %v3861, 8
        %v3937 = vpop.permute.xlu0 %3936
        %3938 = vrot.lane.b32.xlu0 %v3875, 8
        %v3939 = vpop.permute.xlu0 %3938
        %3940 = vrot.lane.b32.xlu0 %v3889, 8
        %v3941 = vpop.permute.xlu0 %3940
        %3942 = vrot.lane.b32.xlu0 %v3903, 8
        %v3943 = vpop.permute.xlu0 %3942
        %3944 = vrot.lane.b32.xlu0 %v3917, 8
        %v3945 = vpop.permute.xlu0 %3944
        %3946 = vrot.lane.b32.xlu0 %v3931, 8
        %v3947 = vpop.permute.xlu0 %3946
        %3956 = vst.msk [vmem:[#allocation2] sm:$0xf] %vm2456, %v2377
        %3957 = vst.msk [vmem:[#allocation2 + $0x4] sm:$0xf] %vm2456, %v2379
        %3958 = vst.msk [vmem:[#allocation2 + $0x8] sm:$0xf] %vm2456, %v2381
        %3959 = vst.msk [vmem:[#allocation2 + $0xc] sm:$0xf] %vm2456, %v2383
        %3960 = vst.msk [vmem:[#allocation2 + $0x10] sm:$0xf] %vm2456, %v2385
        %3961 = vst.msk [vmem:[#allocation2 + $0x14] sm:$0xf] %vm2456, %v2387
        %3962 = vst.msk [vmem:[#allocation2 + $0x18] sm:$0xf] %vm2456, %v2389
        %3963 = vst.msk [vmem:[#allocation2 + $0x1c] sm:$0xf] %vm2456, %v2391
        %3964 = vst.msk [vmem:[#allocation2 + $0x20] sm:$0xf] %vm2456, %v2393
        %3965 = vst.msk [vmem:[#allocation2 + $0x24] sm:$0xf] %vm2456, %v2395
        %3966 = vst.msk [vmem:[#allocation2 + $0x28] sm:$0xf] %vm2456, %v2397
        %3967 = vst.msk [vmem:[#allocation2 + $0x2c] sm:$0xf] %vm2456, %v2399
        %3968 = vst.msk [vmem:[#allocation2 + $0x30] sm:$0xf] %vm2456, %v2401
        %3969 = vst.msk [vmem:[#allocation2 + $0x34] sm:$0xf] %vm2456, %v2403
        %3970 = vst.msk [vmem:[#allocation2 + $0x38] sm:$0xf] %vm2456, %v2405
        %3971 = vst.msk [vmem:[#allocation2 + $0x3c] sm:$0xf] %vm2456, %v2407
        %3972 = vst.msk [vmem:[#allocation2 + $0x40] sm:$0xf] %vm2456, %v2409
        %3973 = vst.msk [vmem:[#allocation2 + $0x44] sm:$0xf] %vm2456, %v2411
        %3974 = vst.msk [vmem:[#allocation2 + $0x48] sm:$0xf] %vm2456, %v2413
        %3975 = vst.msk [vmem:[#allocation2 + $0x4c] sm:$0xf] %vm2456, %v2415
        %3976 = vst.msk [vmem:[#allocation2 + $0x50] sm:$0xf] %vm2456, %v2417
        %3977 = vst.msk [vmem:[#allocation2 + $0x54] sm:$0xf] %vm2456, %v2419
        %3978 = vst.msk [vmem:[#allocation2 + $0x58] sm:$0xf] %vm2456, %v2421
        %3979 = vst.msk [vmem:[#allocation2 + $0x5c] sm:$0xf] %vm2456, %v2423
        %3980 = vst.msk [vmem:[#allocation2 + $0x60] sm:$0xf] %vm2456, %v3933
        %3981 = vst.msk [vmem:[#allocation2 + $0x64] sm:$0xf] %vm2456, %v3935
        %3982 = vst.msk [vmem:[#allocation2 + $0x68] sm:$0xf] %vm2456, %v3937
        %3983 = vst.msk [vmem:[#allocation2 + $0x6c] sm:$0xf] %vm2456, %v3939
        %3984 = vst.msk [vmem:[#allocation2 + $0x70] sm:$0xf] %vm2456, %v3941
        %3985 = vst.msk [vmem:[#allocation2 + $0x74] sm:$0xf] %vm2456, %v3943
        %3986 = vst.msk [vmem:[#allocation2 + $0x78] sm:$0xf] %vm2456, %v3945
        %3987 = vst.msk [vmem:[#allocation2 + $0x7c] sm:$0xf] %vm2456, %v3947
        %v3988 = vrot.slane %v3804, 5
        %v3989 = vrot.slane %v3988, 4
        %v3990 = vrot.slane %v3805, 5
        %v3991 = vsel %vm2491, %v3989, %v3990
        %v3992 = vrot.slane %v3806, 5
        %v3993 = vrot.slane %v3992, 4
        %v3994 = vrot.slane %v3807, 5
        %v3995 = vsel %vm2491, %v3993, %v3994
        %v3996 = vrot.slane %v3808, 5
        %v3997 = vrot.slane %v3996, 4
        %v3998 = vrot.slane %v3809, 5
        %v3999 = vsel %vm2491, %v3997, %v3998
        %v4000 = vrot.slane %v3810, 5
        %v4001 = vrot.slane %v4000, 4
        %v4002 = vrot.slane %v3811, 5
        %v4003 = vsel %vm2491, %v4001, %v4002
        %v4004 = vrot.slane %v3812, 5
        %v4005 = vrot.slane %v4004, 4
        %v4006 = vrot.slane %v3813, 5
        %v4007 = vsel %vm2491, %v4005, %v4006
        %v4008 = vrot.slane %v3814, 5
        %v4009 = vrot.slane %v4008, 4
        %v4010 = vrot.slane %v3815, 5
        %v4011 = vsel %vm2491, %v4009, %v4010
        %v4012 = vrot.slane %v3816, 5
        %v4013 = vrot.slane %v4012, 4
        %v4014 = vrot.slane %v3817, 5
        %v4015 = vsel %vm2491, %v4013, %v4014
        %v4016 = vrot.slane %v3818, 5
        %v4017 = vrot.slane %v4016, 4
        %v4018 = vrot.slane %v3819, 5
        %v4019 = vsel %vm2491, %v4017, %v4018
        %4020 = vrot.lane.b32.xlu0 %v3991, 16
        %v4021 = vpop.permute.xlu0 %4020
        %4022 = vrot.lane.b32.xlu0 %v3995, 16
        %v4023 = vpop.permute.xlu0 %4022
        %4024 = vrot.lane.b32.xlu0 %v3999, 16
        %v4025 = vpop.permute.xlu0 %4024
        %4026 = vrot.lane.b32.xlu0 %v4003, 16
        %v4027 = vpop.permute.xlu0 %4026
        %4028 = vrot.lane.b32.xlu0 %v4007, 16
        %v4029 = vpop.permute.xlu0 %4028
        %4030 = vrot.lane.b32.xlu0 %v4011, 16
        %v4031 = vpop.permute.xlu0 %4030
        %4032 = vrot.lane.b32.xlu0 %v4015, 16
        %v4033 = vpop.permute.xlu0 %4032
        %4034 = vrot.lane.b32.xlu0 %v4019, 16
        %v4035 = vpop.permute.xlu0 %4034
        %4044 = vst.msk [vmem:[#allocation2] sm:$0xf] %vm2716, %v2637
        %4045 = vst.msk [vmem:[#allocation2 + $0x4] sm:$0xf] %vm2716, %v2639
        %4046 = vst.msk [vmem:[#allocation2 + $0x8] sm:$0xf] %vm2716, %v2641
        %4047 = vst.msk [vmem:[#allocation2 + $0xc] sm:$0xf] %vm2716, %v2643
        %4048 = vst.msk [vmem:[#allocation2 + $0x10] sm:$0xf] %vm2716, %v2645
        %4049 = vst.msk [vmem:[#allocation2 + $0x14] sm:$0xf] %vm2716, %v2647
        %4050 = vst.msk [vmem:[#allocation2 + $0x18] sm:$0xf] %vm2716, %v2649
        %4051 = vst.msk [vmem:[#allocation2 + $0x1c] sm:$0xf] %vm2716, %v2651
        %4052 = vst.msk [vmem:[#allocation2 + $0x20] sm:$0xf] %vm2716, %v2653
        %4053 = vst.msk [vmem:[#allocation2 + $0x24] sm:$0xf] %vm2716, %v2655
        %4054 = vst.msk [vmem:[#allocation2 + $0x28] sm:$0xf] %vm2716, %v2657
        %4055 = vst.msk [vmem:[#allocation2 + $0x2c] sm:$0xf] %vm2716, %v2659
        %4056 = vst.msk [vmem:[#allocation2 + $0x30] sm:$0xf] %vm2716, %v2661
        %4057 = vst.msk [vmem:[#allocation2 + $0x34] sm:$0xf] %vm2716, %v2663
        %4058 = vst.msk [vmem:[#allocation2 + $0x38] sm:$0xf] %vm2716, %v2665
        %4059 = vst.msk [vmem:[#allocation2 + $0x3c] sm:$0xf] %vm2716, %v2667
        %4060 = vst.msk [vmem:[#allocation2 + $0x40] sm:$0xf] %vm2716, %v2669
        %4061 = vst.msk [vmem:[#allocation2 + $0x44] sm:$0xf] %vm2716, %v2671
        %4062 = vst.msk [vmem:[#allocation2 + $0x48] sm:$0xf] %vm2716, %v2673
        %4063 = vst.msk [vmem:[#allocation2 + $0x4c] sm:$0xf] %vm2716, %v2675
        %4064 = vst.msk [vmem:[#allocation2 + $0x50] sm:$0xf] %vm2716, %v2677
        %4065 = vst.msk [vmem:[#allocation2 + $0x54] sm:$0xf] %vm2716, %v2679
        %4066 = vst.msk [vmem:[#allocation2 + $0x58] sm:$0xf] %vm2716, %v2681
        %4067 = vst.msk [vmem:[#allocation2 + $0x5c] sm:$0xf] %vm2716, %v2683
        %4068 = vst.msk [vmem:[#allocation2 + $0x60] sm:$0xf] %vm2716, %v4021
        %4069 = vst.msk [vmem:[#allocation2 + $0x64] sm:$0xf] %vm2716, %v4023
        %4070 = vst.msk [vmem:[#allocation2 + $0x68] sm:$0xf] %vm2716, %v4025
        %4071 = vst.msk [vmem:[#allocation2 + $0x6c] sm:$0xf] %vm2716, %v4027
        %4072 = vst.msk [vmem:[#allocation2 + $0x70] sm:$0xf] %vm2716, %v4029
        %4073 = vst.msk [vmem:[#allocation2 + $0x74] sm:$0xf] %vm2716, %v4031
        %4074 = vst.msk [vmem:[#allocation2 + $0x78] sm:$0xf] %vm2716, %v4033
        %4075 = vst.msk [vmem:[#allocation2 + $0x7c] sm:$0xf] %vm2716, %v4035
        %4077 = vrot.lane.b32.xlu0 %v1697, 24
        %v4078 = vpop.permute.xlu0 %4077
        %4079 = vrot.lane.b32.xlu0 %v1698, 24
        %v4080 = vpop.permute.xlu0 %4079
        %4081 = vrot.lane.b32.xlu0 %v1699, 24
        %v4082 = vpop.permute.xlu0 %4081
        %4083 = vrot.lane.b32.xlu0 %v1700, 24
        %v4084 = vpop.permute.xlu0 %4083
        %4085 = vrot.lane.b32.xlu0 %v1701, 24
        %v4086 = vpop.permute.xlu0 %4085
        %4087 = vrot.lane.b32.xlu0 %v1702, 24
        %v4088 = vpop.permute.xlu0 %4087
        %4089 = vrot.lane.b32.xlu0 %v1703, 24
        %v4090 = vpop.permute.xlu0 %4089
        %4091 = vrot.lane.b32.xlu0 %v1704, 24
        %v4092 = vpop.permute.xlu0 %4091
        %4101 = vst.msk [vmem:[#allocation2] sm:$0xf] %vm2849, %v2770
        %4102 = vst.msk [vmem:[#allocation2 + $0x4] sm:$0xf] %vm2849, %v2772
        %4103 = vst.msk [vmem:[#allocation2 + $0x8] sm:$0xf] %vm2849, %v2774
        %4104 = vst.msk [vmem:[#allocation2 + $0xc] sm:$0xf] %vm2849, %v2776
        %4105 = vst.msk [vmem:[#allocation2 + $0x10] sm:$0xf] %vm2849, %v2778
        %4106 = vst.msk [vmem:[#allocation2 + $0x14] sm:$0xf] %vm2849, %v2780
        %4107 = vst.msk [vmem:[#allocation2 + $0x18] sm:$0xf] %vm2849, %v2782
        %4108 = vst.msk [vmem:[#allocation2 + $0x1c] sm:$0xf] %vm2849, %v2784
        %4109 = vst.msk [vmem:[#allocation2 + $0x20] sm:$0xf] %vm2849, %v2786
        %4110 = vst.msk [vmem:[#allocation2 + $0x24] sm:$0xf] %vm2849, %v2788
        %4111 = vst.msk [vmem:[#allocation2 + $0x28] sm:$0xf] %vm2849, %v2790
        %4112 = vst.msk [vmem:[#allocation2 + $0x2c] sm:$0xf] %vm2849, %v2792
        %4113 = vst.msk [vmem:[#allocation2 + $0x30] sm:$0xf] %vm2849, %v2794
        %4114 = vst.msk [vmem:[#allocation2 + $0x34] sm:$0xf] %vm2849, %v2796
        %4115 = vst.msk [vmem:[#allocation2 + $0x38] sm:$0xf] %vm2849, %v2798
        %4116 = vst.msk [vmem:[#allocation2 + $0x3c] sm:$0xf] %vm2849, %v2800
        %4117 = vst.msk [vmem:[#allocation2 + $0x40] sm:$0xf] %vm2849, %v2802
        %4118 = vst.msk [vmem:[#allocation2 + $0x44] sm:$0xf] %vm2849, %v2804
        %4119 = vst.msk [vmem:[#allocation2 + $0x48] sm:$0xf] %vm2849, %v2806
        %4120 = vst.msk [vmem:[#allocation2 + $0x4c] sm:$0xf] %vm2849, %v2808
        %4121 = vst.msk [vmem:[#allocation2 + $0x50] sm:$0xf] %vm2849, %v2810
        %4122 = vst.msk [vmem:[#allocation2 + $0x54] sm:$0xf] %vm2849, %v2812
        %4123 = vst.msk [vmem:[#allocation2 + $0x58] sm:$0xf] %vm2849, %v2814
        %4124 = vst.msk [vmem:[#allocation2 + $0x5c] sm:$0xf] %vm2849, %v2816
        %4125 = vst.msk [vmem:[#allocation2 + $0x60] sm:$0xf] %vm2849, %v4078
        %4126 = vst.msk [vmem:[#allocation2 + $0x64] sm:$0xf] %vm2849, %v4080
        %4127 = vst.msk [vmem:[#allocation2 + $0x68] sm:$0xf] %vm2849, %v4082
        %4128 = vst.msk [vmem:[#allocation2 + $0x6c] sm:$0xf] %vm2849, %v4084
        %4129 = vst.msk [vmem:[#allocation2 + $0x70] sm:$0xf] %vm2849, %v4086
        %4130 = vst.msk [vmem:[#allocation2 + $0x74] sm:$0xf] %vm2849, %v4088
        %4131 = vst.msk [vmem:[#allocation2 + $0x78] sm:$0xf] %vm2849, %v4090
        %4132 = vst.msk [vmem:[#allocation2 + $0x7c] sm:$0xf] %vm2849, %v4092
        %v4133 = vunpack.c.l.b16 %v1704
        %v4134 = vunpack.c.h.b16 %v1704
        %v4135 = vpack.c.b16 %v4133, %v4133
        %v4136 = vpack.c.b16 %v4134, %v4134
        %v4138 = vshrl.u32 %v4135, 16
        %v4140 = vrot.slane %v4138, 4
        %v4141 = vshll.u32 %v4135, 16
        %v4143 = vrot.slane %v4141, 5
        %v4144 = vor.u32 %v4140, %v4143
        %v4145 = vrot.slane %v4144, 4
        %v4147 = vshll.u32 %v4136, 16
        %v4149 = vrot.slane %v4147, 5
        %v4150 = vsel %vm1911, %v4145, %v4149
        %4151 = vrot.lane.b32.xlu0 %v3847, 32
        %v4152 = vpop.permute.xlu0 %4151
        %4153 = vrot.lane.b32.xlu0 %v3861, 32
        %v4154 = vpop.permute.xlu0 %4153
        %4155 = vrot.lane.b32.xlu0 %v3875, 32
        %v4156 = vpop.permute.xlu0 %4155
        %4157 = vrot.lane.b32.xlu0 %v3889, 32
        %v4158 = vpop.permute.xlu0 %4157
        %4159 = vrot.lane.b32.xlu0 %v3903, 32
        %v4160 = vpop.permute.xlu0 %4159
        %4161 = vrot.lane.b32.xlu0 %v3917, 32
        %v4162 = vpop.permute.xlu0 %4161
        %4163 = vrot.lane.b32.xlu0 %v3931, 32
        %v4164 = vpop.permute.xlu0 %4163
        %4165 = vrot.lane.b32.xlu0 %v4150, 32
        %v4166 = vpop.permute.xlu0 %4165
        %4175 = vst.msk [vmem:[#allocation2] sm:$0xf] %vm3050, %v2971
        %4176 = vst.msk [vmem:[#allocation2 + $0x4] sm:$0xf] %vm3050, %v2973
        %4177 = vst.msk [vmem:[#allocation2 + $0x8] sm:$0xf] %vm3050, %v2975
        %4178 = vst.msk [vmem:[#allocation2 + $0xc] sm:$0xf] %vm3050, %v2977
        %4179 = vst.msk [vmem:[#allocation2 + $0x10] sm:$0xf] %vm3050, %v2979
        %4180 = vst.msk [vmem:[#allocation2 + $0x14] sm:$0xf] %vm3050, %v2981
        %4181 = vst.msk [vmem:[#allocation2 + $0x18] sm:$0xf] %vm3050, %v2983
        %4182 = vst.msk [vmem:[#allocation2 + $0x1c] sm:$0xf] %vm3050, %v2985
        %4183 = vst.msk [vmem:[#allocation2 + $0x20] sm:$0xf] %vm3050, %v2987
        %4184 = vst.msk [vmem:[#allocation2 + $0x24] sm:$0xf] %vm3050, %v2989
        %4185 = vst.msk [vmem:[#allocation2 + $0x28] sm:$0xf] %vm3050, %v2991
        %4186 = vst.msk [vmem:[#allocation2 + $0x2c] sm:$0xf] %vm3050, %v2993
        %4187 = vst.msk [vmem:[#allocation2 + $0x30] sm:$0xf] %vm3050, %v2995
        %4188 = vst.msk [vmem:[#allocation2 + $0x34] sm:$0xf] %vm3050, %v2997
        %4189 = vst.msk [vmem:[#allocation2 + $0x38] sm:$0xf] %vm3050, %v2999
        %4190 = vst.msk [vmem:[#allocation2 + $0x3c] sm:$0xf] %vm3050, %v3001
        %4191 = vst.msk [vmem:[#allocation2 + $0x40] sm:$0xf] %vm3050, %v3003
        %4192 = vst.msk [vmem:[#allocation2 + $0x44] sm:$0xf] %vm3050, %v3005
        %4193 = vst.msk [vmem:[#allocation2 + $0x48] sm:$0xf] %vm3050, %v3007
        %4194 = vst.msk [vmem:[#allocation2 + $0x4c] sm:$0xf] %vm3050, %v3009
        %4195 = vst.msk [vmem:[#allocation2 + $0x50] sm:$0xf] %vm3050, %v3011
        %4196 = vst.msk [vmem:[#allocation2 + $0x54] sm:$0xf] %vm3050, %v3013
        %4197 = vst.msk [vmem:[#allocation2 + $0x58] sm:$0xf] %vm3050, %v3015
        %4198 = vst.msk [vmem:[#allocation2 + $0x5c] sm:$0xf] %vm3050, %v3017
        %4199 = vst.msk [vmem:[#allocation2 + $0x60] sm:$0xf] %vm3050, %v4152
        %4200 = vst.msk [vmem:[#allocation2 + $0x64] sm:$0xf] %vm3050, %v4154
        %4201 = vst.msk [vmem:[#allocation2 + $0x68] sm:$0xf] %vm3050, %v4156
        %4202 = vst.msk [vmem:[#allocation2 + $0x6c] sm:$0xf] %vm3050, %v4158
        %4203 = vst.msk [vmem:[#allocation2 + $0x70] sm:$0xf] %vm3050, %v4160
        %4204 = vst.msk [vmem:[#allocation2 + $0x74] sm:$0xf] %vm3050, %v4162
        %4205 = vst.msk [vmem:[#allocation2 + $0x78] sm:$0xf] %vm3050, %v4164
        %4206 = vst.msk [vmem:[#allocation2 + $0x7c] sm:$0xf] %vm3050, %v4166
        %v4207 = vrot.slane %v4135, 5
        %v4208 = vrot.slane %v4207, 4
        %v4209 = vrot.slane %v4136, 5
        %v4210 = vsel %vm2491, %v4208, %v4209
        %4211 = vrot.lane.b32.xlu0 %v3995, 40
        %v4212 = vpop.permute.xlu0 %4211
        %4213 = vrot.lane.b32.xlu0 %v3999, 40
        %v4214 = vpop.permute.xlu0 %4213
        %4215 = vrot.lane.b32.xlu0 %v4003, 40
        %v4216 = vpop.permute.xlu0 %4215
        %4217 = vrot.lane.b32.xlu0 %v4007, 40
        %v4218 = vpop.permute.xlu0 %4217
        %4219 = vrot.lane.b32.xlu0 %v4011, 40
        %v4220 = vpop.permute.xlu0 %4219
        %4221 = vrot.lane.b32.xlu0 %v4015, 40
        %v4222 = vpop.permute.xlu0 %4221
        %4223 = vrot.lane.b32.xlu0 %v4019, 40
        %v4224 = vpop.permute.xlu0 %4223
        %4225 = vrot.lane.b32.xlu0 %v4210, 40
        %v4226 = vpop.permute.xlu0 %4225
        %4235 = vst.msk [vmem:[#allocation2] sm:$0xf] %vm3195, %v3116
        %4236 = vst.msk [vmem:[#allocation2 + $0x4] sm:$0xf] %vm3195, %v3118
        %4237 = vst.msk [vmem:[#allocation2 + $0x8] sm:$0xf] %vm3195, %v3120
        %4238 = vst.msk [vmem:[#allocation2 + $0xc] sm:$0xf] %vm3195, %v3122
        %4239 = vst.msk [vmem:[#allocation2 + $0x10] sm:$0xf] %vm3195, %v3124
        %4240 = vst.msk [vmem:[#allocation2 + $0x14] sm:$0xf] %vm3195, %v3126
        %4241 = vst.msk [vmem:[#allocation2 + $0x18] sm:$0xf] %vm3195, %v3128
        %4242 = vst.msk [vmem:[#allocation2 + $0x1c] sm:$0xf] %vm3195, %v3130
        %4243 = vst.msk [vmem:[#allocation2 + $0x20] sm:$0xf] %vm3195, %v3132
        %4244 = vst.msk [vmem:[#allocation2 + $0x24] sm:$0xf] %vm3195, %v3134
        %4245 = vst.msk [vmem:[#allocation2 + $0x28] sm:$0xf] %vm3195, %v3136
        %4246 = vst.msk [vmem:[#allocation2 + $0x2c] sm:$0xf] %vm3195, %v3138
        %4247 = vst.msk [vmem:[#allocation2 + $0x30] sm:$0xf] %vm3195, %v3140
        %4248 = vst.msk [vmem:[#allocation2 + $0x34] sm:$0xf] %vm3195, %v3142
        %4249 = vst.msk [vmem:[#allocation2 + $0x38] sm:$0xf] %vm3195, %v3144
        %4250 = vst.msk [vmem:[#allocation2 + $0x3c] sm:$0xf] %vm3195, %v3146
        %4251 = vst.msk [vmem:[#allocation2 + $0x40] sm:$0xf] %vm3195, %v3148
        %4252 = vst.msk [vmem:[#allocation2 + $0x44] sm:$0xf] %vm3195, %v3150
        %4253 = vst.msk [vmem:[#allocation2 + $0x48] sm:$0xf] %vm3195, %v3152
        %4254 = vst.msk [vmem:[#allocation2 + $0x4c] sm:$0xf] %vm3195, %v3154
        %4255 = vst.msk [vmem:[#allocation2 + $0x50] sm:$0xf] %vm3195, %v3156
        %4256 = vst.msk [vmem:[#allocation2 + $0x54] sm:$0xf] %vm3195, %v3158
        %4257 = vst.msk [vmem:[#allocation2 + $0x58] sm:$0xf] %vm3195, %v3160
        %4258 = vst.msk [vmem:[#allocation2 + $0x5c] sm:$0xf] %vm3195, %v3162
        %4259 = vst.msk [vmem:[#allocation2 + $0x60] sm:$0xf] %vm3195, %v4212
        %4260 = vst.msk [vmem:[#allocation2 + $0x64] sm:$0xf] %vm3195, %v4214
        %4261 = vst.msk [vmem:[#allocation2 + $0x68] sm:$0xf] %vm3195, %v4216
        %4262 = vst.msk [vmem:[#allocation2 + $0x6c] sm:$0xf] %vm3195, %v4218
        %4263 = vst.msk [vmem:[#allocation2 + $0x70] sm:$0xf] %vm3195, %v4220
        %4264 = vst.msk [vmem:[#allocation2 + $0x74] sm:$0xf] %vm3195, %v4222
        %4265 = vst.msk [vmem:[#allocation2 + $0x78] sm:$0xf] %vm3195, %v4224
        %4266 = vst.msk [vmem:[#allocation2 + $0x7c] sm:$0xf] %vm3195, %v4226
        %4268 = vrot.lane.b32.xlu0 %v1698, 48
        %v4269 = vpop.permute.xlu0 %4268
        %4270 = vrot.lane.b32.xlu0 %v1699, 48
        %v4271 = vpop.permute.xlu0 %4270
        %4272 = vrot.lane.b32.xlu0 %v1700, 48
        %v4273 = vpop.permute.xlu0 %4272
        %4274 = vrot.lane.b32.xlu0 %v1701, 48
        %v4275 = vpop.permute.xlu0 %4274
        %4276 = vrot.lane.b32.xlu0 %v1702, 48
        %v4277 = vpop.permute.xlu0 %4276
        %4278 = vrot.lane.b32.xlu0 %v1703, 48
        %v4279 = vpop.permute.xlu0 %4278
        %4280 = vrot.lane.b32.xlu0 %v1704, 48
        %v4281 = vpop.permute.xlu0 %4280
        %4282 = vrot.lane.b32.xlu0 %v1705, 48
        %v4283 = vpop.permute.xlu0 %4282
        %4292 = vst.msk [vmem:[#allocation2] sm:$0xf] %vm3328, %v3249
        %4293 = vst.msk [vmem:[#allocation2 + $0x4] sm:$0xf] %vm3328, %v3251
        %4294 = vst.msk [vmem:[#allocation2 + $0x8] sm:$0xf] %vm3328, %v3253
        %4295 = vst.msk [vmem:[#allocation2 + $0xc] sm:$0xf] %vm3328, %v3255
        %4296 = vst.msk [vmem:[#allocation2 + $0x10] sm:$0xf] %vm3328, %v3257
        %4297 = vst.msk [vmem:[#allocation2 + $0x14] sm:$0xf] %vm3328, %v3259
        %4298 = vst.msk [vmem:[#allocation2 + $0x18] sm:$0xf] %vm3328, %v3261
        %4299 = vst.msk [vmem:[#allocation2 + $0x1c] sm:$0xf] %vm3328, %v3263
        %4300 = vst.msk [vmem:[#allocation2 + $0x20] sm:$0xf] %vm3328, %v3265
        %4301 = vst.msk [vmem:[#allocation2 + $0x24] sm:$0xf] %vm3328, %v3267
        %4302 = vst.msk [vmem:[#allocation2 + $0x28] sm:$0xf] %vm3328, %v3269
        %4303 = vst.msk [vmem:[#allocation2 + $0x2c] sm:$0xf] %vm3328, %v3271
        %4304 = vst.msk [vmem:[#allocation2 + $0x30] sm:$0xf] %vm3328, %v3273
        %4305 = vst.msk [vmem:[#allocation2 + $0x34] sm:$0xf] %vm3328, %v3275
        %4306 = vst.msk [vmem:[#allocation2 + $0x38] sm:$0xf] %vm3328, %v3277
        %4307 = vst.msk [vmem:[#allocation2 + $0x3c] sm:$0xf] %vm3328, %v3279
        %4308 = vst.msk [vmem:[#allocation2 + $0x40] sm:$0xf] %vm3328, %v3281
        %4309 = vst.msk [vmem:[#allocation2 + $0x44] sm:$0xf] %vm3328, %v3283
        %4310 = vst.msk [vmem:[#allocation2 + $0x48] sm:$0xf] %vm3328, %v3285
        %4311 = vst.msk [vmem:[#allocation2 + $0x4c] sm:$0xf] %vm3328, %v3287
        %4312 = vst.msk [vmem:[#allocation2 + $0x50] sm:$0xf] %vm3328, %v3289
        %4313 = vst.msk [vmem:[#allocation2 + $0x54] sm:$0xf] %vm3328, %v3291
        %4314 = vst.msk [vmem:[#allocation2 + $0x58] sm:$0xf] %vm3328, %v3293
        %4315 = vst.msk [vmem:[#allocation2 + $0x5c] sm:$0xf] %vm3328, %v3295
        %4316 = vst.msk [vmem:[#allocation2 + $0x60] sm:$0xf] %vm3328, %v4269
        %4317 = vst.msk [vmem:[#allocation2 + $0x64] sm:$0xf] %vm3328, %v4271
        %4318 = vst.msk [vmem:[#allocation2 + $0x68] sm:$0xf] %vm3328, %v4273
        %4319 = vst.msk [vmem:[#allocation2 + $0x6c] sm:$0xf] %vm3328, %v4275
        %4320 = vst.msk [vmem:[#allocation2 + $0x70] sm:$0xf] %vm3328, %v4277
        %4321 = vst.msk [vmem:[#allocation2 + $0x74] sm:$0xf] %vm3328, %v4279
        %4322 = vst.msk [vmem:[#allocation2 + $0x78] sm:$0xf] %vm3328, %v4281
        %4323 = vst.msk [vmem:[#allocation2 + $0x7c] sm:$0xf] %vm3328, %v4283
        %v4324 = vunpack.c.l.b16 %v1705
        %v4325 = vunpack.c.h.b16 %v1705
        %v4326 = vpack.c.b16 %v4324, %v4324
        %v4327 = vpack.c.b16 %v4325, %v4325
        %v4329 = vshrl.u32 %v4326, 16
        %v4331 = vrot.slane %v4329, 4
        %v4332 = vshll.u32 %v4326, 16
        %v4334 = vrot.slane %v4332, 5
        %v4335 = vor.u32 %v4331, %v4334
        %v4336 = vrot.slane %v4335, 4
        %v4338 = vshll.u32 %v4327, 16
        %v4340 = vrot.slane %v4338, 5
        %v4341 = vsel %vm1911, %v4336, %v4340
        %4342 = vrot.lane.b32.xlu0 %v3861, 56
        %v4343 = vpop.permute.xlu0 %4342
        %4344 = vrot.lane.b32.xlu0 %v3875, 56
        %v4345 = vpop.permute.xlu0 %4344
        %4346 = vrot.lane.b32.xlu0 %v3889, 56
        %v4347 = vpop.permute.xlu0 %4346
        %4348 = vrot.lane.b32.xlu0 %v3903, 56
        %v4349 = vpop.permute.xlu0 %4348
        %4350 = vrot.lane.b32.xlu0 %v3917, 56
        %v4351 = vpop.permute.xlu0 %4350
        %4352 = vrot.lane.b32.xlu0 %v3931, 56
        %v4353 = vpop.permute.xlu0 %4352
        %4354 = vrot.lane.b32.xlu0 %v4150, 56
        %v4355 = vpop.permute.xlu0 %4354
        %4356 = vrot.lane.b32.xlu0 %v4341, 56
        %v4357 = vpop.permute.xlu0 %4356
        %4366 = vst.msk [vmem:[#allocation2] sm:$0xf] %vm3529, %v3450
        %4367 = vst.msk [vmem:[#allocation2 + $0x4] sm:$0xf] %vm3529, %v3452
        %4368 = vst.msk [vmem:[#allocation2 + $0x8] sm:$0xf] %vm3529, %v3454
        %4369 = vst.msk [vmem:[#allocation2 + $0xc] sm:$0xf] %vm3529, %v3456
        %4370 = vst.msk [vmem:[#allocation2 + $0x10] sm:$0xf] %vm3529, %v3458
        %4371 = vst.msk [vmem:[#allocation2 + $0x14] sm:$0xf] %vm3529, %v3460
        %4372 = vst.msk [vmem:[#allocation2 + $0x18] sm:$0xf] %vm3529, %v3462
        %4373 = vst.msk [vmem:[#allocation2 + $0x1c] sm:$0xf] %vm3529, %v3464
        %4374 = vst.msk [vmem:[#allocation2 + $0x20] sm:$0xf] %vm3529, %v3466
        %4375 = vst.msk [vmem:[#allocation2 + $0x24] sm:$0xf] %vm3529, %v3468
        %4376 = vst.msk [vmem:[#allocation2 + $0x28] sm:$0xf] %vm3529, %v3470
        %4377 = vst.msk [vmem:[#allocation2 + $0x2c] sm:$0xf] %vm3529, %v3472
        %4378 = vst.msk [vmem:[#allocation2 + $0x30] sm:$0xf] %vm3529, %v3474
        %4379 = vst.msk [vmem:[#allocation2 + $0x34] sm:$0xf] %vm3529, %v3476
        %4380 = vst.msk [vmem:[#allocation2 + $0x38] sm:$0xf] %vm3529, %v3478
        %4381 = vst.msk [vmem:[#allocation2 + $0x3c] sm:$0xf] %vm3529, %v3480
        %4382 = vst.msk [vmem:[#allocation2 + $0x40] sm:$0xf] %vm3529, %v3482
        %4383 = vst.msk [vmem:[#allocation2 + $0x44] sm:$0xf] %vm3529, %v3484
        %4384 = vst.msk [vmem:[#allocation2 + $0x48] sm:$0xf] %vm3529, %v3486
        %4385 = vst.msk [vmem:[#allocation2 + $0x4c] sm:$0xf] %vm3529, %v3488
        %4386 = vst.msk [vmem:[#allocation2 + $0x50] sm:$0xf] %vm3529, %v3490
        %4387 = vst.msk [vmem:[#allocation2 + $0x54] sm:$0xf] %vm3529, %v3492
        %4388 = vst.msk [vmem:[#allocation2 + $0x58] sm:$0xf] %vm3529, %v3494
        %4389 = vst.msk [vmem:[#allocation2 + $0x5c] sm:$0xf] %vm3529, %v3496
        %4390 = vst.msk [vmem:[#allocation2 + $0x60] sm:$0xf] %vm3529, %v4343
        %4391 = vst.msk [vmem:[#allocation2 + $0x64] sm:$0xf] %vm3529, %v4345
        %4392 = vst.msk [vmem:[#allocation2 + $0x68] sm:$0xf] %vm3529, %v4347
        %4393 = vst.msk [vmem:[#allocation2 + $0x6c] sm:$0xf] %vm3529, %v4349
        %4394 = vst.msk [vmem:[#allocation2 + $0x70] sm:$0xf] %vm3529, %v4351
        %4395 = vst.msk [vmem:[#allocation2 + $0x74] sm:$0xf] %vm3529, %v4353
        %4396 = vst.msk [vmem:[#allocation2 + $0x78] sm:$0xf] %vm3529, %v4355
        %4397 = vst.msk [vmem:[#allocation2 + $0x7c] sm:$0xf] %vm3529, %v4357
        %v4398 = vrot.slane %v4326, 5
        %v4399 = vrot.slane %v4398, 4
        %v4400 = vrot.slane %v4327, 5
        %v4401 = vsel %vm2491, %v4399, %v4400
        %4402 = vrot.lane.b32.xlu0 %v3999, 64
        %v4403 = vpop.permute.xlu0 %4402
        %4404 = vrot.lane.b32.xlu0 %v4003, 64
        %v4405 = vpop.permute.xlu0 %4404
        %4406 = vrot.lane.b32.xlu0 %v4007, 64
        %v4407 = vpop.permute.xlu0 %4406
        %4408 = vrot.lane.b32.xlu0 %v4011, 64
        %v4409 = vpop.permute.xlu0 %4408
        %4410 = vrot.lane.b32.xlu0 %v4015, 64
        %v4411 = vpop.permute.xlu0 %4410
        %4412 = vrot.lane.b32.xlu0 %v4019, 64
        %v4413 = vpop.permute.xlu0 %4412
        %4414 = vrot.lane.b32.xlu0 %v4210, 64
        %v4415 = vpop.permute.xlu0 %4414
        %4416 = vrot.lane.b32.xlu0 %v4401, 64
        %v4417 = vpop.permute.xlu0 %4416
        %4426 = vst.msk [vmem:[#allocation2] sm:$0xf] %vm3674, %v3595
        %4427 = vst.msk [vmem:[#allocation2 + $0x4] sm:$0xf] %vm3674, %v3597
        %4428 = vst.msk [vmem:[#allocation2 + $0x8] sm:$0xf] %vm3674, %v3599
        %4429 = vst.msk [vmem:[#allocation2 + $0xc] sm:$0xf] %vm3674, %v3601
        %4430 = vst.msk [vmem:[#allocation2 + $0x10] sm:$0xf] %vm3674, %v3603
        %4431 = vst.msk [vmem:[#allocation2 + $0x14] sm:$0xf] %vm3674, %v3605
        %4432 = vst.msk [vmem:[#allocation2 + $0x18] sm:$0xf] %vm3674, %v3607
        %4433 = vst.msk [vmem:[#allocation2 + $0x1c] sm:$0xf] %vm3674, %v3609
        %4434 = vst.msk [vmem:[#allocation2 + $0x20] sm:$0xf] %vm3674, %v3611
        %4435 = vst.msk [vmem:[#allocation2 + $0x24] sm:$0xf] %vm3674, %v3613
        %4436 = vst.msk [vmem:[#allocation2 + $0x28] sm:$0xf] %vm3674, %v3615
        %4437 = vst.msk [vmem:[#allocation2 + $0x2c] sm:$0xf] %vm3674, %v3617
        %4438 = vst.msk [vmem:[#allocation2 + $0x30] sm:$0xf] %vm3674, %v3619
        %4439 = vst.msk [vmem:[#allocation2 + $0x34] sm:$0xf] %vm3674, %v3621
        %4440 = vst.msk [vmem:[#allocation2 + $0x38] sm:$0xf] %vm3674, %v3623
        %4441 = vst.msk [vmem:[#allocation2 + $0x3c] sm:$0xf] %vm3674, %v3625
        %4442 = vst.msk [vmem:[#allocation2 + $0x40] sm:$0xf] %vm3674, %v3627
        %4443 = vst.msk [vmem:[#allocation2 + $0x44] sm:$0xf] %vm3674, %v3629
        %4444 = vst.msk [vmem:[#allocation2 + $0x48] sm:$0xf] %vm3674, %v3631
        %4445 = vst.msk [vmem:[#allocation2 + $0x4c] sm:$0xf] %vm3674, %v3633
        %4446 = vst.msk [vmem:[#allocation2 + $0x50] sm:$0xf] %vm3674, %v3635
        %4447 = vst.msk [vmem:[#allocation2 + $0x54] sm:$0xf] %vm3674, %v3637
        %4448 = vst.msk [vmem:[#allocation2 + $0x58] sm:$0xf] %vm3674, %v3639
        %4449 = vst.msk [vmem:[#allocation2 + $0x5c] sm:$0xf] %vm3674, %v3641
        %4450 = vst.msk [vmem:[#allocation2 + $0x60] sm:$0xf] %vm3674, %v4403
        %4451 = vst.msk [vmem:[#allocation2 + $0x64] sm:$0xf] %vm3674, %v4405
        %4452 = vst.msk [vmem:[#allocation2 + $0x68] sm:$0xf] %vm3674, %v4407
        %4453 = vst.msk [vmem:[#allocation2 + $0x6c] sm:$0xf] %vm3674, %v4409
        %4454 = vst.msk [vmem:[#allocation2 + $0x70] sm:$0xf] %vm3674, %v4411
        %4455 = vst.msk [vmem:[#allocation2 + $0x74] sm:$0xf] %vm3674, %v4413
        %4456 = vst.msk [vmem:[#allocation2 + $0x78] sm:$0xf] %vm3674, %v4415
        %4457 = vst.msk [vmem:[#allocation2 + $0x7c] sm:$0xf] %vm3674, %v4417
        %v4458 = vld [vmem:[#allocation2] sm:$0xf]
        %v4459 = vld [vmem:[#allocation2 + $0x4] sm:$0xf]
        %v4460 = vld [vmem:[#allocation2 + $0x8] sm:$0xf]
        %v4461 = vld [vmem:[#allocation2 + $0xc] sm:$0xf]
        %v4462 = vld [vmem:[#allocation2 + $0x10] sm:$0xf]
        %v4463 = vld [vmem:[#allocation2 + $0x14] sm:$0xf]
        %v4464 = vld [vmem:[#allocation2 + $0x18] sm:$0xf]
        %v4465 = vld [vmem:[#allocation2 + $0x1c] sm:$0xf]
        %v4466 = vld [vmem:[#allocation2 + $0x20] sm:$0xf]
        %v4467 = vld [vmem:[#allocation2 + $0x24] sm:$0xf]
        %v4468 = vld [vmem:[#allocation2 + $0x28] sm:$0xf]
        %v4469 = vld [vmem:[#allocation2 + $0x2c] sm:$0xf]
        %v4470 = vld [vmem:[#allocation2 + $0x30] sm:$0xf]
        %v4471 = vld [vmem:[#allocation2 + $0x34] sm:$0xf]
        %v4472 = vld [vmem:[#allocation2 + $0x38] sm:$0xf]
        %v4473 = vld [vmem:[#allocation2 + $0x3c] sm:$0xf]
        %v4474 = vld [vmem:[#allocation2 + $0x40] sm:$0xf]
        %v4475 = vld [vmem:[#allocation2 + $0x44] sm:$0xf]
        %v4476 = vld [vmem:[#allocation2 + $0x48] sm:$0xf]
        %v4477 = vld [vmem:[#allocation2 + $0x4c] sm:$0xf]
        %v4478 = vld [vmem:[#allocation2 + $0x50] sm:$0xf]
        %v4479 = vld [vmem:[#allocation2 + $0x54] sm:$0xf]
        %v4480 = vld [vmem:[#allocation2 + $0x58] sm:$0xf]
        %v4481 = vld [vmem:[#allocation2 + $0x5c] sm:$0xf]
        %v4482 = vld [vmem:[#allocation2 + $0x60] sm:$0xf]
        %v4483 = vld [vmem:[#allocation2 + $0x64] sm:$0xf]
        %v4484 = vld [vmem:[#allocation2 + $0x68] sm:$0xf]
        %v4485 = vld [vmem:[#allocation2 + $0x6c] sm:$0xf]
        %v4486 = vld [vmem:[#allocation2 + $0x70] sm:$0xf]
        %v4487 = vld [vmem:[#allocation2 + $0x74] sm:$0xf]
        %v4488 = vld [vmem:[#allocation2 + $0x78] sm:$0xf]
        %v4489 = vld [vmem:[#allocation2 + $0x7c] sm:$0xf]
        %s4490 = scalar_lea.vmem %s4, 36
        %v4491 = vld [vmem:[%s4490] sm:$0xf]
        %v4492 = vld [vmem:[%s4490 + $0x4] sm:$0xf]
        %v4493 = vld [vmem:[%s4490 + $0x8] sm:$0xf]
        %v4494 = vld [vmem:[%s4490 + $0xc] sm:$0xf]
        %v4495 = vld [vmem:[%s4490 + $0x10] sm:$0xf]
        %v4496 = vld [vmem:[%s4490 + $0x14] sm:$0xf]
        %v4497 = vld [vmem:[%s4490 + $0x18] sm:$0xf]
        %v4498 = vld [vmem:[%s4490 + $0x1c] sm:$0xf]
        %v4499 = vld [vmem:[%s4490 + $0x20] sm:$0xf]
        %v4532 = vunpack.c.l.b16 %v4458
        %v4533 = vunpack.c.l.b16 %v4459
        %v4534 = vunpack.c.l.b16 %v4460
        %v4535 = vunpack.c.l.b16 %v4461
        %v4536 = vunpack.c.l.b16 %v4462
        %v4537 = vunpack.c.l.b16 %v4463
        %v4538 = vunpack.c.l.b16 %v4464
        %v4539 = vunpack.c.l.b16 %v4465
        %v4540 = vunpack.c.l.b16 %v4466
        %v4541 = vunpack.c.l.b16 %v4467
        %v4542 = vunpack.c.l.b16 %v4468
        %v4543 = vunpack.c.l.b16 %v4469
        %v4544 = vunpack.c.l.b16 %v4470
        %v4545 = vunpack.c.l.b16 %v4471
        %v4546 = vunpack.c.l.b16 %v4472
        %v4547 = vunpack.c.l.b16 %v4473
        %v4548 = vunpack.c.l.b16 %v4474
        %v4549 = vunpack.c.l.b16 %v4475
        %v4550 = vunpack.c.l.b16 %v4476
        %v4551 = vunpack.c.l.b16 %v4477
        %v4552 = vunpack.c.l.b16 %v4478
        %v4553 = vunpack.c.l.b16 %v4479
        %v4554 = vunpack.c.l.b16 %v4480
        %v4555 = vunpack.c.l.b16 %v4481
        %v4556 = vunpack.c.l.b16 %v4482
        %v4557 = vunpack.c.l.b16 %v4483
        %v4558 = vunpack.c.l.b16 %v4484
        %v4559 = vunpack.c.l.b16 %v4485
        %v4560 = vunpack.c.l.b16 %v4486
        %v4561 = vunpack.c.l.b16 %v4487
        %v4562 = vunpack.c.l.b16 %v4488
        %v4563 = vunpack.c.l.b16 %v4489
        %v4564 = vpack.c.b16 %v4533, %v4532
        %v4565 = vpack.c.b16 %v4535, %v4534
        %v4566 = vpack.c.b16 %v4537, %v4536
        %v4567 = vpack.c.b16 %v4539, %v4538
        %v4568 = vpack.c.b16 %v4541, %v4540
        %v4569 = vpack.c.b16 %v4543, %v4542
        %v4570 = vpack.c.b16 %v4545, %v4544
        %v4571 = vpack.c.b16 %v4547, %v4546
        %v4572 = vpack.c.b16 %v4549, %v4548
        %v4573 = vpack.c.b16 %v4551, %v4550
        %v4574 = vpack.c.b16 %v4553, %v4552
        %v4575 = vpack.c.b16 %v4555, %v4554
        %v4576 = vpack.c.b16 %v4557, %v4556
        %v4577 = vpack.c.b16 %v4559, %v4558
        %v4578 = vpack.c.b16 %v4561, %v4560
        %v4579 = vpack.c.b16 %v4563, %v4562
        %v4589 = vunpack.c.l.b16 %v4491
        %v4590 = vunpack.c.l.b16 %v4492
        %v4591 = vunpack.c.l.b16 %v4493
        %v4592 = vunpack.c.l.b16 %v4494
        %v4593 = vunpack.c.l.b16 %v4495
        %v4594 = vunpack.c.l.b16 %v4496
        %v4595 = vunpack.c.l.b16 %v4497
        %v4596 = vunpack.c.l.b16 %v4498
        %v4597 = vunpack.c.l.b16 %v4499
        %v4598 = vpack.c.b16 %v4590, %v4589
        %v4599 = vpack.c.b16 %v4592, %v4591
        %v4600 = vpack.c.b16 %v4594, %v4593
        %v4601 = vpack.c.b16 %v4596, %v4595
        %v4602 = vpack.c.b16 %v4597, %v4597
        %vm4607 = vcmask 588800
        %v4609 = vsel %vm4607, %v4564, 0
        %v4612 = vsel %vm4607, %v4565, 0
        %v4615 = vsel %vm4607, %v4566, 0
        %v4618 = vsel %vm4607, %v4567, 0
        %v4621 = vsel %vm4607, %v4568, 0
        %v4624 = vsel %vm4607, %v4569, 0
        %v4627 = vsel %vm4607, %v4570, 0
        %v4630 = vsel %vm4607, %v4571, 0
        %v4633 = vsel %vm4607, %v4572, 0
        %v4636 = vsel %vm4607, %v4573, 0
        %v4639 = vsel %vm4607, %v4574, 0
        %v4642 = vsel %vm4607, %v4575, 0
        %v4645 = vsel %vm4607, %v4576, 0
        %v4648 = vsel %vm4607, %v4577, 0
        %v4651 = vsel %vm4607, %v4578, 0
        %v4654 = vsel %vm4607, %v4579, 0
        %vm4656 = vcmask 1043456
        %v4658 = vsel %vm4656, %v4602, 0
        %4660 = vmatprep.subr.bf16.mxu0 0
        %4661 = vmatpush1.bf16.msra.mxu0 0
        %4662 = vmatprep.subr.bf16.mxu0 0
        %4663 = vmatpush1.bf16.msra.mxu0 0
        %4664 = vmatprep.subr.bf16.mxu0 0
        %4665 = vmatpush1.bf16.msra.mxu0 0
        %4666 = vmatprep.subr.bf16.mxu0 0
        %4667 = vmatpush1.bf16.msra.mxu0 %v4658
        %4668 = vmatprep.subr.bf16.mxu0 0
        %4669 = vmatpush1.bf16.msra.mxu0 %v4601
        %4670 = vmatprep.subr.bf16.mxu0 0
        %4671 = vmatpush1.bf16.msra.mxu0 %v4600
        %4672 = vmatprep.subr.bf16.mxu0 0
        %4673 = vmatpush1.bf16.msra.mxu0 %v4599
        %4674 = vmatprep.subr.bf16.mxu0 0
        %4675 = vmatpush1.bf16.msra.mxu0 %v4598
        %4676 = vmatprep.subr.bf16.mxu0 0
        %4677 = vmatpush2.bf16.msra.mxu0 0
        %4678 = vmatprep.subr.bf16.mxu0 0
        %4679 = vmatpush2.bf16.msra.mxu0 0
        %4680 = vmatprep.subr.bf16.mxu0 0
        %4681 = vmatpush2.bf16.msra.mxu0 0
        %4682 = vmatprep.subr.bf16.mxu0 0
        %4683 = vmatpush2.bf16.msra.mxu0 0
        %4684 = vmatprep.subr.bf16.mxu0 0
        %4685 = vmatpush2.bf16.msra.mxu0 0
        %4686 = vmatprep.subr.bf16.mxu0 0
        %4687 = vmatpush2.bf16.msra.mxu0 0
        %4688 = vmatprep.subr.bf16.mxu0 0
        %4689 = vmatpush2.bf16.msra.mxu0 0
        %4690 = vmatprep.subr.bf16.mxu0 0
        %4691 = vmatpush2.bf16.msra.mxu0 0
        %4692 = vmatprep.mubr.bf16.mxu0 0
        %4693 = vmatmul.mubr.bf16.gmra.mxu0 %v4609
        %v4694 = vpop.f32.mrf.mxu0
        %v4695 = vadd.f32 0.0, %v4694
        %v4696 = vpop.f32.mrf.mxu0
        %v4697 = vpop.f32.mrf.mxu0
        %v4698 = vadd.f32 0.0, %v4697
        %v4699 = vpop.f32.mrf.mxu0
        %4700 = vmatprep.mubr.bf16.mxu0 0
        %4701 = vmatmul.mubr.bf16.gmra.mxu0 %v4612
        %v4702 = vpop.f32.mrf.mxu0
        %v4703 = vadd.f32 0.0, %v4702
        %v4704 = vpop.f32.mrf.mxu0
        %v4705 = vpop.f32.mrf.mxu0
        %v4706 = vadd.f32 0.0, %v4705
        %v4707 = vpop.f32.mrf.mxu0
        %4708 = vmatprep.mubr.bf16.mxu0 0
        %4709 = vmatmul.mubr.bf16.gmra.mxu0 %v4615
        %v4710 = vpop.f32.mrf.mxu0
        %v4711 = vadd.f32 0.0, %v4710
        %v4712 = vpop.f32.mrf.mxu0
        %v4713 = vpop.f32.mrf.mxu0
        %v4714 = vadd.f32 0.0, %v4713
        %v4715 = vpop.f32.mrf.mxu0
        %4716 = vmatprep.mubr.bf16.mxu0 0
        %4717 = vmatmul.mubr.bf16.gmra.mxu0 %v4618
        %v4718 = vpop.f32.mrf.mxu0
        %v4719 = vadd.f32 0.0, %v4718
        %v4720 = vpop.f32.mrf.mxu0
        %v4721 = vpop.f32.mrf.mxu0
        %v4722 = vadd.f32 0.0, %v4721
        %v4723 = vpop.f32.mrf.mxu0
        %4724 = vmatprep.mubr.bf16.mxu0 0
        %4725 = vmatmul.mubr.bf16.gmra.mxu0 %v4621
        %v4726 = vpop.f32.mrf.mxu0
        %v4727 = vadd.f32 0.0, %v4726
        %v4728 = vpop.f32.mrf.mxu0
        %v4729 = vpop.f32.mrf.mxu0
        %v4730 = vadd.f32 0.0, %v4729
        %v4731 = vpop.f32.mrf.mxu0
        %4732 = vmatprep.mubr.bf16.mxu0 0
        %4733 = vmatmul.mubr.bf16.gmra.mxu0 %v4624
        %v4734 = vpop.f32.mrf.mxu0
        %v4735 = vadd.f32 0.0, %v4734
        %v4736 = vpop.f32.mrf.mxu0
        %v4737 = vpop.f32.mrf.mxu0
        %v4738 = vadd.f32 0.0, %v4737
        %v4739 = vpop.f32.mrf.mxu0
        %4740 = vmatprep.mubr.bf16.mxu0 0
        %4741 = vmatmul.mubr.bf16.gmra.mxu0 %v4627
        %v4742 = vpop.f32.mrf.mxu0
        %v4743 = vadd.f32 0.0, %v4742
        %v4744 = vpop.f32.mrf.mxu0
        %v4745 = vpop.f32.mrf.mxu0
        %v4746 = vadd.f32 0.0, %v4745
        %v4747 = vpop.f32.mrf.mxu0
        %4748 = vmatprep.mubr.bf16.mxu0 0
        %4749 = vmatmul.mubr.bf16.gmra.mxu0 %v4630
        %v4750 = vpop.f32.mrf.mxu0
        %v4751 = vadd.f32 0.0, %v4750
        %v4752 = vpop.f32.mrf.mxu0
        %v4753 = vpop.f32.mrf.mxu0
        %v4754 = vadd.f32 0.0, %v4753
        %v4755 = vpop.f32.mrf.mxu0
        %4756 = vmatprep.mubr.bf16.mxu0 0
        %4757 = vmatmul.mubr.bf16.gmra.mxu0 %v4633
        %v4758 = vpop.f32.mrf.mxu0
        %v4759 = vadd.f32 0.0, %v4758
        %v4760 = vpop.f32.mrf.mxu0
        %v4761 = vpop.f32.mrf.mxu0
        %v4762 = vadd.f32 0.0, %v4761
        %v4763 = vpop.f32.mrf.mxu0
        %4764 = vmatprep.mubr.bf16.mxu0 0
        %4765 = vmatmul.mubr.bf16.gmra.mxu0 %v4636
        %v4766 = vpop.f32.mrf.mxu0
        %v4767 = vadd.f32 0.0, %v4766
        %v4768 = vpop.f32.mrf.mxu0
        %v4769 = vpop.f32.mrf.mxu0
        %v4770 = vadd.f32 0.0, %v4769
        %v4771 = vpop.f32.mrf.mxu0
        %4772 = vmatprep.mubr.bf16.mxu0 0
        %4773 = vmatmul.mubr.bf16.gmra.mxu0 %v4639
        %v4774 = vpop.f32.mrf.mxu0
        %v4775 = vadd.f32 0.0, %v4774
        %v4776 = vpop.f32.mrf.mxu0
        %v4777 = vpop.f32.mrf.mxu0
        %v4778 = vadd.f32 0.0, %v4777
        %v4779 = vpop.f32.mrf.mxu0
        %4780 = vmatprep.mubr.bf16.mxu0 0
        %4781 = vmatmul.mubr.bf16.gmra.mxu0 %v4642
        %v4782 = vpop.f32.mrf.mxu0
        %v4783 = vadd.f32 0.0, %v4782
        %v4784 = vpop.f32.mrf.mxu0
        %v4785 = vpop.f32.mrf.mxu0
        %v4786 = vadd.f32 0.0, %v4785
        %v4787 = vpop.f32.mrf.mxu0
        %4788 = vmatprep.mubr.bf16.mxu0 0
        %4789 = vmatmul.mubr.bf16.gmra.mxu0 %v4645
        %v4790 = vpop.f32.mrf.mxu0
        %v4791 = vadd.f32 0.0, %v4790
        %v4792 = vpop.f32.mrf.mxu0
        %v4793 = vpop.f32.mrf.mxu0
        %v4794 = vadd.f32 0.0, %v4793
        %v4795 = vpop.f32.mrf.mxu0
        %4796 = vmatprep.mubr.bf16.mxu0 0
        %4797 = vmatmul.mubr.bf16.gmra.mxu0 %v4648
        %v4798 = vpop.f32.mrf.mxu0
        %v4799 = vadd.f32 0.0, %v4798
        %v4800 = vpop.f32.mrf.mxu0
        %v4801 = vpop.f32.mrf.mxu0
        %v4802 = vadd.f32 0.0, %v4801
        %v4803 = vpop.f32.mrf.mxu0
        %4804 = vmatprep.mubr.bf16.mxu0 0
        %4805 = vmatmul.mubr.bf16.gmra.mxu0 %v4651
        %v4806 = vpop.f32.mrf.mxu0
        %v4807 = vadd.f32 0.0, %v4806
        %v4808 = vpop.f32.mrf.mxu0
        %v4809 = vpop.f32.mrf.mxu0
        %v4810 = vadd.f32 0.0, %v4809
        %v4811 = vpop.f32.mrf.mxu0
        %4812 = vmatprep.mubr.bf16.mxu0 0
        %4813 = vmatmul.mubr.bf16.gmra.mxu0 %v4654
        %v4814 = vpop.f32.mrf.mxu0
        %v4815 = vadd.f32 0.0, %v4814
        %v4816 = vpop.f32.mrf.mxu0
        %v4817 = vpop.f32.mrf.mxu0
        %v4818 = vadd.f32 0.0, %v4817
        %v4819 = vpop.f32.mrf.mxu0
        %4820 = vdwg.mxu0
        %v4853 = vunpack.c.l.b16 %v3707
        %v4854 = vunpack.c.l.b16 %v3708
        %v4855 = vunpack.c.l.b16 %v3709
        %v4856 = vunpack.c.l.b16 %v3710
        %v4857 = vunpack.c.l.b16 %v3711
        %v4858 = vunpack.c.l.b16 %v3712
        %v4859 = vunpack.c.l.b16 %v3713
        %v4860 = vunpack.c.l.b16 %v3714
        %v4861 = vunpack.c.l.b16 %v3715
        %v4862 = vunpack.c.l.b16 %v3716
        %v4863 = vunpack.c.l.b16 %v3717
        %v4864 = vunpack.c.l.b16 %v3718
        %v4865 = vunpack.c.l.b16 %v3719
        %v4866 = vunpack.c.l.b16 %v3720
        %v4867 = vunpack.c.l.b16 %v3721
        %v4868 = vunpack.c.l.b16 %v3722
        %v4869 = vunpack.c.l.b16 %v3723
        %v4870 = vunpack.c.l.b16 %v3724
        %v4871 = vunpack.c.l.b16 %v3725
        %v4872 = vunpack.c.l.b16 %v3726
        %v4873 = vunpack.c.l.b16 %v3727
        %v4874 = vunpack.c.l.b16 %v3728
        %v4875 = vunpack.c.l.b16 %v3729
        %v4876 = vunpack.c.l.b16 %v3730
        %v4877 = vunpack.c.l.b16 %v3731
        %v4878 = vunpack.c.l.b16 %v3732
        %v4879 = vunpack.c.l.b16 %v3733
        %v4880 = vunpack.c.l.b16 %v3734
        %v4881 = vunpack.c.l.b16 %v3735
        %v4882 = vunpack.c.l.b16 %v3736
        %v4883 = vunpack.c.l.b16 %v3737
        %v4884 = vunpack.c.l.b16 %v3738
        %v4885 = vpack.c.b16 %v4854, %v4853
        %v4886 = vpack.c.b16 %v4856, %v4855
        %v4887 = vpack.c.b16 %v4858, %v4857
        %v4888 = vpack.c.b16 %v4860, %v4859
        %v4889 = vpack.c.b16 %v4862, %v4861
        %v4890 = vpack.c.b16 %v4864, %v4863
        %v4891 = vpack.c.b16 %v4866, %v4865
        %v4892 = vpack.c.b16 %v4868, %v4867
        %v4893 = vpack.c.b16 %v4870, %v4869
        %v4894 = vpack.c.b16 %v4872, %v4871
        %v4895 = vpack.c.b16 %v4874, %v4873
        %v4896 = vpack.c.b16 %v4876, %v4875
        %v4897 = vpack.c.b16 %v4878, %v4877
        %v4898 = vpack.c.b16 %v4880, %v4879
        %v4899 = vpack.c.b16 %v4882, %v4881
        %v4900 = vpack.c.b16 %v4884, %v4883
        %v4910 = vunpack.c.l.b16 %v3739
        %v4911 = vunpack.c.l.b16 %v3740
        %v4912 = vunpack.c.l.b16 %v3741
        %v4913 = vunpack.c.l.b16 %v3742
        %v4914 = vunpack.c.l.b16 %v3743
        %v4915 = vunpack.c.l.b16 %v3744
        %v4916 = vunpack.c.l.b16 %v3745
        %v4917 = vunpack.c.l.b16 %v3746
        %v4918 = vunpack.c.l.b16 %v3747
        %v4919 = vpack.c.b16 %v4911, %v4910
        %v4920 = vpack.c.b16 %v4913, %v4912
        %v4921 = vpack.c.b16 %v4915, %v4914
        %v4922 = vpack.c.b16 %v4917, %v4916
        %v4923 = vpack.c.b16 %v4918, %v4918
        %v4929 = vsel %vm4607, %v4885, 0
        %v4932 = vsel %vm4607, %v4886, 0
        %v4935 = vsel %vm4607, %v4887, 0
        %v4938 = vsel %vm4607, %v4888, 0
        %v4941 = vsel %vm4607, %v4889, 0
        %v4944 = vsel %vm4607, %v4890, 0
        %v4947 = vsel %vm4607, %v4891, 0
        %v4950 = vsel %vm4607, %v4892, 0
        %v4953 = vsel %vm4607, %v4893, 0
        %v4956 = vsel %vm4607, %v4894, 0
        %v4959 = vsel %vm4607, %v4895, 0
        %v4962 = vsel %vm4607, %v4896, 0
        %v4965 = vsel %vm4607, %v4897, 0
        %v4968 = vsel %vm4607, %v4898, 0
        %v4971 = vsel %vm4607, %v4899, 0
        %v4974 = vsel %vm4607, %v4900, 0
        %v4977 = vsel %vm4656, %v4923, 0
        %4979 = vmatprep.subr.bf16.mxu0 0
        %4980 = vmatpush1.bf16.msra.mxu0 0
        %4981 = vmatprep.subr.bf16.mxu0 0
        %4982 = vmatpush1.bf16.msra.mxu0 0
        %4983 = vmatprep.subr.bf16.mxu0 0
        %4984 = vmatpush1.bf16.msra.mxu0 0
        %4985 = vmatprep.subr.bf16.mxu0 0
        %4986 = vmatpush1.bf16.msra.mxu0 %v4977
        %4987 = vmatprep.subr.bf16.mxu0 0
        %4988 = vmatpush1.bf16.msra.mxu0 %v4922
        %4989 = vmatprep.subr.bf16.mxu0 0
        %4990 = vmatpush1.bf16.msra.mxu0 %v4921
        %4991 = vmatprep.subr.bf16.mxu0 0
        %4992 = vmatpush1.bf16.msra.mxu0 %v4920
        %4993 = vmatprep.subr.bf16.mxu0 0
        %4994 = vmatpush1.bf16.msra.mxu0 %v4919
        %4995 = vmatprep.subr.bf16.mxu0 0
        %4996 = vmatpush2.bf16.msra.mxu0 0
        %4997 = vmatprep.subr.bf16.mxu0 0
        %4998 = vmatpush2.bf16.msra.mxu0 0
        %4999 = vmatprep.subr.bf16.mxu0 0
        %5000 = vmatpush2.bf16.msra.mxu0 0
        %5001 = vmatprep.subr.bf16.mxu0 0
        %5002 = vmatpush2.bf16.msra.mxu0 0
        %5003 = vmatprep.subr.bf16.mxu0 0
        %5004 = vmatpush2.bf16.msra.mxu0 0
        %5005 = vmatprep.subr.bf16.mxu0 0
        %5006 = vmatpush2.bf16.msra.mxu0 0
        %5007 = vmatprep.subr.bf16.mxu0 0
        %5008 = vmatpush2.bf16.msra.mxu0 0
        %5009 = vmatprep.subr.bf16.mxu0 0
        %5010 = vmatpush2.bf16.msra.mxu0 0
        %5011 = vmatprep.mubr.bf16.mxu0 0
        %5012 = vmatmul.mubr.bf16.gmra.mxu0 %v4929
        %v5013 = vpop.f32.mrf.mxu0
        %v5014 = vadd.f32 %v4695, %v5013
        %v5015 = vpop.f32.mrf.mxu0
        %v5016 = vpop.f32.mrf.mxu0
        %v5017 = vadd.f32 %v4698, %v5016
        %v5018 = vpop.f32.mrf.mxu0
        %5019 = vmatprep.mubr.bf16.mxu0 0
        %5020 = vmatmul.mubr.bf16.gmra.mxu0 %v4932
        %v5021 = vpop.f32.mrf.mxu0
        %v5022 = vadd.f32 %v4703, %v5021
        %v5023 = vpop.f32.mrf.mxu0
        %v5024 = vpop.f32.mrf.mxu0
        %v5025 = vadd.f32 %v4706, %v5024
        %v5026 = vpop.f32.mrf.mxu0
        %5027 = vmatprep.mubr.bf16.mxu0 0
        %5028 = vmatmul.mubr.bf16.gmra.mxu0 %v4935
        %v5029 = vpop.f32.mrf.mxu0
        %v5030 = vadd.f32 %v4711, %v5029
        %v5031 = vpop.f32.mrf.mxu0
        %v5032 = vpop.f32.mrf.mxu0
        %v5033 = vadd.f32 %v4714, %v5032
        %v5034 = vpop.f32.mrf.mxu0
        %5035 = vmatprep.mubr.bf16.mxu0 0
        %5036 = vmatmul.mubr.bf16.gmra.mxu0 %v4938
        %v5037 = vpop.f32.mrf.mxu0
        %v5038 = vadd.f32 %v4719, %v5037
        %v5039 = vpop.f32.mrf.mxu0
        %v5040 = vpop.f32.mrf.mxu0
        %v5041 = vadd.f32 %v4722, %v5040
        %v5042 = vpop.f32.mrf.mxu0
        %5043 = vmatprep.mubr.bf16.mxu0 0
        %5044 = vmatmul.mubr.bf16.gmra.mxu0 %v4941
        %v5045 = vpop.f32.mrf.mxu0
        %v5046 = vadd.f32 %v4727, %v5045
        %v5047 = vpop.f32.mrf.mxu0
        %v5048 = vpop.f32.mrf.mxu0
        %v5049 = vadd.f32 %v4730, %v5048
        %v5050 = vpop.f32.mrf.mxu0
        %5051 = vmatprep.mubr.bf16.mxu0 0
        %5052 = vmatmul.mubr.bf16.gmra.mxu0 %v4944
        %v5053 = vpop.f32.mrf.mxu0
        %v5054 = vadd.f32 %v4735, %v5053
        %v5055 = vpop.f32.mrf.mxu0
        %v5056 = vpop.f32.mrf.mxu0
        %v5057 = vadd.f32 %v4738, %v5056
        %v5058 = vpop.f32.mrf.mxu0
        %5059 = vmatprep.mubr.bf16.mxu0 0
        %5060 = vmatmul.mubr.bf16.gmra.mxu0 %v4947
        %v5061 = vpop.f32.mrf.mxu0
        %v5062 = vadd.f32 %v4743, %v5061
        %v5063 = vpop.f32.mrf.mxu0
        %v5064 = vpop.f32.mrf.mxu0
        %v5065 = vadd.f32 %v4746, %v5064
        %v5066 = vpop.f32.mrf.mxu0
        %5067 = vmatprep.mubr.bf16.mxu0 0
        %5068 = vmatmul.mubr.bf16.gmra.mxu0 %v4950
        %v5069 = vpop.f32.mrf.mxu0
        %v5070 = vadd.f32 %v4751, %v5069
        %v5071 = vpop.f32.mrf.mxu0
        %v5072 = vpop.f32.mrf.mxu0
        %v5073 = vadd.f32 %v4754, %v5072
        %v5074 = vpop.f32.mrf.mxu0
        %5075 = vmatprep.mubr.bf16.mxu0 0
        %5076 = vmatmul.mubr.bf16.gmra.mxu0 %v4953
        %v5077 = vpop.f32.mrf.mxu0
        %v5078 = vadd.f32 %v4759, %v5077
        %v5079 = vpop.f32.mrf.mxu0
        %v5080 = vpop.f32.mrf.mxu0
        %v5081 = vadd.f32 %v4762, %v5080
        %v5082 = vpop.f32.mrf.mxu0
        %5083 = vmatprep.mubr.bf16.mxu0 0
        %5084 = vmatmul.mubr.bf16.gmra.mxu0 %v4956
        %v5085 = vpop.f32.mrf.mxu0
        %v5086 = vadd.f32 %v4767, %v5085
        %v5087 = vpop.f32.mrf.mxu0
        %v5088 = vpop.f32.mrf.mxu0
        %v5089 = vadd.f32 %v4770, %v5088
        %v5090 = vpop.f32.mrf.mxu0
        %5091 = vmatprep.mubr.bf16.mxu0 0
        %5092 = vmatmul.mubr.bf16.gmra.mxu0 %v4959
        %v5093 = vpop.f32.mrf.mxu0
        %v5094 = vadd.f32 %v4775, %v5093
        %v5095 = vpop.f32.mrf.mxu0
        %v5096 = vpop.f32.mrf.mxu0
        %v5097 = vadd.f32 %v4778, %v5096
        %v5098 = vpop.f32.mrf.mxu0
        %5099 = vmatprep.mubr.bf16.mxu0 0
        %5100 = vmatmul.mubr.bf16.gmra.mxu0 %v4962
        %v5101 = vpop.f32.mrf.mxu0
        %v5102 = vadd.f32 %v4783, %v5101
        %v5103 = vpop.f32.mrf.mxu0
        %v5104 = vpop.f32.mrf.mxu0
        %v5105 = vadd.f32 %v4786, %v5104
        %v5106 = vpop.f32.mrf.mxu0
        %5107 = vmatprep.mubr.bf16.mxu0 0
        %5108 = vmatmul.mubr.bf16.gmra.mxu0 %v4965
        %v5109 = vpop.f32.mrf.mxu0
        %v5110 = vadd.f32 %v4791, %v5109
        %v5111 = vpop.f32.mrf.mxu0
        %v5112 = vpop.f32.mrf.mxu0
        %v5113 = vadd.f32 %v4794, %v5112
        %v5114 = vpop.f32.mrf.mxu0
        %5115 = vmatprep.mubr.bf16.mxu0 0
        %5116 = vmatmul.mubr.bf16.gmra.mxu0 %v4968
        %v5117 = vpop.f32.mrf.mxu0
        %v5118 = vadd.f32 %v4799, %v5117
        %v5119 = vpop.f32.mrf.mxu0
        %v5120 = vpop.f32.mrf.mxu0
        %v5121 = vadd.f32 %v4802, %v5120
        %v5122 = vpop.f32.mrf.mxu0
        %5123 = vmatprep.mubr.bf16.mxu0 0
        %5124 = vmatmul.mubr.bf16.gmra.mxu0 %v4971
        %v5125 = vpop.f32.mrf.mxu0
        %v5126 = vadd.f32 %v4807, %v5125
        %v5127 = vpop.f32.mrf.mxu0
        %v5128 = vpop.f32.mrf.mxu0
        %v5129 = vadd.f32 %v4810, %v5128
        %v5130 = vpop.f32.mrf.mxu0
        %5131 = vmatprep.mubr.bf16.mxu0 0
        %5132 = vmatmul.mubr.bf16.gmra.mxu0 %v4974
        %v5133 = vpop.f32.mrf.mxu0
        %v5134 = vadd.f32 %v4815, %v5133
        %v5135 = vpop.f32.mrf.mxu0
        %v5136 = vpop.f32.mrf.mxu0
        %v5137 = vadd.f32 %v4818, %v5136
        %v5138 = vpop.f32.mrf.mxu0
        %5139 = vdwg.mxu0
        %5140 = vst.msk [vmem:[#allocation2] sm:$0xf] %vm1716, %v1676
        %5141 = vst.msk [vmem:[#allocation2 + $0x4] sm:$0xf] %vm1716, %v1677
        %5142 = vst.msk [vmem:[#allocation2 + $0x8] sm:$0xf] %vm1716, %v1678
        %5143 = vst.msk [vmem:[#allocation2 + $0xc] sm:$0xf] %vm1716, %v1679
        %5144 = vst.msk [vmem:[#allocation2 + $0x10] sm:$0xf] %vm1716, %v1680
        %5145 = vst.msk [vmem:[#allocation2 + $0x14] sm:$0xf] %vm1716, %v1681
        %5146 = vst.msk [vmem:[#allocation2 + $0x18] sm:$0xf] %vm1716, %v1682
        %5147 = vst.msk [vmem:[#allocation2 + $0x1c] sm:$0xf] %vm1716, %v1683
        %5148 = vst.msk [vmem:[#allocation2 + $0x20] sm:$0xf] %vm1716, %v1686
        %5149 = vst.msk [vmem:[#allocation2 + $0x24] sm:$0xf] %vm1716, %v1687
        %5150 = vst.msk [vmem:[#allocation2 + $0x28] sm:$0xf] %vm1716, %v1688
        %5151 = vst.msk [vmem:[#allocation2 + $0x2c] sm:$0xf] %vm1716, %v1689
        %5152 = vst.msk [vmem:[#allocation2 + $0x30] sm:$0xf] %vm1716, %v1690
        %5153 = vst.msk [vmem:[#allocation2 + $0x34] sm:$0xf] %vm1716, %v1691
        %5154 = vst.msk [vmem:[#allocation2 + $0x38] sm:$0xf] %vm1716, %v1692
        %5155 = vst.msk [vmem:[#allocation2 + $0x3c] sm:$0xf] %vm1716, %v1693
        %5156 = vst.msk [vmem:[#allocation2 + $0x40] sm:$0xf] %vm1716, %v1696
        %5157 = vst.msk [vmem:[#allocation2 + $0x44] sm:$0xf] %vm1716, %v1697
        %5158 = vst.msk [vmem:[#allocation2 + $0x48] sm:$0xf] %vm1716, %v1698
        %5159 = vst.msk [vmem:[#allocation2 + $0x4c] sm:$0xf] %vm1716, %v1699
        %5160 = vst.msk [vmem:[#allocation2 + $0x50] sm:$0xf] %vm1716, %v1700
        %5161 = vst.msk [vmem:[#allocation2 + $0x54] sm:$0xf] %vm1716, %v1701
        %5162 = vst.msk [vmem:[#allocation2 + $0x58] sm:$0xf] %vm1716, %v1702
        %5163 = vst.msk [vmem:[#allocation2 + $0x5c] sm:$0xf] %vm1716, %v1703
        %5164 = vst.msk [vmem:[#allocation2 + $0x60] sm:$0xf] %vm1716, %v1706
        %5165 = vst.msk [vmem:[#allocation2 + $0x64] sm:$0xf] %vm1716, %v1707
        %5166 = vst.msk [vmem:[#allocation2 + $0x68] sm:$0xf] %vm1716, %v1708
        %5167 = vst.msk [vmem:[#allocation2 + $0x6c] sm:$0xf] %vm1716, %v1709
        %5168 = vst.msk [vmem:[#allocation2 + $0x70] sm:$0xf] %vm1716, %v1710
        %5169 = vst.msk [vmem:[#allocation2 + $0x74] sm:$0xf] %vm1716, %v1711
        %5170 = vst.msk [vmem:[#allocation2 + $0x78] sm:$0xf] %vm1716, %v1712
        %5171 = vst.msk [vmem:[#allocation2 + $0x7c] sm:$0xf] %vm1716, %v1713
        %v5180 = vunpack.c.l.b16 %v1706
        %v5181 = vunpack.c.h.b16 %v1706
        %v5182 = vunpack.c.l.b16 %v1707
        %v5183 = vunpack.c.h.b16 %v1707
        %v5184 = vunpack.c.l.b16 %v1708
        %v5185 = vunpack.c.h.b16 %v1708
        %v5186 = vunpack.c.l.b16 %v1709
        %v5187 = vunpack.c.h.b16 %v1709
        %v5188 = vunpack.c.l.b16 %v1710
        %v5189 = vunpack.c.h.b16 %v1710
        %v5190 = vunpack.c.l.b16 %v1711
        %v5191 = vunpack.c.h.b16 %v1711
        %v5192 = vunpack.c.l.b16 %v1712
        %v5193 = vunpack.c.h.b16 %v1712
        %v5194 = vunpack.c.l.b16 %v1713
        %v5195 = vunpack.c.h.b16 %v1713
        %v5196 = vpack.c.b16 %v5180, %v5180
        %v5197 = vpack.c.b16 %v5181, %v5181
        %v5198 = vpack.c.b16 %v5182, %v5182
        %v5199 = vpack.c.b16 %v5183, %v5183
        %v5200 = vpack.c.b16 %v5184, %v5184
        %v5201 = vpack.c.b16 %v5185, %v5185
        %v5202 = vpack.c.b16 %v5186, %v5186
        %v5203 = vpack.c.b16 %v5187, %v5187
        %v5204 = vpack.c.b16 %v5188, %v5188
        %v5205 = vpack.c.b16 %v5189, %v5189
        %v5206 = vpack.c.b16 %v5190, %v5190
        %v5207 = vpack.c.b16 %v5191, %v5191
        %v5208 = vpack.c.b16 %v5192, %v5192
        %v5209 = vpack.c.b16 %v5193, %v5193
        %v5210 = vpack.c.b16 %v5194, %v5194
        %v5211 = vpack.c.b16 %v5195, %v5195
        %v5213 = vshrl.u32 %v5196, 16
        %v5215 = vrot.slane %v5213, 4
        %v5216 = vshll.u32 %v5196, 16
        %v5218 = vrot.slane %v5216, 5
        %v5219 = vor.u32 %v5215, %v5218
        %v5220 = vrot.slane %v5219, 4
        %v5222 = vshll.u32 %v5197, 16
        %v5224 = vrot.slane %v5222, 5
        %v5225 = vsel %vm1911, %v5220, %v5224
        %v5227 = vshrl.u32 %v5198, 16
        %v5229 = vrot.slane %v5227, 4
        %v5230 = vshll.u32 %v5198, 16
        %v5232 = vrot.slane %v5230, 5
        %v5233 = vor.u32 %v5229, %v5232
        %v5234 = vrot.slane %v5233, 4
        %v5236 = vshll.u32 %v5199, 16
        %v5238 = vrot.slane %v5236, 5
        %v5239 = vsel %vm1911, %v5234, %v5238
        %v5241 = vshrl.u32 %v5200, 16
        %v5243 = vrot.slane %v5241, 4
        %v5244 = vshll.u32 %v5200, 16
        %v5246 = vrot.slane %v5244, 5
        %v5247 = vor.u32 %v5243, %v5246
        %v5248 = vrot.slane %v5247, 4
        %v5250 = vshll.u32 %v5201, 16
        %v5252 = vrot.slane %v5250, 5
        %v5253 = vsel %vm1911, %v5248, %v5252
        %v5255 = vshrl.u32 %v5202, 16
        %v5257 = vrot.slane %v5255, 4
        %v5258 = vshll.u32 %v5202, 16
        %v5260 = vrot.slane %v5258, 5
        %v5261 = vor.u32 %v5257, %v5260
        %v5262 = vrot.slane %v5261, 4
        %v5264 = vshll.u32 %v5203, 16
        %v5266 = vrot.slane %v5264, 5
        %v5267 = vsel %vm1911, %v5262, %v5266
        %v5269 = vshrl.u32 %v5204, 16
        %v5271 = vrot.slane %v5269, 4
        %v5272 = vshll.u32 %v5204, 16
        %v5274 = vrot.slane %v5272, 5
        %v5275 = vor.u32 %v5271, %v5274
        %v5276 = vrot.slane %v5275, 4
        %v5278 = vshll.u32 %v5205, 16
        %v5280 = vrot.slane %v5278, 5
        %v5281 = vsel %vm1911, %v5276, %v5280
        %v5283 = vshrl.u32 %v5206, 16
        %v5285 = vrot.slane %v5283, 4
        %v5286 = vshll.u32 %v5206, 16
        %v5288 = vrot.slane %v5286, 5
        %v5289 = vor.u32 %v5285, %v5288
        %v5290 = vrot.slane %v5289, 4
        %v5292 = vshll.u32 %v5207, 16
        %v5294 = vrot.slane %v5292, 5
        %v5295 = vsel %vm1911, %v5290, %v5294
        %v5297 = vshrl.u32 %v5208, 16
        %v5299 = vrot.slane %v5297, 4
        %v5300 = vshll.u32 %v5208, 16
        %v5302 = vrot.slane %v5300, 5
        %v5303 = vor.u32 %v5299, %v5302
        %v5304 = vrot.slane %v5303, 4
        %v5306 = vshll.u32 %v5209, 16
        %v5308 = vrot.slane %v5306, 5
        %v5309 = vsel %vm1911, %v5304, %v5308
        %v5311 = vshrl.u32 %v5210, 16
        %v5313 = vrot.slane %v5311, 4
        %v5314 = vshll.u32 %v5210, 16
        %v5316 = vrot.slane %v5314, 5
        %v5317 = vor.u32 %v5313, %v5316
        %v5318 = vrot.slane %v5317, 4
        %v5320 = vshll.u32 %v5211, 16
        %v5322 = vrot.slane %v5320, 5
        %v5323 = vsel %vm1911, %v5318, %v5322
        %5324 = vrot.lane.b32.xlu0 %v5225, 8
        %v5325 = vpop.permute.xlu0 %5324
        %5326 = vrot.lane.b32.xlu0 %v5239, 8
        %v5327 = vpop.permute.xlu0 %5326
        %5328 = vrot.lane.b32.xlu0 %v5253, 8
        %v5329 = vpop.permute.xlu0 %5328
        %5330 = vrot.lane.b32.xlu0 %v5267, 8
        %v5331 = vpop.permute.xlu0 %5330
        %5332 = vrot.lane.b32.xlu0 %v5281, 8
        %v5333 = vpop.permute.xlu0 %5332
        %5334 = vrot.lane.b32.xlu0 %v5295, 8
        %v5335 = vpop.permute.xlu0 %5334
        %5336 = vrot.lane.b32.xlu0 %v5309, 8
        %v5337 = vpop.permute.xlu0 %5336
        %5338 = vrot.lane.b32.xlu0 %v5323, 8
        %v5339 = vpop.permute.xlu0 %5338
        %5348 = vst.msk [vmem:[#allocation2] sm:$0xf] %vm2456, %v2393
        %5349 = vst.msk [vmem:[#allocation2 + $0x4] sm:$0xf] %vm2456, %v2395
        %5350 = vst.msk [vmem:[#allocation2 + $0x8] sm:$0xf] %vm2456, %v2397
        %5351 = vst.msk [vmem:[#allocation2 + $0xc] sm:$0xf] %vm2456, %v2399
        %5352 = vst.msk [vmem:[#allocation2 + $0x10] sm:$0xf] %vm2456, %v2401
        %5353 = vst.msk [vmem:[#allocation2 + $0x14] sm:$0xf] %vm2456, %v2403
        %5354 = vst.msk [vmem:[#allocation2 + $0x18] sm:$0xf] %vm2456, %v2405
        %5355 = vst.msk [vmem:[#allocation2 + $0x1c] sm:$0xf] %vm2456, %v2407
        %5356 = vst.msk [vmem:[#allocation2 + $0x20] sm:$0xf] %vm2456, %v2409
        %5357 = vst.msk [vmem:[#allocation2 + $0x24] sm:$0xf] %vm2456, %v2411
        %5358 = vst.msk [vmem:[#allocation2 + $0x28] sm:$0xf] %vm2456, %v2413
        %5359 = vst.msk [vmem:[#allocation2 + $0x2c] sm:$0xf] %vm2456, %v2415
        %5360 = vst.msk [vmem:[#allocation2 + $0x30] sm:$0xf] %vm2456, %v2417
        %5361 = vst.msk [vmem:[#allocation2 + $0x34] sm:$0xf] %vm2456, %v2419
        %5362 = vst.msk [vmem:[#allocation2 + $0x38] sm:$0xf] %vm2456, %v2421
        %5363 = vst.msk [vmem:[#allocation2 + $0x3c] sm:$0xf] %vm2456, %v2423
        %5364 = vst.msk [vmem:[#allocation2 + $0x40] sm:$0xf] %vm2456, %v3933
        %5365 = vst.msk [vmem:[#allocation2 + $0x44] sm:$0xf] %vm2456, %v3935
        %5366 = vst.msk [vmem:[#allocation2 + $0x48] sm:$0xf] %vm2456, %v3937
        %5367 = vst.msk [vmem:[#allocation2 + $0x4c] sm:$0xf] %vm2456, %v3939
        %5368 = vst.msk [vmem:[#allocation2 + $0x50] sm:$0xf] %vm2456, %v3941
        %5369 = vst.msk [vmem:[#allocation2 + $0x54] sm:$0xf] %vm2456, %v3943
        %5370 = vst.msk [vmem:[#allocation2 + $0x58] sm:$0xf] %vm2456, %v3945
        %5371 = vst.msk [vmem:[#allocation2 + $0x5c] sm:$0xf] %vm2456, %v3947
        %5372 = vst.msk [vmem:[#allocation2 + $0x60] sm:$0xf] %vm2456, %v5325
        %5373 = vst.msk [vmem:[#allocation2 + $0x64] sm:$0xf] %vm2456, %v5327
        %5374 = vst.msk [vmem:[#allocation2 + $0x68] sm:$0xf] %vm2456, %v5329
        %5375 = vst.msk [vmem:[#allocation2 + $0x6c] sm:$0xf] %vm2456, %v5331
        %5376 = vst.msk [vmem:[#allocation2 + $0x70] sm:$0xf] %vm2456, %v5333
        %5377 = vst.msk [vmem:[#allocation2 + $0x74] sm:$0xf] %vm2456, %v5335
        %5378 = vst.msk [vmem:[#allocation2 + $0x78] sm:$0xf] %vm2456, %v5337
        %5379 = vst.msk [vmem:[#allocation2 + $0x7c] sm:$0xf] %vm2456, %v5339
        %v5380 = vrot.slane %v5196, 5
        %v5381 = vrot.slane %v5380, 4
        %v5382 = vrot.slane %v5197, 5
        %v5383 = vsel %vm2491, %v5381, %v5382
        %v5384 = vrot.slane %v5198, 5
        %v5385 = vrot.slane %v5384, 4
        %v5386 = vrot.slane %v5199, 5
        %v5387 = vsel %vm2491, %v5385, %v5386
        %v5388 = vrot.slane %v5200, 5
        %v5389 = vrot.slane %v5388, 4
        %v5390 = vrot.slane %v5201, 5
        %v5391 = vsel %vm2491, %v5389, %v5390
        %v5392 = vrot.slane %v5202, 5
        %v5393 = vrot.slane %v5392, 4
        %v5394 = vrot.slane %v5203, 5
        %v5395 = vsel %vm2491, %v5393, %v5394
        %v5396 = vrot.slane %v5204, 5
        %v5397 = vrot.slane %v5396, 4
        %v5398 = vrot.slane %v5205, 5
        %v5399 = vsel %vm2491, %v5397, %v5398
        %v5400 = vrot.slane %v5206, 5
        %v5401 = vrot.slane %v5400, 4
        %v5402 = vrot.slane %v5207, 5
        %v5403 = vsel %vm2491, %v5401, %v5402
        %v5404 = vrot.slane %v5208, 5
        %v5405 = vrot.slane %v5404, 4
        %v5406 = vrot.slane %v5209, 5
        %v5407 = vsel %vm2491, %v5405, %v5406
        %v5408 = vrot.slane %v5210, 5
        %v5409 = vrot.slane %v5408, 4
        %v5410 = vrot.slane %v5211, 5
        %v5411 = vsel %vm2491, %v5409, %v5410
        %5412 = vrot.lane.b32.xlu0 %v5383, 16
        %v5413 = vpop.permute.xlu0 %5412
        %5414 = vrot.lane.b32.xlu0 %v5387, 16
        %v5415 = vpop.permute.xlu0 %5414
        %5416 = vrot.lane.b32.xlu0 %v5391, 16
        %v5417 = vpop.permute.xlu0 %5416
        %5418 = vrot.lane.b32.xlu0 %v5395, 16
        %v5419 = vpop.permute.xlu0 %5418
        %5420 = vrot.lane.b32.xlu0 %v5399, 16
        %v5421 = vpop.permute.xlu0 %5420
        %5422 = vrot.lane.b32.xlu0 %v5403, 16
        %v5423 = vpop.permute.xlu0 %5422
        %5424 = vrot.lane.b32.xlu0 %v5407, 16
        %v5425 = vpop.permute.xlu0 %5424
        %5426 = vrot.lane.b32.xlu0 %v5411, 16
        %v5427 = vpop.permute.xlu0 %5426
        %5436 = vst.msk [vmem:[#allocation2] sm:$0xf] %vm2716, %v2653
        %5437 = vst.msk [vmem:[#allocation2 + $0x4] sm:$0xf] %vm2716, %v2655
        %5438 = vst.msk [vmem:[#allocation2 + $0x8] sm:$0xf] %vm2716, %v2657
        %5439 = vst.msk [vmem:[#allocation2 + $0xc] sm:$0xf] %vm2716, %v2659
        %5440 = vst.msk [vmem:[#allocation2 + $0x10] sm:$0xf] %vm2716, %v2661
        %5441 = vst.msk [vmem:[#allocation2 + $0x14] sm:$0xf] %vm2716, %v2663
        %5442 = vst.msk [vmem:[#allocation2 + $0x18] sm:$0xf] %vm2716, %v2665
        %5443 = vst.msk [vmem:[#allocation2 + $0x1c] sm:$0xf] %vm2716, %v2667
        %5444 = vst.msk [vmem:[#allocation2 + $0x20] sm:$0xf] %vm2716, %v2669
        %5445 = vst.msk [vmem:[#allocation2 + $0x24] sm:$0xf] %vm2716, %v2671
        %5446 = vst.msk [vmem:[#allocation2 + $0x28] sm:$0xf] %vm2716, %v2673
        %5447 = vst.msk [vmem:[#allocation2 + $0x2c] sm:$0xf] %vm2716, %v2675
        %5448 = vst.msk [vmem:[#allocation2 + $0x30] sm:$0xf] %vm2716, %v2677
        %5449 = vst.msk [vmem:[#allocation2 + $0x34] sm:$0xf] %vm2716, %v2679
        %5450 = vst.msk [vmem:[#allocation2 + $0x38] sm:$0xf] %vm2716, %v2681
        %5451 = vst.msk [vmem:[#allocation2 + $0x3c] sm:$0xf] %vm2716, %v2683
        %5452 = vst.msk [vmem:[#allocation2 + $0x40] sm:$0xf] %vm2716, %v4021
        %5453 = vst.msk [vmem:[#allocation2 + $0x44] sm:$0xf] %vm2716, %v4023
        %5454 = vst.msk [vmem:[#allocation2 + $0x48] sm:$0xf] %vm2716, %v4025
        %5455 = vst.msk [vmem:[#allocation2 + $0x4c] sm:$0xf] %vm2716, %v4027
        %5456 = vst.msk [vmem:[#allocation2 + $0x50] sm:$0xf] %vm2716, %v4029
        %5457 = vst.msk [vmem:[#allocation2 + $0x54] sm:$0xf] %vm2716, %v4031
        %5458 = vst.msk [vmem:[#allocation2 + $0x58] sm:$0xf] %vm2716, %v4033
        %5459 = vst.msk [vmem:[#allocation2 + $0x5c] sm:$0xf] %vm2716, %v4035
        %5460 = vst.msk [vmem:[#allocation2 + $0x60] sm:$0xf] %vm2716, %v5413
        %5461 = vst.msk [vmem:[#allocation2 + $0x64] sm:$0xf] %vm2716, %v5415
        %5462 = vst.msk [vmem:[#allocation2 + $0x68] sm:$0xf] %vm2716, %v5417
        %5463 = vst.msk [vmem:[#allocation2 + $0x6c] sm:$0xf] %vm2716, %v5419
        %5464 = vst.msk [vmem:[#allocation2 + $0x70] sm:$0xf] %vm2716, %v5421
        %5465 = vst.msk [vmem:[#allocation2 + $0x74] sm:$0xf] %vm2716, %v5423
        %5466 = vst.msk [vmem:[#allocation2 + $0x78] sm:$0xf] %vm2716, %v5425
        %5467 = vst.msk [vmem:[#allocation2 + $0x7c] sm:$0xf] %vm2716, %v5427
        %5469 = vrot.lane.b32.xlu0 %v1707, 24
        %v5470 = vpop.permute.xlu0 %5469
        %5471 = vrot.lane.b32.xlu0 %v1708, 24
        %v5472 = vpop.permute.xlu0 %5471
        %5473 = vrot.lane.b32.xlu0 %v1709, 24
        %v5474 = vpop.permute.xlu0 %5473
        %5475 = vrot.lane.b32.xlu0 %v1710, 24
        %v5476 = vpop.permute.xlu0 %5475
        %5477 = vrot.lane.b32.xlu0 %v1711, 24
        %v5478 = vpop.permute.xlu0 %5477
        %5479 = vrot.lane.b32.xlu0 %v1712, 24
        %v5480 = vpop.permute.xlu0 %5479
        %5481 = vrot.lane.b32.xlu0 %v1713, 24
        %v5482 = vpop.permute.xlu0 %5481
        %5483 = vrot.lane.b32.xlu0 %v1714, 24
        %v5484 = vpop.permute.xlu0 %5483
        %5493 = vst.msk [vmem:[#allocation2] sm:$0xf] %vm2849, %v2786
        %5494 = vst.msk [vmem:[#allocation2 + $0x4] sm:$0xf] %vm2849, %v2788
        %5495 = vst.msk [vmem:[#allocation2 + $0x8] sm:$0xf] %vm2849, %v2790
        %5496 = vst.msk [vmem:[#allocation2 + $0xc] sm:$0xf] %vm2849, %v2792
        %5497 = vst.msk [vmem:[#allocation2 + $0x10] sm:$0xf] %vm2849, %v2794
        %5498 = vst.msk [vmem:[#allocation2 + $0x14] sm:$0xf] %vm2849, %v2796
        %5499 = vst.msk [vmem:[#allocation2 + $0x18] sm:$0xf] %vm2849, %v2798
        %5500 = vst.msk [vmem:[#allocation2 + $0x1c] sm:$0xf] %vm2849, %v2800
        %5501 = vst.msk [vmem:[#allocation2 + $0x20] sm:$0xf] %vm2849, %v2802
        %5502 = vst.msk [vmem:[#allocation2 + $0x24] sm:$0xf] %vm2849, %v2804
        %5503 = vst.msk [vmem:[#allocation2 + $0x28] sm:$0xf] %vm2849, %v2806
        %5504 = vst.msk [vmem:[#allocation2 + $0x2c] sm:$0xf] %vm2849, %v2808
        %5505 = vst.msk [vmem:[#allocation2 + $0x30] sm:$0xf] %vm2849, %v2810
        %5506 = vst.msk [vmem:[#allocation2 + $0x34] sm:$0xf] %vm2849, %v2812
        %5507 = vst.msk [vmem:[#allocation2 + $0x38] sm:$0xf] %vm2849, %v2814
        %5508 = vst.msk [vmem:[#allocation2 + $0x3c] sm:$0xf] %vm2849, %v2816
        %5509 = vst.msk [vmem:[#allocation2 + $0x40] sm:$0xf] %vm2849, %v4078
        %5510 = vst.msk [vmem:[#allocation2 + $0x44] sm:$0xf] %vm2849, %v4080
        %5511 = vst.msk [vmem:[#allocation2 + $0x48] sm:$0xf] %vm2849, %v4082
        %5512 = vst.msk [vmem:[#allocation2 + $0x4c] sm:$0xf] %vm2849, %v4084
        %5513 = vst.msk [vmem:[#allocation2 + $0x50] sm:$0xf] %vm2849, %v4086
        %5514 = vst.msk [vmem:[#allocation2 + $0x54] sm:$0xf] %vm2849, %v4088
        %5515 = vst.msk [vmem:[#allocation2 + $0x58] sm:$0xf] %vm2849, %v4090
        %5516 = vst.msk [vmem:[#allocation2 + $0x5c] sm:$0xf] %vm2849, %v4092
        %5517 = vst.msk [vmem:[#allocation2 + $0x60] sm:$0xf] %vm2849, %v5470
        %5518 = vst.msk [vmem:[#allocation2 + $0x64] sm:$0xf] %vm2849, %v5472
        %5519 = vst.msk [vmem:[#allocation2 + $0x68] sm:$0xf] %vm2849, %v5474
        %5520 = vst.msk [vmem:[#allocation2 + $0x6c] sm:$0xf] %vm2849, %v5476
        %5521 = vst.msk [vmem:[#allocation2 + $0x70] sm:$0xf] %vm2849, %v5478
        %5522 = vst.msk [vmem:[#allocation2 + $0x74] sm:$0xf] %vm2849, %v5480
        %5523 = vst.msk [vmem:[#allocation2 + $0x78] sm:$0xf] %vm2849, %v5482
        %5524 = vst.msk [vmem:[#allocation2 + $0x7c] sm:$0xf] %vm2849, %v5484
        %v5525 = vunpack.c.l.b16 %v1714
        %v5526 = vunpack.c.h.b16 %v1714
        %v5527 = vpack.c.b16 %v5525, %v5525
        %v5528 = vpack.c.b16 %v5526, %v5526
        %v5530 = vshrl.u32 %v5527, 16
        %v5532 = vrot.slane %v5530, 4
        %v5533 = vshll.u32 %v5527, 16
        %v5535 = vrot.slane %v5533, 5
        %v5536 = vor.u32 %v5532, %v5535
        %v5537 = vrot.slane %v5536, 4
        %v5539 = vshll.u32 %v5528, 16
        %v5541 = vrot.slane %v5539, 5
        %v5542 = vsel %vm1911, %v5537, %v5541
        %5543 = vrot.lane.b32.xlu0 %v5239, 32
        %v5544 = vpop.permute.xlu0 %5543
        %5545 = vrot.lane.b32.xlu0 %v5253, 32
        %v5546 = vpop.permute.xlu0 %5545
        %5547 = vrot.lane.b32.xlu0 %v5267, 32
        %v5548 = vpop.permute.xlu0 %5547
        %5549 = vrot.lane.b32.xlu0 %v5281, 32
        %v5550 = vpop.permute.xlu0 %5549
        %5551 = vrot.lane.b32.xlu0 %v5295, 32
        %v5552 = vpop.permute.xlu0 %5551
        %5553 = vrot.lane.b32.xlu0 %v5309, 32
        %v5554 = vpop.permute.xlu0 %5553
        %5555 = vrot.lane.b32.xlu0 %v5323, 32
        %v5556 = vpop.permute.xlu0 %5555
        %5557 = vrot.lane.b32.xlu0 %v5542, 32
        %v5558 = vpop.permute.xlu0 %5557
        %5567 = vst.msk [vmem:[#allocation2] sm:$0xf] %vm3050, %v2987
        %5568 = vst.msk [vmem:[#allocation2 + $0x4] sm:$0xf] %vm3050, %v2989
        %5569 = vst.msk [vmem:[#allocation2 + $0x8] sm:$0xf] %vm3050, %v2991
        %5570 = vst.msk [vmem:[#allocation2 + $0xc] sm:$0xf] %vm3050, %v2993
        %5571 = vst.msk [vmem:[#allocation2 + $0x10] sm:$0xf] %vm3050, %v2995
        %5572 = vst.msk [vmem:[#allocation2 + $0x14] sm:$0xf] %vm3050, %v2997
        %5573 = vst.msk [vmem:[#allocation2 + $0x18] sm:$0xf] %vm3050, %v2999
        %5574 = vst.msk [vmem:[#allocation2 + $0x1c] sm:$0xf] %vm3050, %v3001
        %5575 = vst.msk [vmem:[#allocation2 + $0x20] sm:$0xf] %vm3050, %v3003
        %5576 = vst.msk [vmem:[#allocation2 + $0x24] sm:$0xf] %vm3050, %v3005
        %5577 = vst.msk [vmem:[#allocation2 + $0x28] sm:$0xf] %vm3050, %v3007
        %5578 = vst.msk [vmem:[#allocation2 + $0x2c] sm:$0xf] %vm3050, %v3009
        %5579 = vst.msk [vmem:[#allocation2 + $0x30] sm:$0xf] %vm3050, %v3011
        %5580 = vst.msk [vmem:[#allocation2 + $0x34] sm:$0xf] %vm3050, %v3013
        %5581 = vst.msk [vmem:[#allocation2 + $0x38] sm:$0xf] %vm3050, %v3015
        %5582 = vst.msk [vmem:[#allocation2 + $0x3c] sm:$0xf] %vm3050, %v3017
        %5583 = vst.msk [vmem:[#allocation2 + $0x40] sm:$0xf] %vm3050, %v4152
        %5584 = vst.msk [vmem:[#allocation2 + $0x44] sm:$0xf] %vm3050, %v4154
        %5585 = vst.msk [vmem:[#allocation2 + $0x48] sm:$0xf] %vm3050, %v4156
        %5586 = vst.msk [vmem:[#allocation2 + $0x4c] sm:$0xf] %vm3050, %v4158
        %5587 = vst.msk [vmem:[#allocation2 + $0x50] sm:$0xf] %vm3050, %v4160
        %5588 = vst.msk [vmem:[#allocation2 + $0x54] sm:$0xf] %vm3050, %v4162
        %5589 = vst.msk [vmem:[#allocation2 + $0x58] sm:$0xf] %vm3050, %v4164
        %5590 = vst.msk [vmem:[#allocation2 + $0x5c] sm:$0xf] %vm3050, %v4166
        %5591 = vst.msk [vmem:[#allocation2 + $0x60] sm:$0xf] %vm3050, %v5544
        %5592 = vst.msk [vmem:[#allocation2 + $0x64] sm:$0xf] %vm3050, %v5546
        %5593 = vst.msk [vmem:[#allocation2 + $0x68] sm:$0xf] %vm3050, %v5548
        %5594 = vst.msk [vmem:[#allocation2 + $0x6c] sm:$0xf] %vm3050, %v5550
        %5595 = vst.msk [vmem:[#allocation2 + $0x70] sm:$0xf] %vm3050, %v5552
        %5596 = vst.msk [vmem:[#allocation2 + $0x74] sm:$0xf] %vm3050, %v5554
        %5597 = vst.msk [vmem:[#allocation2 + $0x78] sm:$0xf] %vm3050, %v5556
        %5598 = vst.msk [vmem:[#allocation2 + $0x7c] sm:$0xf] %vm3050, %v5558
        %v5599 = vrot.slane %v5527, 5
        %v5600 = vrot.slane %v5599, 4
        %v5601 = vrot.slane %v5528, 5
        %v5602 = vsel %vm2491, %v5600, %v5601
        %5603 = vrot.lane.b32.xlu0 %v5387, 40
        %v5604 = vpop.permute.xlu0 %5603
        %5605 = vrot.lane.b32.xlu0 %v5391, 40
        %v5606 = vpop.permute.xlu0 %5605
        %5607 = vrot.lane.b32.xlu0 %v5395, 40
        %v5608 = vpop.permute.xlu0 %5607
        %5609 = vrot.lane.b32.xlu0 %v5399, 40
        %v5610 = vpop.permute.xlu0 %5609
        %5611 = vrot.lane.b32.xlu0 %v5403, 40
        %v5612 = vpop.permute.xlu0 %5611
        %5613 = vrot.lane.b32.xlu0 %v5407, 40
        %v5614 = vpop.permute.xlu0 %5613
        %5615 = vrot.lane.b32.xlu0 %v5411, 40
        %v5616 = vpop.permute.xlu0 %5615
        %5617 = vrot.lane.b32.xlu0 %v5602, 40
        %v5618 = vpop.permute.xlu0 %5617
        %5627 = vst.msk [vmem:[#allocation2] sm:$0xf] %vm3195, %v3132
        %5628 = vst.msk [vmem:[#allocation2 + $0x4] sm:$0xf] %vm3195, %v3134
        %5629 = vst.msk [vmem:[#allocation2 + $0x8] sm:$0xf] %vm3195, %v3136
        %5630 = vst.msk [vmem:[#allocation2 + $0xc] sm:$0xf] %vm3195, %v3138
        %5631 = vst.msk [vmem:[#allocation2 + $0x10] sm:$0xf] %vm3195, %v3140
        %5632 = vst.msk [vmem:[#allocation2 + $0x14] sm:$0xf] %vm3195, %v3142
        %5633 = vst.msk [vmem:[#allocation2 + $0x18] sm:$0xf] %vm3195, %v3144
        %5634 = vst.msk [vmem:[#allocation2 + $0x1c] sm:$0xf] %vm3195, %v3146
        %5635 = vst.msk [vmem:[#allocation2 + $0x20] sm:$0xf] %vm3195, %v3148
        %5636 = vst.msk [vmem:[#allocation2 + $0x24] sm:$0xf] %vm3195, %v3150
        %5637 = vst.msk [vmem:[#allocation2 + $0x28] sm:$0xf] %vm3195, %v3152
        %5638 = vst.msk [vmem:[#allocation2 + $0x2c] sm:$0xf] %vm3195, %v3154
        %5639 = vst.msk [vmem:[#allocation2 + $0x30] sm:$0xf] %vm3195, %v3156
        %5640 = vst.msk [vmem:[#allocation2 + $0x34] sm:$0xf] %vm3195, %v3158
        %5641 = vst.msk [vmem:[#allocation2 + $0x38] sm:$0xf] %vm3195, %v3160
        %5642 = vst.msk [vmem:[#allocation2 + $0x3c] sm:$0xf] %vm3195, %v3162
        %5643 = vst.msk [vmem:[#allocation2 + $0x40] sm:$0xf] %vm3195, %v4212
        %5644 = vst.msk [vmem:[#allocation2 + $0x44] sm:$0xf] %vm3195, %v4214
        %5645 = vst.msk [vmem:[#allocation2 + $0x48] sm:$0xf] %vm3195, %v4216
        %5646 = vst.msk [vmem:[#allocation2 + $0x4c] sm:$0xf] %vm3195, %v4218
        %5647 = vst.msk [vmem:[#allocation2 + $0x50] sm:$0xf] %vm3195, %v4220
        %5648 = vst.msk [vmem:[#allocation2 + $0x54] sm:$0xf] %vm3195, %v4222
        %5649 = vst.msk [vmem:[#allocation2 + $0x58] sm:$0xf] %vm3195, %v4224
        %5650 = vst.msk [vmem:[#allocation2 + $0x5c] sm:$0xf] %vm3195, %v4226
        %5651 = vst.msk [vmem:[#allocation2 + $0x60] sm:$0xf] %vm3195, %v5604
        %5652 = vst.msk [vmem:[#allocation2 + $0x64] sm:$0xf] %vm3195, %v5606
        %5653 = vst.msk [vmem:[#allocation2 + $0x68] sm:$0xf] %vm3195, %v5608
        %5654 = vst.msk [vmem:[#allocation2 + $0x6c] sm:$0xf] %vm3195, %v5610
        %5655 = vst.msk [vmem:[#allocation2 + $0x70] sm:$0xf] %vm3195, %v5612
        %5656 = vst.msk [vmem:[#allocation2 + $0x74] sm:$0xf] %vm3195, %v5614
        %5657 = vst.msk [vmem:[#allocation2 + $0x78] sm:$0xf] %vm3195, %v5616
        %5658 = vst.msk [vmem:[#allocation2 + $0x7c] sm:$0xf] %vm3195, %v5618
        %5660 = vrot.lane.b32.xlu0 %v1708, 48
        %v5661 = vpop.permute.xlu0 %5660
        %5662 = vrot.lane.b32.xlu0 %v1709, 48
        %v5663 = vpop.permute.xlu0 %5662
        %5664 = vrot.lane.b32.xlu0 %v1710, 48
        %v5665 = vpop.permute.xlu0 %5664
        %5666 = vrot.lane.b32.xlu0 %v1711, 48
        %v5667 = vpop.permute.xlu0 %5666
        %5668 = vrot.lane.b32.xlu0 %v1712, 48
        %v5669 = vpop.permute.xlu0 %5668
        %5670 = vrot.lane.b32.xlu0 %v1713, 48
        %v5671 = vpop.permute.xlu0 %5670
        %5672 = vrot.lane.b32.xlu0 %v1714, 48
        %v5673 = vpop.permute.xlu0 %5672
        %5674 = vrot.lane.b32.xlu0 %v1715, 48
        %v5675 = vpop.permute.xlu0 %5674
        %5684 = vst.msk [vmem:[#allocation2] sm:$0xf] %vm3328, %v3265
        %5685 = vst.msk [vmem:[#allocation2 + $0x4] sm:$0xf] %vm3328, %v3267
        %5686 = vst.msk [vmem:[#allocation2 + $0x8] sm:$0xf] %vm3328, %v3269
        %5687 = vst.msk [vmem:[#allocation2 + $0xc] sm:$0xf] %vm3328, %v3271
        %5688 = vst.msk [vmem:[#allocation2 + $0x10] sm:$0xf] %vm3328, %v3273
        %5689 = vst.msk [vmem:[#allocation2 + $0x14] sm:$0xf] %vm3328, %v3275
        %5690 = vst.msk [vmem:[#allocation2 + $0x18] sm:$0xf] %vm3328, %v3277
        %5691 = vst.msk [vmem:[#allocation2 + $0x1c] sm:$0xf] %vm3328, %v3279
        %5692 = vst.msk [vmem:[#allocation2 + $0x20] sm:$0xf] %vm3328, %v3281
        %5693 = vst.msk [vmem:[#allocation2 + $0x24] sm:$0xf] %vm3328, %v3283
        %5694 = vst.msk [vmem:[#allocation2 + $0x28] sm:$0xf] %vm3328, %v3285
        %5695 = vst.msk [vmem:[#allocation2 + $0x2c] sm:$0xf] %vm3328, %v3287
        %5696 = vst.msk [vmem:[#allocation2 + $0x30] sm:$0xf] %vm3328, %v3289
        %5697 = vst.msk [vmem:[#allocation2 + $0x34] sm:$0xf] %vm3328, %v3291
        %5698 = vst.msk [vmem:[#allocation2 + $0x38] sm:$0xf] %vm3328, %v3293
        %5699 = vst.msk [vmem:[#allocation2 + $0x3c] sm:$0xf] %vm3328, %v3295
        %5700 = vst.msk [vmem:[#allocation2 + $0x40] sm:$0xf] %vm3328, %v4269
        %5701 = vst.msk [vmem:[#allocation2 + $0x44] sm:$0xf] %vm3328, %v4271
        %5702 = vst.msk [vmem:[#allocation2 + $0x48] sm:$0xf] %vm3328, %v4273
        %5703 = vst.msk [vmem:[#allocation2 + $0x4c] sm:$0xf] %vm3328, %v4275
        %5704 = vst.msk [vmem:[#allocation2 + $0x50] sm:$0xf] %vm3328, %v4277
        %5705 = vst.msk [vmem:[#allocation2 + $0x54] sm:$0xf] %vm3328, %v4279
        %5706 = vst.msk [vmem:[#allocation2 + $0x58] sm:$0xf] %vm3328, %v4281
        %5707 = vst.msk [vmem:[#allocation2 + $0x5c] sm:$0xf] %vm3328, %v4283
        %5708 = vst.msk [vmem:[#allocation2 + $0x60] sm:$0xf] %vm3328, %v5661
        %5709 = vst.msk [vmem:[#allocation2 + $0x64] sm:$0xf] %vm3328, %v5663
        %5710 = vst.msk [vmem:[#allocation2 + $0x68] sm:$0xf] %vm3328, %v5665
        %5711 = vst.msk [vmem:[#allocation2 + $0x6c] sm:$0xf] %vm3328, %v5667
        %5712 = vst.msk [vmem:[#allocation2 + $0x70] sm:$0xf] %vm3328, %v5669
        %5713 = vst.msk [vmem:[#allocation2 + $0x74] sm:$0xf] %vm3328, %v5671
        %5714 = vst.msk [vmem:[#allocation2 + $0x78] sm:$0xf] %vm3328, %v5673
        %5715 = vst.msk [vmem:[#allocation2 + $0x7c] sm:$0xf] %vm3328, %v5675
        %v5716 = vunpack.c.l.b16 %v1715
        %v5717 = vunpack.c.h.b16 %v1715
        %v5718 = vpack.c.b16 %v5716, %v5716
        %v5719 = vpack.c.b16 %v5717, %v5717
        %v5721 = vshrl.u32 %v5718, 16
        %v5723 = vrot.slane %v5721, 4
        %v5724 = vshll.u32 %v5718, 16
        %v5726 = vrot.slane %v5724, 5
        %v5727 = vor.u32 %v5723, %v5726
        %v5728 = vrot.slane %v5727, 4
        %v5730 = vshll.u32 %v5719, 16
        %v5732 = vrot.slane %v5730, 5
        %v5733 = vsel %vm1911, %v5728, %v5732
        %5734 = vrot.lane.b32.xlu0 %v5253, 56
        %v5735 = vpop.permute.xlu0 %5734
        %5736 = vrot.lane.b32.xlu0 %v5267, 56
        %v5737 = vpop.permute.xlu0 %5736
        %5738 = vrot.lane.b32.xlu0 %v5281, 56
        %v5739 = vpop.permute.xlu0 %5738
        %5740 = vrot.lane.b32.xlu0 %v5295, 56
        %v5741 = vpop.permute.xlu0 %5740
        %5742 = vrot.lane.b32.xlu0 %v5309, 56
        %v5743 = vpop.permute.xlu0 %5742
        %5744 = vrot.lane.b32.xlu0 %v5323, 56
        %v5745 = vpop.permute.xlu0 %5744
        %5746 = vrot.lane.b32.xlu0 %v5542, 56
        %v5747 = vpop.permute.xlu0 %5746
        %5748 = vrot.lane.b32.xlu0 %v5733, 56
        %v5749 = vpop.permute.xlu0 %5748
        %5758 = vst.msk [vmem:[#allocation2] sm:$0xf] %vm3529, %v3466
        %5759 = vst.msk [vmem:[#allocation2 + $0x4] sm:$0xf] %vm3529, %v3468
        %5760 = vst.msk [vmem:[#allocation2 + $0x8] sm:$0xf] %vm3529, %v3470
        %5761 = vst.msk [vmem:[#allocation2 + $0xc] sm:$0xf] %vm3529, %v3472
        %5762 = vst.msk [vmem:[#allocation2 + $0x10] sm:$0xf] %vm3529, %v3474
        %5763 = vst.msk [vmem:[#allocation2 + $0x14] sm:$0xf] %vm3529, %v3476
        %5764 = vst.msk [vmem:[#allocation2 + $0x18] sm:$0xf] %vm3529, %v3478
        %5765 = vst.msk [vmem:[#allocation2 + $0x1c] sm:$0xf] %vm3529, %v3480
        %5766 = vst.msk [vmem:[#allocation2 + $0x20] sm:$0xf] %vm3529, %v3482
        %5767 = vst.msk [vmem:[#allocation2 + $0x24] sm:$0xf] %vm3529, %v3484
        %5768 = vst.msk [vmem:[#allocation2 + $0x28] sm:$0xf] %vm3529, %v3486
        %5769 = vst.msk [vmem:[#allocation2 + $0x2c] sm:$0xf] %vm3529, %v3488
        %5770 = vst.msk [vmem:[#allocation2 + $0x30] sm:$0xf] %vm3529, %v3490
        %5771 = vst.msk [vmem:[#allocation2 + $0x34] sm:$0xf] %vm3529, %v3492
        %5772 = vst.msk [vmem:[#allocation2 + $0x38] sm:$0xf] %vm3529, %v3494
        %5773 = vst.msk [vmem:[#allocation2 + $0x3c] sm:$0xf] %vm3529, %v3496
        %5774 = vst.msk [vmem:[#allocation2 + $0x40] sm:$0xf] %vm3529, %v4343
        %5775 = vst.msk [vmem:[#allocation2 + $0x44] sm:$0xf] %vm3529, %v4345
        %5776 = vst.msk [vmem:[#allocation2 + $0x48] sm:$0xf] %vm3529, %v4347
        %5777 = vst.msk [vmem:[#allocation2 + $0x4c] sm:$0xf] %vm3529, %v4349
        %5778 = vst.msk [vmem:[#allocation2 + $0x50] sm:$0xf] %vm3529, %v4351
        %5779 = vst.msk [vmem:[#allocation2 + $0x54] sm:$0xf] %vm3529, %v4353
        %5780 = vst.msk [vmem:[#allocation2 + $0x58] sm:$0xf] %vm3529, %v4355
        %5781 = vst.msk [vmem:[#allocation2 + $0x5c] sm:$0xf] %vm3529, %v4357
        %5782 = vst.msk [vmem:[#allocation2 + $0x60] sm:$0xf] %vm3529, %v5735
        %5783 = vst.msk [vmem:[#allocation2 + $0x64] sm:$0xf] %vm3529, %v5737
        %5784 = vst.msk [vmem:[#allocation2 + $0x68] sm:$0xf] %vm3529, %v5739
        %5785 = vst.msk [vmem:[#allocation2 + $0x6c] sm:$0xf] %vm3529, %v5741
        %5786 = vst.msk [vmem:[#allocation2 + $0x70] sm:$0xf] %vm3529, %v5743
        %5787 = vst.msk [vmem:[#allocation2 + $0x74] sm:$0xf] %vm3529, %v5745
        %5788 = vst.msk [vmem:[#allocation2 + $0x78] sm:$0xf] %vm3529, %v5747
        %5789 = vst.msk [vmem:[#allocation2 + $0x7c] sm:$0xf] %vm3529, %v5749
        %v5790 = vrot.slane %v5718, 5
        %v5791 = vrot.slane %v5790, 4
        %v5792 = vrot.slane %v5719, 5
        %v5793 = vsel %vm2491, %v5791, %v5792
        %5794 = vrot.lane.b32.xlu0 %v5391, 64
        %v5795 = vpop.permute.xlu0 %5794
        %5796 = vrot.lane.b32.xlu0 %v5395, 64
        %v5797 = vpop.permute.xlu0 %5796
        %5798 = vrot.lane.b32.xlu0 %v5399, 64
        %v5799 = vpop.permute.xlu0 %5798
        %5800 = vrot.lane.b32.xlu0 %v5403, 64
        %v5801 = vpop.permute.xlu0 %5800
        %5802 = vrot.lane.b32.xlu0 %v5407, 64
        %v5803 = vpop.permute.xlu0 %5802
        %5804 = vrot.lane.b32.xlu0 %v5411, 64
        %v5805 = vpop.permute.xlu0 %5804
        %5806 = vrot.lane.b32.xlu0 %v5602, 64
        %v5807 = vpop.permute.xlu0 %5806
        %5808 = vrot.lane.b32.xlu0 %v5793, 64
        %v5809 = vpop.permute.xlu0 %5808
        %5818 = vst.msk [vmem:[#allocation2] sm:$0xf] %vm3674, %v3611
        %5819 = vst.msk [vmem:[#allocation2 + $0x4] sm:$0xf] %vm3674, %v3613
        %5820 = vst.msk [vmem:[#allocation2 + $0x8] sm:$0xf] %vm3674, %v3615
        %5821 = vst.msk [vmem:[#allocation2 + $0xc] sm:$0xf] %vm3674, %v3617
        %5822 = vst.msk [vmem:[#allocation2 + $0x10] sm:$0xf] %vm3674, %v3619
        %5823 = vst.msk [vmem:[#allocation2 + $0x14] sm:$0xf] %vm3674, %v3621
        %5824 = vst.msk [vmem:[#allocation2 + $0x18] sm:$0xf] %vm3674, %v3623
        %5825 = vst.msk [vmem:[#allocation2 + $0x1c] sm:$0xf] %vm3674, %v3625
        %5826 = vst.msk [vmem:[#allocation2 + $0x20] sm:$0xf] %vm3674, %v3627
        %5827 = vst.msk [vmem:[#allocation2 + $0x24] sm:$0xf] %vm3674, %v3629
        %5828 = vst.msk [vmem:[#allocation2 + $0x28] sm:$0xf] %vm3674, %v3631
        %5829 = vst.msk [vmem:[#allocation2 + $0x2c] sm:$0xf] %vm3674, %v3633
        %5830 = vst.msk [vmem:[#allocation2 + $0x30] sm:$0xf] %vm3674, %v3635
        %5831 = vst.msk [vmem:[#allocation2 + $0x34] sm:$0xf] %vm3674, %v3637
        %5832 = vst.msk [vmem:[#allocation2 + $0x38] sm:$0xf] %vm3674, %v3639
        %5833 = vst.msk [vmem:[#allocation2 + $0x3c] sm:$0xf] %vm3674, %v3641
        %5834 = vst.msk [vmem:[#allocation2 + $0x40] sm:$0xf] %vm3674, %v4403
        %5835 = vst.msk [vmem:[#allocation2 + $0x44] sm:$0xf] %vm3674, %v4405
        %5836 = vst.msk [vmem:[#allocation2 + $0x48] sm:$0xf] %vm3674, %v4407
        %5837 = vst.msk [vmem:[#allocation2 + $0x4c] sm:$0xf] %vm3674, %v4409
        %5838 = vst.msk [vmem:[#allocation2 + $0x50] sm:$0xf] %vm3674, %v4411
        %5839 = vst.msk [vmem:[#allocation2 + $0x54] sm:$0xf] %vm3674, %v4413
        %5840 = vst.msk [vmem:[#allocation2 + $0x58] sm:$0xf] %vm3674, %v4415
        %5841 = vst.msk [vmem:[#allocation2 + $0x5c] sm:$0xf] %vm3674, %v4417
        %5842 = vst.msk [vmem:[#allocation2 + $0x60] sm:$0xf] %vm3674, %v5795
        %5843 = vst.msk [vmem:[#allocation2 + $0x64] sm:$0xf] %vm3674, %v5797
        %5844 = vst.msk [vmem:[#allocation2 + $0x68] sm:$0xf] %vm3674, %v5799
        %5845 = vst.msk [vmem:[#allocation2 + $0x6c] sm:$0xf] %vm3674, %v5801
        %5846 = vst.msk [vmem:[#allocation2 + $0x70] sm:$0xf] %vm3674, %v5803
        %5847 = vst.msk [vmem:[#allocation2 + $0x74] sm:$0xf] %vm3674, %v5805
        %5848 = vst.msk [vmem:[#allocation2 + $0x78] sm:$0xf] %vm3674, %v5807
        %5849 = vst.msk [vmem:[#allocation2 + $0x7c] sm:$0xf] %vm3674, %v5809
        %v5850 = vld [vmem:[#allocation2] sm:$0xf]
        %v5851 = vld [vmem:[#allocation2 + $0x4] sm:$0xf]
        %v5852 = vld [vmem:[#allocation2 + $0x8] sm:$0xf]
        %v5853 = vld [vmem:[#allocation2 + $0xc] sm:$0xf]
        %v5854 = vld [vmem:[#allocation2 + $0x10] sm:$0xf]
        %v5855 = vld [vmem:[#allocation2 + $0x14] sm:$0xf]
        %v5856 = vld [vmem:[#allocation2 + $0x18] sm:$0xf]
        %v5857 = vld [vmem:[#allocation2 + $0x1c] sm:$0xf]
        %v5858 = vld [vmem:[#allocation2 + $0x20] sm:$0xf]
        %v5859 = vld [vmem:[#allocation2 + $0x24] sm:$0xf]
        %v5860 = vld [vmem:[#allocation2 + $0x28] sm:$0xf]
        %v5861 = vld [vmem:[#allocation2 + $0x2c] sm:$0xf]
        %v5862 = vld [vmem:[#allocation2 + $0x30] sm:$0xf]
        %v5863 = vld [vmem:[#allocation2 + $0x34] sm:$0xf]
        %v5864 = vld [vmem:[#allocation2 + $0x38] sm:$0xf]
        %v5865 = vld [vmem:[#allocation2 + $0x3c] sm:$0xf]
        %v5866 = vld [vmem:[#allocation2 + $0x40] sm:$0xf]
        %v5867 = vld [vmem:[#allocation2 + $0x44] sm:$0xf]
        %v5868 = vld [vmem:[#allocation2 + $0x48] sm:$0xf]
        %v5869 = vld [vmem:[#allocation2 + $0x4c] sm:$0xf]
        %v5870 = vld [vmem:[#allocation2 + $0x50] sm:$0xf]
        %v5871 = vld [vmem:[#allocation2 + $0x54] sm:$0xf]
        %v5872 = vld [vmem:[#allocation2 + $0x58] sm:$0xf]
        %v5873 = vld [vmem:[#allocation2 + $0x5c] sm:$0xf]
        %v5874 = vld [vmem:[#allocation2 + $0x60] sm:$0xf]
        %v5875 = vld [vmem:[#allocation2 + $0x64] sm:$0xf]
        %v5876 = vld [vmem:[#allocation2 + $0x68] sm:$0xf]
        %v5877 = vld [vmem:[#allocation2 + $0x6c] sm:$0xf]
        %v5878 = vld [vmem:[#allocation2 + $0x70] sm:$0xf]
        %v5879 = vld [vmem:[#allocation2 + $0x74] sm:$0xf]
        %v5880 = vld [vmem:[#allocation2 + $0x78] sm:$0xf]
        %v5881 = vld [vmem:[#allocation2 + $0x7c] sm:$0xf]
        %s5882 = scalar_lea.vmem %s4, 72
        %v5883 = vld [vmem:[%s5882] sm:$0xf]
        %v5884 = vld [vmem:[%s5882 + $0x4] sm:$0xf]
        %v5885 = vld [vmem:[%s5882 + $0x8] sm:$0xf]
        %v5886 = vld [vmem:[%s5882 + $0xc] sm:$0xf]
        %v5887 = vld [vmem:[%s5882 + $0x10] sm:$0xf]
        %v5888 = vld [vmem:[%s5882 + $0x14] sm:$0xf]
        %v5889 = vld [vmem:[%s5882 + $0x18] sm:$0xf]
        %v5890 = vld [vmem:[%s5882 + $0x1c] sm:$0xf]
        %v5891 = vld [vmem:[%s5882 + $0x20] sm:$0xf]
        %v5924 = vunpack.c.l.b16 %v5850
        %v5925 = vunpack.c.l.b16 %v5851
        %v5926 = vunpack.c.l.b16 %v5852
        %v5927 = vunpack.c.l.b16 %v5853
        %v5928 = vunpack.c.l.b16 %v5854
        %v5929 = vunpack.c.l.b16 %v5855
        %v5930 = vunpack.c.l.b16 %v5856
        %v5931 = vunpack.c.l.b16 %v5857
        %v5932 = vunpack.c.l.b16 %v5858
        %v5933 = vunpack.c.l.b16 %v5859
        %v5934 = vunpack.c.l.b16 %v5860
        %v5935 = vunpack.c.l.b16 %v5861
        %v5936 = vunpack.c.l.b16 %v5862
        %v5937 = vunpack.c.l.b16 %v5863
        %v5938 = vunpack.c.l.b16 %v5864
        %v5939 = vunpack.c.l.b16 %v5865
        %v5940 = vunpack.c.l.b16 %v5866
        %v5941 = vunpack.c.l.b16 %v5867
        %v5942 = vunpack.c.l.b16 %v5868
        %v5943 = vunpack.c.l.b16 %v5869
        %v5944 = vunpack.c.l.b16 %v5870
        %v5945 = vunpack.c.l.b16 %v5871
        %v5946 = vunpack.c.l.b16 %v5872
        %v5947 = vunpack.c.l.b16 %v5873
        %v5948 = vunpack.c.l.b16 %v5874
        %v5949 = vunpack.c.l.b16 %v5875
        %v5950 = vunpack.c.l.b16 %v5876
        %v5951 = vunpack.c.l.b16 %v5877
        %v5952 = vunpack.c.l.b16 %v5878
        %v5953 = vunpack.c.l.b16 %v5879
        %v5954 = vunpack.c.l.b16 %v5880
        %v5955 = vunpack.c.l.b16 %v5881
        %v5956 = vpack.c.b16 %v5925, %v5924
        %v5957 = vpack.c.b16 %v5927, %v5926
        %v5958 = vpack.c.b16 %v5929, %v5928
        %v5959 = vpack.c.b16 %v5931, %v5930
        %v5960 = vpack.c.b16 %v5933, %v5932
        %v5961 = vpack.c.b16 %v5935, %v5934
        %v5962 = vpack.c.b16 %v5937, %v5936
        %v5963 = vpack.c.b16 %v5939, %v5938
        %v5964 = vpack.c.b16 %v5941, %v5940
        %v5965 = vpack.c.b16 %v5943, %v5942
        %v5966 = vpack.c.b16 %v5945, %v5944
        %v5967 = vpack.c.b16 %v5947, %v5946
        %v5968 = vpack.c.b16 %v5949, %v5948
        %v5969 = vpack.c.b16 %v5951, %v5950
        %v5970 = vpack.c.b16 %v5953, %v5952
        %v5971 = vpack.c.b16 %v5955, %v5954
        %v5981 = vunpack.c.l.b16 %v5883
        %v5982 = vunpack.c.l.b16 %v5884
        %v5983 = vunpack.c.l.b16 %v5885
        %v5984 = vunpack.c.l.b16 %v5886
        %v5985 = vunpack.c.l.b16 %v5887
        %v5986 = vunpack.c.l.b16 %v5888
        %v5987 = vunpack.c.l.b16 %v5889
        %v5988 = vunpack.c.l.b16 %v5890
        %v5989 = vunpack.c.l.b16 %v5891
        %v5990 = vpack.c.b16 %v5982, %v5981
        %v5991 = vpack.c.b16 %v5984, %v5983
        %v5992 = vpack.c.b16 %v5986, %v5985
        %v5993 = vpack.c.b16 %v5988, %v5987
        %v5994 = vpack.c.b16 %v5989, %v5989
        %v6000 = vsel %vm4607, %v5956, 0
        %v6003 = vsel %vm4607, %v5957, 0
        %v6006 = vsel %vm4607, %v5958, 0
        %v6009 = vsel %vm4607, %v5959, 0
        %v6012 = vsel %vm4607, %v5960, 0
        %v6015 = vsel %vm4607, %v5961, 0
        %v6018 = vsel %vm4607, %v5962, 0
        %v6021 = vsel %vm4607, %v5963, 0
        %v6024 = vsel %vm4607, %v5964, 0
        %v6027 = vsel %vm4607, %v5965, 0
        %v6030 = vsel %vm4607, %v5966, 0
        %v6033 = vsel %vm4607, %v5967, 0
        %v6036 = vsel %vm4607, %v5968, 0
        %v6039 = vsel %vm4607, %v5969, 0
        %v6042 = vsel %vm4607, %v5970, 0
        %v6045 = vsel %vm4607, %v5971, 0
        %v6048 = vsel %vm4656, %v5994, 0
        %6050 = vmatprep.subr.bf16.mxu0 0
        %6051 = vmatpush1.bf16.msra.mxu0 0
        %6052 = vmatprep.subr.bf16.mxu0 0
        %6053 = vmatpush1.bf16.msra.mxu0 0
        %6054 = vmatprep.subr.bf16.mxu0 0
        %6055 = vmatpush1.bf16.msra.mxu0 0
        %6056 = vmatprep.subr.bf16.mxu0 0
        %6057 = vmatpush1.bf16.msra.mxu0 %v6048
        %6058 = vmatprep.subr.bf16.mxu0 0
        %6059 = vmatpush1.bf16.msra.mxu0 %v5993
        %6060 = vmatprep.subr.bf16.mxu0 0
        %6061 = vmatpush1.bf16.msra.mxu0 %v5992
        %6062 = vmatprep.subr.bf16.mxu0 0
        %6063 = vmatpush1.bf16.msra.mxu0 %v5991
        %6064 = vmatprep.subr.bf16.mxu0 0
        %6065 = vmatpush1.bf16.msra.mxu0 %v5990
        %6066 = vmatprep.subr.bf16.mxu0 0
        %6067 = vmatpush2.bf16.msra.mxu0 0
        %6068 = vmatprep.subr.bf16.mxu0 0
        %6069 = vmatpush2.bf16.msra.mxu0 0
        %6070 = vmatprep.subr.bf16.mxu0 0
        %6071 = vmatpush2.bf16.msra.mxu0 0
        %6072 = vmatprep.subr.bf16.mxu0 0
        %6073 = vmatpush2.bf16.msra.mxu0 0
        %6074 = vmatprep.subr.bf16.mxu0 0
        %6075 = vmatpush2.bf16.msra.mxu0 0
        %6076 = vmatprep.subr.bf16.mxu0 0
        %6077 = vmatpush2.bf16.msra.mxu0 0
        %6078 = vmatprep.subr.bf16.mxu0 0
        %6079 = vmatpush2.bf16.msra.mxu0 0
        %6080 = vmatprep.subr.bf16.mxu0 0
        %6081 = vmatpush2.bf16.msra.mxu0 0
        %6082 = vmatprep.mubr.bf16.mxu0 0
        %6083 = vmatmul.mubr.bf16.gmra.mxu0 %v6000
        %v6084 = vpop.f32.mrf.mxu0
        %v6085 = vadd.f32 0.0, %v6084
        %v6086 = vpop.f32.mrf.mxu0
        %v6087 = vpop.f32.mrf.mxu0
        %v6088 = vadd.f32 0.0, %v6087
        %v6089 = vpop.f32.mrf.mxu0
        %6090 = vmatprep.mubr.bf16.mxu0 0
        %6091 = vmatmul.mubr.bf16.gmra.mxu0 %v6003
        %v6092 = vpop.f32.mrf.mxu0
        %v6093 = vadd.f32 0.0, %v6092
        %v6094 = vpop.f32.mrf.mxu0
        %v6095 = vpop.f32.mrf.mxu0
        %v6096 = vadd.f32 0.0, %v6095
        %v6097 = vpop.f32.mrf.mxu0
        %6098 = vmatprep.mubr.bf16.mxu0 0
        %6099 = vmatmul.mubr.bf16.gmra.mxu0 %v6006
        %v6100 = vpop.f32.mrf.mxu0
        %v6101 = vadd.f32 0.0, %v6100
        %v6102 = vpop.f32.mrf.mxu0
        %v6103 = vpop.f32.mrf.mxu0
        %v6104 = vadd.f32 0.0, %v6103
        %v6105 = vpop.f32.mrf.mxu0
        %6106 = vmatprep.mubr.bf16.mxu0 0
        %6107 = vmatmul.mubr.bf16.gmra.mxu0 %v6009
        %v6108 = vpop.f32.mrf.mxu0
        %v6109 = vadd.f32 0.0, %v6108
        %v6110 = vpop.f32.mrf.mxu0
        %v6111 = vpop.f32.mrf.mxu0
        %v6112 = vadd.f32 0.0, %v6111
        %v6113 = vpop.f32.mrf.mxu0
        %6114 = vmatprep.mubr.bf16.mxu0 0
        %6115 = vmatmul.mubr.bf16.gmra.mxu0 %v6012
        %v6116 = vpop.f32.mrf.mxu0
        %v6117 = vadd.f32 0.0, %v6116
        %v6118 = vpop.f32.mrf.mxu0
        %v6119 = vpop.f32.mrf.mxu0
        %v6120 = vadd.f32 0.0, %v6119
        %v6121 = vpop.f32.mrf.mxu0
        %6122 = vmatprep.mubr.bf16.mxu0 0
        %6123 = vmatmul.mubr.bf16.gmra.mxu0 %v6015
        %v6124 = vpop.f32.mrf.mxu0
        %v6125 = vadd.f32 0.0, %v6124
        %v6126 = vpop.f32.mrf.mxu0
        %v6127 = vpop.f32.mrf.mxu0
        %v6128 = vadd.f32 0.0, %v6127
        %v6129 = vpop.f32.mrf.mxu0
        %6130 = vmatprep.mubr.bf16.mxu0 0
        %6131 = vmatmul.mubr.bf16.gmra.mxu0 %v6018
        %v6132 = vpop.f32.mrf.mxu0
        %v6133 = vadd.f32 0.0, %v6132
        %v6134 = vpop.f32.mrf.mxu0
        %v6135 = vpop.f32.mrf.mxu0
        %v6136 = vadd.f32 0.0, %v6135
        %v6137 = vpop.f32.mrf.mxu0
        %6138 = vmatprep.mubr.bf16.mxu0 0
        %6139 = vmatmul.mubr.bf16.gmra.mxu0 %v6021
        %v6140 = vpop.f32.mrf.mxu0
        %v6141 = vadd.f32 0.0, %v6140
        %v6142 = vpop.f32.mrf.mxu0
        %v6143 = vpop.f32.mrf.mxu0
        %v6144 = vadd.f32 0.0, %v6143
        %v6145 = vpop.f32.mrf.mxu0
        %6146 = vmatprep.mubr.bf16.mxu0 0
        %6147 = vmatmul.mubr.bf16.gmra.mxu0 %v6024
        %v6148 = vpop.f32.mrf.mxu0
        %v6149 = vadd.f32 0.0, %v6148
        %v6150 = vpop.f32.mrf.mxu0
        %v6151 = vpop.f32.mrf.mxu0
        %v6152 = vadd.f32 0.0, %v6151
        %v6153 = vpop.f32.mrf.mxu0
        %6154 = vmatprep.mubr.bf16.mxu0 0
        %6155 = vmatmul.mubr.bf16.gmra.mxu0 %v6027
        %v6156 = vpop.f32.mrf.mxu0
        %v6157 = vadd.f32 0.0, %v6156
        %v6158 = vpop.f32.mrf.mxu0
        %v6159 = vpop.f32.mrf.mxu0
        %v6160 = vadd.f32 0.0, %v6159
        %v6161 = vpop.f32.mrf.mxu0
        %6162 = vmatprep.mubr.bf16.mxu0 0
        %6163 = vmatmul.mubr.bf16.gmra.mxu0 %v6030
        %v6164 = vpop.f32.mrf.mxu0
        %v6165 = vadd.f32 0.0, %v6164
        %v6166 = vpop.f32.mrf.mxu0
        %v6167 = vpop.f32.mrf.mxu0
        %v6168 = vadd.f32 0.0, %v6167
        %v6169 = vpop.f32.mrf.mxu0
        %6170 = vmatprep.mubr.bf16.mxu0 0
        %6171 = vmatmul.mubr.bf16.gmra.mxu0 %v6033
        %v6172 = vpop.f32.mrf.mxu0
        %v6173 = vadd.f32 0.0, %v6172
        %v6174 = vpop.f32.mrf.mxu0
        %v6175 = vpop.f32.mrf.mxu0
        %v6176 = vadd.f32 0.0, %v6175
        %v6177 = vpop.f32.mrf.mxu0
        %6178 = vmatprep.mubr.bf16.mxu0 0
        %6179 = vmatmul.mubr.bf16.gmra.mxu0 %v6036
        %v6180 = vpop.f32.mrf.mxu0
        %v6181 = vadd.f32 0.0, %v6180
        %v6182 = vpop.f32.mrf.mxu0
        %v6183 = vpop.f32.mrf.mxu0
        %v6184 = vadd.f32 0.0, %v6183
        %v6185 = vpop.f32.mrf.mxu0
        %6186 = vmatprep.mubr.bf16.mxu0 0
        %6187 = vmatmul.mubr.bf16.gmra.mxu0 %v6039
        %v6188 = vpop.f32.mrf.mxu0
        %v6189 = vadd.f32 0.0, %v6188
        %v6190 = vpop.f32.mrf.mxu0
        %v6191 = vpop.f32.mrf.mxu0
        %v6192 = vadd.f32 0.0, %v6191
        %v6193 = vpop.f32.mrf.mxu0
        %6194 = vmatprep.mubr.bf16.mxu0 0
        %6195 = vmatmul.mubr.bf16.gmra.mxu0 %v6042
        %v6196 = vpop.f32.mrf.mxu0
        %v6197 = vadd.f32 0.0, %v6196
        %v6198 = vpop.f32.mrf.mxu0
        %v6199 = vpop.f32.mrf.mxu0
        %v6200 = vadd.f32 0.0, %v6199
        %v6201 = vpop.f32.mrf.mxu0
        %6202 = vmatprep.mubr.bf16.mxu0 0
        %6203 = vmatmul.mubr.bf16.gmra.mxu0 %v6045
        %v6204 = vpop.f32.mrf.mxu0
        %v6205 = vadd.f32 0.0, %v6204
        %v6206 = vpop.f32.mrf.mxu0
        %v6207 = vpop.f32.mrf.mxu0
        %v6208 = vadd.f32 0.0, %v6207
        %v6209 = vpop.f32.mrf.mxu0
        %6210 = vdwg.mxu0
        %v6211 = vadd.f32 %v5014, %v6085
        %v6212 = vadd.f32 %v5017, %v6088
        %v6213 = vadd.f32 %v5022, %v6093
        %v6214 = vadd.f32 %v5025, %v6096
        %v6215 = vadd.f32 %v5030, %v6101
        %v6216 = vadd.f32 %v5033, %v6104
        %v6217 = vadd.f32 %v5038, %v6109
        %v6218 = vadd.f32 %v5041, %v6112
        %v6219 = vadd.f32 %v5046, %v6117
        %v6220 = vadd.f32 %v5049, %v6120
        %v6221 = vadd.f32 %v5054, %v6125
        %v6222 = vadd.f32 %v5057, %v6128
        %v6223 = vadd.f32 %v5062, %v6133
        %v6224 = vadd.f32 %v5065, %v6136
        %v6225 = vadd.f32 %v5070, %v6141
        %v6226 = vadd.f32 %v5073, %v6144
        %v6227 = vadd.f32 %v5078, %v6149
        %v6228 = vadd.f32 %v5081, %v6152
        %v6229 = vadd.f32 %v5086, %v6157
        %v6230 = vadd.f32 %v5089, %v6160
        %v6231 = vadd.f32 %v5094, %v6165
        %v6232 = vadd.f32 %v5097, %v6168
        %v6233 = vadd.f32 %v5102, %v6173
        %v6234 = vadd.f32 %v5105, %v6176
        %v6235 = vadd.f32 %v5110, %v6181
        %v6236 = vadd.f32 %v5113, %v6184
        %v6237 = vadd.f32 %v5118, %v6189
        %v6238 = vadd.f32 %v5121, %v6192
        %v6239 = vadd.f32 %v5126, %v6197
        %v6240 = vadd.f32 %v5129, %v6200
        %v6241 = vadd.f32 %v5134, %v6205
        %v6242 = vadd.f32 %v5137, %v6208
        %v6243 = vpack.c.bf16 %v6212, %v6211
        %v6244 = vpack.c.bf16 %v6214, %v6213
        %v6245 = vpack.c.bf16 %v6216, %v6215
        %v6246 = vpack.c.bf16 %v6218, %v6217
        %v6247 = vpack.c.bf16 %v6220, %v6219
        %v6248 = vpack.c.bf16 %v6222, %v6221
        %v6249 = vpack.c.bf16 %v6224, %v6223
        %v6250 = vpack.c.bf16 %v6226, %v6225
        %v6251 = vpack.c.bf16 %v6228, %v6227
        %v6252 = vpack.c.bf16 %v6230, %v6229
        %v6253 = vpack.c.bf16 %v6232, %v6231
        %v6254 = vpack.c.bf16 %v6234, %v6233
        %v6255 = vpack.c.bf16 %v6236, %v6235
        %v6256 = vpack.c.bf16 %v6238, %v6237
        %v6257 = vpack.c.bf16 %v6240, %v6239
        %v6258 = vpack.c.bf16 %v6242, %v6241
        %v6275 = vunpack.c.l.b16 %v6243
        %v6276 = vunpack.c.h.b16 %v6243
        %v6277 = vunpack.c.l.b16 %v6244
        %v6278 = vunpack.c.h.b16 %v6244
        %v6279 = vunpack.c.l.b16 %v6245
        %v6280 = vunpack.c.h.b16 %v6245
        %v6281 = vunpack.c.l.b16 %v6246
        %v6282 = vunpack.c.h.b16 %v6246
        %v6283 = vunpack.c.l.b16 %v6247
        %v6284 = vunpack.c.h.b16 %v6247
        %v6285 = vunpack.c.l.b16 %v6248
        %v6286 = vunpack.c.h.b16 %v6248
        %v6287 = vunpack.c.l.b16 %v6249
        %v6288 = vunpack.c.h.b16 %v6249
        %v6289 = vunpack.c.l.b16 %v6250
        %v6290 = vunpack.c.h.b16 %v6250
        %v6291 = vunpack.c.l.b16 %v6251
        %v6292 = vunpack.c.h.b16 %v6251
        %v6293 = vunpack.c.l.b16 %v6252
        %v6294 = vunpack.c.h.b16 %v6252
        %v6295 = vunpack.c.l.b16 %v6253
        %v6296 = vunpack.c.h.b16 %v6253
        %v6297 = vunpack.c.l.b16 %v6254
        %v6298 = vunpack.c.h.b16 %v6254
        %v6299 = vunpack.c.l.b16 %v6255
        %v6300 = vunpack.c.h.b16 %v6255
        %v6301 = vunpack.c.l.b16 %v6256
        %v6302 = vunpack.c.h.b16 %v6256
        %v6303 = vunpack.c.l.b16 %v6257
        %v6304 = vunpack.c.h.b16 %v6257
        %v6305 = vunpack.c.l.b16 %v6258
        %v6306 = vunpack.c.h.b16 %v6258
        %v6307 = vpack.c.b16 %v6275, %v6275
        %v6308 = vpack.c.b16 %v6276, %v6276
        %v6309 = vpack.c.b16 %v6277, %v6277
        %v6310 = vpack.c.b16 %v6278, %v6278
        %v6311 = vpack.c.b16 %v6279, %v6279
        %v6312 = vpack.c.b16 %v6280, %v6280
        %v6313 = vpack.c.b16 %v6281, %v6281
        %v6314 = vpack.c.b16 %v6282, %v6282
        %v6315 = vpack.c.b16 %v6283, %v6283
        %v6316 = vpack.c.b16 %v6284, %v6284
        %v6317 = vpack.c.b16 %v6285, %v6285
        %v6318 = vpack.c.b16 %v6286, %v6286
        %v6319 = vpack.c.b16 %v6287, %v6287
        %v6320 = vpack.c.b16 %v6288, %v6288
        %v6321 = vpack.c.b16 %v6289, %v6289
        %v6322 = vpack.c.b16 %v6290, %v6290
        %v6323 = vpack.c.b16 %v6291, %v6291
        %v6324 = vpack.c.b16 %v6292, %v6292
        %v6325 = vpack.c.b16 %v6293, %v6293
        %v6326 = vpack.c.b16 %v6294, %v6294
        %v6327 = vpack.c.b16 %v6295, %v6295
        %v6328 = vpack.c.b16 %v6296, %v6296
        %v6329 = vpack.c.b16 %v6297, %v6297
        %v6330 = vpack.c.b16 %v6298, %v6298
        %v6331 = vpack.c.b16 %v6299, %v6299
        %v6332 = vpack.c.b16 %v6300, %v6300
        %v6333 = vpack.c.b16 %v6301, %v6301
        %v6334 = vpack.c.b16 %v6302, %v6302
        %v6335 = vpack.c.b16 %v6303, %v6303
        %v6336 = vpack.c.b16 %v6304, %v6304
        %v6337 = vpack.c.b16 %v6305, %v6305
        %v6338 = vpack.c.b16 %v6306, %v6306
        %vm6371 = vcmask 257024
        %6372 = vst.msk [vmem:[%s320] sm:$0xf] %vm6371, %v6307
        %6373 = vst.msk [vmem:[%s320 + $0x4] sm:$0xf] %vm6371, %v6308
        %6374 = vst.msk [vmem:[%s320 + $0x8] sm:$0xf] %vm6371, %v6309
        %6375 = vst.msk [vmem:[%s320 + $0xc] sm:$0xf] %vm6371, %v6310
        %6376 = vst.msk [vmem:[%s320 + $0x10] sm:$0xf] %vm6371, %v6311
        %6377 = vst.msk [vmem:[%s320 + $0x14] sm:$0xf] %vm6371, %v6312
        %6378 = vst.msk [vmem:[%s320 + $0x18] sm:$0xf] %vm6371, %v6313
        %6379 = vst.msk [vmem:[%s320 + $0x1c] sm:$0xf] %vm6371, %v6314
        %6380 = vst.msk [vmem:[%s320 + $0x20] sm:$0xf] %vm6371, %v6315
        %6381 = vst.msk [vmem:[%s320 + $0x24] sm:$0xf] %vm6371, %v6316
        %6382 = vst.msk [vmem:[%s320 + $0x28] sm:$0xf] %vm6371, %v6317
        %6383 = vst.msk [vmem:[%s320 + $0x2c] sm:$0xf] %vm6371, %v6318
        %6384 = vst.msk [vmem:[%s320 + $0x30] sm:$0xf] %vm6371, %v6319
        %6385 = vst.msk [vmem:[%s320 + $0x34] sm:$0xf] %vm6371, %v6320
        %6386 = vst.msk [vmem:[%s320 + $0x38] sm:$0xf] %vm6371, %v6321
        %6387 = vst.msk [vmem:[%s320 + $0x3c] sm:$0xf] %vm6371, %v6322
        %6388 = vst.msk [vmem:[%s320 + $0x40] sm:$0xf] %vm6371, %v6323
        %6389 = vst.msk [vmem:[%s320 + $0x44] sm:$0xf] %vm6371, %v6324
        %6390 = vst.msk [vmem:[%s320 + $0x48] sm:$0xf] %vm6371, %v6325
        %6391 = vst.msk [vmem:[%s320 + $0x4c] sm:$0xf] %vm6371, %v6326
        %6392 = vst.msk [vmem:[%s320 + $0x50] sm:$0xf] %vm6371, %v6327
        %6393 = vst.msk [vmem:[%s320 + $0x54] sm:$0xf] %vm6371, %v6328
        %6394 = vst.msk [vmem:[%s320 + $0x58] sm:$0xf] %vm6371, %v6329
        %6395 = vst.msk [vmem:[%s320 + $0x5c] sm:$0xf] %vm6371, %v6330
        %6396 = vst.msk [vmem:[%s320 + $0x60] sm:$0xf] %vm6371, %v6331
        %6397 = vst.msk [vmem:[%s320 + $0x64] sm:$0xf] %vm6371, %v6332
        %6398 = vst.msk [vmem:[%s320 + $0x68] sm:$0xf] %vm6371, %v6333
        %6399 = vst.msk [vmem:[%s320 + $0x6c] sm:$0xf] %vm6371, %v6334
        %6400 = vst.msk [vmem:[%s320 + $0x70] sm:$0xf] %vm6371, %v6335
        %6401 = vst.msk [vmem:[%s320 + $0x74] sm:$0xf] %vm6371, %v6336
        %6402 = vst.msk [vmem:[%s320 + $0x78] sm:$0xf] %vm6371, %v6337
        %6403 = vst.msk [vmem:[%s320 + $0x7c] sm:$0xf] %vm6371, %v6338
        %vm6404 = vcmask 261120
        %v6405 = vsel %vm6404, %v6211, 0.0
        %v6406 = vsel %vm6404, %v6212, 0.0
        %v6407 = vadd.f32 %v6405, %v6406
        %v6408 = vsel %vm6404, %v6213, 0.0
        %v6409 = vadd.f32 %v6407, %v6408
        %v6410 = vsel %vm6404, %v6214, 0.0
        %v6411 = vadd.f32 %v6409, %v6410
        %v6412 = vsel %vm6404, %v6215, 0.0
        %v6413 = vadd.f32 %v6411, %v6412
        %v6414 = vsel %vm6404, %v6216, 0.0
        %v6415 = vadd.f32 %v6413, %v6414
        %v6416 = vsel %vm6404, %v6217, 0.0
        %v6417 = vadd.f32 %v6415, %v6416
        %v6418 = vsel %vm6404, %v6218, 0.0
        %v6419 = vadd.f32 %v6417, %v6418
        %v6420 = vsel %vm6404, %v6219, 0.0
        %v6421 = vadd.f32 %v6419, %v6420
        %v6422 = vsel %vm6404, %v6220, 0.0
        %v6423 = vadd.f32 %v6421, %v6422
        %v6424 = vsel %vm6404, %v6221, 0.0
        %v6425 = vadd.f32 %v6423, %v6424
        %v6426 = vsel %vm6404, %v6222, 0.0
        %v6427 = vadd.f32 %v6425, %v6426
        %v6428 = vsel %vm6404, %v6223, 0.0
        %v6429 = vadd.f32 %v6427, %v6428
        %v6430 = vsel %vm6404, %v6224, 0.0
        %v6431 = vadd.f32 %v6429, %v6430
        %v6432 = vsel %vm6404, %v6225, 0.0
        %v6433 = vadd.f32 %v6431, %v6432
        %v6434 = vsel %vm6404, %v6226, 0.0
        %v6435 = vadd.f32 %v6433, %v6434
        %v6436 = vsel %vm6404, %v6227, 0.0
        %v6437 = vadd.f32 %v6435, %v6436
        %v6438 = vsel %vm6404, %v6228, 0.0
        %v6439 = vadd.f32 %v6437, %v6438
        %v6440 = vsel %vm6404, %v6229, 0.0
        %v6441 = vadd.f32 %v6439, %v6440
        %v6442 = vsel %vm6404, %v6230, 0.0
        %v6443 = vadd.f32 %v6441, %v6442
        %v6444 = vsel %vm6404, %v6231, 0.0
        %v6445 = vadd.f32 %v6443, %v6444
        %v6446 = vsel %vm6404, %v6232, 0.0
        %v6447 = vadd.f32 %v6445, %v6446
        %v6448 = vsel %vm6404, %v6233, 0.0
        %v6449 = vadd.f32 %v6447, %v6448
        %v6450 = vsel %vm6404, %v6234, 0.0
        %v6451 = vadd.f32 %v6449, %v6450
        %v6452 = vsel %vm6404, %v6235, 0.0
        %v6453 = vadd.f32 %v6451, %v6452
        %v6454 = vsel %vm6404, %v6236, 0.0
        %v6455 = vadd.f32 %v6453, %v6454
        %v6456 = vsel %vm6404, %v6237, 0.0
        %v6457 = vadd.f32 %v6455, %v6456
        %v6458 = vsel %vm6404, %v6238, 0.0
        %v6459 = vadd.f32 %v6457, %v6458
        %v6460 = vsel %vm6404, %v6239, 0.0
        %v6461 = vadd.f32 %v6459, %v6460
        %v6462 = vsel %vm6404, %v6240, 0.0
        %v6463 = vadd.f32 %v6461, %v6462
        %v6464 = vsel %vm6404, %v6241, 0.0
        %v6465 = vadd.f32 %v6463, %v6464
        %v6466 = vsel %vm6404, %v6242, 0.0
        %v6467 = vadd.f32 %v6465, %v6466
        %v6468 = vrot.slane %v6467, 4
        %v6469 = vadd.f32 %v6467, %v6468
        %v6470 = vrot.slane %v6469, 2
        %v6471 = vadd.f32 %v6469, %v6470
        %v6472 = vrot.slane %v6471, 1
        %v6473 = vadd.f32 %v6471, %v6472
        %v6474 = vmul.f32 %v6211, %v6211
        %v6475 = vmul.f32 %v6212, %v6212
        %v6476 = vmul.f32 %v6213, %v6213
        %v6477 = vmul.f32 %v6214, %v6214
        %v6478 = vmul.f32 %v6215, %v6215
        %v6479 = vmul.f32 %v6216, %v6216
        %v6480 = vmul.f32 %v6217, %v6217
        %v6481 = vmul.f32 %v6218, %v6218
        %v6482 = vmul.f32 %v6219, %v6219
        %v6483 = vmul.f32 %v6220, %v6220
        %v6484 = vmul.f32 %v6221, %v6221
        %v6485 = vmul.f32 %v6222, %v6222
        %v6486 = vmul.f32 %v6223, %v6223
        %v6487 = vmul.f32 %v6224, %v6224
        %v6488 = vmul.f32 %v6225, %v6225
        %v6489 = vmul.f32 %v6226, %v6226
        %v6490 = vmul.f32 %v6227, %v6227
        %v6491 = vmul.f32 %v6228, %v6228
        %v6492 = vmul.f32 %v6229, %v6229
        %v6493 = vmul.f32 %v6230, %v6230
        %v6494 = vmul.f32 %v6231, %v6231
        %v6495 = vmul.f32 %v6232, %v6232
        %v6496 = vmul.f32 %v6233, %v6233
        %v6497 = vmul.f32 %v6234, %v6234
        %v6498 = vmul.f32 %v6235, %v6235
        %v6499 = vmul.f32 %v6236, %v6236
        %v6500 = vmul.f32 %v6237, %v6237
        %v6501 = vmul.f32 %v6238, %v6238
        %v6502 = vmul.f32 %v6239, %v6239
        %v6503 = vmul.f32 %v6240, %v6240
        %v6504 = vmul.f32 %v6241, %v6241
        %v6505 = vmul.f32 %v6242, %v6242
        %v6506 = vsel %vm6404, %v6474, 0.0
        %v6507 = vsel %vm6404, %v6475, 0.0
        %v6508 = vadd.f32 %v6506, %v6507
        %v6509 = vsel %vm6404, %v6476, 0.0
        %v6510 = vadd.f32 %v6508, %v6509
        %v6511 = vsel %vm6404, %v6477, 0.0
        %v6512 = vadd.f32 %v6510, %v6511
        %v6513 = vsel %vm6404, %v6478, 0.0
        %v6514 = vadd.f32 %v6512, %v6513
        %v6515 = vsel %vm6404, %v6479, 0.0
        %v6516 = vadd.f32 %v6514, %v6515
        %v6517 = vsel %vm6404, %v6480, 0.0
        %v6518 = vadd.f32 %v6516, %v6517
        %v6519 = vsel %vm6404, %v6481, 0.0
        %v6520 = vadd.f32 %v6518, %v6519
        %v6521 = vsel %vm6404, %v6482, 0.0
        %v6522 = vadd.f32 %v6520, %v6521
        %v6523 = vsel %vm6404, %v6483, 0.0
        %v6524 = vadd.f32 %v6522, %v6523
        %v6525 = vsel %vm6404, %v6484, 0.0
        %v6526 = vadd.f32 %v6524, %v6525
        %v6527 = vsel %vm6404, %v6485, 0.0
        %v6528 = vadd.f32 %v6526, %v6527
        %v6529 = vsel %vm6404, %v6486, 0.0
        %v6530 = vadd.f32 %v6528, %v6529
        %v6531 = vsel %vm6404, %v6487, 0.0
        %v6532 = vadd.f32 %v6530, %v6531
        %v6533 = vsel %vm6404, %v6488, 0.0
        %v6534 = vadd.f32 %v6532, %v6533
        %v6535 = vsel %vm6404, %v6489, 0.0
        %v6536 = vadd.f32 %v6534, %v6535
        %v6537 = vsel %vm6404, %v6490, 0.0
        %v6538 = vadd.f32 %v6536, %v6537
        %v6539 = vsel %vm6404, %v6491, 0.0
        %v6540 = vadd.f32 %v6538, %v6539
        %v6541 = vsel %vm6404, %v6492, 0.0
        %v6542 = vadd.f32 %v6540, %v6541
        %v6543 = vsel %vm6404, %v6493, 0.0
        %v6544 = vadd.f32 %v6542, %v6543
        %v6545 = vsel %vm6404, %v6494, 0.0
        %v6546 = vadd.f32 %v6544, %v6545
        %v6547 = vsel %vm6404, %v6495, 0.0
        %v6548 = vadd.f32 %v6546, %v6547
        %v6549 = vsel %vm6404, %v6496, 0.0
        %v6550 = vadd.f32 %v6548, %v6549
        %v6551 = vsel %vm6404, %v6497, 0.0
        %v6552 = vadd.f32 %v6550, %v6551
        %v6553 = vsel %vm6404, %v6498, 0.0
        %v6554 = vadd.f32 %v6552, %v6553
        %v6555 = vsel %vm6404, %v6499, 0.0
        %v6556 = vadd.f32 %v6554, %v6555
        %v6557 = vsel %vm6404, %v6500, 0.0
        %v6558 = vadd.f32 %v6556, %v6557
        %v6559 = vsel %vm6404, %v6501, 0.0
        %v6560 = vadd.f32 %v6558, %v6559
        %v6561 = vsel %vm6404, %v6502, 0.0
        %v6562 = vadd.f32 %v6560, %v6561
        %v6563 = vsel %vm6404, %v6503, 0.0
        %v6564 = vadd.f32 %v6562, %v6563
        %v6565 = vsel %vm6404, %v6504, 0.0
        %v6566 = vadd.f32 %v6564, %v6565
        %v6567 = vsel %vm6404, %v6505, 0.0
        %v6568 = vadd.f32 %v6566, %v6567
        %v6569 = vrot.slane %v6568, 4
        %v6570 = vadd.f32 %v6568, %v6569
        %v6571 = vrot.slane %v6570, 2
        %v6572 = vadd.f32 %v6570, %v6571
        %v6573 = vrot.slane %v6572, 1
        %v6574 = vadd.f32 %v6572, %v6573
        %vm6575 = vcmask 1040384
        %v6576 = vsel %vm6575, %v6473, %v6574
        %vm6577 = vcmask 254976
        %6578 = vst.msk [vmem:[%s297] sm:$0x3] %vm6577, %v6576
        %p6579 = scmp.lt.s32.totalorder %s25, 1
        %s6580 = scalar_select %p6579, %s25, 1
        %p6581 = scmp.lt.s32.totalorder %s26, 1
        %s6582 = scalar_select %p6581, %s26, 1
        %s6583 = smul.addr %s6582, 32
        %s6584 = smul.addr %s6580, 64
        %s6585 = sadd.s32 %s6583, %s6584
        %s6586 = smul.addr %s6585, 4
        %s6587 = scalar_lea.vmem %s5, %s6586
        %s6588 = sand.u32 %s188, 1
        %s6589 = scalar_lea.sflag [#allocation4], %s6588
        %s6590 = sand.u32 %s188, 1
        %s6591 = smul.addr %s6590, 2
        %s6592 = scalar_lea.vmem [#allocation3], %s6591
        // Predicated region
        $region41: #{tpu_custom_call.1} parent=39 // pred_check
          %p6593 = pneg %p170
        $region42: #{tpu_custom_call.1} parent=39 // pred_check_branch
          %6595 = sbr.rel (%p6593) target = $region44
        $region43: #{tpu_custom_call.1} parent=39 // pred_region
          _
        $region44: #{tpu_custom_call.1} parent=39 // pred_fallthru
          _
        // Predicated region
        $region45: #{tpu_custom_call.1} parent=39 // pred_check
          %p6596 = pneg %p198
        $region46: #{tpu_custom_call.1} parent=39 // pred_check_branch
          %6598 = sbr.rel (%p6596) target = $region48
        $region47: #{tpu_custom_call.1} parent=39 // pred_region
          %s6600 = ssub.s32 32, 32
          %6601 = vsyncadd %s6589, %s6600
          %s6602 = smul.addr %s25, 2
          %s6603 = sadd.s32 %s26, %s6602
          %s6604 = smul.addr %s6603, 32
          %s6605 = scalar_lea.hbm %s6, %s6604
          %s6607 = sshll.u32 %s6592, 4
          %s6608 = int_to_ptr.vmem [resolvable:$true] %s6607
          %6610 = dma.vmem_to_hbm [thread:$0]  %s6608, 32, %s6605, %s6589
        $region48: #{tpu_custom_call.1} parent=39 // pred_fallthru
          _
      $region40: #{tpu_custom_call.1} parent=5 // pred_fallthru
        _
      %p6611 = scmp.le.s32.totalorder 2, %s16
      // Predicated region
      $region49: #{tpu_custom_call.1} parent=5 // pred_check
        %p6612 = pneg %p6611
      $region50: #{tpu_custom_call.1} parent=5 // pred_check_branch
        %6614 = sbr.rel (%p6612) target = $region52
      $region51: #{tpu_custom_call.1} parent=5 // pred_region
        %s6615 = ssub.s32 %s16, 2
        // Predicated region
        $region53: #{tpu_custom_call.1} parent=51 // pred_check
          %p6616 = pneg %p176
        $region54: #{tpu_custom_call.1} parent=51 // pred_check_branch
          %6618 = sbr.rel (%p6616) target = $region56
        $region55: #{tpu_custom_call.1} parent=51 // pred_region
          %p6619 = scmp.lt.s32.totalorder %s27, 1
          %s6620 = scalar_select %p6619, %s27, 1
          %p6621 = scmp.lt.s32.totalorder %s28, 1
          %s6622 = scalar_select %p6621, %s28, 1
          %s6623 = smul.addr %s6622, 32
          %s6624 = smul.addr %s6620, 64
          %s6625 = sadd.s32 %s6623, %s6624
          %s6626 = smul.addr %s6625, 4
          %s6627 = scalar_lea.vmem %s5, %s6626
        $region56: #{tpu_custom_call.1} parent=51 // pred_fallthru
          _
        // Predicated region
        $region57: #{tpu_custom_call.1} parent=51 // pred_check
          %p6628 = pneg %p204
        $region58: #{tpu_custom_call.1} parent=51 // pred_check_branch
          %6630 = sbr.rel (%p6628) target = $region60
        $region59: #{tpu_custom_call.1} parent=51 // pred_region
          %s6631 = sand.u32 %s189, 1
          %s6632 = scalar_lea.sflag [#allocation4], %s6631
          %s6633 = sand.u32 %s189, 1
          %s6634 = smul.addr %s6633, 2
          %s6635 = scalar_lea.vmem [#allocation3], %s6634
          %6636 = dma.done %s6632, 32
        $region60: #{tpu_custom_call.1} parent=51 // pred_fallthru
          _
      $region52: #{tpu_custom_call.1} parent=5 // pred_fallthru
        _
    $region6: #{tpu_custom_call.1} parent=1 // loop_footer
      %s20 = sadd.s32 1, %s16
    $region7: #{tpu_custom_call.1} parent=1 // loop_footer_branch
      %15 = sbr.rel target = $region3
    $region8: #{tpu_custom_call.1} parent=1 // loop_exit
      _
    %6637 = vsyncpa [#allocation4], 1
    %s6638 = scalar_lea.sflag [#allocation4], 1
    %6639 = vsyncpa %s6638, 1

</llo_original>
